<compile_context>
chip_gen: v5e
topology: v5e:2x2
jax: 0.10.0
libtpu: 0.0.40
codegen_flags: <defaults>
</compile_context>

<pallas_src>
import functools
import math

import jax
import jax.numpy as jnp
from jax import lax
from jax.experimental import pallas as pl
from jax.experimental.pallas import tpu as pltpu


# ----------------------------------------------------------------------------
# helpers
# ----------------------------------------------------------------------------
def _round_up(x, n):
    return ((x + n - 1) // n) * n


def _act(t, activation_type):
    if activation_type == 'ReLU':
        return jnp.maximum(t, 0.0)
    if activation_type == 'ReLU3':
        return jnp.maximum(t * t * t, 0.0)
    if activation_type == 'sigmoid':
        return jax.nn.sigmoid(t)
    if activation_type == 'tanh':
        return jnp.tanh(t)
    if activation_type == 'sin':
        return jnp.sin(t)
    raise ValueError(f"unknown activation_type: {activation_type}")


# ----------------------------------------------------------------------------
# kernel bodies
# ----------------------------------------------------------------------------
def _mlp_block(xT, b4, w1, b1, w2, b2, w3, b3, w4sel, *, activation_type,
               mxu_precision):
    """xT: (k*d, TNk) f32 — features on sublanes (feature-major packing of k
    batch groups), packed batch on lanes.  Weights are block-diagonal so the
    MXU contracts over k*m rows.  Returns the packed (k, TNk) outputs."""
    if mxu_precision == 'bf16':
        def dot(w, a):  # weights already bf16; cast activations at the MXU input
            return jnp.dot(w, a.astype(w.dtype), preferred_element_type=jnp.float32)
    else:
        def dot(w, a):  # true f32 matmuls
            return jnp.dot(w, a, preferred_element_type=jnp.float32,
                           precision=lax.Precision.HIGHEST)

    h = _act(dot(w1, xT) + b1, activation_type)     # (k*m, TNk)
    h = _act(dot(w2, h) + b2, activation_type)      # (k*m, TNk)
    h = _act(dot(w3, h) + b3, activation_type)      # (k*m, TNk)
    return dot(w4sel, h) + b4                       # (k, TNk) lane-dense rows


def _mlp_kernel(x_ref, b4_ref, w1_ref, b1_ref, w2_ref, b2_ref, w3_ref, b3_ref,
                w4_ref, o_ref, *, activation_type, mxu_precision):
    o_ref[...] = _mlp_block(
        x_ref[...], b4_ref[0],
        w1_ref[...], b1_ref[...], w2_ref[...], b2_ref[...],
        w3_ref[...], b3_ref[...], w4_ref[...],
        activation_type=activation_type, mxu_precision=mxu_precision)


def _mlp_probe_kernel(x_ref, c_ref, b4_ref, w1_ref, b1_ref, w2_ref, b2_ref,
                      w3_ref, b3_ref, w4_ref, o_ref, *,
                      activation_type, mxu_precision, k, d, spn):
    xT = x_ref[...]                                 # (k*d, TNk) f32
    y = _mlp_block(
        xT, b4_ref[0],
        w1_ref[...], b1_ref[...], w2_ref[...], b2_ref[...],
        w3_ref[...], b3_ref[...], w4_ref[...],
        activation_type=activation_type, mxu_precision=mxu_precision)

    # Structure probing, fused and vectorized over all k*d rows at once:
    #   probing = prod_f  sum_i c[i] * cos((i+1)*pi*x_f)
    # cos(pi*x) computed in-kernel (EUP); higher harmonics via the Chebyshev
    # recurrence T_{i+1} = 2*cos(pi*x)*T_i - T_{i-1} (pure VPU mul/add).
    xc = jnp.cos(math.pi * xT)                      # (k*d, TNk)
    t_prev = jnp.ones_like(xc)                      # T_0
    t_cur = xc                                      # T_1
    temp = c_ref[0] * t_cur
    for i in range(1, spn):
        t_next = 2.0 * xc * t_cur - t_prev
        t_prev, t_cur = t_cur, t_next
        temp = temp + c_ref[i] * t_cur              # c from SMEM: scalar * vector

    # Rows are feature-major (f*k + j): the per-feature slab [f*k:(f+1)*k, :] is
    # contiguous sublanes and lines up with the k output rows -> cheap product.
    probing = temp[0:k, :]
    for f in range(1, d):
        probing = probing * temp[f * k:(f + 1) * k, :]

    o_ref[...] = y + probing


# ----------------------------------------------------------------------------
# wrapper
# ----------------------------------------------------------------------------
def network_forward(x, params, *, activation_type='ReLU',
                    structure_probing_num=0, c=None, block_n=8192,
                    mxu_precision='bf16', mxu_pack=None):
    """x: (N, d) float32.  params: torch-layout weights (out, in) / column biases."""
    x = jnp.asarray(x, jnp.float32)
    N, d = x.shape
    m = params["w2"].shape[0]

    # Batch-packing factor: stack k batch groups along sublanes so the MXU
    # contraction / output rows approach 256 (full depth on v6e/v7x, 2 passes on v5e).
    k = max(1, 256 // m) if mxu_pack is None else int(mxu_pack)
    lane_quant = k * 128                       # TN granularity (TNk multiple of 128)

    TN = _round_up(min(max(block_n, lane_quant), _round_up(N, lane_quant)), lane_quant)
    Np = _round_up(N, TN)
    G = Np // TN
    # v7x has 2 TensorCores: prefer >= 2 grid steps when the tile can be split.
    if G == 1 and TN >= 2 * lane_quant:
        TN = _round_up(TN // 2, lane_quant)
        Np = _round_up(N, TN)
        G = Np // TN
    TNk = TN // k

    # ---- pack x: row f*k + j  (feature-major), col g*TNk + c  <- x[g*TN + j*TNk + c, f]
    x_pad = x if Np == N else jnp.zeros((Np, d), x.dtype).at[:N].set(x)
    x_packed = (x_pad.reshape(G, k, TNk, d)
                .transpose(3, 1, 0, 2)          # (d, k, G, TNk)
                .reshape(d * k, G * TNk))

    # ---- block-diagonal weights (built once; VMEM-resident via constant index_map)
    eye_k = jnp.eye(k, dtype=jnp.float32)
    w1_bd = jnp.kron(eye_k, params["w1"])                                   # (k*m, k*d)
    w1_bd = w1_bd.reshape(k * m, k, d).transpose(0, 2, 1).reshape(k * m, k * d)  # feature-major cols
    w2_bd = jnp.kron(eye_k, params["w2"])                                   # (k*m, k*m)
    w3_bd = jnp.kron(eye_k, params["w3"])                                   # (k*m, k*m)
    w4_sel = jnp.kron(eye_k, params["w4"].reshape(1, m))                    # (k,  k*m)
    if mxu_precision == 'bf16':
        w1_bd, w2_bd, w3_bd, w4_sel = (t.astype(jnp.bfloat16)
                                       for t in (w1_bd, w2_bd, w3_bd, w4_sel))
    b1_t = jnp.tile(params["b1"].astype(jnp.float32), (k, 1))               # (k*m, 1)
    b2_t = jnp.tile(params["b2"].astype(jnp.float32), (k, 1))
    b3_t = jnp.tile(params["b3"].astype(jnp.float32), (k, 1))
    b4_s = params["b4"].astype(jnp.float32).reshape(1)                      # SMEM scalar

    weight_ops = (w1_bd, b1_t, w2_bd, b2_t, w3_bd, b3_t, w4_sel)
    weight_specs = [pl.BlockSpec(w.shape, lambda i: (0, 0)) for w in weight_ops]

    x_spec = pl.BlockSpec((k * d, TNk), lambda i: (0, i))                   # lane-dense input
    out_spec = pl.BlockSpec((k, TNk), lambda i: (0, i))                     # lane-dense output
    smem_spec = pl.BlockSpec(memory_space=pltpu.MemorySpace.SMEM)
    out_shape = jax.ShapeDtypeStruct((k, G * TNk), jnp.float32)

    # ---- scoped-VMEM budget: double-buffered x/out + weights + live intermediates
    itemsize_w = 2 if mxu_precision == 'bf16' else 4
    w_elems = int(w1_bd.size + w2_bd.size + w3_bd.size + w4_sel.size)
    est = (2 * k * d * TNk * 4            # x double buffer
           + 2 * k * TNk * 4              # out double buffer
           + 2 * w_elems * itemsize_w     # weights
           + 2 * 3 * k * m * 4            # biases
           + 8 * k * m * TNk * 4)         # live (k*m, TNk) f32 intermediates + slack
    if structure_probing_num:
        est += 5 * k * d * TNk * 4        # xc / T_k / temp / probing
    vmem_bytes = int(min(48 << 20, max(32 << 20, est + (8 << 20))))

    cparams = pltpu.CompilerParams(dimension_semantics=("parallel",),
                                   vmem_limit_bytes=vmem_bytes)

    if structure_probing_num == 0:
        kernel = functools.partial(_mlp_kernel, activation_type=activation_type,
                                   mxu_precision=mxu_precision)
        y_packed = pl.pallas_call(
            kernel,
            out_shape=out_shape,
            grid=(G,),
            in_specs=[x_spec, smem_spec] + weight_specs,
            out_specs=out_spec,
            compiler_params=cparams,
        )(x_packed, b4_s, *weight_ops)
    else:
        c_arr = jnp.asarray(c, jnp.float32).reshape(structure_probing_num)
        kernel = functools.partial(_mlp_probe_kernel,
                                   activation_type=activation_type,
                                   mxu_precision=mxu_precision,
                                   k=k, d=d, spn=structure_probing_num)
        y_packed = pl.pallas_call(
            kernel,
            out_shape=out_shape,
            grid=(G,),
            in_specs=[x_spec, smem_spec, smem_spec] + weight_specs,
            out_specs=out_spec,
            compiler_params=cparams,
        )(x_packed, c_arr, b4_s, *weight_ops)

    # unpack: y_packed[j, g*TNk + c]  ->  y[g*TN + j*TNk + c]
    y = (y_packed.reshape(k, G, TNk)
         .transpose(1, 0, 2)
         .reshape(Np))
    return y[:N]


# ----------------------------------------------------------------------------
# params (torch.nn.Linear-style init, stored in torch (out, in) layout)
# ----------------------------------------------------------------------------
def init_params(key, d, m, initial_constant='none'):
    ks = jax.random.split(key, 8)

    def linear(kw, kb, fan_in, fan_out):
        bound = 1.0 / math.sqrt(fan_in)
        w = jax.random.uniform(kw, (fan_out, fan_in), jnp.float32, -bound, bound)
        b = jax.random.uniform(kb, (fan_out, 1), jnp.float32, -bound, bound)
        return w, b

    w1, b1 = linear(ks[0], ks[1], d, m)
    w2, b2 = linear(ks[2], ks[3], m, m)
    w3, b3 = linear(ks[4], ks[5], m, m)
    w4, b4 = linear(ks[6], ks[7], m, 1)
    if initial_constant != 'none':
        b4 = jnp.full_like(b4, float(initial_constant))
    return {"w1": w1, "b1": b1, "w2": w2, "b2": b2,
            "w3": w3, "b3": b3, "w4": w4.T, "b4": b4}   # w4 stored as (m, 1)


# ----------------------------------------------------------------------------
# pure-JAX reference (mirrors the torch forward; f32-exact matmuls)
# ----------------------------------------------------------------------------
def reference_forward(x, params, *, activation_type='ReLU',
                      structure_probing_num=0, c=None):
    P = lax.Precision.HIGHEST
    a = lambda t: _act(t, activation_type)
    y = a(jnp.dot(x, params["w1"].T, precision=P) + params["b1"][:, 0])
    y = a(jnp.dot(y, params["w2"].T, precision=P) + params["b2"][:, 0])
    y = a(jnp.dot(y, params["w3"].T, precision=P) + params["b3"][:, 0])
    y = jnp.dot(y, params["w4"][:, 0], precision=P) + params["b4"][0, 0]
    if structure_probing_num != 0:
        probing = jnp.ones((x.shape[0],), jnp.float32)
        for dd in range(x.shape[1]):
            temp = jnp.zeros((x.shape[0],), jnp.float32)
            for i in range(structure_probing_num):
                temp = temp + c[i] * jnp.cos((i + 1) * math.pi * x[:, dd])
            probing = probing * temp
        y = y + probing
    return y


# ----------------------------------------------------------------------------
# demo / self-check
# ----------------------------------------------------------------------------
if __name__ == "__main__":
    d, m = 8, 32
    key = jax.random.PRNGKey(0)
    kx1, kx2, kx3, kp = jax.random.split(key, 4)
    params = init_params(kp, d, m)

    # Case 1: module defaults (ReLU, no probing), true-f32 MXU path.
    x1 = jax.random.normal(kx1, (256, d), jnp.float32)
    y1 = jax.block_until_ready(network_forward(x1, params, mxu_precision='highest'))
    r1 = reference_forward(x1, params)
    assert y1.shape == (256,)
    assert jnp.allclose(y1, r1, atol=1e-4, rtol=1e-4), float(jnp.max(jnp.abs(y1 - r1)))

    # Case 2: ragged multi-tile batch (padding), fused structure probing,
    #         SMEM-resident c, default bf16 MXU precision.
    N2, spn = 2500, 3
    x2 = jax.random.normal(kx2, (N2, d), jnp.float32)
    c = jnp.array([0.7, -0.4, 0.25], jnp.float32)
    y2 = jax.block_until_ready(
        network_forward(x2, params, structure_probing_num=spn, c=c, block_n=1024))
    r2 = reference_forward(x2, params, structure_probing_num=spn, c=c)
    assert y2.shape == (N2,)
    assert jnp.allclose(y2, r2, atol=1e-2, rtol=1e-2), float(jnp.max(jnp.abs(y2 - r2)))

    # Case 3: alternate activation (tanh), default settings.
    x3 = jax.random.normal(kx3, (300, d), jnp.float32)
    y3 = jax.block_until_ready(network_forward(x3, params, activation_type='tanh'))
    r3 = reference_forward(x3, params, activation_type='tanh')
    assert jnp.allclose(y3, r3, atol=1e-2, rtol=1e-2), float(jnp.max(jnp.abs(y3 - r3)))

    print("KERNEL_OK")
</pallas_src>

<mosaic_0001>
module attributes {stable_mosaic.version = 11 : i64} {
  func.func @_mlp_kernel(%arg0: i32, %arg1: memref<64x128xf32, #tpu.memory_space<vmem>>, %arg2: memref<1xf32, #tpu.memory_space<smem>>, %arg3: memref<256x64xf32, #tpu.memory_space<vmem>>, %arg4: memref<256x1xf32, #tpu.memory_space<vmem>>, %arg5: memref<256x256xf32, #tpu.memory_space<vmem>>, %arg6: memref<256x1xf32, #tpu.memory_space<vmem>>, %arg7: memref<256x256xf32, #tpu.memory_space<vmem>>, %arg8: memref<256x1xf32, #tpu.memory_space<vmem>>, %arg9: memref<8x256xf32, #tpu.memory_space<vmem>>, %arg10: memref<8x128xf32, #tpu.memory_space<vmem>>) attributes {dimension_semantics = [#tpu.dimension_semantics<parallel>], iteration_bounds = array<i64: 1>, scalar_prefetch = 0 : i64, scratch_operands = 0 : i64, tpu.core_type = #tpu.core_type<tc>, window_params = [{transform_indices = @transform_0, window_bounds = array<i64: 64, 128>}, {transform_indices = @transform_1, window_bounds = array<i64: 1>}, {pipeline_mode = #tpu.pipeline_mode<synchronous>, transform_indices = @transform_2, window_bounds = array<i64: 256, 64>}, {pipeline_mode = #tpu.pipeline_mode<synchronous>, transform_indices = @transform_3, window_bounds = array<i64: 256, 1>}, {pipeline_mode = #tpu.pipeline_mode<synchronous>, transform_indices = @transform_4, window_bounds = array<i64: 256, 256>}, {pipeline_mode = #tpu.pipeline_mode<synchronous>, transform_indices = @transform_5, window_bounds = array<i64: 256, 1>}, {pipeline_mode = #tpu.pipeline_mode<synchronous>, transform_indices = @transform_6, window_bounds = array<i64: 256, 256>}, {pipeline_mode = #tpu.pipeline_mode<synchronous>, transform_indices = @transform_7, window_bounds = array<i64: 256, 1>}, {pipeline_mode = #tpu.pipeline_mode<synchronous>, transform_indices = @transform_8, window_bounds = array<i64: 8, 256>}, {transform_indices = @transform_9, window_bounds = array<i64: 8, 128>}]} {
    %c0 = arith.constant 0 : index
    %c0_0 = arith.constant 0 : index
    %0 = vector.load %arg1[%c0, %c0_0] : memref<64x128xf32, #tpu.memory_space<vmem>>, vector<64x128xf32>
    %c0_1 = arith.constant 0 : index
    %1 = memref.load %arg2[%c0_1] : memref<1xf32, #tpu.memory_space<smem>>
    %c0_2 = arith.constant 0 : index
    %c0_3 = arith.constant 0 : index
    %2 = vector.load %arg3[%c0_2, %c0_3] : memref<256x64xf32, #tpu.memory_space<vmem>>, vector<256x64xf32>
    %c0_4 = arith.constant 0 : index
    %c0_5 = arith.constant 0 : index
    %3 = vector.load %arg4[%c0_4, %c0_5] : memref<256x1xf32, #tpu.memory_space<vmem>>, vector<256x1xf32>
    %c0_6 = arith.constant 0 : index
    %c0_7 = arith.constant 0 : index
    %4 = vector.load %arg5[%c0_6, %c0_7] : memref<256x256xf32, #tpu.memory_space<vmem>>, vector<256x256xf32>
    %c0_8 = arith.constant 0 : index
    %c0_9 = arith.constant 0 : index
    %5 = vector.load %arg6[%c0_8, %c0_9] : memref<256x1xf32, #tpu.memory_space<vmem>>, vector<256x1xf32>
    %c0_10 = arith.constant 0 : index
    %c0_11 = arith.constant 0 : index
    %6 = vector.load %arg7[%c0_10, %c0_11] : memref<256x256xf32, #tpu.memory_space<vmem>>, vector<256x256xf32>
    %c0_12 = arith.constant 0 : index
    %c0_13 = arith.constant 0 : index
    %7 = vector.load %arg8[%c0_12, %c0_13] : memref<256x1xf32, #tpu.memory_space<vmem>>, vector<256x1xf32>
    %c0_14 = arith.constant 0 : index
    %c0_15 = arith.constant 0 : index
    %8 = vector.load %arg9[%c0_14, %c0_15] : memref<8x256xf32, #tpu.memory_space<vmem>>, vector<8x256xf32>
    %cst = arith.constant dense<0.000000e+00> : vector<256x128xf32>
    %9 = tpu.matmul %2, %0, %cst {dimension_numbers = #tpu.dot_dimension_numbers<[1], [0], [0], [1], [0, 0, 1, 1], [], []>, precision = #tpu.contract_precision<fp32>} : vector<256x64xf32>, vector<64x128xf32>, vector<256x128xf32> -> vector<256x128xf32>
    %10 = vector.broadcast %3 : vector<256x1xf32> to vector<256x128xf32>
    %11 = arith.addf %9, %10 : vector<256x128xf32>
    %cst_16 = arith.constant 0.000000e+00 : f32
    %12 = vector.broadcast %cst_16 : f32 to vector<256x128xf32>
    %13 = arith.maximumf %11, %12 : vector<256x128xf32>
    %cst_17 = arith.constant dense<0.000000e+00> : vector<256x128xf32>
    %14 = tpu.matmul %4, %13, %cst_17 {dimension_numbers = #tpu.dot_dimension_numbers<[1], [0], [0], [1], [0, 0, 1, 1], [], []>, precision = #tpu.contract_precision<fp32>} : vector<256x256xf32>, vector<256x128xf32>, vector<256x128xf32> -> vector<256x128xf32>
    %15 = vector.broadcast %5 : vector<256x1xf32> to vector<256x128xf32>
    %16 = arith.addf %14, %15 : vector<256x128xf32>
    %cst_18 = arith.constant 0.000000e+00 : f32
    %17 = vector.broadcast %cst_18 : f32 to vector<256x128xf32>
    %18 = arith.maximumf %16, %17 : vector<256x128xf32>
    %cst_19 = arith.constant dense<0.000000e+00> : vector<256x128xf32>
    %19 = tpu.matmul %6, %18, %cst_19 {dimension_numbers = #tpu.dot_dimension_numbers<[1], [0], [0], [1], [0, 0, 1, 1], [], []>, precision = #tpu.contract_precision<fp32>} : vector<256x256xf32>, vector<256x128xf32>, vector<256x128xf32> -> vector<256x128xf32>
    %20 = vector.broadcast %7 : vector<256x1xf32> to vector<256x128xf32>
    %21 = arith.addf %19, %20 : vector<256x128xf32>
    %cst_20 = arith.constant 0.000000e+00 : f32
    %22 = vector.broadcast %cst_20 : f32 to vector<256x128xf32>
    %23 = arith.maximumf %21, %22 : vector<256x128xf32>
    %cst_21 = arith.constant dense<0.000000e+00> : vector<8x128xf32>
    %24 = tpu.matmul %8, %23, %cst_21 {dimension_numbers = #tpu.dot_dimension_numbers<[1], [0], [0], [1], [0, 0, 1, 1], [], []>, precision = #tpu.contract_precision<fp32>} : vector<8x256xf32>, vector<256x128xf32>, vector<8x128xf32> -> vector<8x128xf32>
    %25 = vector.broadcast %1 : f32 to vector<8x128xf32>
    %26 = arith.addf %24, %25 : vector<8x128xf32>
    %c0_22 = arith.constant 0 : index
    %c0_23 = arith.constant 0 : index
    %27 = vector.load %arg10[%c0_22, %c0_23] : memref<8x128xf32, #tpu.memory_space<vmem>>, vector<8x128xf32>
    tpu.vector_store %arg10[%c0_22, %c0_23], %26 {strides = array<i32>} : memref<8x128xf32, #tpu.memory_space<vmem>>, vector<8x128xf32>,
    return
  }
  func.func @transform_0(%arg0: i32) -> (i32, i32) {
    %c0_i32 = arith.constant 0 : i32
    %c0_i32_0 = arith.constant 0 : i32
    return %c0_i32, %arg0 : i32, i32
  }
  func.func @transform_1(%arg0: i32) -> i32 {
    %c0_i32 = arith.constant 0 : i32
    %c0_i32_0 = arith.constant 0 : i32
    return %c0_i32 : i32
  }
  func.func @transform_2(%arg0: i32) -> (i32, i32) {
    %c0_i32 = arith.constant 0 : i32
    %c0_i32_0 = arith.constant 0 : i32
    %c0_i32_1 = arith.constant 0 : i32
    return %c0_i32, %c0_i32_0 : i32, i32
  }
  func.func @transform_3(%arg0: i32) -> (i32, i32) {
    %c0_i32 = arith.constant 0 : i32
    %c0_i32_0 = arith.constant 0 : i32
    %c0_i32_1 = arith.constant 0 : i32
    return %c0_i32, %c0_i32_0 : i32, i32
  }
  func.func @transform_4(%arg0: i32) -> (i32, i32) {
    %c0_i32 = arith.constant 0 : i32
    %c0_i32_0 = arith.constant 0 : i32
    %c0_i32_1 = arith.constant 0 : i32
    return %c0_i32, %c0_i32_0 : i32, i32
  }
  func.func @transform_5(%arg0: i32) -> (i32, i32) {
    %c0_i32 = arith.constant 0 : i32
    %c0_i32_0 = arith.constant 0 : i32
    %c0_i32_1 = arith.constant 0 : i32
    return %c0_i32, %c0_i32_0 : i32, i32
  }
  func.func @transform_6(%arg0: i32) -> (i32, i32) {
    %c0_i32 = arith.constant 0 : i32
    %c0_i32_0 = arith.constant 0 : i32
    %c0_i32_1 = arith.constant 0 : i32
    return %c0_i32, %c0_i32_0 : i32, i32
  }
  func.func @transform_7(%arg0: i32) -> (i32, i32) {
    %c0_i32 = arith.constant 0 : i32
    %c0_i32_0 = arith.constant 0 : i32
    %c0_i32_1 = arith.constant 0 : i32
    return %c0_i32, %c0_i32_0 : i32, i32
  }
  func.func @transform_8(%arg0: i32) -> (i32, i32) {
    %c0_i32 = arith.constant 0 : i32
    %c0_i32_0 = arith.constant 0 : i32
    %c0_i32_1 = arith.constant 0 : i32
    return %c0_i32, %c0_i32_0 : i32, i32
  }
  func.func @transform_9(%arg0: i32) -> (i32, i32) {
    %c0_i32 = arith.constant 0 : i32
    %c0_i32_0 = arith.constant 0 : i32
    return %c0_i32, %arg0 : i32, i32
  }
}

</mosaic_0001>

<llo_original>
// kernel: tpu_custom_call.1
$region0: #{tpu_custom_call.1}
  #allocation0 [shape = 'u32[]', space=smem, size = 0x4, offset = 0x4, fixed_abs, tag = 'smem constant byte address 0x4 - core index']
  #allocation1 [shape = 'u32[72,128]{1,0:T(1,128)}', space=vmem, size = 0x9000, scoped, tag = 'internal scratch']
  #allocation2 [shape = 'f32[1]{0:T(128)S(6)}', space=smem, size = 0x200, scoped, tag = 'scoped memory for tpu_custom_call.1']
  %s0 = inlined_call_operand.vmem [shape: f32[64,128], index: 0, kind: input, shape index: {}]
  %s1 = inlined_call_operand.<no memory space> [shape: f32[1], index: 1, kind: input, shape index: {}]
  %s2 = inlined_call_operand.vmem [shape: f32[256,64], index: 2, kind: input, shape index: {}]
  %s3 = inlined_call_operand.vmem [shape: f32[256,1], index: 3, kind: input, shape index: {}]
  %s4 = inlined_call_operand.vmem [shape: f32[256,256], index: 4, kind: input, shape index: {}]
  %s5 = inlined_call_operand.vmem [shape: f32[256,1], index: 5, kind: input, shape index: {}]
  %s6 = inlined_call_operand.vmem [shape: f32[256,256], index: 6, kind: input, shape index: {}]
  %s7 = inlined_call_operand.vmem [shape: f32[256,1], index: 7, kind: input, shape index: {}]
  %s8 = inlined_call_operand.vmem [shape: f32[8,256], index: 8, kind: input, shape index: {}]
  %s9 = inlined_call_operand.hbm [shape: f32[8,128], index: 9, kind: output, shape index: {}]
  %s10 = sld [smem:[#allocation0]]
  $region46: #{tpu_custom_call.1} parent=0
    _
  %s12 = ssub.s32 1, %s10
  %s13 = scalar_select 0, %s12, %s10
  %14 = sst [smem:[#allocation2]] %s1
  $region1: #{tpu_custom_call.1} parent=0
    #allocation3 [shape = 'u8[4096]{0}', space=vmem, size = 0x1000, scoped, tag = 'output window, operand 0, single buffered']
    #allocation4 [shape = 's32[1]{0}', space=sflag, size = 0x4, scoped, tag = 'scoped memory for tpu_custom_call.1']
    %15 = vsyncpa [#allocation4], 0
    // Predicated region
    $region2: #{tpu_custom_call.1} parent=1 // pred_check
      _
    $region3: #{tpu_custom_call.1} parent=1 // pred_check_branch
      %17 = sbr.rel (0) target = $region5
    $region4: #{tpu_custom_call.1} parent=1 // pred_region
      _
    $region5: #{tpu_custom_call.1} parent=1 // pred_fallthru
      _
    // Predicated region
    $region6: #{tpu_custom_call.1} parent=1 // pred_check
      _
    $region7: #{tpu_custom_call.1} parent=1 // pred_check_branch
      %19 = sbr.rel (0) target = $region9
    $region8: #{tpu_custom_call.1} parent=1 // pred_region
      _
    $region9: #{tpu_custom_call.1} parent=1 // pred_fallthru
      _
    // Predicated region
    $region10: #{tpu_custom_call.1} parent=1 // pred_check
      _
    $region11: #{tpu_custom_call.1} parent=1 // pred_check_branch
      %21 = sbr.rel (0) target = $region13
    $region12: #{tpu_custom_call.1} parent=1 // pred_region
      _
    $region13: #{tpu_custom_call.1} parent=1 // pred_fallthru
      _
    // Predicated region
    $region14: #{tpu_custom_call.1} parent=1 // pred_check
      _
    $region15: #{tpu_custom_call.1} parent=1 // pred_check_branch
      %23 = sbr.rel (0) target = $region17
    $region16: #{tpu_custom_call.1} parent=1 // pred_region
      _
    $region17: #{tpu_custom_call.1} parent=1 // pred_fallthru
      _
    // Predicated region
    $region18: #{tpu_custom_call.1} parent=1 // pred_check
      _
    $region19: #{tpu_custom_call.1} parent=1 // pred_check_branch
      %25 = sbr.rel (0) target = $region21
    $region20: #{tpu_custom_call.1} parent=1 // pred_region
      _
    $region21: #{tpu_custom_call.1} parent=1 // pred_fallthru
      _
    // Predicated region
    $region22: #{tpu_custom_call.1} parent=1 // pred_check
      _
    $region23: #{tpu_custom_call.1} parent=1 // pred_check_branch
      %27 = sbr.rel (0) target = $region25
    $region24: #{tpu_custom_call.1} parent=1 // pred_region
      _
    $region25: #{tpu_custom_call.1} parent=1 // pred_fallthru
      _
    // Predicated region
    $region26: #{tpu_custom_call.1} parent=1 // pred_check
      _
    $region27: #{tpu_custom_call.1} parent=1 // pred_check_branch
      %29 = sbr.rel (0) target = $region29
    $region28: #{tpu_custom_call.1} parent=1 // pred_region
      _
    $region29: #{tpu_custom_call.1} parent=1 // pred_fallthru
      _
    // Predicated region
    $region30: #{tpu_custom_call.1} parent=1 // pred_check
      _
    $region31: #{tpu_custom_call.1} parent=1 // pred_check_branch
      %31 = sbr.rel (0) target = $region33
    $region32: #{tpu_custom_call.1} parent=1 // pred_region
      _
    $region33: #{tpu_custom_call.1} parent=1 // pred_fallthru
      _
    // Predicated region
    $region34: #{tpu_custom_call.1} parent=1 // pred_check
      _
    $region35: #{tpu_custom_call.1} parent=1 // pred_check_branch
      %33 = sbr.rel (0) target = $region37
    $region36: #{tpu_custom_call.1} parent=1 // pred_region
      _
    $region37: #{tpu_custom_call.1} parent=1 // pred_fallthru
      _
    %v34 = vld [vmem:[%s0] sm:$0xff]
    %v35 = vld [vmem:[%s0 + $0x8] sm:$0xff]
    %v36 = vld [vmem:[%s0 + $0x10] sm:$0xff]
    %v37 = vld [vmem:[%s0 + $0x18] sm:$0xff]
    %v38 = vld [vmem:[%s0 + $0x20] sm:$0xff]
    %v39 = vld [vmem:[%s0 + $0x28] sm:$0xff]
    %v40 = vld [vmem:[%s0 + $0x30] sm:$0xff]
    %v41 = vld [vmem:[%s0 + $0x38] sm:$0xff]
    %s42 = sld [smem:[#allocation2]]
    %v43 = vld [vmem:[%s2] sm:$0xff]
    %v44 = vld [vmem:[%s2 + $0x8] sm:$0xff]
    %v45 = vld [vmem:[%s2 + $0x10] sm:$0xff]
    %v46 = vld [vmem:[%s2 + $0x18] sm:$0xff]
    %v47 = vld [vmem:[%s2 + $0x20] sm:$0xff]
    %v48 = vld [vmem:[%s2 + $0x28] sm:$0xff]
    %v49 = vld [vmem:[%s2 + $0x30] sm:$0xff]
    %v50 = vld [vmem:[%s2 + $0x38] sm:$0xff]
    %v51 = vld [vmem:[%s2 + $0x40] sm:$0xff]
    %v52 = vld [vmem:[%s2 + $0x48] sm:$0xff]
    %v53 = vld [vmem:[%s2 + $0x50] sm:$0xff]
    %v54 = vld [vmem:[%s2 + $0x58] sm:$0xff]
    %v55 = vld [vmem:[%s2 + $0x60] sm:$0xff]
    %v56 = vld [vmem:[%s2 + $0x68] sm:$0xff]
    %v57 = vld [vmem:[%s2 + $0x70] sm:$0xff]
    %v58 = vld [vmem:[%s2 + $0x78] sm:$0xff]
    %v59 = vld [vmem:[%s2 + $0x80] sm:$0xff]
    %v60 = vld [vmem:[%s2 + $0x88] sm:$0xff]
    %v61 = vld [vmem:[%s2 + $0x90] sm:$0xff]
    %v62 = vld [vmem:[%s2 + $0x98] sm:$0xff]
    %v63 = vld [vmem:[%s2 + $0xa0] sm:$0xff]
    %v64 = vld [vmem:[%s2 + $0xa8] sm:$0xff]
    %v65 = vld [vmem:[%s2 + $0xb0] sm:$0xff]
    %v66 = vld [vmem:[%s2 + $0xb8] sm:$0xff]
    %v67 = vld [vmem:[%s2 + $0xc0] sm:$0xff]
    %v68 = vld [vmem:[%s2 + $0xc8] sm:$0xff]
    %v69 = vld [vmem:[%s2 + $0xd0] sm:$0xff]
    %v70 = vld [vmem:[%s2 + $0xd8] sm:$0xff]
    %v71 = vld [vmem:[%s2 + $0xe0] sm:$0xff]
    %v72 = vld [vmem:[%s2 + $0xe8] sm:$0xff]
    %v73 = vld [vmem:[%s2 + $0xf0] sm:$0xff]
    %v74 = vld [vmem:[%s2 + $0xf8] sm:$0xff]
    %v75 = vld [vmem:[%s3] sm:$0xff]
    %v76 = vld [vmem:[%s3 + $0x8] sm:$0xff]
    %v77 = vld [vmem:[%s3 + $0x10] sm:$0xff]
    %v78 = vld [vmem:[%s3 + $0x18] sm:$0xff]
    %v79 = vld [vmem:[%s3 + $0x20] sm:$0xff]
    %v80 = vld [vmem:[%s3 + $0x28] sm:$0xff]
    %v81 = vld [vmem:[%s3 + $0x30] sm:$0xff]
    %v82 = vld [vmem:[%s3 + $0x38] sm:$0xff]
    %v83 = vld [vmem:[%s3 + $0x40] sm:$0xff]
    %v84 = vld [vmem:[%s3 + $0x48] sm:$0xff]
    %v85 = vld [vmem:[%s3 + $0x50] sm:$0xff]
    %v86 = vld [vmem:[%s3 + $0x58] sm:$0xff]
    %v87 = vld [vmem:[%s3 + $0x60] sm:$0xff]
    %v88 = vld [vmem:[%s3 + $0x68] sm:$0xff]
    %v89 = vld [vmem:[%s3 + $0x70] sm:$0xff]
    %v90 = vld [vmem:[%s3 + $0x78] sm:$0xff]
    %v91 = vld [vmem:[%s3 + $0x80] sm:$0xff]
    %v92 = vld [vmem:[%s3 + $0x88] sm:$0xff]
    %v93 = vld [vmem:[%s3 + $0x90] sm:$0xff]
    %v94 = vld [vmem:[%s3 + $0x98] sm:$0xff]
    %v95 = vld [vmem:[%s3 + $0xa0] sm:$0xff]
    %v96 = vld [vmem:[%s3 + $0xa8] sm:$0xff]
    %v97 = vld [vmem:[%s3 + $0xb0] sm:$0xff]
    %v98 = vld [vmem:[%s3 + $0xb8] sm:$0xff]
    %v99 = vld [vmem:[%s3 + $0xc0] sm:$0xff]
    %v100 = vld [vmem:[%s3 + $0xc8] sm:$0xff]
    %v101 = vld [vmem:[%s3 + $0xd0] sm:$0xff]
    %v102 = vld [vmem:[%s3 + $0xd8] sm:$0xff]
    %v103 = vld [vmem:[%s3 + $0xe0] sm:$0xff]
    %v104 = vld [vmem:[%s3 + $0xe8] sm:$0xff]
    %v105 = vld [vmem:[%s3 + $0xf0] sm:$0xff]
    %v106 = vld [vmem:[%s3 + $0xf8] sm:$0xff]
    %v107 = vld [vmem:[%s4] sm:$0xff]
    %v108 = vld [vmem:[%s4 + $0x8] sm:$0xff]
    %v109 = vld [vmem:[%s4 + $0x10] sm:$0xff]
    %v110 = vld [vmem:[%s4 + $0x18] sm:$0xff]
    %v111 = vld [vmem:[%s4 + $0x20] sm:$0xff]
    %v112 = vld [vmem:[%s4 + $0x28] sm:$0xff]
    %v113 = vld [vmem:[%s4 + $0x30] sm:$0xff]
    %v114 = vld [vmem:[%s4 + $0x38] sm:$0xff]
    %v115 = vld [vmem:[%s4 + $0x40] sm:$0xff]
    %v116 = vld [vmem:[%s4 + $0x48] sm:$0xff]
    %v117 = vld [vmem:[%s4 + $0x50] sm:$0xff]
    %v118 = vld [vmem:[%s4 + $0x58] sm:$0xff]
    %v119 = vld [vmem:[%s4 + $0x60] sm:$0xff]
    %v120 = vld [vmem:[%s4 + $0x68] sm:$0xff]
    %v121 = vld [vmem:[%s4 + $0x70] sm:$0xff]
    %v122 = vld [vmem:[%s4 + $0x78] sm:$0xff]
    %v123 = vld [vmem:[%s4 + $0x80] sm:$0xff]
    %v124 = vld [vmem:[%s4 + $0x88] sm:$0xff]
    %v125 = vld [vmem:[%s4 + $0x90] sm:$0xff]
    %v126 = vld [vmem:[%s4 + $0x98] sm:$0xff]
    %v127 = vld [vmem:[%s4 + $0xa0] sm:$0xff]
    %v128 = vld [vmem:[%s4 + $0xa8] sm:$0xff]
    %v129 = vld [vmem:[%s4 + $0xb0] sm:$0xff]
    %v130 = vld [vmem:[%s4 + $0xb8] sm:$0xff]
    %v131 = vld [vmem:[%s4 + $0xc0] sm:$0xff]
    %v132 = vld [vmem:[%s4 + $0xc8] sm:$0xff]
    %v133 = vld [vmem:[%s4 + $0xd0] sm:$0xff]
    %v134 = vld [vmem:[%s4 + $0xd8] sm:$0xff]
    %v135 = vld [vmem:[%s4 + $0xe0] sm:$0xff]
    %v136 = vld [vmem:[%s4 + $0xe8] sm:$0xff]
    %v137 = vld [vmem:[%s4 + $0xf0] sm:$0xff]
    %v138 = vld [vmem:[%s4 + $0xf8] sm:$0xff]
    %v139 = vld [vmem:[%s4 + $0x100] sm:$0xff]
    %v140 = vld [vmem:[%s4 + $0x108] sm:$0xff]
    %v141 = vld [vmem:[%s4 + $0x110] sm:$0xff]
    %v142 = vld [vmem:[%s4 + $0x118] sm:$0xff]
    %v143 = vld [vmem:[%s4 + $0x120] sm:$0xff]
    %v144 = vld [vmem:[%s4 + $0x128] sm:$0xff]
    %v145 = vld [vmem:[%s4 + $0x130] sm:$0xff]
    %v146 = vld [vmem:[%s4 + $0x138] sm:$0xff]
    %v147 = vld [vmem:[%s4 + $0x140] sm:$0xff]
    %v148 = vld [vmem:[%s4 + $0x148] sm:$0xff]
    %v149 = vld [vmem:[%s4 + $0x150] sm:$0xff]
    %v150 = vld [vmem:[%s4 + $0x158] sm:$0xff]
    %v151 = vld [vmem:[%s4 + $0x160] sm:$0xff]
    %v152 = vld [vmem:[%s4 + $0x168] sm:$0xff]
    %v153 = vld [vmem:[%s4 + $0x170] sm:$0xff]
    %v154 = vld [vmem:[%s4 + $0x178] sm:$0xff]
    %v155 = vld [vmem:[%s4 + $0x180] sm:$0xff]
    %v156 = vld [vmem:[%s4 + $0x188] sm:$0xff]
    %v157 = vld [vmem:[%s4 + $0x190] sm:$0xff]
    %v158 = vld [vmem:[%s4 + $0x198] sm:$0xff]
    %v159 = vld [vmem:[%s4 + $0x1a0] sm:$0xff]
    %v160 = vld [vmem:[%s4 + $0x1a8] sm:$0xff]
    %v161 = vld [vmem:[%s4 + $0x1b0] sm:$0xff]
    %v162 = vld [vmem:[%s4 + $0x1b8] sm:$0xff]
    %v163 = vld [vmem:[%s4 + $0x1c0] sm:$0xff]
    %v164 = vld [vmem:[%s4 + $0x1c8] sm:$0xff]
    %v165 = vld [vmem:[%s4 + $0x1d0] sm:$0xff]
    %v166 = vld [vmem:[%s4 + $0x1d8] sm:$0xff]
    %v167 = vld [vmem:[%s4 + $0x1e0] sm:$0xff]
    %v168 = vld [vmem:[%s4 + $0x1e8] sm:$0xff]
    %v169 = vld [vmem:[%s4 + $0x1f0] sm:$0xff]
    %v170 = vld [vmem:[%s4 + $0x1f8] sm:$0xff]
    %v171 = vld [vmem:[%s5] sm:$0xff]
    %v172 = vld [vmem:[%s5 + $0x8] sm:$0xff]
    %v173 = vld [vmem:[%s5 + $0x10] sm:$0xff]
    %v174 = vld [vmem:[%s5 + $0x18] sm:$0xff]
    %v175 = vld [vmem:[%s5 + $0x20] sm:$0xff]
    %v176 = vld [vmem:[%s5 + $0x28] sm:$0xff]
    %v177 = vld [vmem:[%s5 + $0x30] sm:$0xff]
    %v178 = vld [vmem:[%s5 + $0x38] sm:$0xff]
    %v179 = vld [vmem:[%s5 + $0x40] sm:$0xff]
    %v180 = vld [vmem:[%s5 + $0x48] sm:$0xff]
    %v181 = vld [vmem:[%s5 + $0x50] sm:$0xff]
    %v182 = vld [vmem:[%s5 + $0x58] sm:$0xff]
    %v183 = vld [vmem:[%s5 + $0x60] sm:$0xff]
    %v184 = vld [vmem:[%s5 + $0x68] sm:$0xff]
    %v185 = vld [vmem:[%s5 + $0x70] sm:$0xff]
    %v186 = vld [vmem:[%s5 + $0x78] sm:$0xff]
    %v187 = vld [vmem:[%s5 + $0x80] sm:$0xff]
    %v188 = vld [vmem:[%s5 + $0x88] sm:$0xff]
    %v189 = vld [vmem:[%s5 + $0x90] sm:$0xff]
    %v190 = vld [vmem:[%s5 + $0x98] sm:$0xff]
    %v191 = vld [vmem:[%s5 + $0xa0] sm:$0xff]
    %v192 = vld [vmem:[%s5 + $0xa8] sm:$0xff]
    %v193 = vld [vmem:[%s5 + $0xb0] sm:$0xff]
    %v194 = vld [vmem:[%s5 + $0xb8] sm:$0xff]
    %v195 = vld [vmem:[%s5 + $0xc0] sm:$0xff]
    %v196 = vld [vmem:[%s5 + $0xc8] sm:$0xff]
    %v197 = vld [vmem:[%s5 + $0xd0] sm:$0xff]
    %v198 = vld [vmem:[%s5 + $0xd8] sm:$0xff]
    %v199 = vld [vmem:[%s5 + $0xe0] sm:$0xff]
    %v200 = vld [vmem:[%s5 + $0xe8] sm:$0xff]
    %v201 = vld [vmem:[%s5 + $0xf0] sm:$0xff]
    %v202 = vld [vmem:[%s5 + $0xf8] sm:$0xff]
    %v203 = vld [vmem:[%s6] sm:$0xff]
    %v204 = vld [vmem:[%s6 + $0x8] sm:$0xff]
    %v205 = vld [vmem:[%s6 + $0x10] sm:$0xff]
    %v206 = vld [vmem:[%s6 + $0x18] sm:$0xff]
    %v207 = vld [vmem:[%s6 + $0x20] sm:$0xff]
    %v208 = vld [vmem:[%s6 + $0x28] sm:$0xff]
    %v209 = vld [vmem:[%s6 + $0x30] sm:$0xff]
    %v210 = vld [vmem:[%s6 + $0x38] sm:$0xff]
    %v211 = vld [vmem:[%s6 + $0x40] sm:$0xff]
    %v212 = vld [vmem:[%s6 + $0x48] sm:$0xff]
    %v213 = vld [vmem:[%s6 + $0x50] sm:$0xff]
    %v214 = vld [vmem:[%s6 + $0x58] sm:$0xff]
    %v215 = vld [vmem:[%s6 + $0x60] sm:$0xff]
    %v216 = vld [vmem:[%s6 + $0x68] sm:$0xff]
    %v217 = vld [vmem:[%s6 + $0x70] sm:$0xff]
    %v218 = vld [vmem:[%s6 + $0x78] sm:$0xff]
    %v219 = vld [vmem:[%s6 + $0x80] sm:$0xff]
    %v220 = vld [vmem:[%s6 + $0x88] sm:$0xff]
    %v221 = vld [vmem:[%s6 + $0x90] sm:$0xff]
    %v222 = vld [vmem:[%s6 + $0x98] sm:$0xff]
    %v223 = vld [vmem:[%s6 + $0xa0] sm:$0xff]
    %v224 = vld [vmem:[%s6 + $0xa8] sm:$0xff]
    %v225 = vld [vmem:[%s6 + $0xb0] sm:$0xff]
    %v226 = vld [vmem:[%s6 + $0xb8] sm:$0xff]
    %v227 = vld [vmem:[%s6 + $0xc0] sm:$0xff]
    %v228 = vld [vmem:[%s6 + $0xc8] sm:$0xff]
    %v229 = vld [vmem:[%s6 + $0xd0] sm:$0xff]
    %v230 = vld [vmem:[%s6 + $0xd8] sm:$0xff]
    %v231 = vld [vmem:[%s6 + $0xe0] sm:$0xff]
    %v232 = vld [vmem:[%s6 + $0xe8] sm:$0xff]
    %v233 = vld [vmem:[%s6 + $0xf0] sm:$0xff]
    %v234 = vld [vmem:[%s6 + $0xf8] sm:$0xff]
    %v235 = vld [vmem:[%s6 + $0x100] sm:$0xff]
    %v236 = vld [vmem:[%s6 + $0x108] sm:$0xff]
    %v237 = vld [vmem:[%s6 + $0x110] sm:$0xff]
    %v238 = vld [vmem:[%s6 + $0x118] sm:$0xff]
    %v239 = vld [vmem:[%s6 + $0x120] sm:$0xff]
    %v240 = vld [vmem:[%s6 + $0x128] sm:$0xff]
    %v241 = vld [vmem:[%s6 + $0x130] sm:$0xff]
    %v242 = vld [vmem:[%s6 + $0x138] sm:$0xff]
    %v243 = vld [vmem:[%s6 + $0x140] sm:$0xff]
    %v244 = vld [vmem:[%s6 + $0x148] sm:$0xff]
    %v245 = vld [vmem:[%s6 + $0x150] sm:$0xff]
    %v246 = vld [vmem:[%s6 + $0x158] sm:$0xff]
    %v247 = vld [vmem:[%s6 + $0x160] sm:$0xff]
    %v248 = vld [vmem:[%s6 + $0x168] sm:$0xff]
    %v249 = vld [vmem:[%s6 + $0x170] sm:$0xff]
    %v250 = vld [vmem:[%s6 + $0x178] sm:$0xff]
    %v251 = vld [vmem:[%s6 + $0x180] sm:$0xff]
    %v252 = vld [vmem:[%s6 + $0x188] sm:$0xff]
    %v253 = vld [vmem:[%s6 + $0x190] sm:$0xff]
    %v254 = vld [vmem:[%s6 + $0x198] sm:$0xff]
    %v255 = vld [vmem:[%s6 + $0x1a0] sm:$0xff]
    %v256 = vld [vmem:[%s6 + $0x1a8] sm:$0xff]
    %v257 = vld [vmem:[%s6 + $0x1b0] sm:$0xff]
    %v258 = vld [vmem:[%s6 + $0x1b8] sm:$0xff]
    %v259 = vld [vmem:[%s6 + $0x1c0] sm:$0xff]
    %v260 = vld [vmem:[%s6 + $0x1c8] sm:$0xff]
    %v261 = vld [vmem:[%s6 + $0x1d0] sm:$0xff]
    %v262 = vld [vmem:[%s6 + $0x1d8] sm:$0xff]
    %v263 = vld [vmem:[%s6 + $0x1e0] sm:$0xff]
    %v264 = vld [vmem:[%s6 + $0x1e8] sm:$0xff]
    %v265 = vld [vmem:[%s6 + $0x1f0] sm:$0xff]
    %v266 = vld [vmem:[%s6 + $0x1f8] sm:$0xff]
    %v267 = vld [vmem:[%s7] sm:$0xff]
    %v268 = vld [vmem:[%s7 + $0x8] sm:$0xff]
    %v269 = vld [vmem:[%s7 + $0x10] sm:$0xff]
    %v270 = vld [vmem:[%s7 + $0x18] sm:$0xff]
    %v271 = vld [vmem:[%s7 + $0x20] sm:$0xff]
    %v272 = vld [vmem:[%s7 + $0x28] sm:$0xff]
    %v273 = vld [vmem:[%s7 + $0x30] sm:$0xff]
    %v274 = vld [vmem:[%s7 + $0x38] sm:$0xff]
    %v275 = vld [vmem:[%s7 + $0x40] sm:$0xff]
    %v276 = vld [vmem:[%s7 + $0x48] sm:$0xff]
    %v277 = vld [vmem:[%s7 + $0x50] sm:$0xff]
    %v278 = vld [vmem:[%s7 + $0x58] sm:$0xff]
    %v279 = vld [vmem:[%s7 + $0x60] sm:$0xff]
    %v280 = vld [vmem:[%s7 + $0x68] sm:$0xff]
    %v281 = vld [vmem:[%s7 + $0x70] sm:$0xff]
    %v282 = vld [vmem:[%s7 + $0x78] sm:$0xff]
    %v283 = vld [vmem:[%s7 + $0x80] sm:$0xff]
    %v284 = vld [vmem:[%s7 + $0x88] sm:$0xff]
    %v285 = vld [vmem:[%s7 + $0x90] sm:$0xff]
    %v286 = vld [vmem:[%s7 + $0x98] sm:$0xff]
    %v287 = vld [vmem:[%s7 + $0xa0] sm:$0xff]
    %v288 = vld [vmem:[%s7 + $0xa8] sm:$0xff]
    %v289 = vld [vmem:[%s7 + $0xb0] sm:$0xff]
    %v290 = vld [vmem:[%s7 + $0xb8] sm:$0xff]
    %v291 = vld [vmem:[%s7 + $0xc0] sm:$0xff]
    %v292 = vld [vmem:[%s7 + $0xc8] sm:$0xff]
    %v293 = vld [vmem:[%s7 + $0xd0] sm:$0xff]
    %v294 = vld [vmem:[%s7 + $0xd8] sm:$0xff]
    %v295 = vld [vmem:[%s7 + $0xe0] sm:$0xff]
    %v296 = vld [vmem:[%s7 + $0xe8] sm:$0xff]
    %v297 = vld [vmem:[%s7 + $0xf0] sm:$0xff]
    %v298 = vld [vmem:[%s7 + $0xf8] sm:$0xff]
    %v299 = vld [vmem:[%s8] sm:$0xff]
    %v300 = vld [vmem:[%s8 + $0x8] sm:$0xff]
    %302 = vset.pattern.permute.xlu0 0
    %303 = vperm.xlu0 %302, %v75
    %v304 = vpop.permute.xlu0 %303
    %307 = vset.pattern.permute.xlu0 0
    %308 = vperm.xlu0 %307, %v76
    %v309 = vpop.permute.xlu0 %308
    %312 = vset.pattern.permute.xlu0 0
    %313 = vperm.xlu0 %312, %v77
    %v314 = vpop.permute.xlu0 %313
    %317 = vset.pattern.permute.xlu0 0
    %318 = vperm.xlu0 %317, %v78
    %v319 = vpop.permute.xlu0 %318
    %322 = vset.pattern.permute.xlu0 0
    %323 = vperm.xlu0 %322, %v79
    %v324 = vpop.permute.xlu0 %323
    %327 = vset.pattern.permute.xlu0 0
    %328 = vperm.xlu0 %327, %v80
    %v329 = vpop.permute.xlu0 %328
    %332 = vset.pattern.permute.xlu0 0
    %333 = vperm.xlu0 %332, %v81
    %v334 = vpop.permute.xlu0 %333
    %337 = vset.pattern.permute.xlu0 0
    %338 = vperm.xlu0 %337, %v82
    %v339 = vpop.permute.xlu0 %338
    %342 = vset.pattern.permute.xlu0 0
    %343 = vperm.xlu0 %342, %v83
    %v344 = vpop.permute.xlu0 %343
    %347 = vset.pattern.permute.xlu0 0
    %348 = vperm.xlu0 %347, %v84
    %v349 = vpop.permute.xlu0 %348
    %352 = vset.pattern.permute.xlu0 0
    %353 = vperm.xlu0 %352, %v85
    %v354 = vpop.permute.xlu0 %353
    %357 = vset.pattern.permute.xlu0 0
    %358 = vperm.xlu0 %357, %v86
    %v359 = vpop.permute.xlu0 %358
    %362 = vset.pattern.permute.xlu0 0
    %363 = vperm.xlu0 %362, %v87
    %v364 = vpop.permute.xlu0 %363
    %367 = vset.pattern.permute.xlu0 0
    %368 = vperm.xlu0 %367, %v88
    %v369 = vpop.permute.xlu0 %368
    %372 = vset.pattern.permute.xlu0 0
    %373 = vperm.xlu0 %372, %v89
    %v374 = vpop.permute.xlu0 %373
    %377 = vset.pattern.permute.xlu0 0
    %378 = vperm.xlu0 %377, %v90
    %v379 = vpop.permute.xlu0 %378
    %382 = vset.pattern.permute.xlu0 0
    %383 = vperm.xlu0 %382, %v91
    %v384 = vpop.permute.xlu0 %383
    %387 = vset.pattern.permute.xlu0 0
    %388 = vperm.xlu0 %387, %v92
    %v389 = vpop.permute.xlu0 %388
    %392 = vset.pattern.permute.xlu0 0
    %393 = vperm.xlu0 %392, %v93
    %v394 = vpop.permute.xlu0 %393
    %397 = vset.pattern.permute.xlu0 0
    %398 = vperm.xlu0 %397, %v94
    %v399 = vpop.permute.xlu0 %398
    %402 = vset.pattern.permute.xlu0 0
    %403 = vperm.xlu0 %402, %v95
    %v404 = vpop.permute.xlu0 %403
    %407 = vset.pattern.permute.xlu0 0
    %408 = vperm.xlu0 %407, %v96
    %v409 = vpop.permute.xlu0 %408
    %412 = vset.pattern.permute.xlu0 0
    %413 = vperm.xlu0 %412, %v97
    %v414 = vpop.permute.xlu0 %413
    %417 = vset.pattern.permute.xlu0 0
    %418 = vperm.xlu0 %417, %v98
    %v419 = vpop.permute.xlu0 %418
    %422 = vset.pattern.permute.xlu0 0
    %423 = vperm.xlu0 %422, %v99
    %v424 = vpop.permute.xlu0 %423
    %427 = vset.pattern.permute.xlu0 0
    %428 = vperm.xlu0 %427, %v100
    %v429 = vpop.permute.xlu0 %428
    %432 = vset.pattern.permute.xlu0 0
    %433 = vperm.xlu0 %432, %v101
    %v434 = vpop.permute.xlu0 %433
    %437 = vset.pattern.permute.xlu0 0
    %438 = vperm.xlu0 %437, %v102
    %v439 = vpop.permute.xlu0 %438
    %442 = vset.pattern.permute.xlu0 0
    %443 = vperm.xlu0 %442, %v103
    %v444 = vpop.permute.xlu0 %443
    %447 = vset.pattern.permute.xlu0 0
    %448 = vperm.xlu0 %447, %v104
    %v449 = vpop.permute.xlu0 %448
    %452 = vset.pattern.permute.xlu0 0
    %453 = vperm.xlu0 %452, %v105
    %v454 = vpop.permute.xlu0 %453
    %457 = vset.pattern.permute.xlu0 0
    %458 = vperm.xlu0 %457, %v106
    %v459 = vpop.permute.xlu0 %458
    %vm461 = vcmask 523264
    %v463 = vsel %vm461, %v43, 0
    %v466 = vsel %vm461, %v44, 0
    %v469 = vsel %vm461, %v45, 0
    %v472 = vsel %vm461, %v46, 0
    %v475 = vsel %vm461, %v47, 0
    %v478 = vsel %vm461, %v48, 0
    %v481 = vsel %vm461, %v49, 0
    %v484 = vsel %vm461, %v50, 0
    %v487 = vsel %vm461, %v51, 0
    %v490 = vsel %vm461, %v52, 0
    %v493 = vsel %vm461, %v53, 0
    %v496 = vsel %vm461, %v54, 0
    %v499 = vsel %vm461, %v55, 0
    %v502 = vsel %vm461, %v56, 0
    %v505 = vsel %vm461, %v57, 0
    %v508 = vsel %vm461, %v58, 0
    %v511 = vsel %vm461, %v59, 0
    %v514 = vsel %vm461, %v60, 0
    %v517 = vsel %vm461, %v61, 0
    %v520 = vsel %vm461, %v62, 0
    %v523 = vsel %vm461, %v63, 0
    %v526 = vsel %vm461, %v64, 0
    %v529 = vsel %vm461, %v65, 0
    %v532 = vsel %vm461, %v66, 0
    %v535 = vsel %vm461, %v67, 0
    %v538 = vsel %vm461, %v68, 0
    %v541 = vsel %vm461, %v69, 0
    %v544 = vsel %vm461, %v70, 0
    %v547 = vsel %vm461, %v71, 0
    %v550 = vsel %vm461, %v72, 0
    %v553 = vsel %vm461, %v73, 0
    %v556 = vsel %vm461, %v74, 0
    %558 = vmatpush.msra.mxu0 0.0
    %559 = vmatpush.msra.mxu0 0.0
    %560 = vmatpush.msra.mxu0 0.0
    %561 = vmatpush.msra.mxu0 0.0
    %562 = vmatpush.msra.mxu0 0.0
    %563 = vmatpush.msra.mxu0 0.0
    %564 = vmatpush.msra.mxu0 0.0
    %565 = vmatpush.msra.mxu0 0.0
    %v566 = vand.u32 %v41, 4294901760
    %567 = vmatpush.msra.mxu0 %v566
    %v568 = vand.u32 %v40, 4294901760
    %569 = vmatpush.msra.mxu0 %v568
    %v570 = vand.u32 %v39, 4294901760
    %571 = vmatpush.msra.mxu0 %v570
    %v572 = vand.u32 %v38, 4294901760
    %573 = vmatpush.msra.mxu0 %v572
    %v574 = vand.u32 %v37, 4294901760
    %575 = vmatpush.msra.mxu0 %v574
    %v576 = vand.u32 %v36, 4294901760
    %577 = vmatpush.msra.mxu0 %v576
    %v578 = vand.u32 %v35, 4294901760
    %579 = vmatpush.msra.mxu0 %v578
    %v580 = vand.u32 %v34, 4294901760
    %581 = vmatpush.msra.mxu0 %v580
    %v582 = vand.u32 %v463, 4294901760
    %v583 = vsub.f32 %v463, %v582
    %v584 = vand.u32 %v583, 4294901760
    %v585 = vsub.f32 %v583, %v584
    %v586 = vand.u32 %v585, 4294901760
    %587 = vmatmul.f32.gmra.mxu0 %v586
    %v588 = vpop.f32.mrf.mxu0
    %v589 = vadd.f32 %v304, %v588
    %v590 = vand.u32 %v466, 4294901760
    %v591 = vsub.f32 %v466, %v590
    %v592 = vand.u32 %v591, 4294901760
    %v593 = vsub.f32 %v591, %v592
    %v594 = vand.u32 %v593, 4294901760
    %595 = vmatmul.f32.gmra.mxu0 %v594
    %v596 = vpop.f32.mrf.mxu0
    %v597 = vadd.f32 %v309, %v596
    %v598 = vand.u32 %v469, 4294901760
    %v599 = vsub.f32 %v469, %v598
    %v600 = vand.u32 %v599, 4294901760
    %v601 = vsub.f32 %v599, %v600
    %v602 = vand.u32 %v601, 4294901760
    %603 = vmatmul.f32.gmra.mxu0 %v602
    %v604 = vpop.f32.mrf.mxu0
    %v605 = vadd.f32 %v314, %v604
    %v606 = vand.u32 %v472, 4294901760
    %v607 = vsub.f32 %v472, %v606
    %v608 = vand.u32 %v607, 4294901760
    %v609 = vsub.f32 %v607, %v608
    %v610 = vand.u32 %v609, 4294901760
    %611 = vmatmul.f32.gmra.mxu0 %v610
    %v612 = vpop.f32.mrf.mxu0
    %v613 = vadd.f32 %v319, %v612
    %v614 = vand.u32 %v475, 4294901760
    %v615 = vsub.f32 %v475, %v614
    %v616 = vand.u32 %v615, 4294901760
    %v617 = vsub.f32 %v615, %v616
    %v618 = vand.u32 %v617, 4294901760
    %619 = vmatmul.f32.gmra.mxu0 %v618
    %v620 = vpop.f32.mrf.mxu0
    %v621 = vadd.f32 %v324, %v620
    %v622 = vand.u32 %v478, 4294901760
    %v623 = vsub.f32 %v478, %v622
    %v624 = vand.u32 %v623, 4294901760
    %v625 = vsub.f32 %v623, %v624
    %v626 = vand.u32 %v625, 4294901760
    %627 = vmatmul.f32.gmra.mxu0 %v626
    %v628 = vpop.f32.mrf.mxu0
    %v629 = vadd.f32 %v329, %v628
    %v630 = vand.u32 %v481, 4294901760
    %v631 = vsub.f32 %v481, %v630
    %v632 = vand.u32 %v631, 4294901760
    %v633 = vsub.f32 %v631, %v632
    %v634 = vand.u32 %v633, 4294901760
    %635 = vmatmul.f32.gmra.mxu0 %v634
    %v636 = vpop.f32.mrf.mxu0
    %v637 = vadd.f32 %v334, %v636
    %v638 = vand.u32 %v484, 4294901760
    %v639 = vsub.f32 %v484, %v638
    %v640 = vand.u32 %v639, 4294901760
    %v641 = vsub.f32 %v639, %v640
    %v642 = vand.u32 %v641, 4294901760
    %643 = vmatmul.f32.gmra.mxu0 %v642
    %v644 = vpop.f32.mrf.mxu0
    %v645 = vadd.f32 %v339, %v644
    %v646 = vand.u32 %v487, 4294901760
    %v647 = vsub.f32 %v487, %v646
    %v648 = vand.u32 %v647, 4294901760
    %v649 = vsub.f32 %v647, %v648
    %v650 = vand.u32 %v649, 4294901760
    %651 = vmatmul.f32.gmra.mxu0 %v650
    %v652 = vpop.f32.mrf.mxu0
    %v653 = vadd.f32 %v344, %v652
    %v654 = vand.u32 %v490, 4294901760
    %v655 = vsub.f32 %v490, %v654
    %v656 = vand.u32 %v655, 4294901760
    %v657 = vsub.f32 %v655, %v656
    %v658 = vand.u32 %v657, 4294901760
    %659 = vmatmul.f32.gmra.mxu0 %v658
    %v660 = vpop.f32.mrf.mxu0
    %v661 = vadd.f32 %v349, %v660
    %v662 = vand.u32 %v493, 4294901760
    %v663 = vsub.f32 %v493, %v662
    %v664 = vand.u32 %v663, 4294901760
    %v665 = vsub.f32 %v663, %v664
    %v666 = vand.u32 %v665, 4294901760
    %667 = vmatmul.f32.gmra.mxu0 %v666
    %v668 = vpop.f32.mrf.mxu0
    %v669 = vadd.f32 %v354, %v668
    %v670 = vand.u32 %v496, 4294901760
    %v671 = vsub.f32 %v496, %v670
    %v672 = vand.u32 %v671, 4294901760
    %v673 = vsub.f32 %v671, %v672
    %v674 = vand.u32 %v673, 4294901760
    %675 = vmatmul.f32.gmra.mxu0 %v674
    %v676 = vpop.f32.mrf.mxu0
    %v677 = vadd.f32 %v359, %v676
    %v678 = vand.u32 %v499, 4294901760
    %v679 = vsub.f32 %v499, %v678
    %v680 = vand.u32 %v679, 4294901760
    %v681 = vsub.f32 %v679, %v680
    %v682 = vand.u32 %v681, 4294901760
    %683 = vmatmul.f32.gmra.mxu0 %v682
    %v684 = vpop.f32.mrf.mxu0
    %v685 = vadd.f32 %v364, %v684
    %v686 = vand.u32 %v502, 4294901760
    %v687 = vsub.f32 %v502, %v686
    %v688 = vand.u32 %v687, 4294901760
    %v689 = vsub.f32 %v687, %v688
    %v690 = vand.u32 %v689, 4294901760
    %691 = vmatmul.f32.gmra.mxu0 %v690
    %v692 = vpop.f32.mrf.mxu0
    %v693 = vadd.f32 %v369, %v692
    %v694 = vand.u32 %v505, 4294901760
    %v695 = vsub.f32 %v505, %v694
    %v696 = vand.u32 %v695, 4294901760
    %v697 = vsub.f32 %v695, %v696
    %v698 = vand.u32 %v697, 4294901760
    %699 = vmatmul.f32.gmra.mxu0 %v698
    %v700 = vpop.f32.mrf.mxu0
    %v701 = vadd.f32 %v374, %v700
    %v702 = vand.u32 %v508, 4294901760
    %v703 = vsub.f32 %v508, %v702
    %v704 = vand.u32 %v703, 4294901760
    %v705 = vsub.f32 %v703, %v704
    %v706 = vand.u32 %v705, 4294901760
    %707 = vmatmul.f32.gmra.mxu0 %v706
    %v708 = vpop.f32.mrf.mxu0
    %v709 = vadd.f32 %v379, %v708
    %v710 = vand.u32 %v511, 4294901760
    %v711 = vsub.f32 %v511, %v710
    %v712 = vand.u32 %v711, 4294901760
    %v713 = vsub.f32 %v711, %v712
    %v714 = vand.u32 %v713, 4294901760
    %715 = vmatmul.f32.gmra.mxu0 %v714
    %v716 = vpop.f32.mrf.mxu0
    %v717 = vadd.f32 %v384, %v716
    %v718 = vand.u32 %v514, 4294901760
    %v719 = vsub.f32 %v514, %v718
    %v720 = vand.u32 %v719, 4294901760
    %v721 = vsub.f32 %v719, %v720
    %v722 = vand.u32 %v721, 4294901760
    %723 = vmatmul.f32.gmra.mxu0 %v722
    %v724 = vpop.f32.mrf.mxu0
    %v725 = vadd.f32 %v389, %v724
    %v726 = vand.u32 %v517, 4294901760
    %v727 = vsub.f32 %v517, %v726
    %v728 = vand.u32 %v727, 4294901760
    %v729 = vsub.f32 %v727, %v728
    %v730 = vand.u32 %v729, 4294901760
    %731 = vmatmul.f32.gmra.mxu0 %v730
    %v732 = vpop.f32.mrf.mxu0
    %v733 = vadd.f32 %v394, %v732
    %v734 = vand.u32 %v520, 4294901760
    %v735 = vsub.f32 %v520, %v734
    %v736 = vand.u32 %v735, 4294901760
    %v737 = vsub.f32 %v735, %v736
    %v738 = vand.u32 %v737, 4294901760
    %739 = vmatmul.f32.gmra.mxu0 %v738
    %v740 = vpop.f32.mrf.mxu0
    %v741 = vadd.f32 %v399, %v740
    %v742 = vand.u32 %v523, 4294901760
    %v743 = vsub.f32 %v523, %v742
    %v744 = vand.u32 %v743, 4294901760
    %v745 = vsub.f32 %v743, %v744
    %v746 = vand.u32 %v745, 4294901760
    %747 = vmatmul.f32.gmra.mxu0 %v746
    %v748 = vpop.f32.mrf.mxu0
    %v749 = vadd.f32 %v404, %v748
    %v750 = vand.u32 %v526, 4294901760
    %v751 = vsub.f32 %v526, %v750
    %v752 = vand.u32 %v751, 4294901760
    %v753 = vsub.f32 %v751, %v752
    %v754 = vand.u32 %v753, 4294901760
    %755 = vmatmul.f32.gmra.mxu0 %v754
    %v756 = vpop.f32.mrf.mxu0
    %v757 = vadd.f32 %v409, %v756
    %v758 = vand.u32 %v529, 4294901760
    %v759 = vsub.f32 %v529, %v758
    %v760 = vand.u32 %v759, 4294901760
    %v761 = vsub.f32 %v759, %v760
    %v762 = vand.u32 %v761, 4294901760
    %763 = vmatmul.f32.gmra.mxu0 %v762
    %v764 = vpop.f32.mrf.mxu0
    %v765 = vadd.f32 %v414, %v764
    %v766 = vand.u32 %v532, 4294901760
    %v767 = vsub.f32 %v532, %v766
    %v768 = vand.u32 %v767, 4294901760
    %v769 = vsub.f32 %v767, %v768
    %v770 = vand.u32 %v769, 4294901760
    %771 = vmatmul.f32.gmra.mxu0 %v770
    %v772 = vpop.f32.mrf.mxu0
    %v773 = vadd.f32 %v419, %v772
    %v774 = vand.u32 %v535, 4294901760
    %v775 = vsub.f32 %v535, %v774
    %v776 = vand.u32 %v775, 4294901760
    %v777 = vsub.f32 %v775, %v776
    %v778 = vand.u32 %v777, 4294901760
    %779 = vmatmul.f32.gmra.mxu0 %v778
    %v780 = vpop.f32.mrf.mxu0
    %v781 = vadd.f32 %v424, %v780
    %v782 = vand.u32 %v538, 4294901760
    %v783 = vsub.f32 %v538, %v782
    %v784 = vand.u32 %v783, 4294901760
    %v785 = vsub.f32 %v783, %v784
    %v786 = vand.u32 %v785, 4294901760
    %787 = vmatmul.f32.gmra.mxu0 %v786
    %v788 = vpop.f32.mrf.mxu0
    %v789 = vadd.f32 %v429, %v788
    %v790 = vand.u32 %v541, 4294901760
    %v791 = vsub.f32 %v541, %v790
    %v792 = vand.u32 %v791, 4294901760
    %v793 = vsub.f32 %v791, %v792
    %v794 = vand.u32 %v793, 4294901760
    %795 = vmatmul.f32.gmra.mxu0 %v794
    %v796 = vpop.f32.mrf.mxu0
    %v797 = vadd.f32 %v434, %v796
    %v798 = vand.u32 %v544, 4294901760
    %v799 = vsub.f32 %v544, %v798
    %v800 = vand.u32 %v799, 4294901760
    %v801 = vsub.f32 %v799, %v800
    %v802 = vand.u32 %v801, 4294901760
    %803 = vmatmul.f32.gmra.mxu0 %v802
    %v804 = vpop.f32.mrf.mxu0
    %v805 = vadd.f32 %v439, %v804
    %v806 = vand.u32 %v547, 4294901760
    %v807 = vsub.f32 %v547, %v806
    %v808 = vand.u32 %v807, 4294901760
    %v809 = vsub.f32 %v807, %v808
    %v810 = vand.u32 %v809, 4294901760
    %811 = vmatmul.f32.gmra.mxu0 %v810
    %v812 = vpop.f32.mrf.mxu0
    %v813 = vadd.f32 %v444, %v812
    %v814 = vand.u32 %v550, 4294901760
    %v815 = vsub.f32 %v550, %v814
    %v816 = vand.u32 %v815, 4294901760
    %v817 = vsub.f32 %v815, %v816
    %v818 = vand.u32 %v817, 4294901760
    %819 = vmatmul.f32.gmra.mxu0 %v818
    %v820 = vpop.f32.mrf.mxu0
    %v821 = vadd.f32 %v449, %v820
    %v822 = vand.u32 %v553, 4294901760
    %v823 = vsub.f32 %v553, %v822
    %v824 = vand.u32 %v823, 4294901760
    %v825 = vsub.f32 %v823, %v824
    %v826 = vand.u32 %v825, 4294901760
    %827 = vmatmul.f32.gmra.mxu0 %v826
    %v828 = vpop.f32.mrf.mxu0
    %v829 = vadd.f32 %v454, %v828
    %v830 = vand.u32 %v556, 4294901760
    %v831 = vsub.f32 %v556, %v830
    %v832 = vand.u32 %v831, 4294901760
    %v833 = vsub.f32 %v831, %v832
    %v834 = vand.u32 %v833, 4294901760
    %835 = vmatmul.f32.gmra.mxu0 %v834
    %v836 = vpop.f32.mrf.mxu0
    %v837 = vadd.f32 %v459, %v836
    %838 = vdwg.mxu0
    %839 = vmatpush.msra.mxu0 0.0
    %840 = vmatpush.msra.mxu0 0.0
    %841 = vmatpush.msra.mxu0 0.0
    %842 = vmatpush.msra.mxu0 0.0
    %843 = vmatpush.msra.mxu0 0.0
    %844 = vmatpush.msra.mxu0 0.0
    %845 = vmatpush.msra.mxu0 0.0
    %846 = vmatpush.msra.mxu0 0.0
    %v847 = vand.u32 %v41, 4294901760
    %v848 = vsub.f32 %v41, %v847
    %v849 = vand.u32 %v848, 4294901760
    %v850 = vsub.f32 %v848, %v849
    %v851 = vand.u32 %v850, 4294901760
    %852 = vmatpush.msra.mxu0 %v851
    %v853 = vand.u32 %v40, 4294901760
    %v854 = vsub.f32 %v40, %v853
    %v855 = vand.u32 %v854, 4294901760
    %v856 = vsub.f32 %v854, %v855
    %v857 = vand.u32 %v856, 4294901760
    %858 = vmatpush.msra.mxu0 %v857
    %v859 = vand.u32 %v39, 4294901760
    %v860 = vsub.f32 %v39, %v859
    %v861 = vand.u32 %v860, 4294901760
    %v862 = vsub.f32 %v860, %v861
    %v863 = vand.u32 %v862, 4294901760
    %864 = vmatpush.msra.mxu0 %v863
    %v865 = vand.u32 %v38, 4294901760
    %v866 = vsub.f32 %v38, %v865
    %v867 = vand.u32 %v866, 4294901760
    %v868 = vsub.f32 %v866, %v867
    %v869 = vand.u32 %v868, 4294901760
    %870 = vmatpush.msra.mxu0 %v869
    %v871 = vand.u32 %v37, 4294901760
    %v872 = vsub.f32 %v37, %v871
    %v873 = vand.u32 %v872, 4294901760
    %v874 = vsub.f32 %v872, %v873
    %v875 = vand.u32 %v874, 4294901760
    %876 = vmatpush.msra.mxu0 %v875
    %v877 = vand.u32 %v36, 4294901760
    %v878 = vsub.f32 %v36, %v877
    %v879 = vand.u32 %v878, 4294901760
    %v880 = vsub.f32 %v878, %v879
    %v881 = vand.u32 %v880, 4294901760
    %882 = vmatpush.msra.mxu0 %v881
    %v883 = vand.u32 %v35, 4294901760
    %v884 = vsub.f32 %v35, %v883
    %v885 = vand.u32 %v884, 4294901760
    %v886 = vsub.f32 %v884, %v885
    %v887 = vand.u32 %v886, 4294901760
    %888 = vmatpush.msra.mxu0 %v887
    %v889 = vand.u32 %v34, 4294901760
    %v890 = vsub.f32 %v34, %v889
    %v891 = vand.u32 %v890, 4294901760
    %v892 = vsub.f32 %v890, %v891
    %v893 = vand.u32 %v892, 4294901760
    %894 = vmatpush.msra.mxu0 %v893
    %v895 = vand.u32 %v463, 4294901760
    %896 = vmatmul.f32.gmra.mxu0 %v895
    %v897 = vpop.f32.mrf.mxu0
    %v898 = vadd.f32 %v589, %v897
    %v899 = vand.u32 %v466, 4294901760
    %900 = vmatmul.f32.gmra.mxu0 %v899
    %v901 = vpop.f32.mrf.mxu0
    %v902 = vadd.f32 %v597, %v901
    %v903 = vand.u32 %v469, 4294901760
    %904 = vmatmul.f32.gmra.mxu0 %v903
    %v905 = vpop.f32.mrf.mxu0
    %v906 = vadd.f32 %v605, %v905
    %v907 = vand.u32 %v472, 4294901760
    %908 = vmatmul.f32.gmra.mxu0 %v907
    %v909 = vpop.f32.mrf.mxu0
    %v910 = vadd.f32 %v613, %v909
    %v911 = vand.u32 %v475, 4294901760
    %912 = vmatmul.f32.gmra.mxu0 %v911
    %v913 = vpop.f32.mrf.mxu0
    %v914 = vadd.f32 %v621, %v913
    %v915 = vand.u32 %v478, 4294901760
    %916 = vmatmul.f32.gmra.mxu0 %v915
    %v917 = vpop.f32.mrf.mxu0
    %v918 = vadd.f32 %v629, %v917
    %v919 = vand.u32 %v481, 4294901760
    %920 = vmatmul.f32.gmra.mxu0 %v919
    %v921 = vpop.f32.mrf.mxu0
    %v922 = vadd.f32 %v637, %v921
    %v923 = vand.u32 %v484, 4294901760
    %924 = vmatmul.f32.gmra.mxu0 %v923
    %v925 = vpop.f32.mrf.mxu0
    %v926 = vadd.f32 %v645, %v925
    %v927 = vand.u32 %v487, 4294901760
    %928 = vmatmul.f32.gmra.mxu0 %v927
    %v929 = vpop.f32.mrf.mxu0
    %v930 = vadd.f32 %v653, %v929
    %v931 = vand.u32 %v490, 4294901760
    %932 = vmatmul.f32.gmra.mxu0 %v931
    %v933 = vpop.f32.mrf.mxu0
    %v934 = vadd.f32 %v661, %v933
    %v935 = vand.u32 %v493, 4294901760
    %936 = vmatmul.f32.gmra.mxu0 %v935
    %v937 = vpop.f32.mrf.mxu0
    %v938 = vadd.f32 %v669, %v937
    %v939 = vand.u32 %v496, 4294901760
    %940 = vmatmul.f32.gmra.mxu0 %v939
    %v941 = vpop.f32.mrf.mxu0
    %v942 = vadd.f32 %v677, %v941
    %v943 = vand.u32 %v499, 4294901760
    %944 = vmatmul.f32.gmra.mxu0 %v943
    %v945 = vpop.f32.mrf.mxu0
    %v946 = vadd.f32 %v685, %v945
    %v947 = vand.u32 %v502, 4294901760
    %948 = vmatmul.f32.gmra.mxu0 %v947
    %v949 = vpop.f32.mrf.mxu0
    %v950 = vadd.f32 %v693, %v949
    %v951 = vand.u32 %v505, 4294901760
    %952 = vmatmul.f32.gmra.mxu0 %v951
    %v953 = vpop.f32.mrf.mxu0
    %v954 = vadd.f32 %v701, %v953
    %v955 = vand.u32 %v508, 4294901760
    %956 = vmatmul.f32.gmra.mxu0 %v955
    %v957 = vpop.f32.mrf.mxu0
    %v958 = vadd.f32 %v709, %v957
    %v959 = vand.u32 %v511, 4294901760
    %960 = vmatmul.f32.gmra.mxu0 %v959
    %v961 = vpop.f32.mrf.mxu0
    %v962 = vadd.f32 %v717, %v961
    %v963 = vand.u32 %v514, 4294901760
    %964 = vmatmul.f32.gmra.mxu0 %v963
    %v965 = vpop.f32.mrf.mxu0
    %v966 = vadd.f32 %v725, %v965
    %v967 = vand.u32 %v517, 4294901760
    %968 = vmatmul.f32.gmra.mxu0 %v967
    %v969 = vpop.f32.mrf.mxu0
    %v970 = vadd.f32 %v733, %v969
    %v971 = vand.u32 %v520, 4294901760
    %972 = vmatmul.f32.gmra.mxu0 %v971
    %v973 = vpop.f32.mrf.mxu0
    %v974 = vadd.f32 %v741, %v973
    %v975 = vand.u32 %v523, 4294901760
    %976 = vmatmul.f32.gmra.mxu0 %v975
    %v977 = vpop.f32.mrf.mxu0
    %v978 = vadd.f32 %v749, %v977
    %v979 = vand.u32 %v526, 4294901760
    %980 = vmatmul.f32.gmra.mxu0 %v979
    %v981 = vpop.f32.mrf.mxu0
    %v982 = vadd.f32 %v757, %v981
    %v983 = vand.u32 %v529, 4294901760
    %984 = vmatmul.f32.gmra.mxu0 %v983
    %v985 = vpop.f32.mrf.mxu0
    %v986 = vadd.f32 %v765, %v985
    %v987 = vand.u32 %v532, 4294901760
    %988 = vmatmul.f32.gmra.mxu0 %v987
    %v989 = vpop.f32.mrf.mxu0
    %v990 = vadd.f32 %v773, %v989
    %v991 = vand.u32 %v535, 4294901760
    %992 = vmatmul.f32.gmra.mxu0 %v991
    %v993 = vpop.f32.mrf.mxu0
    %v994 = vadd.f32 %v781, %v993
    %v995 = vand.u32 %v538, 4294901760
    %996 = vmatmul.f32.gmra.mxu0 %v995
    %v997 = vpop.f32.mrf.mxu0
    %v998 = vadd.f32 %v789, %v997
    %v999 = vand.u32 %v541, 4294901760
    %1000 = vmatmul.f32.gmra.mxu0 %v999
    %v1001 = vpop.f32.mrf.mxu0
    %v1002 = vadd.f32 %v797, %v1001
    %v1003 = vand.u32 %v544, 4294901760
    %1004 = vmatmul.f32.gmra.mxu0 %v1003
    %v1005 = vpop.f32.mrf.mxu0
    %v1006 = vadd.f32 %v805, %v1005
    %v1007 = vand.u32 %v547, 4294901760
    %1008 = vmatmul.f32.gmra.mxu0 %v1007
    %v1009 = vpop.f32.mrf.mxu0
    %v1010 = vadd.f32 %v813, %v1009
    %v1011 = vand.u32 %v550, 4294901760
    %1012 = vmatmul.f32.gmra.mxu0 %v1011
    %v1013 = vpop.f32.mrf.mxu0
    %v1014 = vadd.f32 %v821, %v1013
    %v1015 = vand.u32 %v553, 4294901760
    %1016 = vmatmul.f32.gmra.mxu0 %v1015
    %v1017 = vpop.f32.mrf.mxu0
    %v1018 = vadd.f32 %v829, %v1017
    %v1019 = vand.u32 %v556, 4294901760
    %1020 = vmatmul.f32.gmra.mxu0 %v1019
    %v1021 = vpop.f32.mrf.mxu0
    %v1022 = vadd.f32 %v837, %v1021
    %1023 = vdwg.mxu0
    %1024 = vmatpush.msra.mxu0 0.0
    %1025 = vmatpush.msra.mxu0 0.0
    %1026 = vmatpush.msra.mxu0 0.0
    %1027 = vmatpush.msra.mxu0 0.0
    %1028 = vmatpush.msra.mxu0 0.0
    %1029 = vmatpush.msra.mxu0 0.0
    %1030 = vmatpush.msra.mxu0 0.0
    %1031 = vmatpush.msra.mxu0 0.0
    %v1032 = vand.u32 %v41, 4294901760
    %v1033 = vsub.f32 %v41, %v1032
    %1034 = vmatpush.msra.mxu0 %v1033
    %v1035 = vand.u32 %v40, 4294901760
    %v1036 = vsub.f32 %v40, %v1035
    %1037 = vmatpush.msra.mxu0 %v1036
    %v1038 = vand.u32 %v39, 4294901760
    %v1039 = vsub.f32 %v39, %v1038
    %1040 = vmatpush.msra.mxu0 %v1039
    %v1041 = vand.u32 %v38, 4294901760
    %v1042 = vsub.f32 %v38, %v1041
    %1043 = vmatpush.msra.mxu0 %v1042
    %v1044 = vand.u32 %v37, 4294901760
    %v1045 = vsub.f32 %v37, %v1044
    %1046 = vmatpush.msra.mxu0 %v1045
    %v1047 = vand.u32 %v36, 4294901760
    %v1048 = vsub.f32 %v36, %v1047
    %1049 = vmatpush.msra.mxu0 %v1048
    %v1050 = vand.u32 %v35, 4294901760
    %v1051 = vsub.f32 %v35, %v1050
    %1052 = vmatpush.msra.mxu0 %v1051
    %v1053 = vand.u32 %v34, 4294901760
    %v1054 = vsub.f32 %v34, %v1053
    %1055 = vmatpush.msra.mxu0 %v1054
    %v1056 = vand.u32 %v463, 4294901760
    %v1057 = vsub.f32 %v463, %v1056
    %1058 = vmatmul.f32.gmra.mxu0 %v1057
    %v1059 = vpop.f32.mrf.mxu0
    %v1060 = vadd.f32 %v898, %v1059
    %v1061 = vand.u32 %v466, 4294901760
    %v1062 = vsub.f32 %v466, %v1061
    %1063 = vmatmul.f32.gmra.mxu0 %v1062
    %v1064 = vpop.f32.mrf.mxu0
    %v1065 = vadd.f32 %v902, %v1064
    %v1066 = vand.u32 %v469, 4294901760
    %v1067 = vsub.f32 %v469, %v1066
    %1068 = vmatmul.f32.gmra.mxu0 %v1067
    %v1069 = vpop.f32.mrf.mxu0
    %v1070 = vadd.f32 %v906, %v1069
    %v1071 = vand.u32 %v472, 4294901760
    %v1072 = vsub.f32 %v472, %v1071
    %1073 = vmatmul.f32.gmra.mxu0 %v1072
    %v1074 = vpop.f32.mrf.mxu0
    %v1075 = vadd.f32 %v910, %v1074
    %v1076 = vand.u32 %v475, 4294901760
    %v1077 = vsub.f32 %v475, %v1076
    %1078 = vmatmul.f32.gmra.mxu0 %v1077
    %v1079 = vpop.f32.mrf.mxu0
    %v1080 = vadd.f32 %v914, %v1079
    %v1081 = vand.u32 %v478, 4294901760
    %v1082 = vsub.f32 %v478, %v1081
    %1083 = vmatmul.f32.gmra.mxu0 %v1082
    %v1084 = vpop.f32.mrf.mxu0
    %v1085 = vadd.f32 %v918, %v1084
    %v1086 = vand.u32 %v481, 4294901760
    %v1087 = vsub.f32 %v481, %v1086
    %1088 = vmatmul.f32.gmra.mxu0 %v1087
    %v1089 = vpop.f32.mrf.mxu0
    %v1090 = vadd.f32 %v922, %v1089
    %v1091 = vand.u32 %v484, 4294901760
    %v1092 = vsub.f32 %v484, %v1091
    %1093 = vmatmul.f32.gmra.mxu0 %v1092
    %v1094 = vpop.f32.mrf.mxu0
    %v1095 = vadd.f32 %v926, %v1094
    %v1096 = vand.u32 %v487, 4294901760
    %v1097 = vsub.f32 %v487, %v1096
    %1098 = vmatmul.f32.gmra.mxu0 %v1097
    %v1099 = vpop.f32.mrf.mxu0
    %v1100 = vadd.f32 %v930, %v1099
    %v1101 = vand.u32 %v490, 4294901760
    %v1102 = vsub.f32 %v490, %v1101
    %1103 = vmatmul.f32.gmra.mxu0 %v1102
    %v1104 = vpop.f32.mrf.mxu0
    %v1105 = vadd.f32 %v934, %v1104
    %v1106 = vand.u32 %v493, 4294901760
    %v1107 = vsub.f32 %v493, %v1106
    %1108 = vmatmul.f32.gmra.mxu0 %v1107
    %v1109 = vpop.f32.mrf.mxu0
    %v1110 = vadd.f32 %v938, %v1109
    %v1111 = vand.u32 %v496, 4294901760
    %v1112 = vsub.f32 %v496, %v1111
    %1113 = vmatmul.f32.gmra.mxu0 %v1112
    %v1114 = vpop.f32.mrf.mxu0
    %v1115 = vadd.f32 %v942, %v1114
    %v1116 = vand.u32 %v499, 4294901760
    %v1117 = vsub.f32 %v499, %v1116
    %1118 = vmatmul.f32.gmra.mxu0 %v1117
    %v1119 = vpop.f32.mrf.mxu0
    %v1120 = vadd.f32 %v946, %v1119
    %v1121 = vand.u32 %v502, 4294901760
    %v1122 = vsub.f32 %v502, %v1121
    %1123 = vmatmul.f32.gmra.mxu0 %v1122
    %v1124 = vpop.f32.mrf.mxu0
    %v1125 = vadd.f32 %v950, %v1124
    %v1126 = vand.u32 %v505, 4294901760
    %v1127 = vsub.f32 %v505, %v1126
    %1128 = vmatmul.f32.gmra.mxu0 %v1127
    %v1129 = vpop.f32.mrf.mxu0
    %v1130 = vadd.f32 %v954, %v1129
    %v1131 = vand.u32 %v508, 4294901760
    %v1132 = vsub.f32 %v508, %v1131
    %1133 = vmatmul.f32.gmra.mxu0 %v1132
    %v1134 = vpop.f32.mrf.mxu0
    %v1135 = vadd.f32 %v958, %v1134
    %v1136 = vand.u32 %v511, 4294901760
    %v1137 = vsub.f32 %v511, %v1136
    %1138 = vmatmul.f32.gmra.mxu0 %v1137
    %v1139 = vpop.f32.mrf.mxu0
    %v1140 = vadd.f32 %v962, %v1139
    %v1141 = vand.u32 %v514, 4294901760
    %v1142 = vsub.f32 %v514, %v1141
    %1143 = vmatmul.f32.gmra.mxu0 %v1142
    %v1144 = vpop.f32.mrf.mxu0
    %v1145 = vadd.f32 %v966, %v1144
    %v1146 = vand.u32 %v517, 4294901760
    %v1147 = vsub.f32 %v517, %v1146
    %1148 = vmatmul.f32.gmra.mxu0 %v1147
    %v1149 = vpop.f32.mrf.mxu0
    %v1150 = vadd.f32 %v970, %v1149
    %v1151 = vand.u32 %v520, 4294901760
    %v1152 = vsub.f32 %v520, %v1151
    %1153 = vmatmul.f32.gmra.mxu0 %v1152
    %v1154 = vpop.f32.mrf.mxu0
    %v1155 = vadd.f32 %v974, %v1154
    %v1156 = vand.u32 %v523, 4294901760
    %v1157 = vsub.f32 %v523, %v1156
    %1158 = vmatmul.f32.gmra.mxu0 %v1157
    %v1159 = vpop.f32.mrf.mxu0
    %v1160 = vadd.f32 %v978, %v1159
    %v1161 = vand.u32 %v526, 4294901760
    %v1162 = vsub.f32 %v526, %v1161
    %1163 = vmatmul.f32.gmra.mxu0 %v1162
    %v1164 = vpop.f32.mrf.mxu0
    %v1165 = vadd.f32 %v982, %v1164
    %v1166 = vand.u32 %v529, 4294901760
    %v1167 = vsub.f32 %v529, %v1166
    %1168 = vmatmul.f32.gmra.mxu0 %v1167
    %v1169 = vpop.f32.mrf.mxu0
    %v1170 = vadd.f32 %v986, %v1169
    %v1171 = vand.u32 %v532, 4294901760
    %v1172 = vsub.f32 %v532, %v1171
    %1173 = vmatmul.f32.gmra.mxu0 %v1172
    %v1174 = vpop.f32.mrf.mxu0
    %v1175 = vadd.f32 %v990, %v1174
    %v1176 = vand.u32 %v535, 4294901760
    %v1177 = vsub.f32 %v535, %v1176
    %1178 = vmatmul.f32.gmra.mxu0 %v1177
    %v1179 = vpop.f32.mrf.mxu0
    %v1180 = vadd.f32 %v994, %v1179
    %v1181 = vand.u32 %v538, 4294901760
    %v1182 = vsub.f32 %v538, %v1181
    %1183 = vmatmul.f32.gmra.mxu0 %v1182
    %v1184 = vpop.f32.mrf.mxu0
    %v1185 = vadd.f32 %v998, %v1184
    %v1186 = vand.u32 %v541, 4294901760
    %v1187 = vsub.f32 %v541, %v1186
    %1188 = vmatmul.f32.gmra.mxu0 %v1187
    %v1189 = vpop.f32.mrf.mxu0
    %v1190 = vadd.f32 %v1002, %v1189
    %v1191 = vand.u32 %v544, 4294901760
    %v1192 = vsub.f32 %v544, %v1191
    %1193 = vmatmul.f32.gmra.mxu0 %v1192
    %v1194 = vpop.f32.mrf.mxu0
    %v1195 = vadd.f32 %v1006, %v1194
    %v1196 = vand.u32 %v547, 4294901760
    %v1197 = vsub.f32 %v547, %v1196
    %1198 = vmatmul.f32.gmra.mxu0 %v1197
    %v1199 = vpop.f32.mrf.mxu0
    %v1200 = vadd.f32 %v1010, %v1199
    %v1201 = vand.u32 %v550, 4294901760
    %v1202 = vsub.f32 %v550, %v1201
    %1203 = vmatmul.f32.gmra.mxu0 %v1202
    %v1204 = vpop.f32.mrf.mxu0
    %v1205 = vadd.f32 %v1014, %v1204
    %v1206 = vand.u32 %v553, 4294901760
    %v1207 = vsub.f32 %v553, %v1206
    %1208 = vmatmul.f32.gmra.mxu0 %v1207
    %v1209 = vpop.f32.mrf.mxu0
    %v1210 = vadd.f32 %v1018, %v1209
    %v1211 = vand.u32 %v556, 4294901760
    %v1212 = vsub.f32 %v556, %v1211
    %1213 = vmatmul.f32.gmra.mxu0 %v1212
    %v1214 = vpop.f32.mrf.mxu0
    %v1215 = vadd.f32 %v1022, %v1214
    %1216 = vdwg.mxu0
    %1217 = vmatpush.msra.mxu0 0.0
    %1218 = vmatpush.msra.mxu0 0.0
    %1219 = vmatpush.msra.mxu0 0.0
    %1220 = vmatpush.msra.mxu0 0.0
    %1221 = vmatpush.msra.mxu0 0.0
    %1222 = vmatpush.msra.mxu0 0.0
    %1223 = vmatpush.msra.mxu0 0.0
    %1224 = vmatpush.msra.mxu0 0.0
    %v1225 = vand.u32 %v41, 4294901760
    %1226 = vmatpush.msra.mxu0 %v1225
    %v1227 = vand.u32 %v40, 4294901760
    %1228 = vmatpush.msra.mxu0 %v1227
    %v1229 = vand.u32 %v39, 4294901760
    %1230 = vmatpush.msra.mxu0 %v1229
    %v1231 = vand.u32 %v38, 4294901760
    %1232 = vmatpush.msra.mxu0 %v1231
    %v1233 = vand.u32 %v37, 4294901760
    %1234 = vmatpush.msra.mxu0 %v1233
    %v1235 = vand.u32 %v36, 4294901760
    %1236 = vmatpush.msra.mxu0 %v1235
    %v1237 = vand.u32 %v35, 4294901760
    %1238 = vmatpush.msra.mxu0 %v1237
    %v1239 = vand.u32 %v34, 4294901760
    %1240 = vmatpush.msra.mxu0 %v1239
    %v1241 = vand.u32 %v463, 4294901760
    %v1242 = vsub.f32 %v463, %v1241
    %v1243 = vand.u32 %v1242, 4294901760
    %1244 = vmatmul.f32.gmra.mxu0 %v1243
    %v1245 = vpop.f32.mrf.mxu0
    %v1246 = vadd.f32 %v1060, %v1245
    %v1247 = vand.u32 %v466, 4294901760
    %v1248 = vsub.f32 %v466, %v1247
    %v1249 = vand.u32 %v1248, 4294901760
    %1250 = vmatmul.f32.gmra.mxu0 %v1249
    %v1251 = vpop.f32.mrf.mxu0
    %v1252 = vadd.f32 %v1065, %v1251
    %v1253 = vand.u32 %v469, 4294901760
    %v1254 = vsub.f32 %v469, %v1253
    %v1255 = vand.u32 %v1254, 4294901760
    %1256 = vmatmul.f32.gmra.mxu0 %v1255
    %v1257 = vpop.f32.mrf.mxu0
    %v1258 = vadd.f32 %v1070, %v1257
    %v1259 = vand.u32 %v472, 4294901760
    %v1260 = vsub.f32 %v472, %v1259
    %v1261 = vand.u32 %v1260, 4294901760
    %1262 = vmatmul.f32.gmra.mxu0 %v1261
    %v1263 = vpop.f32.mrf.mxu0
    %v1264 = vadd.f32 %v1075, %v1263
    %v1265 = vand.u32 %v475, 4294901760
    %v1266 = vsub.f32 %v475, %v1265
    %v1267 = vand.u32 %v1266, 4294901760
    %1268 = vmatmul.f32.gmra.mxu0 %v1267
    %v1269 = vpop.f32.mrf.mxu0
    %v1270 = vadd.f32 %v1080, %v1269
    %v1271 = vand.u32 %v478, 4294901760
    %v1272 = vsub.f32 %v478, %v1271
    %v1273 = vand.u32 %v1272, 4294901760
    %1274 = vmatmul.f32.gmra.mxu0 %v1273
    %v1275 = vpop.f32.mrf.mxu0
    %v1276 = vadd.f32 %v1085, %v1275
    %v1277 = vand.u32 %v481, 4294901760
    %v1278 = vsub.f32 %v481, %v1277
    %v1279 = vand.u32 %v1278, 4294901760
    %1280 = vmatmul.f32.gmra.mxu0 %v1279
    %v1281 = vpop.f32.mrf.mxu0
    %v1282 = vadd.f32 %v1090, %v1281
    %v1283 = vand.u32 %v484, 4294901760
    %v1284 = vsub.f32 %v484, %v1283
    %v1285 = vand.u32 %v1284, 4294901760
    %1286 = vmatmul.f32.gmra.mxu0 %v1285
    %v1287 = vpop.f32.mrf.mxu0
    %v1288 = vadd.f32 %v1095, %v1287
    %v1289 = vand.u32 %v487, 4294901760
    %v1290 = vsub.f32 %v487, %v1289
    %v1291 = vand.u32 %v1290, 4294901760
    %1292 = vmatmul.f32.gmra.mxu0 %v1291
    %v1293 = vpop.f32.mrf.mxu0
    %v1294 = vadd.f32 %v1100, %v1293
    %v1295 = vand.u32 %v490, 4294901760
    %v1296 = vsub.f32 %v490, %v1295
    %v1297 = vand.u32 %v1296, 4294901760
    %1298 = vmatmul.f32.gmra.mxu0 %v1297
    %v1299 = vpop.f32.mrf.mxu0
    %v1300 = vadd.f32 %v1105, %v1299
    %v1301 = vand.u32 %v493, 4294901760
    %v1302 = vsub.f32 %v493, %v1301
    %v1303 = vand.u32 %v1302, 4294901760
    %1304 = vmatmul.f32.gmra.mxu0 %v1303
    %v1305 = vpop.f32.mrf.mxu0
    %v1306 = vadd.f32 %v1110, %v1305
    %v1307 = vand.u32 %v496, 4294901760
    %v1308 = vsub.f32 %v496, %v1307
    %v1309 = vand.u32 %v1308, 4294901760
    %1310 = vmatmul.f32.gmra.mxu0 %v1309
    %v1311 = vpop.f32.mrf.mxu0
    %v1312 = vadd.f32 %v1115, %v1311
    %v1313 = vand.u32 %v499, 4294901760
    %v1314 = vsub.f32 %v499, %v1313
    %v1315 = vand.u32 %v1314, 4294901760
    %1316 = vmatmul.f32.gmra.mxu0 %v1315
    %v1317 = vpop.f32.mrf.mxu0
    %v1318 = vadd.f32 %v1120, %v1317
    %v1319 = vand.u32 %v502, 4294901760
    %v1320 = vsub.f32 %v502, %v1319
    %v1321 = vand.u32 %v1320, 4294901760
    %1322 = vmatmul.f32.gmra.mxu0 %v1321
    %v1323 = vpop.f32.mrf.mxu0
    %v1324 = vadd.f32 %v1125, %v1323
    %v1325 = vand.u32 %v505, 4294901760
    %v1326 = vsub.f32 %v505, %v1325
    %v1327 = vand.u32 %v1326, 4294901760
    %1328 = vmatmul.f32.gmra.mxu0 %v1327
    %v1329 = vpop.f32.mrf.mxu0
    %v1330 = vadd.f32 %v1130, %v1329
    %v1331 = vand.u32 %v508, 4294901760
    %v1332 = vsub.f32 %v508, %v1331
    %v1333 = vand.u32 %v1332, 4294901760
    %1334 = vmatmul.f32.gmra.mxu0 %v1333
    %v1335 = vpop.f32.mrf.mxu0
    %v1336 = vadd.f32 %v1135, %v1335
    %v1337 = vand.u32 %v511, 4294901760
    %v1338 = vsub.f32 %v511, %v1337
    %v1339 = vand.u32 %v1338, 4294901760
    %1340 = vmatmul.f32.gmra.mxu0 %v1339
    %v1341 = vpop.f32.mrf.mxu0
    %v1342 = vadd.f32 %v1140, %v1341
    %v1343 = vand.u32 %v514, 4294901760
    %v1344 = vsub.f32 %v514, %v1343
    %v1345 = vand.u32 %v1344, 4294901760
    %1346 = vmatmul.f32.gmra.mxu0 %v1345
    %v1347 = vpop.f32.mrf.mxu0
    %v1348 = vadd.f32 %v1145, %v1347
    %v1349 = vand.u32 %v517, 4294901760
    %v1350 = vsub.f32 %v517, %v1349
    %v1351 = vand.u32 %v1350, 4294901760
    %1352 = vmatmul.f32.gmra.mxu0 %v1351
    %v1353 = vpop.f32.mrf.mxu0
    %v1354 = vadd.f32 %v1150, %v1353
    %v1355 = vand.u32 %v520, 4294901760
    %v1356 = vsub.f32 %v520, %v1355
    %v1357 = vand.u32 %v1356, 4294901760
    %1358 = vmatmul.f32.gmra.mxu0 %v1357
    %v1359 = vpop.f32.mrf.mxu0
    %v1360 = vadd.f32 %v1155, %v1359
    %v1361 = vand.u32 %v523, 4294901760
    %v1362 = vsub.f32 %v523, %v1361
    %v1363 = vand.u32 %v1362, 4294901760
    %1364 = vmatmul.f32.gmra.mxu0 %v1363
    %v1365 = vpop.f32.mrf.mxu0
    %v1366 = vadd.f32 %v1160, %v1365
    %v1367 = vand.u32 %v526, 4294901760
    %v1368 = vsub.f32 %v526, %v1367
    %v1369 = vand.u32 %v1368, 4294901760
    %1370 = vmatmul.f32.gmra.mxu0 %v1369
    %v1371 = vpop.f32.mrf.mxu0
    %v1372 = vadd.f32 %v1165, %v1371
    %v1373 = vand.u32 %v529, 4294901760
    %v1374 = vsub.f32 %v529, %v1373
    %v1375 = vand.u32 %v1374, 4294901760
    %1376 = vmatmul.f32.gmra.mxu0 %v1375
    %v1377 = vpop.f32.mrf.mxu0
    %v1378 = vadd.f32 %v1170, %v1377
    %v1379 = vand.u32 %v532, 4294901760
    %v1380 = vsub.f32 %v532, %v1379
    %v1381 = vand.u32 %v1380, 4294901760
    %1382 = vmatmul.f32.gmra.mxu0 %v1381
    %v1383 = vpop.f32.mrf.mxu0
    %v1384 = vadd.f32 %v1175, %v1383
    %v1385 = vand.u32 %v535, 4294901760
    %v1386 = vsub.f32 %v535, %v1385
    %v1387 = vand.u32 %v1386, 4294901760
    %1388 = vmatmul.f32.gmra.mxu0 %v1387
    %v1389 = vpop.f32.mrf.mxu0
    %v1390 = vadd.f32 %v1180, %v1389
    %v1391 = vand.u32 %v538, 4294901760
    %v1392 = vsub.f32 %v538, %v1391
    %v1393 = vand.u32 %v1392, 4294901760
    %1394 = vmatmul.f32.gmra.mxu0 %v1393
    %v1395 = vpop.f32.mrf.mxu0
    %v1396 = vadd.f32 %v1185, %v1395
    %v1397 = vand.u32 %v541, 4294901760
    %v1398 = vsub.f32 %v541, %v1397
    %v1399 = vand.u32 %v1398, 4294901760
    %1400 = vmatmul.f32.gmra.mxu0 %v1399
    %v1401 = vpop.f32.mrf.mxu0
    %v1402 = vadd.f32 %v1190, %v1401
    %v1403 = vand.u32 %v544, 4294901760
    %v1404 = vsub.f32 %v544, %v1403
    %v1405 = vand.u32 %v1404, 4294901760
    %1406 = vmatmul.f32.gmra.mxu0 %v1405
    %v1407 = vpop.f32.mrf.mxu0
    %v1408 = vadd.f32 %v1195, %v1407
    %v1409 = vand.u32 %v547, 4294901760
    %v1410 = vsub.f32 %v547, %v1409
    %v1411 = vand.u32 %v1410, 4294901760
    %1412 = vmatmul.f32.gmra.mxu0 %v1411
    %v1413 = vpop.f32.mrf.mxu0
    %v1414 = vadd.f32 %v1200, %v1413
    %v1415 = vand.u32 %v550, 4294901760
    %v1416 = vsub.f32 %v550, %v1415
    %v1417 = vand.u32 %v1416, 4294901760
    %1418 = vmatmul.f32.gmra.mxu0 %v1417
    %v1419 = vpop.f32.mrf.mxu0
    %v1420 = vadd.f32 %v1205, %v1419
    %v1421 = vand.u32 %v553, 4294901760
    %v1422 = vsub.f32 %v553, %v1421
    %v1423 = vand.u32 %v1422, 4294901760
    %1424 = vmatmul.f32.gmra.mxu0 %v1423
    %v1425 = vpop.f32.mrf.mxu0
    %v1426 = vadd.f32 %v1210, %v1425
    %v1427 = vand.u32 %v556, 4294901760
    %v1428 = vsub.f32 %v556, %v1427
    %v1429 = vand.u32 %v1428, 4294901760
    %1430 = vmatmul.f32.gmra.mxu0 %v1429
    %v1431 = vpop.f32.mrf.mxu0
    %v1432 = vadd.f32 %v1215, %v1431
    %1433 = vdwg.mxu0
    %1434 = vmatpush.msra.mxu0 0.0
    %1435 = vmatpush.msra.mxu0 0.0
    %1436 = vmatpush.msra.mxu0 0.0
    %1437 = vmatpush.msra.mxu0 0.0
    %1438 = vmatpush.msra.mxu0 0.0
    %1439 = vmatpush.msra.mxu0 0.0
    %1440 = vmatpush.msra.mxu0 0.0
    %1441 = vmatpush.msra.mxu0 0.0
    %v1442 = vand.u32 %v41, 4294901760
    %v1443 = vsub.f32 %v41, %v1442
    %v1444 = vand.u32 %v1443, 4294901760
    %1445 = vmatpush.msra.mxu0 %v1444
    %v1446 = vand.u32 %v40, 4294901760
    %v1447 = vsub.f32 %v40, %v1446
    %v1448 = vand.u32 %v1447, 4294901760
    %1449 = vmatpush.msra.mxu0 %v1448
    %v1450 = vand.u32 %v39, 4294901760
    %v1451 = vsub.f32 %v39, %v1450
    %v1452 = vand.u32 %v1451, 4294901760
    %1453 = vmatpush.msra.mxu0 %v1452
    %v1454 = vand.u32 %v38, 4294901760
    %v1455 = vsub.f32 %v38, %v1454
    %v1456 = vand.u32 %v1455, 4294901760
    %1457 = vmatpush.msra.mxu0 %v1456
    %v1458 = vand.u32 %v37, 4294901760
    %v1459 = vsub.f32 %v37, %v1458
    %v1460 = vand.u32 %v1459, 4294901760
    %1461 = vmatpush.msra.mxu0 %v1460
    %v1462 = vand.u32 %v36, 4294901760
    %v1463 = vsub.f32 %v36, %v1462
    %v1464 = vand.u32 %v1463, 4294901760
    %1465 = vmatpush.msra.mxu0 %v1464
    %v1466 = vand.u32 %v35, 4294901760
    %v1467 = vsub.f32 %v35, %v1466
    %v1468 = vand.u32 %v1467, 4294901760
    %1469 = vmatpush.msra.mxu0 %v1468
    %v1470 = vand.u32 %v34, 4294901760
    %v1471 = vsub.f32 %v34, %v1470
    %v1472 = vand.u32 %v1471, 4294901760
    %1473 = vmatpush.msra.mxu0 %v1472
    %v1474 = vand.u32 %v463, 4294901760
    %1475 = vmatmul.f32.gmra.mxu0 %v1474
    %v1476 = vpop.f32.mrf.mxu0
    %v1477 = vadd.f32 %v1246, %v1476
    %v1478 = vand.u32 %v466, 4294901760
    %1479 = vmatmul.f32.gmra.mxu0 %v1478
    %v1480 = vpop.f32.mrf.mxu0
    %v1481 = vadd.f32 %v1252, %v1480
    %v1482 = vand.u32 %v469, 4294901760
    %1483 = vmatmul.f32.gmra.mxu0 %v1482
    %v1484 = vpop.f32.mrf.mxu0
    %v1485 = vadd.f32 %v1258, %v1484
    %v1486 = vand.u32 %v472, 4294901760
    %1487 = vmatmul.f32.gmra.mxu0 %v1486
    %v1488 = vpop.f32.mrf.mxu0
    %v1489 = vadd.f32 %v1264, %v1488
    %v1490 = vand.u32 %v475, 4294901760
    %1491 = vmatmul.f32.gmra.mxu0 %v1490
    %v1492 = vpop.f32.mrf.mxu0
    %v1493 = vadd.f32 %v1270, %v1492
    %v1494 = vand.u32 %v478, 4294901760
    %1495 = vmatmul.f32.gmra.mxu0 %v1494
    %v1496 = vpop.f32.mrf.mxu0
    %v1497 = vadd.f32 %v1276, %v1496
    %v1498 = vand.u32 %v481, 4294901760
    %1499 = vmatmul.f32.gmra.mxu0 %v1498
    %v1500 = vpop.f32.mrf.mxu0
    %v1501 = vadd.f32 %v1282, %v1500
    %v1502 = vand.u32 %v484, 4294901760
    %1503 = vmatmul.f32.gmra.mxu0 %v1502
    %v1504 = vpop.f32.mrf.mxu0
    %v1505 = vadd.f32 %v1288, %v1504
    %v1506 = vand.u32 %v487, 4294901760
    %1507 = vmatmul.f32.gmra.mxu0 %v1506
    %v1508 = vpop.f32.mrf.mxu0
    %v1509 = vadd.f32 %v1294, %v1508
    %v1510 = vand.u32 %v490, 4294901760
    %1511 = vmatmul.f32.gmra.mxu0 %v1510
    %v1512 = vpop.f32.mrf.mxu0
    %v1513 = vadd.f32 %v1300, %v1512
    %v1514 = vand.u32 %v493, 4294901760
    %1515 = vmatmul.f32.gmra.mxu0 %v1514
    %v1516 = vpop.f32.mrf.mxu0
    %v1517 = vadd.f32 %v1306, %v1516
    %v1518 = vand.u32 %v496, 4294901760
    %1519 = vmatmul.f32.gmra.mxu0 %v1518
    %v1520 = vpop.f32.mrf.mxu0
    %v1521 = vadd.f32 %v1312, %v1520
    %v1522 = vand.u32 %v499, 4294901760
    %1523 = vmatmul.f32.gmra.mxu0 %v1522
    %v1524 = vpop.f32.mrf.mxu0
    %v1525 = vadd.f32 %v1318, %v1524
    %v1526 = vand.u32 %v502, 4294901760
    %1527 = vmatmul.f32.gmra.mxu0 %v1526
    %v1528 = vpop.f32.mrf.mxu0
    %v1529 = vadd.f32 %v1324, %v1528
    %v1530 = vand.u32 %v505, 4294901760
    %1531 = vmatmul.f32.gmra.mxu0 %v1530
    %v1532 = vpop.f32.mrf.mxu0
    %v1533 = vadd.f32 %v1330, %v1532
    %v1534 = vand.u32 %v508, 4294901760
    %1535 = vmatmul.f32.gmra.mxu0 %v1534
    %v1536 = vpop.f32.mrf.mxu0
    %v1537 = vadd.f32 %v1336, %v1536
    %v1538 = vand.u32 %v511, 4294901760
    %1539 = vmatmul.f32.gmra.mxu0 %v1538
    %v1540 = vpop.f32.mrf.mxu0
    %v1541 = vadd.f32 %v1342, %v1540
    %v1542 = vand.u32 %v514, 4294901760
    %1543 = vmatmul.f32.gmra.mxu0 %v1542
    %v1544 = vpop.f32.mrf.mxu0
    %v1545 = vadd.f32 %v1348, %v1544
    %v1546 = vand.u32 %v517, 4294901760
    %1547 = vmatmul.f32.gmra.mxu0 %v1546
    %v1548 = vpop.f32.mrf.mxu0
    %v1549 = vadd.f32 %v1354, %v1548
    %v1550 = vand.u32 %v520, 4294901760
    %1551 = vmatmul.f32.gmra.mxu0 %v1550
    %v1552 = vpop.f32.mrf.mxu0
    %v1553 = vadd.f32 %v1360, %v1552
    %v1554 = vand.u32 %v523, 4294901760
    %1555 = vmatmul.f32.gmra.mxu0 %v1554
    %v1556 = vpop.f32.mrf.mxu0
    %v1557 = vadd.f32 %v1366, %v1556
    %v1558 = vand.u32 %v526, 4294901760
    %1559 = vmatmul.f32.gmra.mxu0 %v1558
    %v1560 = vpop.f32.mrf.mxu0
    %v1561 = vadd.f32 %v1372, %v1560
    %v1562 = vand.u32 %v529, 4294901760
    %1563 = vmatmul.f32.gmra.mxu0 %v1562
    %v1564 = vpop.f32.mrf.mxu0
    %v1565 = vadd.f32 %v1378, %v1564
    %v1566 = vand.u32 %v532, 4294901760
    %1567 = vmatmul.f32.gmra.mxu0 %v1566
    %v1568 = vpop.f32.mrf.mxu0
    %v1569 = vadd.f32 %v1384, %v1568
    %v1570 = vand.u32 %v535, 4294901760
    %1571 = vmatmul.f32.gmra.mxu0 %v1570
    %v1572 = vpop.f32.mrf.mxu0
    %v1573 = vadd.f32 %v1390, %v1572
    %v1574 = vand.u32 %v538, 4294901760
    %1575 = vmatmul.f32.gmra.mxu0 %v1574
    %v1576 = vpop.f32.mrf.mxu0
    %v1577 = vadd.f32 %v1396, %v1576
    %v1578 = vand.u32 %v541, 4294901760
    %1579 = vmatmul.f32.gmra.mxu0 %v1578
    %v1580 = vpop.f32.mrf.mxu0
    %v1581 = vadd.f32 %v1402, %v1580
    %v1582 = vand.u32 %v544, 4294901760
    %1583 = vmatmul.f32.gmra.mxu0 %v1582
    %v1584 = vpop.f32.mrf.mxu0
    %v1585 = vadd.f32 %v1408, %v1584
    %v1586 = vand.u32 %v547, 4294901760
    %1587 = vmatmul.f32.gmra.mxu0 %v1586
    %v1588 = vpop.f32.mrf.mxu0
    %v1589 = vadd.f32 %v1414, %v1588
    %v1590 = vand.u32 %v550, 4294901760
    %1591 = vmatmul.f32.gmra.mxu0 %v1590
    %v1592 = vpop.f32.mrf.mxu0
    %v1593 = vadd.f32 %v1420, %v1592
    %v1594 = vand.u32 %v553, 4294901760
    %1595 = vmatmul.f32.gmra.mxu0 %v1594
    %v1596 = vpop.f32.mrf.mxu0
    %v1597 = vadd.f32 %v1426, %v1596
    %v1598 = vand.u32 %v556, 4294901760
    %1599 = vmatmul.f32.gmra.mxu0 %v1598
    %v1600 = vpop.f32.mrf.mxu0
    %v1601 = vadd.f32 %v1432, %v1600
    %1602 = vdwg.mxu0
    %1603 = vmatpush.msra.mxu0 0.0
    %1604 = vmatpush.msra.mxu0 0.0
    %1605 = vmatpush.msra.mxu0 0.0
    %1606 = vmatpush.msra.mxu0 0.0
    %1607 = vmatpush.msra.mxu0 0.0
    %1608 = vmatpush.msra.mxu0 0.0
    %1609 = vmatpush.msra.mxu0 0.0
    %1610 = vmatpush.msra.mxu0 0.0
    %v1611 = vand.u32 %v41, 4294901760
    %1612 = vmatpush.msra.mxu0 %v1611
    %v1613 = vand.u32 %v40, 4294901760
    %1614 = vmatpush.msra.mxu0 %v1613
    %v1615 = vand.u32 %v39, 4294901760
    %1616 = vmatpush.msra.mxu0 %v1615
    %v1617 = vand.u32 %v38, 4294901760
    %1618 = vmatpush.msra.mxu0 %v1617
    %v1619 = vand.u32 %v37, 4294901760
    %1620 = vmatpush.msra.mxu0 %v1619
    %v1621 = vand.u32 %v36, 4294901760
    %1622 = vmatpush.msra.mxu0 %v1621
    %v1623 = vand.u32 %v35, 4294901760
    %1624 = vmatpush.msra.mxu0 %v1623
    %v1625 = vand.u32 %v34, 4294901760
    %1626 = vmatpush.msra.mxu0 %v1625
    %v1627 = vand.u32 %v463, 4294901760
    %1628 = vmatmul.f32.gmra.mxu0 %v1627
    %v1629 = vpop.f32.mrf.mxu0
    %v1630 = vadd.f32 %v1477, %v1629
    %v1631 = vand.u32 %v466, 4294901760
    %1632 = vmatmul.f32.gmra.mxu0 %v1631
    %v1633 = vpop.f32.mrf.mxu0
    %v1634 = vadd.f32 %v1481, %v1633
    %v1635 = vand.u32 %v469, 4294901760
    %1636 = vmatmul.f32.gmra.mxu0 %v1635
    %v1637 = vpop.f32.mrf.mxu0
    %v1638 = vadd.f32 %v1485, %v1637
    %v1639 = vand.u32 %v472, 4294901760
    %1640 = vmatmul.f32.gmra.mxu0 %v1639
    %v1641 = vpop.f32.mrf.mxu0
    %v1642 = vadd.f32 %v1489, %v1641
    %v1643 = vand.u32 %v475, 4294901760
    %1644 = vmatmul.f32.gmra.mxu0 %v1643
    %v1645 = vpop.f32.mrf.mxu0
    %v1646 = vadd.f32 %v1493, %v1645
    %v1647 = vand.u32 %v478, 4294901760
    %1648 = vmatmul.f32.gmra.mxu0 %v1647
    %v1649 = vpop.f32.mrf.mxu0
    %v1650 = vadd.f32 %v1497, %v1649
    %v1651 = vand.u32 %v481, 4294901760
    %1652 = vmatmul.f32.gmra.mxu0 %v1651
    %v1653 = vpop.f32.mrf.mxu0
    %v1654 = vadd.f32 %v1501, %v1653
    %v1655 = vand.u32 %v484, 4294901760
    %1656 = vmatmul.f32.gmra.mxu0 %v1655
    %v1657 = vpop.f32.mrf.mxu0
    %v1658 = vadd.f32 %v1505, %v1657
    %v1659 = vand.u32 %v487, 4294901760
    %1660 = vmatmul.f32.gmra.mxu0 %v1659
    %v1661 = vpop.f32.mrf.mxu0
    %v1662 = vadd.f32 %v1509, %v1661
    %v1663 = vand.u32 %v490, 4294901760
    %1664 = vmatmul.f32.gmra.mxu0 %v1663
    %v1665 = vpop.f32.mrf.mxu0
    %v1666 = vadd.f32 %v1513, %v1665
    %v1667 = vand.u32 %v493, 4294901760
    %1668 = vmatmul.f32.gmra.mxu0 %v1667
    %v1669 = vpop.f32.mrf.mxu0
    %v1670 = vadd.f32 %v1517, %v1669
    %v1671 = vand.u32 %v496, 4294901760
    %1672 = vmatmul.f32.gmra.mxu0 %v1671
    %v1673 = vpop.f32.mrf.mxu0
    %v1674 = vadd.f32 %v1521, %v1673
    %v1675 = vand.u32 %v499, 4294901760
    %1676 = vmatmul.f32.gmra.mxu0 %v1675
    %v1677 = vpop.f32.mrf.mxu0
    %v1678 = vadd.f32 %v1525, %v1677
    %v1679 = vand.u32 %v502, 4294901760
    %1680 = vmatmul.f32.gmra.mxu0 %v1679
    %v1681 = vpop.f32.mrf.mxu0
    %v1682 = vadd.f32 %v1529, %v1681
    %v1683 = vand.u32 %v505, 4294901760
    %1684 = vmatmul.f32.gmra.mxu0 %v1683
    %v1685 = vpop.f32.mrf.mxu0
    %v1686 = vadd.f32 %v1533, %v1685
    %v1687 = vand.u32 %v508, 4294901760
    %1688 = vmatmul.f32.gmra.mxu0 %v1687
    %v1689 = vpop.f32.mrf.mxu0
    %v1690 = vadd.f32 %v1537, %v1689
    %v1691 = vand.u32 %v511, 4294901760
    %1692 = vmatmul.f32.gmra.mxu0 %v1691
    %v1693 = vpop.f32.mrf.mxu0
    %v1694 = vadd.f32 %v1541, %v1693
    %v1695 = vand.u32 %v514, 4294901760
    %1696 = vmatmul.f32.gmra.mxu0 %v1695
    %v1697 = vpop.f32.mrf.mxu0
    %v1698 = vadd.f32 %v1545, %v1697
    %v1699 = vand.u32 %v517, 4294901760
    %1700 = vmatmul.f32.gmra.mxu0 %v1699
    %v1701 = vpop.f32.mrf.mxu0
    %v1702 = vadd.f32 %v1549, %v1701
    %v1703 = vand.u32 %v520, 4294901760
    %1704 = vmatmul.f32.gmra.mxu0 %v1703
    %v1705 = vpop.f32.mrf.mxu0
    %v1706 = vadd.f32 %v1553, %v1705
    %v1707 = vand.u32 %v523, 4294901760
    %1708 = vmatmul.f32.gmra.mxu0 %v1707
    %v1709 = vpop.f32.mrf.mxu0
    %v1710 = vadd.f32 %v1557, %v1709
    %v1711 = vand.u32 %v526, 4294901760
    %1712 = vmatmul.f32.gmra.mxu0 %v1711
    %v1713 = vpop.f32.mrf.mxu0
    %v1714 = vadd.f32 %v1561, %v1713
    %v1715 = vand.u32 %v529, 4294901760
    %1716 = vmatmul.f32.gmra.mxu0 %v1715
    %v1717 = vpop.f32.mrf.mxu0
    %v1718 = vadd.f32 %v1565, %v1717
    %v1719 = vand.u32 %v532, 4294901760
    %1720 = vmatmul.f32.gmra.mxu0 %v1719
    %v1721 = vpop.f32.mrf.mxu0
    %v1722 = vadd.f32 %v1569, %v1721
    %v1723 = vand.u32 %v535, 4294901760
    %1724 = vmatmul.f32.gmra.mxu0 %v1723
    %v1725 = vpop.f32.mrf.mxu0
    %v1726 = vadd.f32 %v1573, %v1725
    %v1727 = vand.u32 %v538, 4294901760
    %1728 = vmatmul.f32.gmra.mxu0 %v1727
    %v1729 = vpop.f32.mrf.mxu0
    %v1730 = vadd.f32 %v1577, %v1729
    %v1731 = vand.u32 %v541, 4294901760
    %1732 = vmatmul.f32.gmra.mxu0 %v1731
    %v1733 = vpop.f32.mrf.mxu0
    %v1734 = vadd.f32 %v1581, %v1733
    %v1735 = vand.u32 %v544, 4294901760
    %1736 = vmatmul.f32.gmra.mxu0 %v1735
    %v1737 = vpop.f32.mrf.mxu0
    %v1738 = vadd.f32 %v1585, %v1737
    %v1739 = vand.u32 %v547, 4294901760
    %1740 = vmatmul.f32.gmra.mxu0 %v1739
    %v1741 = vpop.f32.mrf.mxu0
    %v1742 = vadd.f32 %v1589, %v1741
    %v1743 = vand.u32 %v550, 4294901760
    %1744 = vmatmul.f32.gmra.mxu0 %v1743
    %v1745 = vpop.f32.mrf.mxu0
    %v1746 = vadd.f32 %v1593, %v1745
    %v1747 = vand.u32 %v553, 4294901760
    %1748 = vmatmul.f32.gmra.mxu0 %v1747
    %v1749 = vpop.f32.mrf.mxu0
    %v1750 = vadd.f32 %v1597, %v1749
    %v1751 = vand.u32 %v556, 4294901760
    %1752 = vmatmul.f32.gmra.mxu0 %v1751
    %v1753 = vpop.f32.mrf.mxu0
    %v1754 = vadd.f32 %v1601, %v1753
    %1755 = vdwg.mxu0
    %v1756 = vmax.f32 %v1630, 0.0
    %v1757 = vmax.f32 %v1634, 0.0
    %v1758 = vmax.f32 %v1638, 0.0
    %v1759 = vmax.f32 %v1642, 0.0
    %v1760 = vmax.f32 %v1646, 0.0
    %v1761 = vmax.f32 %v1650, 0.0
    %v1762 = vmax.f32 %v1654, 0.0
    %v1763 = vmax.f32 %v1658, 0.0
    %v1764 = vmax.f32 %v1662, 0.0
    %v1765 = vmax.f32 %v1666, 0.0
    %v1766 = vmax.f32 %v1670, 0.0
    %v1767 = vmax.f32 %v1674, 0.0
    %v1768 = vmax.f32 %v1678, 0.0
    %v1769 = vmax.f32 %v1682, 0.0
    %v1770 = vmax.f32 %v1686, 0.0
    %v1771 = vmax.f32 %v1690, 0.0
    %v1772 = vmax.f32 %v1694, 0.0
    %v1773 = vmax.f32 %v1698, 0.0
    %v1774 = vmax.f32 %v1702, 0.0
    %v1775 = vmax.f32 %v1706, 0.0
    %v1776 = vmax.f32 %v1710, 0.0
    %v1777 = vmax.f32 %v1714, 0.0
    %v1778 = vmax.f32 %v1718, 0.0
    %v1779 = vmax.f32 %v1722, 0.0
    %v1780 = vmax.f32 %v1726, 0.0
    %v1781 = vmax.f32 %v1730, 0.0
    %v1782 = vmax.f32 %v1734, 0.0
    %v1783 = vmax.f32 %v1738, 0.0
    %v1784 = vmax.f32 %v1742, 0.0
    %v1785 = vmax.f32 %v1746, 0.0
    %v1786 = vmax.f32 %v1750, 0.0
    %v1787 = vmax.f32 %v1754, 0.0
    %1789 = vset.pattern.permute.xlu0 0
    %1790 = vperm.xlu0 %1789, %v171
    %v1791 = vpop.permute.xlu0 %1790
    %1794 = vset.pattern.permute.xlu0 0
    %1795 = vperm.xlu0 %1794, %v172
    %v1796 = vpop.permute.xlu0 %1795
    %1799 = vset.pattern.permute.xlu0 0
    %1800 = vperm.xlu0 %1799, %v173
    %v1801 = vpop.permute.xlu0 %1800
    %1804 = vset.pattern.permute.xlu0 0
    %1805 = vperm.xlu0 %1804, %v174
    %v1806 = vpop.permute.xlu0 %1805
    %1809 = vset.pattern.permute.xlu0 0
    %1810 = vperm.xlu0 %1809, %v175
    %v1811 = vpop.permute.xlu0 %1810
    %1814 = vset.pattern.permute.xlu0 0
    %1815 = vperm.xlu0 %1814, %v176
    %v1816 = vpop.permute.xlu0 %1815
    %1819 = vset.pattern.permute.xlu0 0
    %1820 = vperm.xlu0 %1819, %v177
    %v1821 = vpop.permute.xlu0 %1820
    %1824 = vset.pattern.permute.xlu0 0
    %1825 = vperm.xlu0 %1824, %v178
    %v1826 = vpop.permute.xlu0 %1825
    %1829 = vset.pattern.permute.xlu0 0
    %1830 = vperm.xlu0 %1829, %v179
    %v1831 = vpop.permute.xlu0 %1830
    %1834 = vset.pattern.permute.xlu0 0
    %1835 = vperm.xlu0 %1834, %v180
    %v1836 = vpop.permute.xlu0 %1835
    %1839 = vset.pattern.permute.xlu0 0
    %1840 = vperm.xlu0 %1839, %v181
    %v1841 = vpop.permute.xlu0 %1840
    %1844 = vset.pattern.permute.xlu0 0
    %1845 = vperm.xlu0 %1844, %v182
    %v1846 = vpop.permute.xlu0 %1845
    %1849 = vset.pattern.permute.xlu0 0
    %1850 = vperm.xlu0 %1849, %v183
    %v1851 = vpop.permute.xlu0 %1850
    %1854 = vset.pattern.permute.xlu0 0
    %1855 = vperm.xlu0 %1854, %v184
    %v1856 = vpop.permute.xlu0 %1855
    %1859 = vset.pattern.permute.xlu0 0
    %1860 = vperm.xlu0 %1859, %v185
    %v1861 = vpop.permute.xlu0 %1860
    %1864 = vset.pattern.permute.xlu0 0
    %1865 = vperm.xlu0 %1864, %v186
    %v1866 = vpop.permute.xlu0 %1865
    %1869 = vset.pattern.permute.xlu0 0
    %1870 = vperm.xlu0 %1869, %v187
    %v1871 = vpop.permute.xlu0 %1870
    %1874 = vset.pattern.permute.xlu0 0
    %1875 = vperm.xlu0 %1874, %v188
    %v1876 = vpop.permute.xlu0 %1875
    %1879 = vset.pattern.permute.xlu0 0
    %1880 = vperm.xlu0 %1879, %v189
    %v1881 = vpop.permute.xlu0 %1880
    %1884 = vset.pattern.permute.xlu0 0
    %1885 = vperm.xlu0 %1884, %v190
    %v1886 = vpop.permute.xlu0 %1885
    %1889 = vset.pattern.permute.xlu0 0
    %1890 = vperm.xlu0 %1889, %v191
    %v1891 = vpop.permute.xlu0 %1890
    %1894 = vset.pattern.permute.xlu0 0
    %1895 = vperm.xlu0 %1894, %v192
    %v1896 = vpop.permute.xlu0 %1895
    %1899 = vset.pattern.permute.xlu0 0
    %1900 = vperm.xlu0 %1899, %v193
    %v1901 = vpop.permute.xlu0 %1900
    %1904 = vset.pattern.permute.xlu0 0
    %1905 = vperm.xlu0 %1904, %v194
    %v1906 = vpop.permute.xlu0 %1905
    %1909 = vset.pattern.permute.xlu0 0
    %1910 = vperm.xlu0 %1909, %v195
    %v1911 = vpop.permute.xlu0 %1910
    %1914 = vset.pattern.permute.xlu0 0
    %1915 = vperm.xlu0 %1914, %v196
    %v1916 = vpop.permute.xlu0 %1915
    %1919 = vset.pattern.permute.xlu0 0
    %1920 = vperm.xlu0 %1919, %v197
    %v1921 = vpop.permute.xlu0 %1920
    %1924 = vset.pattern.permute.xlu0 0
    %1925 = vperm.xlu0 %1924, %v198
    %v1926 = vpop.permute.xlu0 %1925
    %1929 = vset.pattern.permute.xlu0 0
    %1930 = vperm.xlu0 %1929, %v199
    %v1931 = vpop.permute.xlu0 %1930
    %1934 = vset.pattern.permute.xlu0 0
    %1935 = vperm.xlu0 %1934, %v200
    %v1936 = vpop.permute.xlu0 %1935
    %1939 = vset.pattern.permute.xlu0 0
    %1940 = vperm.xlu0 %1939, %v201
    %v1941 = vpop.permute.xlu0 %1940
    %1944 = vset.pattern.permute.xlu0 0
    %1945 = vperm.xlu0 %1944, %v202
    %v1946 = vpop.permute.xlu0 %1945
    %v1948 = vand.u32 %v1771, 4294901760
    %1949 = vmatpush.msra.mxu0 %v1948
    %v1950 = vand.u32 %v1770, 4294901760
    %1951 = vmatpush.msra.mxu0 %v1950
    %v1952 = vand.u32 %v1769, 4294901760
    %1953 = vmatpush.msra.mxu0 %v1952
    %v1954 = vand.u32 %v1768, 4294901760
    %1955 = vmatpush.msra.mxu0 %v1954
    %v1956 = vand.u32 %v1767, 4294901760
    %1957 = vmatpush.msra.mxu0 %v1956
    %v1958 = vand.u32 %v1766, 4294901760
    %1959 = vmatpush.msra.mxu0 %v1958
    %v1960 = vand.u32 %v1765, 4294901760
    %1961 = vmatpush.msra.mxu0 %v1960
    %v1962 = vand.u32 %v1764, 4294901760
    %1963 = vmatpush.msra.mxu0 %v1962
    %v1964 = vand.u32 %v1763, 4294901760
    %1965 = vmatpush.msra.mxu0 %v1964
    %v1966 = vand.u32 %v1762, 4294901760
    %1967 = vmatpush.msra.mxu0 %v1966
    %v1968 = vand.u32 %v1761, 4294901760
    %1969 = vmatpush.msra.mxu0 %v1968
    %v1970 = vand.u32 %v1760, 4294901760
    %1971 = vmatpush.msra.mxu0 %v1970
    %v1972 = vand.u32 %v1759, 4294901760
    %1973 = vmatpush.msra.mxu0 %v1972
    %v1974 = vand.u32 %v1758, 4294901760
    %1975 = vmatpush.msra.mxu0 %v1974
    %v1976 = vand.u32 %v1757, 4294901760
    %1977 = vmatpush.msra.mxu0 %v1976
    %v1978 = vand.u32 %v1756, 4294901760
    %1979 = vmatpush.msra.mxu0 %v1978
    %v1980 = vand.u32 %v107, 4294901760
    %v1981 = vsub.f32 %v107, %v1980
    %v1982 = vand.u32 %v1981, 4294901760
    %v1983 = vsub.f32 %v1981, %v1982
    %v1984 = vand.u32 %v1983, 4294901760
    %1985 = vmatmul.f32.gmra.mxu0 %v1984
    %v1986 = vpop.f32.mrf.mxu0
    %v1987 = vadd.f32 %v1791, %v1986
    %v1988 = vand.u32 %v109, 4294901760
    %v1989 = vsub.f32 %v109, %v1988
    %v1990 = vand.u32 %v1989, 4294901760
    %v1991 = vsub.f32 %v1989, %v1990
    %v1992 = vand.u32 %v1991, 4294901760
    %1993 = vmatmul.f32.gmra.mxu0 %v1992
    %v1994 = vpop.f32.mrf.mxu0
    %v1995 = vadd.f32 %v1796, %v1994
    %v1996 = vand.u32 %v111, 4294901760
    %v1997 = vsub.f32 %v111, %v1996
    %v1998 = vand.u32 %v1997, 4294901760
    %v1999 = vsub.f32 %v1997, %v1998
    %v2000 = vand.u32 %v1999, 4294901760
    %2001 = vmatmul.f32.gmra.mxu0 %v2000
    %v2002 = vpop.f32.mrf.mxu0
    %v2003 = vadd.f32 %v1801, %v2002
    %v2004 = vand.u32 %v113, 4294901760
    %v2005 = vsub.f32 %v113, %v2004
    %v2006 = vand.u32 %v2005, 4294901760
    %v2007 = vsub.f32 %v2005, %v2006
    %v2008 = vand.u32 %v2007, 4294901760
    %2009 = vmatmul.f32.gmra.mxu0 %v2008
    %v2010 = vpop.f32.mrf.mxu0
    %v2011 = vadd.f32 %v1806, %v2010
    %v2012 = vand.u32 %v115, 4294901760
    %v2013 = vsub.f32 %v115, %v2012
    %v2014 = vand.u32 %v2013, 4294901760
    %v2015 = vsub.f32 %v2013, %v2014
    %v2016 = vand.u32 %v2015, 4294901760
    %2017 = vmatmul.f32.gmra.mxu0 %v2016
    %v2018 = vpop.f32.mrf.mxu0
    %v2019 = vadd.f32 %v1811, %v2018
    %v2020 = vand.u32 %v117, 4294901760
    %v2021 = vsub.f32 %v117, %v2020
    %v2022 = vand.u32 %v2021, 4294901760
    %v2023 = vsub.f32 %v2021, %v2022
    %v2024 = vand.u32 %v2023, 4294901760
    %2025 = vmatmul.f32.gmra.mxu0 %v2024
    %v2026 = vpop.f32.mrf.mxu0
    %v2027 = vadd.f32 %v1816, %v2026
    %v2028 = vand.u32 %v119, 4294901760
    %v2029 = vsub.f32 %v119, %v2028
    %v2030 = vand.u32 %v2029, 4294901760
    %v2031 = vsub.f32 %v2029, %v2030
    %v2032 = vand.u32 %v2031, 4294901760
    %2033 = vmatmul.f32.gmra.mxu0 %v2032
    %v2034 = vpop.f32.mrf.mxu0
    %v2035 = vadd.f32 %v1821, %v2034
    %v2036 = vand.u32 %v121, 4294901760
    %v2037 = vsub.f32 %v121, %v2036
    %v2038 = vand.u32 %v2037, 4294901760
    %v2039 = vsub.f32 %v2037, %v2038
    %v2040 = vand.u32 %v2039, 4294901760
    %2041 = vmatmul.f32.gmra.mxu0 %v2040
    %v2042 = vpop.f32.mrf.mxu0
    %v2043 = vadd.f32 %v1826, %v2042
    %v2044 = vand.u32 %v123, 4294901760
    %v2045 = vsub.f32 %v123, %v2044
    %v2046 = vand.u32 %v2045, 4294901760
    %v2047 = vsub.f32 %v2045, %v2046
    %v2048 = vand.u32 %v2047, 4294901760
    %2049 = vmatmul.f32.gmra.mxu0 %v2048
    %v2050 = vpop.f32.mrf.mxu0
    %v2051 = vadd.f32 %v1831, %v2050
    %v2052 = vand.u32 %v125, 4294901760
    %v2053 = vsub.f32 %v125, %v2052
    %v2054 = vand.u32 %v2053, 4294901760
    %v2055 = vsub.f32 %v2053, %v2054
    %v2056 = vand.u32 %v2055, 4294901760
    %2057 = vmatmul.f32.gmra.mxu0 %v2056
    %v2058 = vpop.f32.mrf.mxu0
    %v2059 = vadd.f32 %v1836, %v2058
    %v2060 = vand.u32 %v127, 4294901760
    %v2061 = vsub.f32 %v127, %v2060
    %v2062 = vand.u32 %v2061, 4294901760
    %v2063 = vsub.f32 %v2061, %v2062
    %v2064 = vand.u32 %v2063, 4294901760
    %2065 = vmatmul.f32.gmra.mxu0 %v2064
    %v2066 = vpop.f32.mrf.mxu0
    %v2067 = vadd.f32 %v1841, %v2066
    %v2068 = vand.u32 %v129, 4294901760
    %v2069 = vsub.f32 %v129, %v2068
    %v2070 = vand.u32 %v2069, 4294901760
    %v2071 = vsub.f32 %v2069, %v2070
    %v2072 = vand.u32 %v2071, 4294901760
    %2073 = vmatmul.f32.gmra.mxu0 %v2072
    %v2074 = vpop.f32.mrf.mxu0
    %v2075 = vadd.f32 %v1846, %v2074
    %v2076 = vand.u32 %v131, 4294901760
    %v2077 = vsub.f32 %v131, %v2076
    %v2078 = vand.u32 %v2077, 4294901760
    %v2079 = vsub.f32 %v2077, %v2078
    %v2080 = vand.u32 %v2079, 4294901760
    %2081 = vmatmul.f32.gmra.mxu0 %v2080
    %v2082 = vpop.f32.mrf.mxu0
    %v2083 = vadd.f32 %v1851, %v2082
    %v2084 = vand.u32 %v133, 4294901760
    %v2085 = vsub.f32 %v133, %v2084
    %v2086 = vand.u32 %v2085, 4294901760
    %v2087 = vsub.f32 %v2085, %v2086
    %v2088 = vand.u32 %v2087, 4294901760
    %2089 = vmatmul.f32.gmra.mxu0 %v2088
    %v2090 = vpop.f32.mrf.mxu0
    %v2091 = vadd.f32 %v1856, %v2090
    %v2092 = vand.u32 %v135, 4294901760
    %v2093 = vsub.f32 %v135, %v2092
    %v2094 = vand.u32 %v2093, 4294901760
    %v2095 = vsub.f32 %v2093, %v2094
    %v2096 = vand.u32 %v2095, 4294901760
    %2097 = vmatmul.f32.gmra.mxu0 %v2096
    %v2098 = vpop.f32.mrf.mxu0
    %v2099 = vadd.f32 %v1861, %v2098
    %v2100 = vand.u32 %v137, 4294901760
    %v2101 = vsub.f32 %v137, %v2100
    %v2102 = vand.u32 %v2101, 4294901760
    %v2103 = vsub.f32 %v2101, %v2102
    %v2104 = vand.u32 %v2103, 4294901760
    %2105 = vmatmul.f32.gmra.mxu0 %v2104
    %v2106 = vpop.f32.mrf.mxu0
    %v2107 = vadd.f32 %v1866, %v2106
    %v2108 = vand.u32 %v139, 4294901760
    %v2109 = vsub.f32 %v139, %v2108
    %v2110 = vand.u32 %v2109, 4294901760
    %v2111 = vsub.f32 %v2109, %v2110
    %v2112 = vand.u32 %v2111, 4294901760
    %2113 = vmatmul.f32.gmra.mxu0 %v2112
    %v2114 = vpop.f32.mrf.mxu0
    %v2115 = vadd.f32 %v1871, %v2114
    %v2116 = vand.u32 %v141, 4294901760
    %v2117 = vsub.f32 %v141, %v2116
    %v2118 = vand.u32 %v2117, 4294901760
    %v2119 = vsub.f32 %v2117, %v2118
    %v2120 = vand.u32 %v2119, 4294901760
    %2121 = vmatmul.f32.gmra.mxu0 %v2120
    %v2122 = vpop.f32.mrf.mxu0
    %v2123 = vadd.f32 %v1876, %v2122
    %v2124 = vand.u32 %v143, 4294901760
    %v2125 = vsub.f32 %v143, %v2124
    %v2126 = vand.u32 %v2125, 4294901760
    %v2127 = vsub.f32 %v2125, %v2126
    %v2128 = vand.u32 %v2127, 4294901760
    %2129 = vmatmul.f32.gmra.mxu0 %v2128
    %v2130 = vpop.f32.mrf.mxu0
    %v2131 = vadd.f32 %v1881, %v2130
    %v2132 = vand.u32 %v145, 4294901760
    %v2133 = vsub.f32 %v145, %v2132
    %v2134 = vand.u32 %v2133, 4294901760
    %v2135 = vsub.f32 %v2133, %v2134
    %v2136 = vand.u32 %v2135, 4294901760
    %2137 = vmatmul.f32.gmra.mxu0 %v2136
    %v2138 = vpop.f32.mrf.mxu0
    %v2139 = vadd.f32 %v1886, %v2138
    %v2140 = vand.u32 %v147, 4294901760
    %v2141 = vsub.f32 %v147, %v2140
    %v2142 = vand.u32 %v2141, 4294901760
    %v2143 = vsub.f32 %v2141, %v2142
    %v2144 = vand.u32 %v2143, 4294901760
    %2145 = vmatmul.f32.gmra.mxu0 %v2144
    %v2146 = vpop.f32.mrf.mxu0
    %v2147 = vadd.f32 %v1891, %v2146
    %v2148 = vand.u32 %v149, 4294901760
    %v2149 = vsub.f32 %v149, %v2148
    %v2150 = vand.u32 %v2149, 4294901760
    %v2151 = vsub.f32 %v2149, %v2150
    %v2152 = vand.u32 %v2151, 4294901760
    %2153 = vmatmul.f32.gmra.mxu0 %v2152
    %v2154 = vpop.f32.mrf.mxu0
    %v2155 = vadd.f32 %v1896, %v2154
    %v2156 = vand.u32 %v151, 4294901760
    %v2157 = vsub.f32 %v151, %v2156
    %v2158 = vand.u32 %v2157, 4294901760
    %v2159 = vsub.f32 %v2157, %v2158
    %v2160 = vand.u32 %v2159, 4294901760
    %2161 = vmatmul.f32.gmra.mxu0 %v2160
    %v2162 = vpop.f32.mrf.mxu0
    %v2163 = vadd.f32 %v1901, %v2162
    %v2164 = vand.u32 %v153, 4294901760
    %v2165 = vsub.f32 %v153, %v2164
    %v2166 = vand.u32 %v2165, 4294901760
    %v2167 = vsub.f32 %v2165, %v2166
    %v2168 = vand.u32 %v2167, 4294901760
    %2169 = vmatmul.f32.gmra.mxu0 %v2168
    %v2170 = vpop.f32.mrf.mxu0
    %v2171 = vadd.f32 %v1906, %v2170
    %v2172 = vand.u32 %v155, 4294901760
    %v2173 = vsub.f32 %v155, %v2172
    %v2174 = vand.u32 %v2173, 4294901760
    %v2175 = vsub.f32 %v2173, %v2174
    %v2176 = vand.u32 %v2175, 4294901760
    %2177 = vmatmul.f32.gmra.mxu0 %v2176
    %v2178 = vpop.f32.mrf.mxu0
    %v2179 = vadd.f32 %v1911, %v2178
    %v2180 = vand.u32 %v157, 4294901760
    %v2181 = vsub.f32 %v157, %v2180
    %v2182 = vand.u32 %v2181, 4294901760
    %v2183 = vsub.f32 %v2181, %v2182
    %v2184 = vand.u32 %v2183, 4294901760
    %2185 = vmatmul.f32.gmra.mxu0 %v2184
    %v2186 = vpop.f32.mrf.mxu0
    %v2187 = vadd.f32 %v1916, %v2186
    %v2188 = vand.u32 %v159, 4294901760
    %v2189 = vsub.f32 %v159, %v2188
    %v2190 = vand.u32 %v2189, 4294901760
    %v2191 = vsub.f32 %v2189, %v2190
    %v2192 = vand.u32 %v2191, 4294901760
    %2193 = vmatmul.f32.gmra.mxu0 %v2192
    %v2194 = vpop.f32.mrf.mxu0
    %v2195 = vadd.f32 %v1921, %v2194
    %v2196 = vand.u32 %v161, 4294901760
    %v2197 = vsub.f32 %v161, %v2196
    %v2198 = vand.u32 %v2197, 4294901760
    %v2199 = vsub.f32 %v2197, %v2198
    %v2200 = vand.u32 %v2199, 4294901760
    %2201 = vmatmul.f32.gmra.mxu0 %v2200
    %v2202 = vpop.f32.mrf.mxu0
    %v2203 = vadd.f32 %v1926, %v2202
    %v2204 = vand.u32 %v163, 4294901760
    %v2205 = vsub.f32 %v163, %v2204
    %v2206 = vand.u32 %v2205, 4294901760
    %v2207 = vsub.f32 %v2205, %v2206
    %v2208 = vand.u32 %v2207, 4294901760
    %2209 = vmatmul.f32.gmra.mxu0 %v2208
    %v2210 = vpop.f32.mrf.mxu0
    %v2211 = vadd.f32 %v1931, %v2210
    %v2212 = vand.u32 %v165, 4294901760
    %v2213 = vsub.f32 %v165, %v2212
    %v2214 = vand.u32 %v2213, 4294901760
    %v2215 = vsub.f32 %v2213, %v2214
    %v2216 = vand.u32 %v2215, 4294901760
    %2217 = vmatmul.f32.gmra.mxu0 %v2216
    %v2218 = vpop.f32.mrf.mxu0
    %v2219 = vadd.f32 %v1936, %v2218
    %v2220 = vand.u32 %v167, 4294901760
    %v2221 = vsub.f32 %v167, %v2220
    %v2222 = vand.u32 %v2221, 4294901760
    %v2223 = vsub.f32 %v2221, %v2222
    %v2224 = vand.u32 %v2223, 4294901760
    %2225 = vmatmul.f32.gmra.mxu0 %v2224
    %v2226 = vpop.f32.mrf.mxu0
    %v2227 = vadd.f32 %v1941, %v2226
    %v2228 = vand.u32 %v169, 4294901760
    %v2229 = vsub.f32 %v169, %v2228
    %v2230 = vand.u32 %v2229, 4294901760
    %v2231 = vsub.f32 %v2229, %v2230
    %v2232 = vand.u32 %v2231, 4294901760
    %2233 = vmatmul.f32.gmra.mxu0 %v2232
    %v2234 = vpop.f32.mrf.mxu0
    %v2235 = vadd.f32 %v1946, %v2234
    %2236 = vdwg.mxu0
    %v2237 = vand.u32 %v1771, 4294901760
    %v2238 = vsub.f32 %v1771, %v2237
    %v2239 = vand.u32 %v2238, 4294901760
    %v2240 = vsub.f32 %v2238, %v2239
    %v2241 = vand.u32 %v2240, 4294901760
    %2242 = vmatpush.msra.mxu0 %v2241
    %v2243 = vand.u32 %v1770, 4294901760
    %v2244 = vsub.f32 %v1770, %v2243
    %v2245 = vand.u32 %v2244, 4294901760
    %v2246 = vsub.f32 %v2244, %v2245
    %v2247 = vand.u32 %v2246, 4294901760
    %2248 = vmatpush.msra.mxu0 %v2247
    %v2249 = vand.u32 %v1769, 4294901760
    %v2250 = vsub.f32 %v1769, %v2249
    %v2251 = vand.u32 %v2250, 4294901760
    %v2252 = vsub.f32 %v2250, %v2251
    %v2253 = vand.u32 %v2252, 4294901760
    %2254 = vmatpush.msra.mxu0 %v2253
    %v2255 = vand.u32 %v1768, 4294901760
    %v2256 = vsub.f32 %v1768, %v2255
    %v2257 = vand.u32 %v2256, 4294901760
    %v2258 = vsub.f32 %v2256, %v2257
    %v2259 = vand.u32 %v2258, 4294901760
    %2260 = vmatpush.msra.mxu0 %v2259
    %v2261 = vand.u32 %v1767, 4294901760
    %v2262 = vsub.f32 %v1767, %v2261
    %v2263 = vand.u32 %v2262, 4294901760
    %v2264 = vsub.f32 %v2262, %v2263
    %v2265 = vand.u32 %v2264, 4294901760
    %2266 = vmatpush.msra.mxu0 %v2265
    %v2267 = vand.u32 %v1766, 4294901760
    %v2268 = vsub.f32 %v1766, %v2267
    %v2269 = vand.u32 %v2268, 4294901760
    %v2270 = vsub.f32 %v2268, %v2269
    %v2271 = vand.u32 %v2270, 4294901760
    %2272 = vmatpush.msra.mxu0 %v2271
    %v2273 = vand.u32 %v1765, 4294901760
    %v2274 = vsub.f32 %v1765, %v2273
    %v2275 = vand.u32 %v2274, 4294901760
    %v2276 = vsub.f32 %v2274, %v2275
    %v2277 = vand.u32 %v2276, 4294901760
    %2278 = vmatpush.msra.mxu0 %v2277
    %v2279 = vand.u32 %v1764, 4294901760
    %v2280 = vsub.f32 %v1764, %v2279
    %v2281 = vand.u32 %v2280, 4294901760
    %v2282 = vsub.f32 %v2280, %v2281
    %v2283 = vand.u32 %v2282, 4294901760
    %2284 = vmatpush.msra.mxu0 %v2283
    %v2285 = vand.u32 %v1763, 4294901760
    %v2286 = vsub.f32 %v1763, %v2285
    %v2287 = vand.u32 %v2286, 4294901760
    %v2288 = vsub.f32 %v2286, %v2287
    %v2289 = vand.u32 %v2288, 4294901760
    %2290 = vmatpush.msra.mxu0 %v2289
    %v2291 = vand.u32 %v1762, 4294901760
    %v2292 = vsub.f32 %v1762, %v2291
    %v2293 = vand.u32 %v2292, 4294901760
    %v2294 = vsub.f32 %v2292, %v2293
    %v2295 = vand.u32 %v2294, 4294901760
    %2296 = vmatpush.msra.mxu0 %v2295
    %v2297 = vand.u32 %v1761, 4294901760
    %v2298 = vsub.f32 %v1761, %v2297
    %v2299 = vand.u32 %v2298, 4294901760
    %v2300 = vsub.f32 %v2298, %v2299
    %v2301 = vand.u32 %v2300, 4294901760
    %2302 = vmatpush.msra.mxu0 %v2301
    %v2303 = vand.u32 %v1760, 4294901760
    %v2304 = vsub.f32 %v1760, %v2303
    %v2305 = vand.u32 %v2304, 4294901760
    %v2306 = vsub.f32 %v2304, %v2305
    %v2307 = vand.u32 %v2306, 4294901760
    %2308 = vmatpush.msra.mxu0 %v2307
    %v2309 = vand.u32 %v1759, 4294901760
    %v2310 = vsub.f32 %v1759, %v2309
    %v2311 = vand.u32 %v2310, 4294901760
    %v2312 = vsub.f32 %v2310, %v2311
    %v2313 = vand.u32 %v2312, 4294901760
    %2314 = vmatpush.msra.mxu0 %v2313
    %v2315 = vand.u32 %v1758, 4294901760
    %v2316 = vsub.f32 %v1758, %v2315
    %v2317 = vand.u32 %v2316, 4294901760
    %v2318 = vsub.f32 %v2316, %v2317
    %v2319 = vand.u32 %v2318, 4294901760
    %2320 = vmatpush.msra.mxu0 %v2319
    %v2321 = vand.u32 %v1757, 4294901760
    %v2322 = vsub.f32 %v1757, %v2321
    %v2323 = vand.u32 %v2322, 4294901760
    %v2324 = vsub.f32 %v2322, %v2323
    %v2325 = vand.u32 %v2324, 4294901760
    %2326 = vmatpush.msra.mxu0 %v2325
    %v2327 = vand.u32 %v1756, 4294901760
    %v2328 = vsub.f32 %v1756, %v2327
    %v2329 = vand.u32 %v2328, 4294901760
    %v2330 = vsub.f32 %v2328, %v2329
    %v2331 = vand.u32 %v2330, 4294901760
    %2332 = vmatpush.msra.mxu0 %v2331
    %v2333 = vand.u32 %v107, 4294901760
    %2334 = vmatmul.f32.gmra.mxu0 %v2333
    %v2335 = vpop.f32.mrf.mxu0
    %v2336 = vadd.f32 %v1987, %v2335
    %v2337 = vand.u32 %v109, 4294901760
    %2338 = vmatmul.f32.gmra.mxu0 %v2337
    %v2339 = vpop.f32.mrf.mxu0
    %v2340 = vadd.f32 %v1995, %v2339
    %v2341 = vand.u32 %v111, 4294901760
    %2342 = vmatmul.f32.gmra.mxu0 %v2341
    %v2343 = vpop.f32.mrf.mxu0
    %v2344 = vadd.f32 %v2003, %v2343
    %v2345 = vand.u32 %v113, 4294901760
    %2346 = vmatmul.f32.gmra.mxu0 %v2345
    %v2347 = vpop.f32.mrf.mxu0
    %v2348 = vadd.f32 %v2011, %v2347
    %v2349 = vand.u32 %v115, 4294901760
    %2350 = vmatmul.f32.gmra.mxu0 %v2349
    %v2351 = vpop.f32.mrf.mxu0
    %v2352 = vadd.f32 %v2019, %v2351
    %v2353 = vand.u32 %v117, 4294901760
    %2354 = vmatmul.f32.gmra.mxu0 %v2353
    %v2355 = vpop.f32.mrf.mxu0
    %v2356 = vadd.f32 %v2027, %v2355
    %v2357 = vand.u32 %v119, 4294901760
    %2358 = vmatmul.f32.gmra.mxu0 %v2357
    %v2359 = vpop.f32.mrf.mxu0
    %v2360 = vadd.f32 %v2035, %v2359
    %v2361 = vand.u32 %v121, 4294901760
    %2362 = vmatmul.f32.gmra.mxu0 %v2361
    %v2363 = vpop.f32.mrf.mxu0
    %v2364 = vadd.f32 %v2043, %v2363
    %v2365 = vand.u32 %v123, 4294901760
    %2366 = vmatmul.f32.gmra.mxu0 %v2365
    %v2367 = vpop.f32.mrf.mxu0
    %v2368 = vadd.f32 %v2051, %v2367
    %v2369 = vand.u32 %v125, 4294901760
    %2370 = vmatmul.f32.gmra.mxu0 %v2369
    %v2371 = vpop.f32.mrf.mxu0
    %v2372 = vadd.f32 %v2059, %v2371
    %v2373 = vand.u32 %v127, 4294901760
    %2374 = vmatmul.f32.gmra.mxu0 %v2373
    %v2375 = vpop.f32.mrf.mxu0
    %v2376 = vadd.f32 %v2067, %v2375
    %v2377 = vand.u32 %v129, 4294901760
    %2378 = vmatmul.f32.gmra.mxu0 %v2377
    %v2379 = vpop.f32.mrf.mxu0
    %v2380 = vadd.f32 %v2075, %v2379
    %v2381 = vand.u32 %v131, 4294901760
    %2382 = vmatmul.f32.gmra.mxu0 %v2381
    %v2383 = vpop.f32.mrf.mxu0
    %v2384 = vadd.f32 %v2083, %v2383
    %v2385 = vand.u32 %v133, 4294901760
    %2386 = vmatmul.f32.gmra.mxu0 %v2385
    %v2387 = vpop.f32.mrf.mxu0
    %v2388 = vadd.f32 %v2091, %v2387
    %v2389 = vand.u32 %v135, 4294901760
    %2390 = vmatmul.f32.gmra.mxu0 %v2389
    %v2391 = vpop.f32.mrf.mxu0
    %v2392 = vadd.f32 %v2099, %v2391
    %v2393 = vand.u32 %v137, 4294901760
    %2394 = vmatmul.f32.gmra.mxu0 %v2393
    %v2395 = vpop.f32.mrf.mxu0
    %v2396 = vadd.f32 %v2107, %v2395
    %v2397 = vand.u32 %v139, 4294901760
    %2398 = vmatmul.f32.gmra.mxu0 %v2397
    %v2399 = vpop.f32.mrf.mxu0
    %v2400 = vadd.f32 %v2115, %v2399
    %v2401 = vand.u32 %v141, 4294901760
    %2402 = vmatmul.f32.gmra.mxu0 %v2401
    %v2403 = vpop.f32.mrf.mxu0
    %v2404 = vadd.f32 %v2123, %v2403
    %v2405 = vand.u32 %v143, 4294901760
    %2406 = vmatmul.f32.gmra.mxu0 %v2405
    %v2407 = vpop.f32.mrf.mxu0
    %v2408 = vadd.f32 %v2131, %v2407
    %v2409 = vand.u32 %v145, 4294901760
    %2410 = vmatmul.f32.gmra.mxu0 %v2409
    %v2411 = vpop.f32.mrf.mxu0
    %v2412 = vadd.f32 %v2139, %v2411
    %v2413 = vand.u32 %v147, 4294901760
    %2414 = vmatmul.f32.gmra.mxu0 %v2413
    %v2415 = vpop.f32.mrf.mxu0
    %v2416 = vadd.f32 %v2147, %v2415
    %v2417 = vand.u32 %v149, 4294901760
    %2418 = vmatmul.f32.gmra.mxu0 %v2417
    %v2419 = vpop.f32.mrf.mxu0
    %v2420 = vadd.f32 %v2155, %v2419
    %v2421 = vand.u32 %v151, 4294901760
    %2422 = vmatmul.f32.gmra.mxu0 %v2421
    %v2423 = vpop.f32.mrf.mxu0
    %v2424 = vadd.f32 %v2163, %v2423
    %v2425 = vand.u32 %v153, 4294901760
    %2426 = vmatmul.f32.gmra.mxu0 %v2425
    %v2427 = vpop.f32.mrf.mxu0
    %v2428 = vadd.f32 %v2171, %v2427
    %v2429 = vand.u32 %v155, 4294901760
    %2430 = vmatmul.f32.gmra.mxu0 %v2429
    %v2431 = vpop.f32.mrf.mxu0
    %v2432 = vadd.f32 %v2179, %v2431
    %v2433 = vand.u32 %v157, 4294901760
    %2434 = vmatmul.f32.gmra.mxu0 %v2433
    %v2435 = vpop.f32.mrf.mxu0
    %v2436 = vadd.f32 %v2187, %v2435
    %v2437 = vand.u32 %v159, 4294901760
    %2438 = vmatmul.f32.gmra.mxu0 %v2437
    %v2439 = vpop.f32.mrf.mxu0
    %v2440 = vadd.f32 %v2195, %v2439
    %v2441 = vand.u32 %v161, 4294901760
    %2442 = vmatmul.f32.gmra.mxu0 %v2441
    %v2443 = vpop.f32.mrf.mxu0
    %v2444 = vadd.f32 %v2203, %v2443
    %v2445 = vand.u32 %v163, 4294901760
    %2446 = vmatmul.f32.gmra.mxu0 %v2445
    %v2447 = vpop.f32.mrf.mxu0
    %v2448 = vadd.f32 %v2211, %v2447
    %v2449 = vand.u32 %v165, 4294901760
    %2450 = vmatmul.f32.gmra.mxu0 %v2449
    %v2451 = vpop.f32.mrf.mxu0
    %v2452 = vadd.f32 %v2219, %v2451
    %v2453 = vand.u32 %v167, 4294901760
    %2454 = vmatmul.f32.gmra.mxu0 %v2453
    %v2455 = vpop.f32.mrf.mxu0
    %v2456 = vadd.f32 %v2227, %v2455
    %v2457 = vand.u32 %v169, 4294901760
    %2458 = vmatmul.f32.gmra.mxu0 %v2457
    %v2459 = vpop.f32.mrf.mxu0
    %v2460 = vadd.f32 %v2235, %v2459
    %2461 = vdwg.mxu0
    %v2462 = vand.u32 %v1771, 4294901760
    %v2463 = vsub.f32 %v1771, %v2462
    %2464 = vmatpush.msra.mxu0 %v2463
    %v2465 = vand.u32 %v1770, 4294901760
    %v2466 = vsub.f32 %v1770, %v2465
    %2467 = vmatpush.msra.mxu0 %v2466
    %v2468 = vand.u32 %v1769, 4294901760
    %v2469 = vsub.f32 %v1769, %v2468
    %2470 = vmatpush.msra.mxu0 %v2469
    %v2471 = vand.u32 %v1768, 4294901760
    %v2472 = vsub.f32 %v1768, %v2471
    %2473 = vmatpush.msra.mxu0 %v2472
    %v2474 = vand.u32 %v1767, 4294901760
    %v2475 = vsub.f32 %v1767, %v2474
    %2476 = vmatpush.msra.mxu0 %v2475
    %v2477 = vand.u32 %v1766, 4294901760
    %v2478 = vsub.f32 %v1766, %v2477
    %2479 = vmatpush.msra.mxu0 %v2478
    %v2480 = vand.u32 %v1765, 4294901760
    %v2481 = vsub.f32 %v1765, %v2480
    %2482 = vmatpush.msra.mxu0 %v2481
    %v2483 = vand.u32 %v1764, 4294901760
    %v2484 = vsub.f32 %v1764, %v2483
    %2485 = vmatpush.msra.mxu0 %v2484
    %v2486 = vand.u32 %v1763, 4294901760
    %v2487 = vsub.f32 %v1763, %v2486
    %2488 = vmatpush.msra.mxu0 %v2487
    %v2489 = vand.u32 %v1762, 4294901760
    %v2490 = vsub.f32 %v1762, %v2489
    %2491 = vmatpush.msra.mxu0 %v2490
    %v2492 = vand.u32 %v1761, 4294901760
    %v2493 = vsub.f32 %v1761, %v2492
    %2494 = vmatpush.msra.mxu0 %v2493
    %v2495 = vand.u32 %v1760, 4294901760
    %v2496 = vsub.f32 %v1760, %v2495
    %2497 = vmatpush.msra.mxu0 %v2496
    %v2498 = vand.u32 %v1759, 4294901760
    %v2499 = vsub.f32 %v1759, %v2498
    %2500 = vmatpush.msra.mxu0 %v2499
    %v2501 = vand.u32 %v1758, 4294901760
    %v2502 = vsub.f32 %v1758, %v2501
    %2503 = vmatpush.msra.mxu0 %v2502
    %v2504 = vand.u32 %v1757, 4294901760
    %v2505 = vsub.f32 %v1757, %v2504
    %2506 = vmatpush.msra.mxu0 %v2505
    %v2507 = vand.u32 %v1756, 4294901760
    %v2508 = vsub.f32 %v1756, %v2507
    %2509 = vmatpush.msra.mxu0 %v2508
    %v2510 = vand.u32 %v107, 4294901760
    %v2511 = vsub.f32 %v107, %v2510
    %2512 = vmatmul.f32.gmra.mxu0 %v2511
    %v2513 = vpop.f32.mrf.mxu0
    %v2514 = vadd.f32 %v2336, %v2513
    %v2515 = vand.u32 %v109, 4294901760
    %v2516 = vsub.f32 %v109, %v2515
    %2517 = vmatmul.f32.gmra.mxu0 %v2516
    %v2518 = vpop.f32.mrf.mxu0
    %v2519 = vadd.f32 %v2340, %v2518
    %v2520 = vand.u32 %v111, 4294901760
    %v2521 = vsub.f32 %v111, %v2520
    %2522 = vmatmul.f32.gmra.mxu0 %v2521
    %v2523 = vpop.f32.mrf.mxu0
    %v2524 = vadd.f32 %v2344, %v2523
    %v2525 = vand.u32 %v113, 4294901760
    %v2526 = vsub.f32 %v113, %v2525
    %2527 = vmatmul.f32.gmra.mxu0 %v2526
    %v2528 = vpop.f32.mrf.mxu0
    %v2529 = vadd.f32 %v2348, %v2528
    %v2530 = vand.u32 %v115, 4294901760
    %v2531 = vsub.f32 %v115, %v2530
    %2532 = vmatmul.f32.gmra.mxu0 %v2531
    %v2533 = vpop.f32.mrf.mxu0
    %v2534 = vadd.f32 %v2352, %v2533
    %v2535 = vand.u32 %v117, 4294901760
    %v2536 = vsub.f32 %v117, %v2535
    %2537 = vmatmul.f32.gmra.mxu0 %v2536
    %v2538 = vpop.f32.mrf.mxu0
    %v2539 = vadd.f32 %v2356, %v2538
    %v2540 = vand.u32 %v119, 4294901760
    %v2541 = vsub.f32 %v119, %v2540
    %2542 = vmatmul.f32.gmra.mxu0 %v2541
    %v2543 = vpop.f32.mrf.mxu0
    %v2544 = vadd.f32 %v2360, %v2543
    %v2545 = vand.u32 %v121, 4294901760
    %v2546 = vsub.f32 %v121, %v2545
    %2547 = vmatmul.f32.gmra.mxu0 %v2546
    %v2548 = vpop.f32.mrf.mxu0
    %v2549 = vadd.f32 %v2364, %v2548
    %v2550 = vand.u32 %v123, 4294901760
    %v2551 = vsub.f32 %v123, %v2550
    %2552 = vmatmul.f32.gmra.mxu0 %v2551
    %v2553 = vpop.f32.mrf.mxu0
    %v2554 = vadd.f32 %v2368, %v2553
    %v2555 = vand.u32 %v125, 4294901760
    %v2556 = vsub.f32 %v125, %v2555
    %2557 = vmatmul.f32.gmra.mxu0 %v2556
    %v2558 = vpop.f32.mrf.mxu0
    %v2559 = vadd.f32 %v2372, %v2558
    %v2560 = vand.u32 %v127, 4294901760
    %v2561 = vsub.f32 %v127, %v2560
    %2562 = vmatmul.f32.gmra.mxu0 %v2561
    %v2563 = vpop.f32.mrf.mxu0
    %v2564 = vadd.f32 %v2376, %v2563
    %v2565 = vand.u32 %v129, 4294901760
    %v2566 = vsub.f32 %v129, %v2565
    %2567 = vmatmul.f32.gmra.mxu0 %v2566
    %v2568 = vpop.f32.mrf.mxu0
    %v2569 = vadd.f32 %v2380, %v2568
    %v2570 = vand.u32 %v131, 4294901760
    %v2571 = vsub.f32 %v131, %v2570
    %2572 = vmatmul.f32.gmra.mxu0 %v2571
    %v2573 = vpop.f32.mrf.mxu0
    %v2574 = vadd.f32 %v2384, %v2573
    %v2575 = vand.u32 %v133, 4294901760
    %v2576 = vsub.f32 %v133, %v2575
    %2577 = vmatmul.f32.gmra.mxu0 %v2576
    %v2578 = vpop.f32.mrf.mxu0
    %v2579 = vadd.f32 %v2388, %v2578
    %v2580 = vand.u32 %v135, 4294901760
    %v2581 = vsub.f32 %v135, %v2580
    %2582 = vmatmul.f32.gmra.mxu0 %v2581
    %v2583 = vpop.f32.mrf.mxu0
    %v2584 = vadd.f32 %v2392, %v2583
    %v2585 = vand.u32 %v137, 4294901760
    %v2586 = vsub.f32 %v137, %v2585
    %2587 = vmatmul.f32.gmra.mxu0 %v2586
    %v2588 = vpop.f32.mrf.mxu0
    %v2589 = vadd.f32 %v2396, %v2588
    %v2590 = vand.u32 %v139, 4294901760
    %v2591 = vsub.f32 %v139, %v2590
    %2592 = vmatmul.f32.gmra.mxu0 %v2591
    %v2593 = vpop.f32.mrf.mxu0
    %v2594 = vadd.f32 %v2400, %v2593
    %v2595 = vand.u32 %v141, 4294901760
    %v2596 = vsub.f32 %v141, %v2595
    %2597 = vmatmul.f32.gmra.mxu0 %v2596
    %v2598 = vpop.f32.mrf.mxu0
    %v2599 = vadd.f32 %v2404, %v2598
    %v2600 = vand.u32 %v143, 4294901760
    %v2601 = vsub.f32 %v143, %v2600
    %2602 = vmatmul.f32.gmra.mxu0 %v2601
    %v2603 = vpop.f32.mrf.mxu0
    %v2604 = vadd.f32 %v2408, %v2603
    %v2605 = vand.u32 %v145, 4294901760
    %v2606 = vsub.f32 %v145, %v2605
    %2607 = vmatmul.f32.gmra.mxu0 %v2606
    %v2608 = vpop.f32.mrf.mxu0
    %v2609 = vadd.f32 %v2412, %v2608
    %v2610 = vand.u32 %v147, 4294901760
    %v2611 = vsub.f32 %v147, %v2610
    %2612 = vmatmul.f32.gmra.mxu0 %v2611
    %v2613 = vpop.f32.mrf.mxu0
    %v2614 = vadd.f32 %v2416, %v2613
    %v2615 = vand.u32 %v149, 4294901760
    %v2616 = vsub.f32 %v149, %v2615
    %2617 = vmatmul.f32.gmra.mxu0 %v2616
    %v2618 = vpop.f32.mrf.mxu0
    %v2619 = vadd.f32 %v2420, %v2618
    %v2620 = vand.u32 %v151, 4294901760
    %v2621 = vsub.f32 %v151, %v2620
    %2622 = vmatmul.f32.gmra.mxu0 %v2621
    %v2623 = vpop.f32.mrf.mxu0
    %v2624 = vadd.f32 %v2424, %v2623
    %v2625 = vand.u32 %v153, 4294901760
    %v2626 = vsub.f32 %v153, %v2625
    %2627 = vmatmul.f32.gmra.mxu0 %v2626
    %v2628 = vpop.f32.mrf.mxu0
    %v2629 = vadd.f32 %v2428, %v2628
    %v2630 = vand.u32 %v155, 4294901760
    %v2631 = vsub.f32 %v155, %v2630
    %2632 = vmatmul.f32.gmra.mxu0 %v2631
    %v2633 = vpop.f32.mrf.mxu0
    %v2634 = vadd.f32 %v2432, %v2633
    %v2635 = vand.u32 %v157, 4294901760
    %v2636 = vsub.f32 %v157, %v2635
    %2637 = vmatmul.f32.gmra.mxu0 %v2636
    %v2638 = vpop.f32.mrf.mxu0
    %v2639 = vadd.f32 %v2436, %v2638
    %v2640 = vand.u32 %v159, 4294901760
    %v2641 = vsub.f32 %v159, %v2640
    %2642 = vmatmul.f32.gmra.mxu0 %v2641
    %v2643 = vpop.f32.mrf.mxu0
    %v2644 = vadd.f32 %v2440, %v2643
    %v2645 = vand.u32 %v161, 4294901760
    %v2646 = vsub.f32 %v161, %v2645
    %2647 = vmatmul.f32.gmra.mxu0 %v2646
    %v2648 = vpop.f32.mrf.mxu0
    %v2649 = vadd.f32 %v2444, %v2648
    %v2650 = vand.u32 %v163, 4294901760
    %v2651 = vsub.f32 %v163, %v2650
    %2652 = vmatmul.f32.gmra.mxu0 %v2651
    %v2653 = vpop.f32.mrf.mxu0
    %v2654 = vadd.f32 %v2448, %v2653
    %v2655 = vand.u32 %v165, 4294901760
    %v2656 = vsub.f32 %v165, %v2655
    %2657 = vmatmul.f32.gmra.mxu0 %v2656
    %v2658 = vpop.f32.mrf.mxu0
    %v2659 = vadd.f32 %v2452, %v2658
    %v2660 = vand.u32 %v167, 4294901760
    %v2661 = vsub.f32 %v167, %v2660
    %2662 = vmatmul.f32.gmra.mxu0 %v2661
    %v2663 = vpop.f32.mrf.mxu0
    %v2664 = vadd.f32 %v2456, %v2663
    %v2665 = vand.u32 %v169, 4294901760
    %v2666 = vsub.f32 %v169, %v2665
    %2667 = vmatmul.f32.gmra.mxu0 %v2666
    %v2668 = vpop.f32.mrf.mxu0
    %v2669 = vadd.f32 %v2460, %v2668
    %2670 = vdwg.mxu0
    %v2671 = vand.u32 %v1771, 4294901760
    %2672 = vmatpush.msra.mxu0 %v2671
    %v2673 = vand.u32 %v1770, 4294901760
    %2674 = vmatpush.msra.mxu0 %v2673
    %v2675 = vand.u32 %v1769, 4294901760
    %2676 = vmatpush.msra.mxu0 %v2675
    %v2677 = vand.u32 %v1768, 4294901760
    %2678 = vmatpush.msra.mxu0 %v2677
    %v2679 = vand.u32 %v1767, 4294901760
    %2680 = vmatpush.msra.mxu0 %v2679
    %v2681 = vand.u32 %v1766, 4294901760
    %2682 = vmatpush.msra.mxu0 %v2681
    %v2683 = vand.u32 %v1765, 4294901760
    %2684 = vmatpush.msra.mxu0 %v2683
    %v2685 = vand.u32 %v1764, 4294901760
    %2686 = vmatpush.msra.mxu0 %v2685
    %v2687 = vand.u32 %v1763, 4294901760
    %2688 = vmatpush.msra.mxu0 %v2687
    %v2689 = vand.u32 %v1762, 4294901760
    %2690 = vmatpush.msra.mxu0 %v2689
    %v2691 = vand.u32 %v1761, 4294901760
    %2692 = vmatpush.msra.mxu0 %v2691
    %v2693 = vand.u32 %v1760, 4294901760
    %2694 = vmatpush.msra.mxu0 %v2693
    %v2695 = vand.u32 %v1759, 4294901760
    %2696 = vmatpush.msra.mxu0 %v2695
    %v2697 = vand.u32 %v1758, 4294901760
    %2698 = vmatpush.msra.mxu0 %v2697
    %v2699 = vand.u32 %v1757, 4294901760
    %2700 = vmatpush.msra.mxu0 %v2699
    %v2701 = vand.u32 %v1756, 4294901760
    %2702 = vmatpush.msra.mxu0 %v2701
    %v2703 = vand.u32 %v107, 4294901760
    %v2704 = vsub.f32 %v107, %v2703
    %v2705 = vand.u32 %v2704, 4294901760
    %2706 = vmatmul.f32.gmra.mxu0 %v2705
    %v2707 = vpop.f32.mrf.mxu0
    %v2708 = vadd.f32 %v2514, %v2707
    %v2709 = vand.u32 %v109, 4294901760
    %v2710 = vsub.f32 %v109, %v2709
    %v2711 = vand.u32 %v2710, 4294901760
    %2712 = vmatmul.f32.gmra.mxu0 %v2711
    %v2713 = vpop.f32.mrf.mxu0
    %v2714 = vadd.f32 %v2519, %v2713
    %v2715 = vand.u32 %v111, 4294901760
    %v2716 = vsub.f32 %v111, %v2715
    %v2717 = vand.u32 %v2716, 4294901760
    %2718 = vmatmul.f32.gmra.mxu0 %v2717
    %v2719 = vpop.f32.mrf.mxu0
    %v2720 = vadd.f32 %v2524, %v2719
    %v2721 = vand.u32 %v113, 4294901760
    %v2722 = vsub.f32 %v113, %v2721
    %v2723 = vand.u32 %v2722, 4294901760
    %2724 = vmatmul.f32.gmra.mxu0 %v2723
    %v2725 = vpop.f32.mrf.mxu0
    %v2726 = vadd.f32 %v2529, %v2725
    %v2727 = vand.u32 %v115, 4294901760
    %v2728 = vsub.f32 %v115, %v2727
    %v2729 = vand.u32 %v2728, 4294901760
    %2730 = vmatmul.f32.gmra.mxu0 %v2729
    %v2731 = vpop.f32.mrf.mxu0
    %v2732 = vadd.f32 %v2534, %v2731
    %v2733 = vand.u32 %v117, 4294901760
    %v2734 = vsub.f32 %v117, %v2733
    %v2735 = vand.u32 %v2734, 4294901760
    %2736 = vmatmul.f32.gmra.mxu0 %v2735
    %v2737 = vpop.f32.mrf.mxu0
    %v2738 = vadd.f32 %v2539, %v2737
    %v2739 = vand.u32 %v119, 4294901760
    %v2740 = vsub.f32 %v119, %v2739
    %v2741 = vand.u32 %v2740, 4294901760
    %2742 = vmatmul.f32.gmra.mxu0 %v2741
    %v2743 = vpop.f32.mrf.mxu0
    %v2744 = vadd.f32 %v2544, %v2743
    %v2745 = vand.u32 %v121, 4294901760
    %v2746 = vsub.f32 %v121, %v2745
    %v2747 = vand.u32 %v2746, 4294901760
    %2748 = vmatmul.f32.gmra.mxu0 %v2747
    %v2749 = vpop.f32.mrf.mxu0
    %v2750 = vadd.f32 %v2549, %v2749
    %v2751 = vand.u32 %v123, 4294901760
    %v2752 = vsub.f32 %v123, %v2751
    %v2753 = vand.u32 %v2752, 4294901760
    %2754 = vmatmul.f32.gmra.mxu0 %v2753
    %v2755 = vpop.f32.mrf.mxu0
    %v2756 = vadd.f32 %v2554, %v2755
    %v2757 = vand.u32 %v125, 4294901760
    %v2758 = vsub.f32 %v125, %v2757
    %v2759 = vand.u32 %v2758, 4294901760
    %2760 = vmatmul.f32.gmra.mxu0 %v2759
    %v2761 = vpop.f32.mrf.mxu0
    %v2762 = vadd.f32 %v2559, %v2761
    %v2763 = vand.u32 %v127, 4294901760
    %v2764 = vsub.f32 %v127, %v2763
    %v2765 = vand.u32 %v2764, 4294901760
    %2766 = vmatmul.f32.gmra.mxu0 %v2765
    %v2767 = vpop.f32.mrf.mxu0
    %v2768 = vadd.f32 %v2564, %v2767
    %v2769 = vand.u32 %v129, 4294901760
    %v2770 = vsub.f32 %v129, %v2769
    %v2771 = vand.u32 %v2770, 4294901760
    %2772 = vmatmul.f32.gmra.mxu0 %v2771
    %v2773 = vpop.f32.mrf.mxu0
    %v2774 = vadd.f32 %v2569, %v2773
    %v2775 = vand.u32 %v131, 4294901760
    %v2776 = vsub.f32 %v131, %v2775
    %v2777 = vand.u32 %v2776, 4294901760
    %2778 = vmatmul.f32.gmra.mxu0 %v2777
    %v2779 = vpop.f32.mrf.mxu0
    %v2780 = vadd.f32 %v2574, %v2779
    %v2781 = vand.u32 %v133, 4294901760
    %v2782 = vsub.f32 %v133, %v2781
    %v2783 = vand.u32 %v2782, 4294901760
    %2784 = vmatmul.f32.gmra.mxu0 %v2783
    %v2785 = vpop.f32.mrf.mxu0
    %v2786 = vadd.f32 %v2579, %v2785
    %v2787 = vand.u32 %v135, 4294901760
    %v2788 = vsub.f32 %v135, %v2787
    %v2789 = vand.u32 %v2788, 4294901760
    %2790 = vmatmul.f32.gmra.mxu0 %v2789
    %v2791 = vpop.f32.mrf.mxu0
    %v2792 = vadd.f32 %v2584, %v2791
    %v2793 = vand.u32 %v137, 4294901760
    %v2794 = vsub.f32 %v137, %v2793
    %v2795 = vand.u32 %v2794, 4294901760
    %2796 = vmatmul.f32.gmra.mxu0 %v2795
    %v2797 = vpop.f32.mrf.mxu0
    %v2798 = vadd.f32 %v2589, %v2797
    %v2799 = vand.u32 %v139, 4294901760
    %v2800 = vsub.f32 %v139, %v2799
    %v2801 = vand.u32 %v2800, 4294901760
    %2802 = vmatmul.f32.gmra.mxu0 %v2801
    %v2803 = vpop.f32.mrf.mxu0
    %v2804 = vadd.f32 %v2594, %v2803
    %v2805 = vand.u32 %v141, 4294901760
    %v2806 = vsub.f32 %v141, %v2805
    %v2807 = vand.u32 %v2806, 4294901760
    %2808 = vmatmul.f32.gmra.mxu0 %v2807
    %v2809 = vpop.f32.mrf.mxu0
    %v2810 = vadd.f32 %v2599, %v2809
    %v2811 = vand.u32 %v143, 4294901760
    %v2812 = vsub.f32 %v143, %v2811
    %v2813 = vand.u32 %v2812, 4294901760
    %2814 = vmatmul.f32.gmra.mxu0 %v2813
    %v2815 = vpop.f32.mrf.mxu0
    %v2816 = vadd.f32 %v2604, %v2815
    %v2817 = vand.u32 %v145, 4294901760
    %v2818 = vsub.f32 %v145, %v2817
    %v2819 = vand.u32 %v2818, 4294901760
    %2820 = vmatmul.f32.gmra.mxu0 %v2819
    %v2821 = vpop.f32.mrf.mxu0
    %v2822 = vadd.f32 %v2609, %v2821
    %v2823 = vand.u32 %v147, 4294901760
    %v2824 = vsub.f32 %v147, %v2823
    %v2825 = vand.u32 %v2824, 4294901760
    %2826 = vmatmul.f32.gmra.mxu0 %v2825
    %v2827 = vpop.f32.mrf.mxu0
    %v2828 = vadd.f32 %v2614, %v2827
    %v2829 = vand.u32 %v149, 4294901760
    %v2830 = vsub.f32 %v149, %v2829
    %v2831 = vand.u32 %v2830, 4294901760
    %2832 = vmatmul.f32.gmra.mxu0 %v2831
    %v2833 = vpop.f32.mrf.mxu0
    %v2834 = vadd.f32 %v2619, %v2833
    %v2835 = vand.u32 %v151, 4294901760
    %v2836 = vsub.f32 %v151, %v2835
    %v2837 = vand.u32 %v2836, 4294901760
    %2838 = vmatmul.f32.gmra.mxu0 %v2837
    %v2839 = vpop.f32.mrf.mxu0
    %v2840 = vadd.f32 %v2624, %v2839
    %v2841 = vand.u32 %v153, 4294901760
    %v2842 = vsub.f32 %v153, %v2841
    %v2843 = vand.u32 %v2842, 4294901760
    %2844 = vmatmul.f32.gmra.mxu0 %v2843
    %v2845 = vpop.f32.mrf.mxu0
    %v2846 = vadd.f32 %v2629, %v2845
    %v2847 = vand.u32 %v155, 4294901760
    %v2848 = vsub.f32 %v155, %v2847
    %v2849 = vand.u32 %v2848, 4294901760
    %2850 = vmatmul.f32.gmra.mxu0 %v2849
    %v2851 = vpop.f32.mrf.mxu0
    %v2852 = vadd.f32 %v2634, %v2851
    %v2853 = vand.u32 %v157, 4294901760
    %v2854 = vsub.f32 %v157, %v2853
    %v2855 = vand.u32 %v2854, 4294901760
    %2856 = vmatmul.f32.gmra.mxu0 %v2855
    %v2857 = vpop.f32.mrf.mxu0
    %v2858 = vadd.f32 %v2639, %v2857
    %v2859 = vand.u32 %v159, 4294901760
    %v2860 = vsub.f32 %v159, %v2859
    %v2861 = vand.u32 %v2860, 4294901760
    %2862 = vmatmul.f32.gmra.mxu0 %v2861
    %v2863 = vpop.f32.mrf.mxu0
    %v2864 = vadd.f32 %v2644, %v2863
    %v2865 = vand.u32 %v161, 4294901760
    %v2866 = vsub.f32 %v161, %v2865
    %v2867 = vand.u32 %v2866, 4294901760
    %2868 = vmatmul.f32.gmra.mxu0 %v2867
    %v2869 = vpop.f32.mrf.mxu0
    %v2870 = vadd.f32 %v2649, %v2869
    %v2871 = vand.u32 %v163, 4294901760
    %v2872 = vsub.f32 %v163, %v2871
    %v2873 = vand.u32 %v2872, 4294901760
    %2874 = vmatmul.f32.gmra.mxu0 %v2873
    %v2875 = vpop.f32.mrf.mxu0
    %v2876 = vadd.f32 %v2654, %v2875
    %v2877 = vand.u32 %v165, 4294901760
    %v2878 = vsub.f32 %v165, %v2877
    %v2879 = vand.u32 %v2878, 4294901760
    %2880 = vmatmul.f32.gmra.mxu0 %v2879
    %v2881 = vpop.f32.mrf.mxu0
    %v2882 = vadd.f32 %v2659, %v2881
    %v2883 = vand.u32 %v167, 4294901760
    %v2884 = vsub.f32 %v167, %v2883
    %v2885 = vand.u32 %v2884, 4294901760
    %2886 = vmatmul.f32.gmra.mxu0 %v2885
    %v2887 = vpop.f32.mrf.mxu0
    %v2888 = vadd.f32 %v2664, %v2887
    %v2889 = vand.u32 %v169, 4294901760
    %v2890 = vsub.f32 %v169, %v2889
    %v2891 = vand.u32 %v2890, 4294901760
    %2892 = vmatmul.f32.gmra.mxu0 %v2891
    %v2893 = vpop.f32.mrf.mxu0
    %v2894 = vadd.f32 %v2669, %v2893
    %2895 = vdwg.mxu0
    %v2896 = vand.u32 %v1771, 4294901760
    %v2897 = vsub.f32 %v1771, %v2896
    %v2898 = vand.u32 %v2897, 4294901760
    %2899 = vmatpush.msra.mxu0 %v2898
    %v2900 = vand.u32 %v1770, 4294901760
    %v2901 = vsub.f32 %v1770, %v2900
    %v2902 = vand.u32 %v2901, 4294901760
    %2903 = vmatpush.msra.mxu0 %v2902
    %v2904 = vand.u32 %v1769, 4294901760
    %v2905 = vsub.f32 %v1769, %v2904
    %v2906 = vand.u32 %v2905, 4294901760
    %2907 = vmatpush.msra.mxu0 %v2906
    %v2908 = vand.u32 %v1768, 4294901760
    %v2909 = vsub.f32 %v1768, %v2908
    %v2910 = vand.u32 %v2909, 4294901760
    %2911 = vmatpush.msra.mxu0 %v2910
    %v2912 = vand.u32 %v1767, 4294901760
    %v2913 = vsub.f32 %v1767, %v2912
    %v2914 = vand.u32 %v2913, 4294901760
    %2915 = vmatpush.msra.mxu0 %v2914
    %v2916 = vand.u32 %v1766, 4294901760
    %v2917 = vsub.f32 %v1766, %v2916
    %v2918 = vand.u32 %v2917, 4294901760
    %2919 = vmatpush.msra.mxu0 %v2918
    %v2920 = vand.u32 %v1765, 4294901760
    %v2921 = vsub.f32 %v1765, %v2920
    %v2922 = vand.u32 %v2921, 4294901760
    %2923 = vmatpush.msra.mxu0 %v2922
    %v2924 = vand.u32 %v1764, 4294901760
    %v2925 = vsub.f32 %v1764, %v2924
    %v2926 = vand.u32 %v2925, 4294901760
    %2927 = vmatpush.msra.mxu0 %v2926
    %v2928 = vand.u32 %v1763, 4294901760
    %v2929 = vsub.f32 %v1763, %v2928
    %v2930 = vand.u32 %v2929, 4294901760
    %2931 = vmatpush.msra.mxu0 %v2930
    %v2932 = vand.u32 %v1762, 4294901760
    %v2933 = vsub.f32 %v1762, %v2932
    %v2934 = vand.u32 %v2933, 4294901760
    %2935 = vmatpush.msra.mxu0 %v2934
    %v2936 = vand.u32 %v1761, 4294901760
    %v2937 = vsub.f32 %v1761, %v2936
    %v2938 = vand.u32 %v2937, 4294901760
    %2939 = vmatpush.msra.mxu0 %v2938
    %v2940 = vand.u32 %v1760, 4294901760
    %v2941 = vsub.f32 %v1760, %v2940
    %v2942 = vand.u32 %v2941, 4294901760
    %2943 = vmatpush.msra.mxu0 %v2942
    %v2944 = vand.u32 %v1759, 4294901760
    %v2945 = vsub.f32 %v1759, %v2944
    %v2946 = vand.u32 %v2945, 4294901760
    %2947 = vmatpush.msra.mxu0 %v2946
    %v2948 = vand.u32 %v1758, 4294901760
    %v2949 = vsub.f32 %v1758, %v2948
    %v2950 = vand.u32 %v2949, 4294901760
    %2951 = vmatpush.msra.mxu0 %v2950
    %v2952 = vand.u32 %v1757, 4294901760
    %v2953 = vsub.f32 %v1757, %v2952
    %v2954 = vand.u32 %v2953, 4294901760
    %2955 = vmatpush.msra.mxu0 %v2954
    %v2956 = vand.u32 %v1756, 4294901760
    %v2957 = vsub.f32 %v1756, %v2956
    %v2958 = vand.u32 %v2957, 4294901760
    %2959 = vmatpush.msra.mxu0 %v2958
    %v2960 = vand.u32 %v107, 4294901760
    %2961 = vmatmul.f32.gmra.mxu0 %v2960
    %v2962 = vpop.f32.mrf.mxu0
    %v2963 = vadd.f32 %v2708, %v2962
    %v2964 = vand.u32 %v109, 4294901760
    %2965 = vmatmul.f32.gmra.mxu0 %v2964
    %v2966 = vpop.f32.mrf.mxu0
    %v2967 = vadd.f32 %v2714, %v2966
    %v2968 = vand.u32 %v111, 4294901760
    %2969 = vmatmul.f32.gmra.mxu0 %v2968
    %v2970 = vpop.f32.mrf.mxu0
    %v2971 = vadd.f32 %v2720, %v2970
    %v2972 = vand.u32 %v113, 4294901760
    %2973 = vmatmul.f32.gmra.mxu0 %v2972
    %v2974 = vpop.f32.mrf.mxu0
    %v2975 = vadd.f32 %v2726, %v2974
    %v2976 = vand.u32 %v115, 4294901760
    %2977 = vmatmul.f32.gmra.mxu0 %v2976
    %v2978 = vpop.f32.mrf.mxu0
    %v2979 = vadd.f32 %v2732, %v2978
    %v2980 = vand.u32 %v117, 4294901760
    %2981 = vmatmul.f32.gmra.mxu0 %v2980
    %v2982 = vpop.f32.mrf.mxu0
    %v2983 = vadd.f32 %v2738, %v2982
    %v2984 = vand.u32 %v119, 4294901760
    %2985 = vmatmul.f32.gmra.mxu0 %v2984
    %v2986 = vpop.f32.mrf.mxu0
    %v2987 = vadd.f32 %v2744, %v2986
    %v2988 = vand.u32 %v121, 4294901760
    %2989 = vmatmul.f32.gmra.mxu0 %v2988
    %v2990 = vpop.f32.mrf.mxu0
    %v2991 = vadd.f32 %v2750, %v2990
    %v2992 = vand.u32 %v123, 4294901760
    %2993 = vmatmul.f32.gmra.mxu0 %v2992
    %v2994 = vpop.f32.mrf.mxu0
    %v2995 = vadd.f32 %v2756, %v2994
    %v2996 = vand.u32 %v125, 4294901760
    %2997 = vmatmul.f32.gmra.mxu0 %v2996
    %v2998 = vpop.f32.mrf.mxu0
    %v2999 = vadd.f32 %v2762, %v2998
    %v3000 = vand.u32 %v127, 4294901760
    %3001 = vmatmul.f32.gmra.mxu0 %v3000
    %v3002 = vpop.f32.mrf.mxu0
    %v3003 = vadd.f32 %v2768, %v3002
    %v3004 = vand.u32 %v129, 4294901760
    %3005 = vmatmul.f32.gmra.mxu0 %v3004
    %v3006 = vpop.f32.mrf.mxu0
    %v3007 = vadd.f32 %v2774, %v3006
    %v3008 = vand.u32 %v131, 4294901760
    %3009 = vmatmul.f32.gmra.mxu0 %v3008
    %v3010 = vpop.f32.mrf.mxu0
    %v3011 = vadd.f32 %v2780, %v3010
    %v3012 = vand.u32 %v133, 4294901760
    %3013 = vmatmul.f32.gmra.mxu0 %v3012
    %v3014 = vpop.f32.mrf.mxu0
    %v3015 = vadd.f32 %v2786, %v3014
    %v3016 = vand.u32 %v135, 4294901760
    %3017 = vmatmul.f32.gmra.mxu0 %v3016
    %v3018 = vpop.f32.mrf.mxu0
    %v3019 = vadd.f32 %v2792, %v3018
    %v3020 = vand.u32 %v137, 4294901760
    %3021 = vmatmul.f32.gmra.mxu0 %v3020
    %v3022 = vpop.f32.mrf.mxu0
    %v3023 = vadd.f32 %v2798, %v3022
    %v3024 = vand.u32 %v139, 4294901760
    %3025 = vmatmul.f32.gmra.mxu0 %v3024
    %v3026 = vpop.f32.mrf.mxu0
    %v3027 = vadd.f32 %v2804, %v3026
    %v3028 = vand.u32 %v141, 4294901760
    %3029 = vmatmul.f32.gmra.mxu0 %v3028
    %v3030 = vpop.f32.mrf.mxu0
    %v3031 = vadd.f32 %v2810, %v3030
    %v3032 = vand.u32 %v143, 4294901760
    %3033 = vmatmul.f32.gmra.mxu0 %v3032
    %v3034 = vpop.f32.mrf.mxu0
    %v3035 = vadd.f32 %v2816, %v3034
    %v3036 = vand.u32 %v145, 4294901760
    %3037 = vmatmul.f32.gmra.mxu0 %v3036
    %v3038 = vpop.f32.mrf.mxu0
    %v3039 = vadd.f32 %v2822, %v3038
    %v3040 = vand.u32 %v147, 4294901760
    %3041 = vmatmul.f32.gmra.mxu0 %v3040
    %v3042 = vpop.f32.mrf.mxu0
    %v3043 = vadd.f32 %v2828, %v3042
    %v3044 = vand.u32 %v149, 4294901760
    %3045 = vmatmul.f32.gmra.mxu0 %v3044
    %v3046 = vpop.f32.mrf.mxu0
    %v3047 = vadd.f32 %v2834, %v3046
    %v3048 = vand.u32 %v151, 4294901760
    %3049 = vmatmul.f32.gmra.mxu0 %v3048
    %v3050 = vpop.f32.mrf.mxu0
    %v3051 = vadd.f32 %v2840, %v3050
    %v3052 = vand.u32 %v153, 4294901760
    %3053 = vmatmul.f32.gmra.mxu0 %v3052
    %v3054 = vpop.f32.mrf.mxu0
    %v3055 = vadd.f32 %v2846, %v3054
    %v3056 = vand.u32 %v155, 4294901760
    %3057 = vmatmul.f32.gmra.mxu0 %v3056
    %v3058 = vpop.f32.mrf.mxu0
    %v3059 = vadd.f32 %v2852, %v3058
    %v3060 = vand.u32 %v157, 4294901760
    %3061 = vmatmul.f32.gmra.mxu0 %v3060
    %v3062 = vpop.f32.mrf.mxu0
    %v3063 = vadd.f32 %v2858, %v3062
    %v3064 = vand.u32 %v159, 4294901760
    %3065 = vmatmul.f32.gmra.mxu0 %v3064
    %v3066 = vpop.f32.mrf.mxu0
    %v3067 = vadd.f32 %v2864, %v3066
    %v3068 = vand.u32 %v161, 4294901760
    %3069 = vmatmul.f32.gmra.mxu0 %v3068
    %v3070 = vpop.f32.mrf.mxu0
    %v3071 = vadd.f32 %v2870, %v3070
    %v3072 = vand.u32 %v163, 4294901760
    %3073 = vmatmul.f32.gmra.mxu0 %v3072
    %v3074 = vpop.f32.mrf.mxu0
    %v3075 = vadd.f32 %v2876, %v3074
    %v3076 = vand.u32 %v165, 4294901760
    %3077 = vmatmul.f32.gmra.mxu0 %v3076
    %v3078 = vpop.f32.mrf.mxu0
    %v3079 = vadd.f32 %v2882, %v3078
    %v3080 = vand.u32 %v167, 4294901760
    %3081 = vmatmul.f32.gmra.mxu0 %v3080
    %v3082 = vpop.f32.mrf.mxu0
    %v3083 = vadd.f32 %v2888, %v3082
    %v3084 = vand.u32 %v169, 4294901760
    %3085 = vmatmul.f32.gmra.mxu0 %v3084
    %v3086 = vpop.f32.mrf.mxu0
    %v3087 = vadd.f32 %v2894, %v3086
    %3088 = vdwg.mxu0
    %v3089 = vand.u32 %v1771, 4294901760
    %3090 = vmatpush.msra.mxu0 %v3089
    %v3091 = vand.u32 %v1770, 4294901760
    %3092 = vmatpush.msra.mxu0 %v3091
    %v3093 = vand.u32 %v1769, 4294901760
    %3094 = vmatpush.msra.mxu0 %v3093
    %v3095 = vand.u32 %v1768, 4294901760
    %3096 = vmatpush.msra.mxu0 %v3095
    %v3097 = vand.u32 %v1767, 4294901760
    %3098 = vmatpush.msra.mxu0 %v3097
    %v3099 = vand.u32 %v1766, 4294901760
    %3100 = vmatpush.msra.mxu0 %v3099
    %v3101 = vand.u32 %v1765, 4294901760
    %3102 = vmatpush.msra.mxu0 %v3101
    %v3103 = vand.u32 %v1764, 4294901760
    %3104 = vmatpush.msra.mxu0 %v3103
    %v3105 = vand.u32 %v1763, 4294901760
    %3106 = vmatpush.msra.mxu0 %v3105
    %v3107 = vand.u32 %v1762, 4294901760
    %3108 = vmatpush.msra.mxu0 %v3107
    %v3109 = vand.u32 %v1761, 4294901760
    %3110 = vmatpush.msra.mxu0 %v3109
    %v3111 = vand.u32 %v1760, 4294901760
    %3112 = vmatpush.msra.mxu0 %v3111
    %v3113 = vand.u32 %v1759, 4294901760
    %3114 = vmatpush.msra.mxu0 %v3113
    %v3115 = vand.u32 %v1758, 4294901760
    %3116 = vmatpush.msra.mxu0 %v3115
    %v3117 = vand.u32 %v1757, 4294901760
    %3118 = vmatpush.msra.mxu0 %v3117
    %v3119 = vand.u32 %v1756, 4294901760
    %3120 = vmatpush.msra.mxu0 %v3119
    %v3121 = vand.u32 %v107, 4294901760
    %3122 = vmatmul.f32.gmra.mxu0 %v3121
    %v3123 = vpop.f32.mrf.mxu0
    %v3124 = vadd.f32 %v2963, %v3123
    %v3125 = vand.u32 %v109, 4294901760
    %3126 = vmatmul.f32.gmra.mxu0 %v3125
    %v3127 = vpop.f32.mrf.mxu0
    %v3128 = vadd.f32 %v2967, %v3127
    %v3129 = vand.u32 %v111, 4294901760
    %3130 = vmatmul.f32.gmra.mxu0 %v3129
    %v3131 = vpop.f32.mrf.mxu0
    %v3132 = vadd.f32 %v2971, %v3131
    %v3133 = vand.u32 %v113, 4294901760
    %3134 = vmatmul.f32.gmra.mxu0 %v3133
    %v3135 = vpop.f32.mrf.mxu0
    %v3136 = vadd.f32 %v2975, %v3135
    %v3137 = vand.u32 %v115, 4294901760
    %3138 = vmatmul.f32.gmra.mxu0 %v3137
    %v3139 = vpop.f32.mrf.mxu0
    %v3140 = vadd.f32 %v2979, %v3139
    %v3141 = vand.u32 %v117, 4294901760
    %3142 = vmatmul.f32.gmra.mxu0 %v3141
    %v3143 = vpop.f32.mrf.mxu0
    %v3144 = vadd.f32 %v2983, %v3143
    %v3145 = vand.u32 %v119, 4294901760
    %3146 = vmatmul.f32.gmra.mxu0 %v3145
    %v3147 = vpop.f32.mrf.mxu0
    %v3148 = vadd.f32 %v2987, %v3147
    %v3149 = vand.u32 %v121, 4294901760
    %3150 = vmatmul.f32.gmra.mxu0 %v3149
    %v3151 = vpop.f32.mrf.mxu0
    %v3152 = vadd.f32 %v2991, %v3151
    %v3153 = vand.u32 %v123, 4294901760
    %3154 = vmatmul.f32.gmra.mxu0 %v3153
    %v3155 = vpop.f32.mrf.mxu0
    %v3156 = vadd.f32 %v2995, %v3155
    %v3157 = vand.u32 %v125, 4294901760
    %3158 = vmatmul.f32.gmra.mxu0 %v3157
    %v3159 = vpop.f32.mrf.mxu0
    %v3160 = vadd.f32 %v2999, %v3159
    %v3161 = vand.u32 %v127, 4294901760
    %3162 = vmatmul.f32.gmra.mxu0 %v3161
    %v3163 = vpop.f32.mrf.mxu0
    %v3164 = vadd.f32 %v3003, %v3163
    %v3165 = vand.u32 %v129, 4294901760
    %3166 = vmatmul.f32.gmra.mxu0 %v3165
    %v3167 = vpop.f32.mrf.mxu0
    %v3168 = vadd.f32 %v3007, %v3167
    %v3169 = vand.u32 %v131, 4294901760
    %3170 = vmatmul.f32.gmra.mxu0 %v3169
    %v3171 = vpop.f32.mrf.mxu0
    %v3172 = vadd.f32 %v3011, %v3171
    %v3173 = vand.u32 %v133, 4294901760
    %3174 = vmatmul.f32.gmra.mxu0 %v3173
    %v3175 = vpop.f32.mrf.mxu0
    %v3176 = vadd.f32 %v3015, %v3175
    %v3177 = vand.u32 %v135, 4294901760
    %3178 = vmatmul.f32.gmra.mxu0 %v3177
    %v3179 = vpop.f32.mrf.mxu0
    %v3180 = vadd.f32 %v3019, %v3179
    %v3181 = vand.u32 %v137, 4294901760
    %3182 = vmatmul.f32.gmra.mxu0 %v3181
    %v3183 = vpop.f32.mrf.mxu0
    %v3184 = vadd.f32 %v3023, %v3183
    %v3185 = vand.u32 %v139, 4294901760
    %3186 = vmatmul.f32.gmra.mxu0 %v3185
    %v3187 = vpop.f32.mrf.mxu0
    %v3188 = vadd.f32 %v3027, %v3187
    %v3189 = vand.u32 %v141, 4294901760
    %3190 = vmatmul.f32.gmra.mxu0 %v3189
    %v3191 = vpop.f32.mrf.mxu0
    %v3192 = vadd.f32 %v3031, %v3191
    %v3193 = vand.u32 %v143, 4294901760
    %3194 = vmatmul.f32.gmra.mxu0 %v3193
    %v3195 = vpop.f32.mrf.mxu0
    %v3196 = vadd.f32 %v3035, %v3195
    %v3197 = vand.u32 %v145, 4294901760
    %3198 = vmatmul.f32.gmra.mxu0 %v3197
    %v3199 = vpop.f32.mrf.mxu0
    %v3200 = vadd.f32 %v3039, %v3199
    %v3201 = vand.u32 %v147, 4294901760
    %3202 = vmatmul.f32.gmra.mxu0 %v3201
    %v3203 = vpop.f32.mrf.mxu0
    %v3204 = vadd.f32 %v3043, %v3203
    %v3205 = vand.u32 %v149, 4294901760
    %3206 = vmatmul.f32.gmra.mxu0 %v3205
    %v3207 = vpop.f32.mrf.mxu0
    %v3208 = vadd.f32 %v3047, %v3207
    %v3209 = vand.u32 %v151, 4294901760
    %3210 = vmatmul.f32.gmra.mxu0 %v3209
    %v3211 = vpop.f32.mrf.mxu0
    %v3212 = vadd.f32 %v3051, %v3211
    %v3213 = vand.u32 %v153, 4294901760
    %3214 = vmatmul.f32.gmra.mxu0 %v3213
    %v3215 = vpop.f32.mrf.mxu0
    %v3216 = vadd.f32 %v3055, %v3215
    %v3217 = vand.u32 %v155, 4294901760
    %3218 = vmatmul.f32.gmra.mxu0 %v3217
    %v3219 = vpop.f32.mrf.mxu0
    %v3220 = vadd.f32 %v3059, %v3219
    %v3221 = vand.u32 %v157, 4294901760
    %3222 = vmatmul.f32.gmra.mxu0 %v3221
    %v3223 = vpop.f32.mrf.mxu0
    %v3224 = vadd.f32 %v3063, %v3223
    %v3225 = vand.u32 %v159, 4294901760
    %3226 = vmatmul.f32.gmra.mxu0 %v3225
    %v3227 = vpop.f32.mrf.mxu0
    %v3228 = vadd.f32 %v3067, %v3227
    %v3229 = vand.u32 %v161, 4294901760
    %3230 = vmatmul.f32.gmra.mxu0 %v3229
    %v3231 = vpop.f32.mrf.mxu0
    %v3232 = vadd.f32 %v3071, %v3231
    %v3233 = vand.u32 %v163, 4294901760
    %3234 = vmatmul.f32.gmra.mxu0 %v3233
    %v3235 = vpop.f32.mrf.mxu0
    %v3236 = vadd.f32 %v3075, %v3235
    %v3237 = vand.u32 %v165, 4294901760
    %3238 = vmatmul.f32.gmra.mxu0 %v3237
    %v3239 = vpop.f32.mrf.mxu0
    %v3240 = vadd.f32 %v3079, %v3239
    %v3241 = vand.u32 %v167, 4294901760
    %3242 = vmatmul.f32.gmra.mxu0 %v3241
    %v3243 = vpop.f32.mrf.mxu0
    %v3244 = vadd.f32 %v3083, %v3243
    %v3245 = vand.u32 %v169, 4294901760
    %3246 = vmatmul.f32.gmra.mxu0 %v3245
    %v3247 = vpop.f32.mrf.mxu0
    %v3248 = vadd.f32 %v3087, %v3247
    %3249 = vdwg.mxu0
    %v3250 = vand.u32 %v1787, 4294901760
    %3251 = vmatpush.msra.mxu0 %v3250
    %v3252 = vand.u32 %v1786, 4294901760
    %3253 = vmatpush.msra.mxu0 %v3252
    %v3254 = vand.u32 %v1785, 4294901760
    %3255 = vmatpush.msra.mxu0 %v3254
    %v3256 = vand.u32 %v1784, 4294901760
    %3257 = vmatpush.msra.mxu0 %v3256
    %v3258 = vand.u32 %v1783, 4294901760
    %3259 = vmatpush.msra.mxu0 %v3258
    %v3260 = vand.u32 %v1782, 4294901760
    %3261 = vmatpush.msra.mxu0 %v3260
    %v3262 = vand.u32 %v1781, 4294901760
    %3263 = vmatpush.msra.mxu0 %v3262
    %v3264 = vand.u32 %v1780, 4294901760
    %3265 = vmatpush.msra.mxu0 %v3264
    %v3266 = vand.u32 %v1779, 4294901760
    %3267 = vmatpush.msra.mxu0 %v3266
    %v3268 = vand.u32 %v1778, 4294901760
    %3269 = vmatpush.msra.mxu0 %v3268
    %v3270 = vand.u32 %v1777, 4294901760
    %3271 = vmatpush.msra.mxu0 %v3270
    %v3272 = vand.u32 %v1776, 4294901760
    %3273 = vmatpush.msra.mxu0 %v3272
    %v3274 = vand.u32 %v1775, 4294901760
    %3275 = vmatpush.msra.mxu0 %v3274
    %v3276 = vand.u32 %v1774, 4294901760
    %3277 = vmatpush.msra.mxu0 %v3276
    %v3278 = vand.u32 %v1773, 4294901760
    %3279 = vmatpush.msra.mxu0 %v3278
    %v3280 = vand.u32 %v1772, 4294901760
    %3281 = vmatpush.msra.mxu0 %v3280
    %v3282 = vand.u32 %v108, 4294901760
    %v3283 = vsub.f32 %v108, %v3282
    %v3284 = vand.u32 %v3283, 4294901760
    %v3285 = vsub.f32 %v3283, %v3284
    %v3286 = vand.u32 %v3285, 4294901760
    %3287 = vmatmul.f32.gmra.mxu0 %v3286
    %v3288 = vpop.f32.mrf.mxu0
    %v3289 = vadd.f32 %v3124, %v3288
    %v3290 = vand.u32 %v110, 4294901760
    %v3291 = vsub.f32 %v110, %v3290
    %v3292 = vand.u32 %v3291, 4294901760
    %v3293 = vsub.f32 %v3291, %v3292
    %v3294 = vand.u32 %v3293, 4294901760
    %3295 = vmatmul.f32.gmra.mxu0 %v3294
    %v3296 = vpop.f32.mrf.mxu0
    %v3297 = vadd.f32 %v3128, %v3296
    %v3298 = vand.u32 %v112, 4294901760
    %v3299 = vsub.f32 %v112, %v3298
    %v3300 = vand.u32 %v3299, 4294901760
    %v3301 = vsub.f32 %v3299, %v3300
    %v3302 = vand.u32 %v3301, 4294901760
    %3303 = vmatmul.f32.gmra.mxu0 %v3302
    %v3304 = vpop.f32.mrf.mxu0
    %v3305 = vadd.f32 %v3132, %v3304
    %v3306 = vand.u32 %v114, 4294901760
    %v3307 = vsub.f32 %v114, %v3306
    %v3308 = vand.u32 %v3307, 4294901760
    %v3309 = vsub.f32 %v3307, %v3308
    %v3310 = vand.u32 %v3309, 4294901760
    %3311 = vmatmul.f32.gmra.mxu0 %v3310
    %v3312 = vpop.f32.mrf.mxu0
    %v3313 = vadd.f32 %v3136, %v3312
    %v3314 = vand.u32 %v116, 4294901760
    %v3315 = vsub.f32 %v116, %v3314
    %v3316 = vand.u32 %v3315, 4294901760
    %v3317 = vsub.f32 %v3315, %v3316
    %v3318 = vand.u32 %v3317, 4294901760
    %3319 = vmatmul.f32.gmra.mxu0 %v3318
    %v3320 = vpop.f32.mrf.mxu0
    %v3321 = vadd.f32 %v3140, %v3320
    %v3322 = vand.u32 %v118, 4294901760
    %v3323 = vsub.f32 %v118, %v3322
    %v3324 = vand.u32 %v3323, 4294901760
    %v3325 = vsub.f32 %v3323, %v3324
    %v3326 = vand.u32 %v3325, 4294901760
    %3327 = vmatmul.f32.gmra.mxu0 %v3326
    %v3328 = vpop.f32.mrf.mxu0
    %v3329 = vadd.f32 %v3144, %v3328
    %v3330 = vand.u32 %v120, 4294901760
    %v3331 = vsub.f32 %v120, %v3330
    %v3332 = vand.u32 %v3331, 4294901760
    %v3333 = vsub.f32 %v3331, %v3332
    %v3334 = vand.u32 %v3333, 4294901760
    %3335 = vmatmul.f32.gmra.mxu0 %v3334
    %v3336 = vpop.f32.mrf.mxu0
    %v3337 = vadd.f32 %v3148, %v3336
    %v3338 = vand.u32 %v122, 4294901760
    %v3339 = vsub.f32 %v122, %v3338
    %v3340 = vand.u32 %v3339, 4294901760
    %v3341 = vsub.f32 %v3339, %v3340
    %v3342 = vand.u32 %v3341, 4294901760
    %3343 = vmatmul.f32.gmra.mxu0 %v3342
    %v3344 = vpop.f32.mrf.mxu0
    %v3345 = vadd.f32 %v3152, %v3344
    %v3346 = vand.u32 %v124, 4294901760
    %v3347 = vsub.f32 %v124, %v3346
    %v3348 = vand.u32 %v3347, 4294901760
    %v3349 = vsub.f32 %v3347, %v3348
    %v3350 = vand.u32 %v3349, 4294901760
    %3351 = vmatmul.f32.gmra.mxu0 %v3350
    %v3352 = vpop.f32.mrf.mxu0
    %v3353 = vadd.f32 %v3156, %v3352
    %v3354 = vand.u32 %v126, 4294901760
    %v3355 = vsub.f32 %v126, %v3354
    %v3356 = vand.u32 %v3355, 4294901760
    %v3357 = vsub.f32 %v3355, %v3356
    %v3358 = vand.u32 %v3357, 4294901760
    %3359 = vmatmul.f32.gmra.mxu0 %v3358
    %v3360 = vpop.f32.mrf.mxu0
    %v3361 = vadd.f32 %v3160, %v3360
    %v3362 = vand.u32 %v128, 4294901760
    %v3363 = vsub.f32 %v128, %v3362
    %v3364 = vand.u32 %v3363, 4294901760
    %v3365 = vsub.f32 %v3363, %v3364
    %v3366 = vand.u32 %v3365, 4294901760
    %3367 = vmatmul.f32.gmra.mxu0 %v3366
    %v3368 = vpop.f32.mrf.mxu0
    %v3369 = vadd.f32 %v3164, %v3368
    %v3370 = vand.u32 %v130, 4294901760
    %v3371 = vsub.f32 %v130, %v3370
    %v3372 = vand.u32 %v3371, 4294901760
    %v3373 = vsub.f32 %v3371, %v3372
    %v3374 = vand.u32 %v3373, 4294901760
    %3375 = vmatmul.f32.gmra.mxu0 %v3374
    %v3376 = vpop.f32.mrf.mxu0
    %v3377 = vadd.f32 %v3168, %v3376
    %v3378 = vand.u32 %v132, 4294901760
    %v3379 = vsub.f32 %v132, %v3378
    %v3380 = vand.u32 %v3379, 4294901760
    %v3381 = vsub.f32 %v3379, %v3380
    %v3382 = vand.u32 %v3381, 4294901760
    %3383 = vmatmul.f32.gmra.mxu0 %v3382
    %v3384 = vpop.f32.mrf.mxu0
    %v3385 = vadd.f32 %v3172, %v3384
    %v3386 = vand.u32 %v134, 4294901760
    %v3387 = vsub.f32 %v134, %v3386
    %v3388 = vand.u32 %v3387, 4294901760
    %v3389 = vsub.f32 %v3387, %v3388
    %v3390 = vand.u32 %v3389, 4294901760
    %3391 = vmatmul.f32.gmra.mxu0 %v3390
    %v3392 = vpop.f32.mrf.mxu0
    %v3393 = vadd.f32 %v3176, %v3392
    %v3394 = vand.u32 %v136, 4294901760
    %v3395 = vsub.f32 %v136, %v3394
    %v3396 = vand.u32 %v3395, 4294901760
    %v3397 = vsub.f32 %v3395, %v3396
    %v3398 = vand.u32 %v3397, 4294901760
    %3399 = vmatmul.f32.gmra.mxu0 %v3398
    %v3400 = vpop.f32.mrf.mxu0
    %v3401 = vadd.f32 %v3180, %v3400
    %v3402 = vand.u32 %v138, 4294901760
    %v3403 = vsub.f32 %v138, %v3402
    %v3404 = vand.u32 %v3403, 4294901760
    %v3405 = vsub.f32 %v3403, %v3404
    %v3406 = vand.u32 %v3405, 4294901760
    %3407 = vmatmul.f32.gmra.mxu0 %v3406
    %v3408 = vpop.f32.mrf.mxu0
    %v3409 = vadd.f32 %v3184, %v3408
    %v3410 = vand.u32 %v140, 4294901760
    %v3411 = vsub.f32 %v140, %v3410
    %v3412 = vand.u32 %v3411, 4294901760
    %v3413 = vsub.f32 %v3411, %v3412
    %v3414 = vand.u32 %v3413, 4294901760
    %3415 = vmatmul.f32.gmra.mxu0 %v3414
    %v3416 = vpop.f32.mrf.mxu0
    %v3417 = vadd.f32 %v3188, %v3416
    %v3418 = vand.u32 %v142, 4294901760
    %v3419 = vsub.f32 %v142, %v3418
    %v3420 = vand.u32 %v3419, 4294901760
    %v3421 = vsub.f32 %v3419, %v3420
    %v3422 = vand.u32 %v3421, 4294901760
    %3423 = vmatmul.f32.gmra.mxu0 %v3422
    %v3424 = vpop.f32.mrf.mxu0
    %v3425 = vadd.f32 %v3192, %v3424
    %v3426 = vand.u32 %v144, 4294901760
    %v3427 = vsub.f32 %v144, %v3426
    %v3428 = vand.u32 %v3427, 4294901760
    %v3429 = vsub.f32 %v3427, %v3428
    %v3430 = vand.u32 %v3429, 4294901760
    %3431 = vmatmul.f32.gmra.mxu0 %v3430
    %v3432 = vpop.f32.mrf.mxu0
    %v3433 = vadd.f32 %v3196, %v3432
    %v3434 = vand.u32 %v146, 4294901760
    %v3435 = vsub.f32 %v146, %v3434
    %v3436 = vand.u32 %v3435, 4294901760
    %v3437 = vsub.f32 %v3435, %v3436
    %v3438 = vand.u32 %v3437, 4294901760
    %3439 = vmatmul.f32.gmra.mxu0 %v3438
    %v3440 = vpop.f32.mrf.mxu0
    %v3441 = vadd.f32 %v3200, %v3440
    %v3442 = vand.u32 %v148, 4294901760
    %v3443 = vsub.f32 %v148, %v3442
    %v3444 = vand.u32 %v3443, 4294901760
    %v3445 = vsub.f32 %v3443, %v3444
    %v3446 = vand.u32 %v3445, 4294901760
    %3447 = vmatmul.f32.gmra.mxu0 %v3446
    %v3448 = vpop.f32.mrf.mxu0
    %v3449 = vadd.f32 %v3204, %v3448
    %v3450 = vand.u32 %v150, 4294901760
    %v3451 = vsub.f32 %v150, %v3450
    %v3452 = vand.u32 %v3451, 4294901760
    %v3453 = vsub.f32 %v3451, %v3452
    %v3454 = vand.u32 %v3453, 4294901760
    %3455 = vmatmul.f32.gmra.mxu0 %v3454
    %v3456 = vpop.f32.mrf.mxu0
    %v3457 = vadd.f32 %v3208, %v3456
    %v3458 = vand.u32 %v152, 4294901760
    %v3459 = vsub.f32 %v152, %v3458
    %v3460 = vand.u32 %v3459, 4294901760
    %v3461 = vsub.f32 %v3459, %v3460
    %v3462 = vand.u32 %v3461, 4294901760
    %3463 = vmatmul.f32.gmra.mxu0 %v3462
    %v3464 = vpop.f32.mrf.mxu0
    %v3465 = vadd.f32 %v3212, %v3464
    %v3466 = vand.u32 %v154, 4294901760
    %v3467 = vsub.f32 %v154, %v3466
    %v3468 = vand.u32 %v3467, 4294901760
    %v3469 = vsub.f32 %v3467, %v3468
    %v3470 = vand.u32 %v3469, 4294901760
    %3471 = vmatmul.f32.gmra.mxu0 %v3470
    %v3472 = vpop.f32.mrf.mxu0
    %v3473 = vadd.f32 %v3216, %v3472
    %v3474 = vand.u32 %v156, 4294901760
    %v3475 = vsub.f32 %v156, %v3474
    %v3476 = vand.u32 %v3475, 4294901760
    %v3477 = vsub.f32 %v3475, %v3476
    %v3478 = vand.u32 %v3477, 4294901760
    %3479 = vmatmul.f32.gmra.mxu0 %v3478
    %v3480 = vpop.f32.mrf.mxu0
    %v3481 = vadd.f32 %v3220, %v3480
    %v3482 = vand.u32 %v158, 4294901760
    %v3483 = vsub.f32 %v158, %v3482
    %v3484 = vand.u32 %v3483, 4294901760
    %v3485 = vsub.f32 %v3483, %v3484
    %v3486 = vand.u32 %v3485, 4294901760
    %3487 = vmatmul.f32.gmra.mxu0 %v3486
    %v3488 = vpop.f32.mrf.mxu0
    %v3489 = vadd.f32 %v3224, %v3488
    %v3490 = vand.u32 %v160, 4294901760
    %v3491 = vsub.f32 %v160, %v3490
    %v3492 = vand.u32 %v3491, 4294901760
    %v3493 = vsub.f32 %v3491, %v3492
    %v3494 = vand.u32 %v3493, 4294901760
    %3495 = vmatmul.f32.gmra.mxu0 %v3494
    %v3496 = vpop.f32.mrf.mxu0
    %v3497 = vadd.f32 %v3228, %v3496
    %v3498 = vand.u32 %v162, 4294901760
    %v3499 = vsub.f32 %v162, %v3498
    %v3500 = vand.u32 %v3499, 4294901760
    %v3501 = vsub.f32 %v3499, %v3500
    %v3502 = vand.u32 %v3501, 4294901760
    %3503 = vmatmul.f32.gmra.mxu0 %v3502
    %v3504 = vpop.f32.mrf.mxu0
    %v3505 = vadd.f32 %v3232, %v3504
    %v3506 = vand.u32 %v164, 4294901760
    %v3507 = vsub.f32 %v164, %v3506
    %v3508 = vand.u32 %v3507, 4294901760
    %v3509 = vsub.f32 %v3507, %v3508
    %v3510 = vand.u32 %v3509, 4294901760
    %3511 = vmatmul.f32.gmra.mxu0 %v3510
    %v3512 = vpop.f32.mrf.mxu0
    %v3513 = vadd.f32 %v3236, %v3512
    %v3514 = vand.u32 %v166, 4294901760
    %v3515 = vsub.f32 %v166, %v3514
    %v3516 = vand.u32 %v3515, 4294901760
    %v3517 = vsub.f32 %v3515, %v3516
    %v3518 = vand.u32 %v3517, 4294901760
    %3519 = vmatmul.f32.gmra.mxu0 %v3518
    %v3520 = vpop.f32.mrf.mxu0
    %v3521 = vadd.f32 %v3240, %v3520
    %v3522 = vand.u32 %v168, 4294901760
    %v3523 = vsub.f32 %v168, %v3522
    %v3524 = vand.u32 %v3523, 4294901760
    %v3525 = vsub.f32 %v3523, %v3524
    %v3526 = vand.u32 %v3525, 4294901760
    %3527 = vmatmul.f32.gmra.mxu0 %v3526
    %v3528 = vpop.f32.mrf.mxu0
    %v3529 = vadd.f32 %v3244, %v3528
    %v3530 = vand.u32 %v170, 4294901760
    %v3531 = vsub.f32 %v170, %v3530
    %v3532 = vand.u32 %v3531, 4294901760
    %v3533 = vsub.f32 %v3531, %v3532
    %v3534 = vand.u32 %v3533, 4294901760
    %3535 = vmatmul.f32.gmra.mxu0 %v3534
    %v3536 = vpop.f32.mrf.mxu0
    %v3537 = vadd.f32 %v3248, %v3536
    %3538 = vdwg.mxu0
    %v3539 = vand.u32 %v1787, 4294901760
    %v3540 = vsub.f32 %v1787, %v3539
    %v3541 = vand.u32 %v3540, 4294901760
    %v3542 = vsub.f32 %v3540, %v3541
    %v3543 = vand.u32 %v3542, 4294901760
    %3544 = vmatpush.msra.mxu0 %v3543
    %v3545 = vand.u32 %v1786, 4294901760
    %v3546 = vsub.f32 %v1786, %v3545
    %v3547 = vand.u32 %v3546, 4294901760
    %v3548 = vsub.f32 %v3546, %v3547
    %v3549 = vand.u32 %v3548, 4294901760
    %3550 = vmatpush.msra.mxu0 %v3549
    %v3551 = vand.u32 %v1785, 4294901760
    %v3552 = vsub.f32 %v1785, %v3551
    %v3553 = vand.u32 %v3552, 4294901760
    %v3554 = vsub.f32 %v3552, %v3553
    %v3555 = vand.u32 %v3554, 4294901760
    %3556 = vmatpush.msra.mxu0 %v3555
    %v3557 = vand.u32 %v1784, 4294901760
    %v3558 = vsub.f32 %v1784, %v3557
    %v3559 = vand.u32 %v3558, 4294901760
    %v3560 = vsub.f32 %v3558, %v3559
    %v3561 = vand.u32 %v3560, 4294901760
    %3562 = vmatpush.msra.mxu0 %v3561
    %v3563 = vand.u32 %v1783, 4294901760
    %v3564 = vsub.f32 %v1783, %v3563
    %v3565 = vand.u32 %v3564, 4294901760
    %v3566 = vsub.f32 %v3564, %v3565
    %v3567 = vand.u32 %v3566, 4294901760
    %3568 = vmatpush.msra.mxu0 %v3567
    %v3569 = vand.u32 %v1782, 4294901760
    %v3570 = vsub.f32 %v1782, %v3569
    %v3571 = vand.u32 %v3570, 4294901760
    %v3572 = vsub.f32 %v3570, %v3571
    %v3573 = vand.u32 %v3572, 4294901760
    %3574 = vmatpush.msra.mxu0 %v3573
    %v3575 = vand.u32 %v1781, 4294901760
    %v3576 = vsub.f32 %v1781, %v3575
    %v3577 = vand.u32 %v3576, 4294901760
    %v3578 = vsub.f32 %v3576, %v3577
    %v3579 = vand.u32 %v3578, 4294901760
    %3580 = vmatpush.msra.mxu0 %v3579
    %v3581 = vand.u32 %v1780, 4294901760
    %v3582 = vsub.f32 %v1780, %v3581
    %v3583 = vand.u32 %v3582, 4294901760
    %v3584 = vsub.f32 %v3582, %v3583
    %v3585 = vand.u32 %v3584, 4294901760
    %3586 = vmatpush.msra.mxu0 %v3585
    %v3587 = vand.u32 %v1779, 4294901760
    %v3588 = vsub.f32 %v1779, %v3587
    %v3589 = vand.u32 %v3588, 4294901760
    %v3590 = vsub.f32 %v3588, %v3589
    %v3591 = vand.u32 %v3590, 4294901760
    %3592 = vmatpush.msra.mxu0 %v3591
    %v3593 = vand.u32 %v1778, 4294901760
    %v3594 = vsub.f32 %v1778, %v3593
    %v3595 = vand.u32 %v3594, 4294901760
    %v3596 = vsub.f32 %v3594, %v3595
    %v3597 = vand.u32 %v3596, 4294901760
    %3598 = vmatpush.msra.mxu0 %v3597
    %v3599 = vand.u32 %v1777, 4294901760
    %v3600 = vsub.f32 %v1777, %v3599
    %v3601 = vand.u32 %v3600, 4294901760
    %v3602 = vsub.f32 %v3600, %v3601
    %v3603 = vand.u32 %v3602, 4294901760
    %3604 = vmatpush.msra.mxu0 %v3603
    %v3605 = vand.u32 %v1776, 4294901760
    %v3606 = vsub.f32 %v1776, %v3605
    %v3607 = vand.u32 %v3606, 4294901760
    %v3608 = vsub.f32 %v3606, %v3607
    %v3609 = vand.u32 %v3608, 4294901760
    %3610 = vmatpush.msra.mxu0 %v3609
    %v3611 = vand.u32 %v1775, 4294901760
    %v3612 = vsub.f32 %v1775, %v3611
    %v3613 = vand.u32 %v3612, 4294901760
    %v3614 = vsub.f32 %v3612, %v3613
    %v3615 = vand.u32 %v3614, 4294901760
    %3616 = vmatpush.msra.mxu0 %v3615
    %v3617 = vand.u32 %v1774, 4294901760
    %v3618 = vsub.f32 %v1774, %v3617
    %v3619 = vand.u32 %v3618, 4294901760
    %v3620 = vsub.f32 %v3618, %v3619
    %v3621 = vand.u32 %v3620, 4294901760
    %3622 = vmatpush.msra.mxu0 %v3621
    %v3623 = vand.u32 %v1773, 4294901760
    %v3624 = vsub.f32 %v1773, %v3623
    %v3625 = vand.u32 %v3624, 4294901760
    %v3626 = vsub.f32 %v3624, %v3625
    %v3627 = vand.u32 %v3626, 4294901760
    %3628 = vmatpush.msra.mxu0 %v3627
    %v3629 = vand.u32 %v1772, 4294901760
    %v3630 = vsub.f32 %v1772, %v3629
    %v3631 = vand.u32 %v3630, 4294901760
    %v3632 = vsub.f32 %v3630, %v3631
    %v3633 = vand.u32 %v3632, 4294901760
    %3634 = vmatpush.msra.mxu0 %v3633
    %v3635 = vand.u32 %v108, 4294901760
    %3636 = vmatmul.f32.gmra.mxu0 %v3635
    %v3637 = vpop.f32.mrf.mxu0
    %v3638 = vadd.f32 %v3289, %v3637
    %v3639 = vand.u32 %v110, 4294901760
    %3640 = vmatmul.f32.gmra.mxu0 %v3639
    %v3641 = vpop.f32.mrf.mxu0
    %v3642 = vadd.f32 %v3297, %v3641
    %v3643 = vand.u32 %v112, 4294901760
    %3644 = vmatmul.f32.gmra.mxu0 %v3643
    %v3645 = vpop.f32.mrf.mxu0
    %v3646 = vadd.f32 %v3305, %v3645
    %v3647 = vand.u32 %v114, 4294901760
    %3648 = vmatmul.f32.gmra.mxu0 %v3647
    %v3649 = vpop.f32.mrf.mxu0
    %v3650 = vadd.f32 %v3313, %v3649
    %v3651 = vand.u32 %v116, 4294901760
    %3652 = vmatmul.f32.gmra.mxu0 %v3651
    %v3653 = vpop.f32.mrf.mxu0
    %v3654 = vadd.f32 %v3321, %v3653
    %v3655 = vand.u32 %v118, 4294901760
    %3656 = vmatmul.f32.gmra.mxu0 %v3655
    %v3657 = vpop.f32.mrf.mxu0
    %v3658 = vadd.f32 %v3329, %v3657
    %v3659 = vand.u32 %v120, 4294901760
    %3660 = vmatmul.f32.gmra.mxu0 %v3659
    %v3661 = vpop.f32.mrf.mxu0
    %v3662 = vadd.f32 %v3337, %v3661
    %v3663 = vand.u32 %v122, 4294901760
    %3664 = vmatmul.f32.gmra.mxu0 %v3663
    %v3665 = vpop.f32.mrf.mxu0
    %v3666 = vadd.f32 %v3345, %v3665
    %v3667 = vand.u32 %v124, 4294901760
    %3668 = vmatmul.f32.gmra.mxu0 %v3667
    %v3669 = vpop.f32.mrf.mxu0
    %v3670 = vadd.f32 %v3353, %v3669
    %v3671 = vand.u32 %v126, 4294901760
    %3672 = vmatmul.f32.gmra.mxu0 %v3671
    %v3673 = vpop.f32.mrf.mxu0
    %v3674 = vadd.f32 %v3361, %v3673
    %v3675 = vand.u32 %v128, 4294901760
    %3676 = vmatmul.f32.gmra.mxu0 %v3675
    %v3677 = vpop.f32.mrf.mxu0
    %v3678 = vadd.f32 %v3369, %v3677
    %v3679 = vand.u32 %v130, 4294901760
    %3680 = vmatmul.f32.gmra.mxu0 %v3679
    %v3681 = vpop.f32.mrf.mxu0
    %v3682 = vadd.f32 %v3377, %v3681
    %v3683 = vand.u32 %v132, 4294901760
    %3684 = vmatmul.f32.gmra.mxu0 %v3683
    %v3685 = vpop.f32.mrf.mxu0
    %v3686 = vadd.f32 %v3385, %v3685
    %v3687 = vand.u32 %v134, 4294901760
    %3688 = vmatmul.f32.gmra.mxu0 %v3687
    %v3689 = vpop.f32.mrf.mxu0
    %v3690 = vadd.f32 %v3393, %v3689
    %v3691 = vand.u32 %v136, 4294901760
    %3692 = vmatmul.f32.gmra.mxu0 %v3691
    %v3693 = vpop.f32.mrf.mxu0
    %v3694 = vadd.f32 %v3401, %v3693
    %v3695 = vand.u32 %v138, 4294901760
    %3696 = vmatmul.f32.gmra.mxu0 %v3695
    %v3697 = vpop.f32.mrf.mxu0
    %v3698 = vadd.f32 %v3409, %v3697
    %v3699 = vand.u32 %v140, 4294901760
    %3700 = vmatmul.f32.gmra.mxu0 %v3699
    %v3701 = vpop.f32.mrf.mxu0
    %v3702 = vadd.f32 %v3417, %v3701
    %v3703 = vand.u32 %v142, 4294901760
    %3704 = vmatmul.f32.gmra.mxu0 %v3703
    %v3705 = vpop.f32.mrf.mxu0
    %v3706 = vadd.f32 %v3425, %v3705
    %v3707 = vand.u32 %v144, 4294901760
    %3708 = vmatmul.f32.gmra.mxu0 %v3707
    %v3709 = vpop.f32.mrf.mxu0
    %v3710 = vadd.f32 %v3433, %v3709
    %v3711 = vand.u32 %v146, 4294901760
    %3712 = vmatmul.f32.gmra.mxu0 %v3711
    %v3713 = vpop.f32.mrf.mxu0
    %v3714 = vadd.f32 %v3441, %v3713
    %v3715 = vand.u32 %v148, 4294901760
    %3716 = vmatmul.f32.gmra.mxu0 %v3715
    %v3717 = vpop.f32.mrf.mxu0
    %v3718 = vadd.f32 %v3449, %v3717
    %v3719 = vand.u32 %v150, 4294901760
    %3720 = vmatmul.f32.gmra.mxu0 %v3719
    %v3721 = vpop.f32.mrf.mxu0
    %v3722 = vadd.f32 %v3457, %v3721
    %v3723 = vand.u32 %v152, 4294901760
    %3724 = vmatmul.f32.gmra.mxu0 %v3723
    %v3725 = vpop.f32.mrf.mxu0
    %v3726 = vadd.f32 %v3465, %v3725
    %v3727 = vand.u32 %v154, 4294901760
    %3728 = vmatmul.f32.gmra.mxu0 %v3727
    %v3729 = vpop.f32.mrf.mxu0
    %v3730 = vadd.f32 %v3473, %v3729
    %v3731 = vand.u32 %v156, 4294901760
    %3732 = vmatmul.f32.gmra.mxu0 %v3731
    %v3733 = vpop.f32.mrf.mxu0
    %v3734 = vadd.f32 %v3481, %v3733
    %v3735 = vand.u32 %v158, 4294901760
    %3736 = vmatmul.f32.gmra.mxu0 %v3735
    %v3737 = vpop.f32.mrf.mxu0
    %v3738 = vadd.f32 %v3489, %v3737
    %v3739 = vand.u32 %v160, 4294901760
    %3740 = vmatmul.f32.gmra.mxu0 %v3739
    %v3741 = vpop.f32.mrf.mxu0
    %v3742 = vadd.f32 %v3497, %v3741
    %v3743 = vand.u32 %v162, 4294901760
    %3744 = vmatmul.f32.gmra.mxu0 %v3743
    %v3745 = vpop.f32.mrf.mxu0
    %v3746 = vadd.f32 %v3505, %v3745
    %v3747 = vand.u32 %v164, 4294901760
    %3748 = vmatmul.f32.gmra.mxu0 %v3747
    %v3749 = vpop.f32.mrf.mxu0
    %v3750 = vadd.f32 %v3513, %v3749
    %v3751 = vand.u32 %v166, 4294901760
    %3752 = vmatmul.f32.gmra.mxu0 %v3751
    %v3753 = vpop.f32.mrf.mxu0
    %v3754 = vadd.f32 %v3521, %v3753
    %v3755 = vand.u32 %v168, 4294901760
    %3756 = vmatmul.f32.gmra.mxu0 %v3755
    %v3757 = vpop.f32.mrf.mxu0
    %v3758 = vadd.f32 %v3529, %v3757
    %v3759 = vand.u32 %v170, 4294901760
    %3760 = vmatmul.f32.gmra.mxu0 %v3759
    %v3761 = vpop.f32.mrf.mxu0
    %v3762 = vadd.f32 %v3537, %v3761
    %3763 = vdwg.mxu0
    %v3764 = vand.u32 %v1787, 4294901760
    %v3765 = vsub.f32 %v1787, %v3764
    %3766 = vmatpush.msra.mxu0 %v3765
    %v3767 = vand.u32 %v1786, 4294901760
    %v3768 = vsub.f32 %v1786, %v3767
    %3769 = vmatpush.msra.mxu0 %v3768
    %v3770 = vand.u32 %v1785, 4294901760
    %v3771 = vsub.f32 %v1785, %v3770
    %3772 = vmatpush.msra.mxu0 %v3771
    %v3773 = vand.u32 %v1784, 4294901760
    %v3774 = vsub.f32 %v1784, %v3773
    %3775 = vmatpush.msra.mxu0 %v3774
    %v3776 = vand.u32 %v1783, 4294901760
    %v3777 = vsub.f32 %v1783, %v3776
    %3778 = vmatpush.msra.mxu0 %v3777
    %v3779 = vand.u32 %v1782, 4294901760
    %v3780 = vsub.f32 %v1782, %v3779
    %3781 = vmatpush.msra.mxu0 %v3780
    %v3782 = vand.u32 %v1781, 4294901760
    %v3783 = vsub.f32 %v1781, %v3782
    %3784 = vmatpush.msra.mxu0 %v3783
    %v3785 = vand.u32 %v1780, 4294901760
    %v3786 = vsub.f32 %v1780, %v3785
    %3787 = vmatpush.msra.mxu0 %v3786
    %v3788 = vand.u32 %v1779, 4294901760
    %v3789 = vsub.f32 %v1779, %v3788
    %3790 = vmatpush.msra.mxu0 %v3789
    %v3791 = vand.u32 %v1778, 4294901760
    %v3792 = vsub.f32 %v1778, %v3791
    %3793 = vmatpush.msra.mxu0 %v3792
    %v3794 = vand.u32 %v1777, 4294901760
    %v3795 = vsub.f32 %v1777, %v3794
    %3796 = vmatpush.msra.mxu0 %v3795
    %v3797 = vand.u32 %v1776, 4294901760
    %v3798 = vsub.f32 %v1776, %v3797
    %3799 = vmatpush.msra.mxu0 %v3798
    %v3800 = vand.u32 %v1775, 4294901760
    %v3801 = vsub.f32 %v1775, %v3800
    %3802 = vmatpush.msra.mxu0 %v3801
    %v3803 = vand.u32 %v1774, 4294901760
    %v3804 = vsub.f32 %v1774, %v3803
    %3805 = vmatpush.msra.mxu0 %v3804
    %v3806 = vand.u32 %v1773, 4294901760
    %v3807 = vsub.f32 %v1773, %v3806
    %3808 = vmatpush.msra.mxu0 %v3807
    %v3809 = vand.u32 %v1772, 4294901760
    %v3810 = vsub.f32 %v1772, %v3809
    %3811 = vmatpush.msra.mxu0 %v3810
    %v3812 = vand.u32 %v108, 4294901760
    %v3813 = vsub.f32 %v108, %v3812
    %3814 = vmatmul.f32.gmra.mxu0 %v3813
    %v3815 = vpop.f32.mrf.mxu0
    %v3816 = vadd.f32 %v3638, %v3815
    %v3817 = vand.u32 %v110, 4294901760
    %v3818 = vsub.f32 %v110, %v3817
    %3819 = vmatmul.f32.gmra.mxu0 %v3818
    %v3820 = vpop.f32.mrf.mxu0
    %v3821 = vadd.f32 %v3642, %v3820
    %v3822 = vand.u32 %v112, 4294901760
    %v3823 = vsub.f32 %v112, %v3822
    %3824 = vmatmul.f32.gmra.mxu0 %v3823
    %v3825 = vpop.f32.mrf.mxu0
    %v3826 = vadd.f32 %v3646, %v3825
    %v3827 = vand.u32 %v114, 4294901760
    %v3828 = vsub.f32 %v114, %v3827
    %3829 = vmatmul.f32.gmra.mxu0 %v3828
    %v3830 = vpop.f32.mrf.mxu0
    %v3831 = vadd.f32 %v3650, %v3830
    %v3832 = vand.u32 %v116, 4294901760
    %v3833 = vsub.f32 %v116, %v3832
    %3834 = vmatmul.f32.gmra.mxu0 %v3833
    %v3835 = vpop.f32.mrf.mxu0
    %v3836 = vadd.f32 %v3654, %v3835
    %v3837 = vand.u32 %v118, 4294901760
    %v3838 = vsub.f32 %v118, %v3837
    %3839 = vmatmul.f32.gmra.mxu0 %v3838
    %v3840 = vpop.f32.mrf.mxu0
    %v3841 = vadd.f32 %v3658, %v3840
    %v3842 = vand.u32 %v120, 4294901760
    %v3843 = vsub.f32 %v120, %v3842
    %3844 = vmatmul.f32.gmra.mxu0 %v3843
    %v3845 = vpop.f32.mrf.mxu0
    %v3846 = vadd.f32 %v3662, %v3845
    %v3847 = vand.u32 %v122, 4294901760
    %v3848 = vsub.f32 %v122, %v3847
    %3849 = vmatmul.f32.gmra.mxu0 %v3848
    %v3850 = vpop.f32.mrf.mxu0
    %v3851 = vadd.f32 %v3666, %v3850
    %v3852 = vand.u32 %v124, 4294901760
    %v3853 = vsub.f32 %v124, %v3852
    %3854 = vmatmul.f32.gmra.mxu0 %v3853
    %v3855 = vpop.f32.mrf.mxu0
    %v3856 = vadd.f32 %v3670, %v3855
    %v3857 = vand.u32 %v126, 4294901760
    %v3858 = vsub.f32 %v126, %v3857
    %3859 = vmatmul.f32.gmra.mxu0 %v3858
    %v3860 = vpop.f32.mrf.mxu0
    %v3861 = vadd.f32 %v3674, %v3860
    %v3862 = vand.u32 %v128, 4294901760
    %v3863 = vsub.f32 %v128, %v3862
    %3864 = vmatmul.f32.gmra.mxu0 %v3863
    %v3865 = vpop.f32.mrf.mxu0
    %v3866 = vadd.f32 %v3678, %v3865
    %v3867 = vand.u32 %v130, 4294901760
    %v3868 = vsub.f32 %v130, %v3867
    %3869 = vmatmul.f32.gmra.mxu0 %v3868
    %v3870 = vpop.f32.mrf.mxu0
    %v3871 = vadd.f32 %v3682, %v3870
    %v3872 = vand.u32 %v132, 4294901760
    %v3873 = vsub.f32 %v132, %v3872
    %3874 = vmatmul.f32.gmra.mxu0 %v3873
    %v3875 = vpop.f32.mrf.mxu0
    %v3876 = vadd.f32 %v3686, %v3875
    %v3877 = vand.u32 %v134, 4294901760
    %v3878 = vsub.f32 %v134, %v3877
    %3879 = vmatmul.f32.gmra.mxu0 %v3878
    %v3880 = vpop.f32.mrf.mxu0
    %v3881 = vadd.f32 %v3690, %v3880
    %v3882 = vand.u32 %v136, 4294901760
    %v3883 = vsub.f32 %v136, %v3882
    %3884 = vmatmul.f32.gmra.mxu0 %v3883
    %v3885 = vpop.f32.mrf.mxu0
    %v3886 = vadd.f32 %v3694, %v3885
    %v3887 = vand.u32 %v138, 4294901760
    %v3888 = vsub.f32 %v138, %v3887
    %3889 = vmatmul.f32.gmra.mxu0 %v3888
    %v3890 = vpop.f32.mrf.mxu0
    %v3891 = vadd.f32 %v3698, %v3890
    %v3892 = vand.u32 %v140, 4294901760
    %v3893 = vsub.f32 %v140, %v3892
    %3894 = vmatmul.f32.gmra.mxu0 %v3893
    %v3895 = vpop.f32.mrf.mxu0
    %v3896 = vadd.f32 %v3702, %v3895
    %v3897 = vand.u32 %v142, 4294901760
    %v3898 = vsub.f32 %v142, %v3897
    %3899 = vmatmul.f32.gmra.mxu0 %v3898
    %v3900 = vpop.f32.mrf.mxu0
    %v3901 = vadd.f32 %v3706, %v3900
    %v3902 = vand.u32 %v144, 4294901760
    %v3903 = vsub.f32 %v144, %v3902
    %3904 = vmatmul.f32.gmra.mxu0 %v3903
    %v3905 = vpop.f32.mrf.mxu0
    %v3906 = vadd.f32 %v3710, %v3905
    %v3907 = vand.u32 %v146, 4294901760
    %v3908 = vsub.f32 %v146, %v3907
    %3909 = vmatmul.f32.gmra.mxu0 %v3908
    %v3910 = vpop.f32.mrf.mxu0
    %v3911 = vadd.f32 %v3714, %v3910
    %v3912 = vand.u32 %v148, 4294901760
    %v3913 = vsub.f32 %v148, %v3912
    %3914 = vmatmul.f32.gmra.mxu0 %v3913
    %v3915 = vpop.f32.mrf.mxu0
    %v3916 = vadd.f32 %v3718, %v3915
    %v3917 = vand.u32 %v150, 4294901760
    %v3918 = vsub.f32 %v150, %v3917
    %3919 = vmatmul.f32.gmra.mxu0 %v3918
    %v3920 = vpop.f32.mrf.mxu0
    %v3921 = vadd.f32 %v3722, %v3920
    %v3922 = vand.u32 %v152, 4294901760
    %v3923 = vsub.f32 %v152, %v3922
    %3924 = vmatmul.f32.gmra.mxu0 %v3923
    %v3925 = vpop.f32.mrf.mxu0
    %v3926 = vadd.f32 %v3726, %v3925
    %v3927 = vand.u32 %v154, 4294901760
    %v3928 = vsub.f32 %v154, %v3927
    %3929 = vmatmul.f32.gmra.mxu0 %v3928
    %v3930 = vpop.f32.mrf.mxu0
    %v3931 = vadd.f32 %v3730, %v3930
    %v3932 = vand.u32 %v156, 4294901760
    %v3933 = vsub.f32 %v156, %v3932
    %3934 = vmatmul.f32.gmra.mxu0 %v3933
    %v3935 = vpop.f32.mrf.mxu0
    %v3936 = vadd.f32 %v3734, %v3935
    %v3937 = vand.u32 %v158, 4294901760
    %v3938 = vsub.f32 %v158, %v3937
    %3939 = vmatmul.f32.gmra.mxu0 %v3938
    %v3940 = vpop.f32.mrf.mxu0
    %v3941 = vadd.f32 %v3738, %v3940
    %v3942 = vand.u32 %v160, 4294901760
    %v3943 = vsub.f32 %v160, %v3942
    %3944 = vmatmul.f32.gmra.mxu0 %v3943
    %v3945 = vpop.f32.mrf.mxu0
    %v3946 = vadd.f32 %v3742, %v3945
    %v3947 = vand.u32 %v162, 4294901760
    %v3948 = vsub.f32 %v162, %v3947
    %3949 = vmatmul.f32.gmra.mxu0 %v3948
    %v3950 = vpop.f32.mrf.mxu0
    %v3951 = vadd.f32 %v3746, %v3950
    %v3952 = vand.u32 %v164, 4294901760
    %v3953 = vsub.f32 %v164, %v3952
    %3954 = vmatmul.f32.gmra.mxu0 %v3953
    %v3955 = vpop.f32.mrf.mxu0
    %v3956 = vadd.f32 %v3750, %v3955
    %v3957 = vand.u32 %v166, 4294901760
    %v3958 = vsub.f32 %v166, %v3957
    %3959 = vmatmul.f32.gmra.mxu0 %v3958
    %v3960 = vpop.f32.mrf.mxu0
    %v3961 = vadd.f32 %v3754, %v3960
    %v3962 = vand.u32 %v168, 4294901760
    %v3963 = vsub.f32 %v168, %v3962
    %3964 = vmatmul.f32.gmra.mxu0 %v3963
    %v3965 = vpop.f32.mrf.mxu0
    %v3966 = vadd.f32 %v3758, %v3965
    %v3967 = vand.u32 %v170, 4294901760
    %v3968 = vsub.f32 %v170, %v3967
    %3969 = vmatmul.f32.gmra.mxu0 %v3968
    %v3970 = vpop.f32.mrf.mxu0
    %v3971 = vadd.f32 %v3762, %v3970
    %3972 = vdwg.mxu0
    %v3973 = vand.u32 %v1787, 4294901760
    %3974 = vmatpush.msra.mxu0 %v3973
    %v3975 = vand.u32 %v1786, 4294901760
    %3976 = vmatpush.msra.mxu0 %v3975
    %v3977 = vand.u32 %v1785, 4294901760
    %3978 = vmatpush.msra.mxu0 %v3977
    %v3979 = vand.u32 %v1784, 4294901760
    %3980 = vmatpush.msra.mxu0 %v3979
    %v3981 = vand.u32 %v1783, 4294901760
    %3982 = vmatpush.msra.mxu0 %v3981
    %v3983 = vand.u32 %v1782, 4294901760
    %3984 = vmatpush.msra.mxu0 %v3983
    %v3985 = vand.u32 %v1781, 4294901760
    %3986 = vmatpush.msra.mxu0 %v3985
    %v3987 = vand.u32 %v1780, 4294901760
    %3988 = vmatpush.msra.mxu0 %v3987
    %v3989 = vand.u32 %v1779, 4294901760
    %3990 = vmatpush.msra.mxu0 %v3989
    %v3991 = vand.u32 %v1778, 4294901760
    %3992 = vmatpush.msra.mxu0 %v3991
    %v3993 = vand.u32 %v1777, 4294901760
    %3994 = vmatpush.msra.mxu0 %v3993
    %v3995 = vand.u32 %v1776, 4294901760
    %3996 = vmatpush.msra.mxu0 %v3995
    %v3997 = vand.u32 %v1775, 4294901760
    %3998 = vmatpush.msra.mxu0 %v3997
    %v3999 = vand.u32 %v1774, 4294901760
    %4000 = vmatpush.msra.mxu0 %v3999
    %v4001 = vand.u32 %v1773, 4294901760
    %4002 = vmatpush.msra.mxu0 %v4001
    %v4003 = vand.u32 %v1772, 4294901760
    %4004 = vmatpush.msra.mxu0 %v4003
    %v4005 = vand.u32 %v108, 4294901760
    %v4006 = vsub.f32 %v108, %v4005
    %v4007 = vand.u32 %v4006, 4294901760
    %4008 = vmatmul.f32.gmra.mxu0 %v4007
    %v4009 = vpop.f32.mrf.mxu0
    %v4010 = vadd.f32 %v3816, %v4009
    %v4011 = vand.u32 %v110, 4294901760
    %v4012 = vsub.f32 %v110, %v4011
    %v4013 = vand.u32 %v4012, 4294901760
    %4014 = vmatmul.f32.gmra.mxu0 %v4013
    %v4015 = vpop.f32.mrf.mxu0
    %v4016 = vadd.f32 %v3821, %v4015
    %v4017 = vand.u32 %v112, 4294901760
    %v4018 = vsub.f32 %v112, %v4017
    %v4019 = vand.u32 %v4018, 4294901760
    %4020 = vmatmul.f32.gmra.mxu0 %v4019
    %v4021 = vpop.f32.mrf.mxu0
    %v4022 = vadd.f32 %v3826, %v4021
    %v4023 = vand.u32 %v114, 4294901760
    %v4024 = vsub.f32 %v114, %v4023
    %v4025 = vand.u32 %v4024, 4294901760
    %4026 = vmatmul.f32.gmra.mxu0 %v4025
    %v4027 = vpop.f32.mrf.mxu0
    %v4028 = vadd.f32 %v3831, %v4027
    %v4029 = vand.u32 %v116, 4294901760
    %v4030 = vsub.f32 %v116, %v4029
    %v4031 = vand.u32 %v4030, 4294901760
    %4032 = vmatmul.f32.gmra.mxu0 %v4031
    %v4033 = vpop.f32.mrf.mxu0
    %v4034 = vadd.f32 %v3836, %v4033
    %v4035 = vand.u32 %v118, 4294901760
    %v4036 = vsub.f32 %v118, %v4035
    %v4037 = vand.u32 %v4036, 4294901760
    %4038 = vmatmul.f32.gmra.mxu0 %v4037
    %v4039 = vpop.f32.mrf.mxu0
    %v4040 = vadd.f32 %v3841, %v4039
    %v4041 = vand.u32 %v120, 4294901760
    %v4042 = vsub.f32 %v120, %v4041
    %v4043 = vand.u32 %v4042, 4294901760
    %4044 = vmatmul.f32.gmra.mxu0 %v4043
    %v4045 = vpop.f32.mrf.mxu0
    %v4046 = vadd.f32 %v3846, %v4045
    %v4047 = vand.u32 %v122, 4294901760
    %v4048 = vsub.f32 %v122, %v4047
    %v4049 = vand.u32 %v4048, 4294901760
    %4050 = vmatmul.f32.gmra.mxu0 %v4049
    %v4051 = vpop.f32.mrf.mxu0
    %v4052 = vadd.f32 %v3851, %v4051
    %v4053 = vand.u32 %v124, 4294901760
    %v4054 = vsub.f32 %v124, %v4053
    %v4055 = vand.u32 %v4054, 4294901760
    %4056 = vmatmul.f32.gmra.mxu0 %v4055
    %v4057 = vpop.f32.mrf.mxu0
    %v4058 = vadd.f32 %v3856, %v4057
    %v4059 = vand.u32 %v126, 4294901760
    %v4060 = vsub.f32 %v126, %v4059
    %v4061 = vand.u32 %v4060, 4294901760
    %4062 = vmatmul.f32.gmra.mxu0 %v4061
    %v4063 = vpop.f32.mrf.mxu0
    %v4064 = vadd.f32 %v3861, %v4063
    %v4065 = vand.u32 %v128, 4294901760
    %v4066 = vsub.f32 %v128, %v4065
    %v4067 = vand.u32 %v4066, 4294901760
    %4068 = vmatmul.f32.gmra.mxu0 %v4067
    %v4069 = vpop.f32.mrf.mxu0
    %v4070 = vadd.f32 %v3866, %v4069
    %v4071 = vand.u32 %v130, 4294901760
    %v4072 = vsub.f32 %v130, %v4071
    %v4073 = vand.u32 %v4072, 4294901760
    %4074 = vmatmul.f32.gmra.mxu0 %v4073
    %v4075 = vpop.f32.mrf.mxu0
    %v4076 = vadd.f32 %v3871, %v4075
    %v4077 = vand.u32 %v132, 4294901760
    %v4078 = vsub.f32 %v132, %v4077
    %v4079 = vand.u32 %v4078, 4294901760
    %4080 = vmatmul.f32.gmra.mxu0 %v4079
    %v4081 = vpop.f32.mrf.mxu0
    %v4082 = vadd.f32 %v3876, %v4081
    %v4083 = vand.u32 %v134, 4294901760
    %v4084 = vsub.f32 %v134, %v4083
    %v4085 = vand.u32 %v4084, 4294901760
    %4086 = vmatmul.f32.gmra.mxu0 %v4085
    %v4087 = vpop.f32.mrf.mxu0
    %v4088 = vadd.f32 %v3881, %v4087
    %v4089 = vand.u32 %v136, 4294901760
    %v4090 = vsub.f32 %v136, %v4089
    %v4091 = vand.u32 %v4090, 4294901760
    %4092 = vmatmul.f32.gmra.mxu0 %v4091
    %v4093 = vpop.f32.mrf.mxu0
    %v4094 = vadd.f32 %v3886, %v4093
    %v4095 = vand.u32 %v138, 4294901760
    %v4096 = vsub.f32 %v138, %v4095
    %v4097 = vand.u32 %v4096, 4294901760
    %4098 = vmatmul.f32.gmra.mxu0 %v4097
    %v4099 = vpop.f32.mrf.mxu0
    %v4100 = vadd.f32 %v3891, %v4099
    %v4101 = vand.u32 %v140, 4294901760
    %v4102 = vsub.f32 %v140, %v4101
    %v4103 = vand.u32 %v4102, 4294901760
    %4104 = vmatmul.f32.gmra.mxu0 %v4103
    %v4105 = vpop.f32.mrf.mxu0
    %v4106 = vadd.f32 %v3896, %v4105
    %v4107 = vand.u32 %v142, 4294901760
    %v4108 = vsub.f32 %v142, %v4107
    %v4109 = vand.u32 %v4108, 4294901760
    %4110 = vmatmul.f32.gmra.mxu0 %v4109
    %v4111 = vpop.f32.mrf.mxu0
    %v4112 = vadd.f32 %v3901, %v4111
    %v4113 = vand.u32 %v144, 4294901760
    %v4114 = vsub.f32 %v144, %v4113
    %v4115 = vand.u32 %v4114, 4294901760
    %4116 = vmatmul.f32.gmra.mxu0 %v4115
    %v4117 = vpop.f32.mrf.mxu0
    %v4118 = vadd.f32 %v3906, %v4117
    %v4119 = vand.u32 %v146, 4294901760
    %v4120 = vsub.f32 %v146, %v4119
    %v4121 = vand.u32 %v4120, 4294901760
    %4122 = vmatmul.f32.gmra.mxu0 %v4121
    %v4123 = vpop.f32.mrf.mxu0
    %v4124 = vadd.f32 %v3911, %v4123
    %v4125 = vand.u32 %v148, 4294901760
    %v4126 = vsub.f32 %v148, %v4125
    %v4127 = vand.u32 %v4126, 4294901760
    %4128 = vmatmul.f32.gmra.mxu0 %v4127
    %v4129 = vpop.f32.mrf.mxu0
    %v4130 = vadd.f32 %v3916, %v4129
    %v4131 = vand.u32 %v150, 4294901760
    %v4132 = vsub.f32 %v150, %v4131
    %v4133 = vand.u32 %v4132, 4294901760
    %4134 = vmatmul.f32.gmra.mxu0 %v4133
    %v4135 = vpop.f32.mrf.mxu0
    %v4136 = vadd.f32 %v3921, %v4135
    %v4137 = vand.u32 %v152, 4294901760
    %v4138 = vsub.f32 %v152, %v4137
    %v4139 = vand.u32 %v4138, 4294901760
    %4140 = vmatmul.f32.gmra.mxu0 %v4139
    %v4141 = vpop.f32.mrf.mxu0
    %v4142 = vadd.f32 %v3926, %v4141
    %v4143 = vand.u32 %v154, 4294901760
    %v4144 = vsub.f32 %v154, %v4143
    %v4145 = vand.u32 %v4144, 4294901760
    %4146 = vmatmul.f32.gmra.mxu0 %v4145
    %v4147 = vpop.f32.mrf.mxu0
    %v4148 = vadd.f32 %v3931, %v4147
    %v4149 = vand.u32 %v156, 4294901760
    %v4150 = vsub.f32 %v156, %v4149
    %v4151 = vand.u32 %v4150, 4294901760
    %4152 = vmatmul.f32.gmra.mxu0 %v4151
    %v4153 = vpop.f32.mrf.mxu0
    %v4154 = vadd.f32 %v3936, %v4153
    %v4155 = vand.u32 %v158, 4294901760
    %v4156 = vsub.f32 %v158, %v4155
    %v4157 = vand.u32 %v4156, 4294901760
    %4158 = vmatmul.f32.gmra.mxu0 %v4157
    %v4159 = vpop.f32.mrf.mxu0
    %v4160 = vadd.f32 %v3941, %v4159
    %v4161 = vand.u32 %v160, 4294901760
    %v4162 = vsub.f32 %v160, %v4161
    %v4163 = vand.u32 %v4162, 4294901760
    %4164 = vmatmul.f32.gmra.mxu0 %v4163
    %v4165 = vpop.f32.mrf.mxu0
    %v4166 = vadd.f32 %v3946, %v4165
    %v4167 = vand.u32 %v162, 4294901760
    %v4168 = vsub.f32 %v162, %v4167
    %v4169 = vand.u32 %v4168, 4294901760
    %4170 = vmatmul.f32.gmra.mxu0 %v4169
    %v4171 = vpop.f32.mrf.mxu0
    %v4172 = vadd.f32 %v3951, %v4171
    %v4173 = vand.u32 %v164, 4294901760
    %v4174 = vsub.f32 %v164, %v4173
    %v4175 = vand.u32 %v4174, 4294901760
    %4176 = vmatmul.f32.gmra.mxu0 %v4175
    %v4177 = vpop.f32.mrf.mxu0
    %v4178 = vadd.f32 %v3956, %v4177
    %v4179 = vand.u32 %v166, 4294901760
    %v4180 = vsub.f32 %v166, %v4179
    %v4181 = vand.u32 %v4180, 4294901760
    %4182 = vmatmul.f32.gmra.mxu0 %v4181
    %v4183 = vpop.f32.mrf.mxu0
    %v4184 = vadd.f32 %v3961, %v4183
    %v4185 = vand.u32 %v168, 4294901760
    %v4186 = vsub.f32 %v168, %v4185
    %v4187 = vand.u32 %v4186, 4294901760
    %4188 = vmatmul.f32.gmra.mxu0 %v4187
    %v4189 = vpop.f32.mrf.mxu0
    %v4190 = vadd.f32 %v3966, %v4189
    %v4191 = vand.u32 %v170, 4294901760
    %v4192 = vsub.f32 %v170, %v4191
    %v4193 = vand.u32 %v4192, 4294901760
    %4194 = vmatmul.f32.gmra.mxu0 %v4193
    %v4195 = vpop.f32.mrf.mxu0
    %v4196 = vadd.f32 %v3971, %v4195
    %4197 = vdwg.mxu0
    %v4198 = vand.u32 %v1787, 4294901760
    %v4199 = vsub.f32 %v1787, %v4198
    %v4200 = vand.u32 %v4199, 4294901760
    %4201 = vmatpush.msra.mxu0 %v4200
    %v4202 = vand.u32 %v1786, 4294901760
    %v4203 = vsub.f32 %v1786, %v4202
    %v4204 = vand.u32 %v4203, 4294901760
    %4205 = vmatpush.msra.mxu0 %v4204
    %v4206 = vand.u32 %v1785, 4294901760
    %v4207 = vsub.f32 %v1785, %v4206
    %v4208 = vand.u32 %v4207, 4294901760
    %4209 = vmatpush.msra.mxu0 %v4208
    %v4210 = vand.u32 %v1784, 4294901760
    %v4211 = vsub.f32 %v1784, %v4210
    %v4212 = vand.u32 %v4211, 4294901760
    %4213 = vmatpush.msra.mxu0 %v4212
    %v4214 = vand.u32 %v1783, 4294901760
    %v4215 = vsub.f32 %v1783, %v4214
    %v4216 = vand.u32 %v4215, 4294901760
    %4217 = vmatpush.msra.mxu0 %v4216
    %v4218 = vand.u32 %v1782, 4294901760
    %v4219 = vsub.f32 %v1782, %v4218
    %v4220 = vand.u32 %v4219, 4294901760
    %4221 = vmatpush.msra.mxu0 %v4220
    %v4222 = vand.u32 %v1781, 4294901760
    %v4223 = vsub.f32 %v1781, %v4222
    %v4224 = vand.u32 %v4223, 4294901760
    %4225 = vmatpush.msra.mxu0 %v4224
    %v4226 = vand.u32 %v1780, 4294901760
    %v4227 = vsub.f32 %v1780, %v4226
    %v4228 = vand.u32 %v4227, 4294901760
    %4229 = vmatpush.msra.mxu0 %v4228
    %v4230 = vand.u32 %v1779, 4294901760
    %v4231 = vsub.f32 %v1779, %v4230
    %v4232 = vand.u32 %v4231, 4294901760
    %4233 = vmatpush.msra.mxu0 %v4232
    %v4234 = vand.u32 %v1778, 4294901760
    %v4235 = vsub.f32 %v1778, %v4234
    %v4236 = vand.u32 %v4235, 4294901760
    %4237 = vmatpush.msra.mxu0 %v4236
    %v4238 = vand.u32 %v1777, 4294901760
    %v4239 = vsub.f32 %v1777, %v4238
    %v4240 = vand.u32 %v4239, 4294901760
    %4241 = vmatpush.msra.mxu0 %v4240
    %v4242 = vand.u32 %v1776, 4294901760
    %v4243 = vsub.f32 %v1776, %v4242
    %v4244 = vand.u32 %v4243, 4294901760
    %4245 = vmatpush.msra.mxu0 %v4244
    %v4246 = vand.u32 %v1775, 4294901760
    %v4247 = vsub.f32 %v1775, %v4246
    %v4248 = vand.u32 %v4247, 4294901760
    %4249 = vmatpush.msra.mxu0 %v4248
    %v4250 = vand.u32 %v1774, 4294901760
    %v4251 = vsub.f32 %v1774, %v4250
    %v4252 = vand.u32 %v4251, 4294901760
    %4253 = vmatpush.msra.mxu0 %v4252
    %v4254 = vand.u32 %v1773, 4294901760
    %v4255 = vsub.f32 %v1773, %v4254
    %v4256 = vand.u32 %v4255, 4294901760
    %4257 = vmatpush.msra.mxu0 %v4256
    %v4258 = vand.u32 %v1772, 4294901760
    %v4259 = vsub.f32 %v1772, %v4258
    %v4260 = vand.u32 %v4259, 4294901760
    %4261 = vmatpush.msra.mxu0 %v4260
    %v4262 = vand.u32 %v108, 4294901760
    %4263 = vmatmul.f32.gmra.mxu0 %v4262
    %v4264 = vpop.f32.mrf.mxu0
    %v4265 = vadd.f32 %v4010, %v4264
    %v4266 = vand.u32 %v110, 4294901760
    %4267 = vmatmul.f32.gmra.mxu0 %v4266
    %v4268 = vpop.f32.mrf.mxu0
    %v4269 = vadd.f32 %v4016, %v4268
    %v4270 = vand.u32 %v112, 4294901760
    %4271 = vmatmul.f32.gmra.mxu0 %v4270
    %v4272 = vpop.f32.mrf.mxu0
    %v4273 = vadd.f32 %v4022, %v4272
    %v4274 = vand.u32 %v114, 4294901760
    %4275 = vmatmul.f32.gmra.mxu0 %v4274
    %v4276 = vpop.f32.mrf.mxu0
    %v4277 = vadd.f32 %v4028, %v4276
    %v4278 = vand.u32 %v116, 4294901760
    %4279 = vmatmul.f32.gmra.mxu0 %v4278
    %v4280 = vpop.f32.mrf.mxu0
    %v4281 = vadd.f32 %v4034, %v4280
    %v4282 = vand.u32 %v118, 4294901760
    %4283 = vmatmul.f32.gmra.mxu0 %v4282
    %v4284 = vpop.f32.mrf.mxu0
    %v4285 = vadd.f32 %v4040, %v4284
    %v4286 = vand.u32 %v120, 4294901760
    %4287 = vmatmul.f32.gmra.mxu0 %v4286
    %v4288 = vpop.f32.mrf.mxu0
    %v4289 = vadd.f32 %v4046, %v4288
    %v4290 = vand.u32 %v122, 4294901760
    %4291 = vmatmul.f32.gmra.mxu0 %v4290
    %v4292 = vpop.f32.mrf.mxu0
    %v4293 = vadd.f32 %v4052, %v4292
    %v4294 = vand.u32 %v124, 4294901760
    %4295 = vmatmul.f32.gmra.mxu0 %v4294
    %v4296 = vpop.f32.mrf.mxu0
    %v4297 = vadd.f32 %v4058, %v4296
    %v4298 = vand.u32 %v126, 4294901760
    %4299 = vmatmul.f32.gmra.mxu0 %v4298
    %v4300 = vpop.f32.mrf.mxu0
    %v4301 = vadd.f32 %v4064, %v4300
    %v4302 = vand.u32 %v128, 4294901760
    %4303 = vmatmul.f32.gmra.mxu0 %v4302
    %v4304 = vpop.f32.mrf.mxu0
    %v4305 = vadd.f32 %v4070, %v4304
    %v4306 = vand.u32 %v130, 4294901760
    %4307 = vmatmul.f32.gmra.mxu0 %v4306
    %v4308 = vpop.f32.mrf.mxu0
    %v4309 = vadd.f32 %v4076, %v4308
    %v4310 = vand.u32 %v132, 4294901760
    %4311 = vmatmul.f32.gmra.mxu0 %v4310
    %v4312 = vpop.f32.mrf.mxu0
    %v4313 = vadd.f32 %v4082, %v4312
    %v4314 = vand.u32 %v134, 4294901760
    %4315 = vmatmul.f32.gmra.mxu0 %v4314
    %v4316 = vpop.f32.mrf.mxu0
    %v4317 = vadd.f32 %v4088, %v4316
    %v4318 = vand.u32 %v136, 4294901760
    %4319 = vmatmul.f32.gmra.mxu0 %v4318
    %v4320 = vpop.f32.mrf.mxu0
    %v4321 = vadd.f32 %v4094, %v4320
    %v4322 = vand.u32 %v138, 4294901760
    %4323 = vmatmul.f32.gmra.mxu0 %v4322
    %v4324 = vpop.f32.mrf.mxu0
    %v4325 = vadd.f32 %v4100, %v4324
    %v4326 = vand.u32 %v140, 4294901760
    %4327 = vmatmul.f32.gmra.mxu0 %v4326
    %v4328 = vpop.f32.mrf.mxu0
    %v4329 = vadd.f32 %v4106, %v4328
    %v4330 = vand.u32 %v142, 4294901760
    %4331 = vmatmul.f32.gmra.mxu0 %v4330
    %v4332 = vpop.f32.mrf.mxu0
    %v4333 = vadd.f32 %v4112, %v4332
    %v4334 = vand.u32 %v144, 4294901760
    %4335 = vmatmul.f32.gmra.mxu0 %v4334
    %v4336 = vpop.f32.mrf.mxu0
    %v4337 = vadd.f32 %v4118, %v4336
    %v4338 = vand.u32 %v146, 4294901760
    %4339 = vmatmul.f32.gmra.mxu0 %v4338
    %v4340 = vpop.f32.mrf.mxu0
    %v4341 = vadd.f32 %v4124, %v4340
    %v4342 = vand.u32 %v148, 4294901760
    %4343 = vmatmul.f32.gmra.mxu0 %v4342
    %v4344 = vpop.f32.mrf.mxu0
    %v4345 = vadd.f32 %v4130, %v4344
    %v4346 = vand.u32 %v150, 4294901760
    %4347 = vmatmul.f32.gmra.mxu0 %v4346
    %v4348 = vpop.f32.mrf.mxu0
    %v4349 = vadd.f32 %v4136, %v4348
    %v4350 = vand.u32 %v152, 4294901760
    %4351 = vmatmul.f32.gmra.mxu0 %v4350
    %v4352 = vpop.f32.mrf.mxu0
    %v4353 = vadd.f32 %v4142, %v4352
    %v4354 = vand.u32 %v154, 4294901760
    %4355 = vmatmul.f32.gmra.mxu0 %v4354
    %v4356 = vpop.f32.mrf.mxu0
    %v4357 = vadd.f32 %v4148, %v4356
    %v4358 = vand.u32 %v156, 4294901760
    %4359 = vmatmul.f32.gmra.mxu0 %v4358
    %v4360 = vpop.f32.mrf.mxu0
    %v4361 = vadd.f32 %v4154, %v4360
    %v4362 = vand.u32 %v158, 4294901760
    %4363 = vmatmul.f32.gmra.mxu0 %v4362
    %v4364 = vpop.f32.mrf.mxu0
    %v4365 = vadd.f32 %v4160, %v4364
    %v4366 = vand.u32 %v160, 4294901760
    %4367 = vmatmul.f32.gmra.mxu0 %v4366
    %v4368 = vpop.f32.mrf.mxu0
    %v4369 = vadd.f32 %v4166, %v4368
    %v4370 = vand.u32 %v162, 4294901760
    %4371 = vmatmul.f32.gmra.mxu0 %v4370
    %v4372 = vpop.f32.mrf.mxu0
    %v4373 = vadd.f32 %v4172, %v4372
    %v4374 = vand.u32 %v164, 4294901760
    %4375 = vmatmul.f32.gmra.mxu0 %v4374
    %v4376 = vpop.f32.mrf.mxu0
    %v4377 = vadd.f32 %v4178, %v4376
    %v4378 = vand.u32 %v166, 4294901760
    %4379 = vmatmul.f32.gmra.mxu0 %v4378
    %v4380 = vpop.f32.mrf.mxu0
    %v4381 = vadd.f32 %v4184, %v4380
    %v4382 = vand.u32 %v168, 4294901760
    %4383 = vmatmul.f32.gmra.mxu0 %v4382
    %v4384 = vpop.f32.mrf.mxu0
    %v4385 = vadd.f32 %v4190, %v4384
    %v4386 = vand.u32 %v170, 4294901760
    %4387 = vmatmul.f32.gmra.mxu0 %v4386
    %v4388 = vpop.f32.mrf.mxu0
    %v4389 = vadd.f32 %v4196, %v4388
    %4390 = vdwg.mxu0
    %v4391 = vand.u32 %v1787, 4294901760
    %4392 = vmatpush.msra.mxu0 %v4391
    %v4393 = vand.u32 %v1786, 4294901760
    %4394 = vmatpush.msra.mxu0 %v4393
    %v4395 = vand.u32 %v1785, 4294901760
    %4396 = vmatpush.msra.mxu0 %v4395
    %v4397 = vand.u32 %v1784, 4294901760
    %4398 = vmatpush.msra.mxu0 %v4397
    %v4399 = vand.u32 %v1783, 4294901760
    %4400 = vmatpush.msra.mxu0 %v4399
    %v4401 = vand.u32 %v1782, 4294901760
    %4402 = vmatpush.msra.mxu0 %v4401
    %v4403 = vand.u32 %v1781, 4294901760
    %4404 = vmatpush.msra.mxu0 %v4403
    %v4405 = vand.u32 %v1780, 4294901760
    %4406 = vmatpush.msra.mxu0 %v4405
    %v4407 = vand.u32 %v1779, 4294901760
    %4408 = vmatpush.msra.mxu0 %v4407
    %v4409 = vand.u32 %v1778, 4294901760
    %4410 = vmatpush.msra.mxu0 %v4409
    %v4411 = vand.u32 %v1777, 4294901760
    %4412 = vmatpush.msra.mxu0 %v4411
    %v4413 = vand.u32 %v1776, 4294901760
    %4414 = vmatpush.msra.mxu0 %v4413
    %v4415 = vand.u32 %v1775, 4294901760
    %4416 = vmatpush.msra.mxu0 %v4415
    %v4417 = vand.u32 %v1774, 4294901760
    %4418 = vmatpush.msra.mxu0 %v4417
    %v4419 = vand.u32 %v1773, 4294901760
    %4420 = vmatpush.msra.mxu0 %v4419
    %v4421 = vand.u32 %v1772, 4294901760
    %4422 = vmatpush.msra.mxu0 %v4421
    %v4423 = vand.u32 %v108, 4294901760
    %4424 = vmatmul.f32.gmra.mxu0 %v4423
    %v4425 = vpop.f32.mrf.mxu0
    %v4426 = vadd.f32 %v4265, %v4425
    %v4427 = vand.u32 %v110, 4294901760
    %4428 = vmatmul.f32.gmra.mxu0 %v4427
    %v4429 = vpop.f32.mrf.mxu0
    %v4430 = vadd.f32 %v4269, %v4429
    %v4431 = vand.u32 %v112, 4294901760
    %4432 = vmatmul.f32.gmra.mxu0 %v4431
    %v4433 = vpop.f32.mrf.mxu0
    %v4434 = vadd.f32 %v4273, %v4433
    %v4435 = vand.u32 %v114, 4294901760
    %4436 = vmatmul.f32.gmra.mxu0 %v4435
    %v4437 = vpop.f32.mrf.mxu0
    %v4438 = vadd.f32 %v4277, %v4437
    %v4439 = vand.u32 %v116, 4294901760
    %4440 = vmatmul.f32.gmra.mxu0 %v4439
    %v4441 = vpop.f32.mrf.mxu0
    %v4442 = vadd.f32 %v4281, %v4441
    %v4443 = vand.u32 %v118, 4294901760
    %4444 = vmatmul.f32.gmra.mxu0 %v4443
    %v4445 = vpop.f32.mrf.mxu0
    %v4446 = vadd.f32 %v4285, %v4445
    %v4447 = vand.u32 %v120, 4294901760
    %4448 = vmatmul.f32.gmra.mxu0 %v4447
    %v4449 = vpop.f32.mrf.mxu0
    %v4450 = vadd.f32 %v4289, %v4449
    %v4451 = vand.u32 %v122, 4294901760
    %4452 = vmatmul.f32.gmra.mxu0 %v4451
    %v4453 = vpop.f32.mrf.mxu0
    %v4454 = vadd.f32 %v4293, %v4453
    %v4455 = vand.u32 %v124, 4294901760
    %4456 = vmatmul.f32.gmra.mxu0 %v4455
    %v4457 = vpop.f32.mrf.mxu0
    %v4458 = vadd.f32 %v4297, %v4457
    %v4459 = vand.u32 %v126, 4294901760
    %4460 = vmatmul.f32.gmra.mxu0 %v4459
    %v4461 = vpop.f32.mrf.mxu0
    %v4462 = vadd.f32 %v4301, %v4461
    %v4463 = vand.u32 %v128, 4294901760
    %4464 = vmatmul.f32.gmra.mxu0 %v4463
    %v4465 = vpop.f32.mrf.mxu0
    %v4466 = vadd.f32 %v4305, %v4465
    %v4467 = vand.u32 %v130, 4294901760
    %4468 = vmatmul.f32.gmra.mxu0 %v4467
    %v4469 = vpop.f32.mrf.mxu0
    %v4470 = vadd.f32 %v4309, %v4469
    %v4471 = vand.u32 %v132, 4294901760
    %4472 = vmatmul.f32.gmra.mxu0 %v4471
    %v4473 = vpop.f32.mrf.mxu0
    %v4474 = vadd.f32 %v4313, %v4473
    %v4475 = vand.u32 %v134, 4294901760
    %4476 = vmatmul.f32.gmra.mxu0 %v4475
    %v4477 = vpop.f32.mrf.mxu0
    %v4478 = vadd.f32 %v4317, %v4477
    %v4479 = vand.u32 %v136, 4294901760
    %4480 = vmatmul.f32.gmra.mxu0 %v4479
    %v4481 = vpop.f32.mrf.mxu0
    %v4482 = vadd.f32 %v4321, %v4481
    %v4483 = vand.u32 %v138, 4294901760
    %4484 = vmatmul.f32.gmra.mxu0 %v4483
    %v4485 = vpop.f32.mrf.mxu0
    %v4486 = vadd.f32 %v4325, %v4485
    %v4487 = vand.u32 %v140, 4294901760
    %4488 = vmatmul.f32.gmra.mxu0 %v4487
    %v4489 = vpop.f32.mrf.mxu0
    %v4490 = vadd.f32 %v4329, %v4489
    %v4491 = vand.u32 %v142, 4294901760
    %4492 = vmatmul.f32.gmra.mxu0 %v4491
    %v4493 = vpop.f32.mrf.mxu0
    %v4494 = vadd.f32 %v4333, %v4493
    %v4495 = vand.u32 %v144, 4294901760
    %4496 = vmatmul.f32.gmra.mxu0 %v4495
    %v4497 = vpop.f32.mrf.mxu0
    %v4498 = vadd.f32 %v4337, %v4497
    %v4499 = vand.u32 %v146, 4294901760
    %4500 = vmatmul.f32.gmra.mxu0 %v4499
    %v4501 = vpop.f32.mrf.mxu0
    %v4502 = vadd.f32 %v4341, %v4501
    %v4503 = vand.u32 %v148, 4294901760
    %4504 = vmatmul.f32.gmra.mxu0 %v4503
    %v4505 = vpop.f32.mrf.mxu0
    %v4506 = vadd.f32 %v4345, %v4505
    %v4507 = vand.u32 %v150, 4294901760
    %4508 = vmatmul.f32.gmra.mxu0 %v4507
    %v4509 = vpop.f32.mrf.mxu0
    %v4510 = vadd.f32 %v4349, %v4509
    %v4511 = vand.u32 %v152, 4294901760
    %4512 = vmatmul.f32.gmra.mxu0 %v4511
    %v4513 = vpop.f32.mrf.mxu0
    %v4514 = vadd.f32 %v4353, %v4513
    %v4515 = vand.u32 %v154, 4294901760
    %4516 = vmatmul.f32.gmra.mxu0 %v4515
    %v4517 = vpop.f32.mrf.mxu0
    %v4518 = vadd.f32 %v4357, %v4517
    %v4519 = vand.u32 %v156, 4294901760
    %4520 = vmatmul.f32.gmra.mxu0 %v4519
    %v4521 = vpop.f32.mrf.mxu0
    %v4522 = vadd.f32 %v4361, %v4521
    %v4523 = vand.u32 %v158, 4294901760
    %4524 = vmatmul.f32.gmra.mxu0 %v4523
    %v4525 = vpop.f32.mrf.mxu0
    %v4526 = vadd.f32 %v4365, %v4525
    %v4527 = vand.u32 %v160, 4294901760
    %4528 = vmatmul.f32.gmra.mxu0 %v4527
    %v4529 = vpop.f32.mrf.mxu0
    %v4530 = vadd.f32 %v4369, %v4529
    %v4531 = vand.u32 %v162, 4294901760
    %4532 = vmatmul.f32.gmra.mxu0 %v4531
    %v4533 = vpop.f32.mrf.mxu0
    %v4534 = vadd.f32 %v4373, %v4533
    %v4535 = vand.u32 %v164, 4294901760
    %4536 = vmatmul.f32.gmra.mxu0 %v4535
    %v4537 = vpop.f32.mrf.mxu0
    %v4538 = vadd.f32 %v4377, %v4537
    %v4539 = vand.u32 %v166, 4294901760
    %4540 = vmatmul.f32.gmra.mxu0 %v4539
    %v4541 = vpop.f32.mrf.mxu0
    %v4542 = vadd.f32 %v4381, %v4541
    %v4543 = vand.u32 %v168, 4294901760
    %4544 = vmatmul.f32.gmra.mxu0 %v4543
    %v4545 = vpop.f32.mrf.mxu0
    %v4546 = vadd.f32 %v4385, %v4545
    %v4547 = vand.u32 %v170, 4294901760
    %4548 = vmatmul.f32.gmra.mxu0 %v4547
    %v4549 = vpop.f32.mrf.mxu0
    %v4550 = vadd.f32 %v4389, %v4549
    %4551 = vdwg.mxu0
    %v4552 = vmax.f32 %v4426, 0.0
    %v4553 = vmax.f32 %v4430, 0.0
    %v4554 = vmax.f32 %v4434, 0.0
    %v4555 = vmax.f32 %v4438, 0.0
    %v4556 = vmax.f32 %v4442, 0.0
    %v4557 = vmax.f32 %v4446, 0.0
    %v4558 = vmax.f32 %v4450, 0.0
    %v4559 = vmax.f32 %v4454, 0.0
    %v4560 = vmax.f32 %v4458, 0.0
    %v4561 = vmax.f32 %v4462, 0.0
    %v4562 = vmax.f32 %v4466, 0.0
    %v4563 = vmax.f32 %v4470, 0.0
    %v4564 = vmax.f32 %v4474, 0.0
    %v4565 = vmax.f32 %v4478, 0.0
    %v4566 = vmax.f32 %v4482, 0.0
    %v4567 = vmax.f32 %v4486, 0.0
    %v4568 = vmax.f32 %v4490, 0.0
    %v4569 = vmax.f32 %v4494, 0.0
    %v4570 = vmax.f32 %v4498, 0.0
    %v4571 = vmax.f32 %v4502, 0.0
    %v4572 = vmax.f32 %v4506, 0.0
    %v4573 = vmax.f32 %v4510, 0.0
    %v4574 = vmax.f32 %v4514, 0.0
    %v4575 = vmax.f32 %v4518, 0.0
    %v4576 = vmax.f32 %v4522, 0.0
    %v4577 = vmax.f32 %v4526, 0.0
    %v4578 = vmax.f32 %v4530, 0.0
    %v4579 = vmax.f32 %v4534, 0.0
    %v4580 = vmax.f32 %v4538, 0.0
    %v4581 = vmax.f32 %v4542, 0.0
    %v4582 = vmax.f32 %v4546, 0.0
    %v4583 = vmax.f32 %v4550, 0.0
    %4585 = vset.pattern.permute.xlu0 0
    %4586 = vperm.xlu0 %4585, %v267
    %v4587 = vpop.permute.xlu0 %4586
    %4590 = vset.pattern.permute.xlu0 0
    %4591 = vperm.xlu0 %4590, %v268
    %v4592 = vpop.permute.xlu0 %4591
    %4595 = vset.pattern.permute.xlu0 0
    %4596 = vperm.xlu0 %4595, %v269
    %v4597 = vpop.permute.xlu0 %4596
    %4600 = vset.pattern.permute.xlu0 0
    %4601 = vperm.xlu0 %4600, %v270
    %v4602 = vpop.permute.xlu0 %4601
    %4605 = vset.pattern.permute.xlu0 0
    %4606 = vperm.xlu0 %4605, %v271
    %v4607 = vpop.permute.xlu0 %4606
    %4610 = vset.pattern.permute.xlu0 0
    %4611 = vperm.xlu0 %4610, %v272
    %v4612 = vpop.permute.xlu0 %4611
    %4615 = vset.pattern.permute.xlu0 0
    %4616 = vperm.xlu0 %4615, %v273
    %v4617 = vpop.permute.xlu0 %4616
    %4620 = vset.pattern.permute.xlu0 0
    %4621 = vperm.xlu0 %4620, %v274
    %v4622 = vpop.permute.xlu0 %4621
    %4625 = vset.pattern.permute.xlu0 0
    %4626 = vperm.xlu0 %4625, %v275
    %v4627 = vpop.permute.xlu0 %4626
    %4630 = vset.pattern.permute.xlu0 0
    %4631 = vperm.xlu0 %4630, %v276
    %v4632 = vpop.permute.xlu0 %4631
    %4635 = vset.pattern.permute.xlu0 0
    %4636 = vperm.xlu0 %4635, %v277
    %v4637 = vpop.permute.xlu0 %4636
    %4640 = vset.pattern.permute.xlu0 0
    %4641 = vperm.xlu0 %4640, %v278
    %v4642 = vpop.permute.xlu0 %4641
    %4645 = vset.pattern.permute.xlu0 0
    %4646 = vperm.xlu0 %4645, %v279
    %v4647 = vpop.permute.xlu0 %4646
    %4650 = vset.pattern.permute.xlu0 0
    %4651 = vperm.xlu0 %4650, %v280
    %v4652 = vpop.permute.xlu0 %4651
    %4655 = vset.pattern.permute.xlu0 0
    %4656 = vperm.xlu0 %4655, %v281
    %v4657 = vpop.permute.xlu0 %4656
    %4660 = vset.pattern.permute.xlu0 0
    %4661 = vperm.xlu0 %4660, %v282
    %v4662 = vpop.permute.xlu0 %4661
    %4665 = vset.pattern.permute.xlu0 0
    %4666 = vperm.xlu0 %4665, %v283
    %v4667 = vpop.permute.xlu0 %4666
    %4670 = vset.pattern.permute.xlu0 0
    %4671 = vperm.xlu0 %4670, %v284
    %v4672 = vpop.permute.xlu0 %4671
    %4675 = vset.pattern.permute.xlu0 0
    %4676 = vperm.xlu0 %4675, %v285
    %v4677 = vpop.permute.xlu0 %4676
    %4680 = vset.pattern.permute.xlu0 0
    %4681 = vperm.xlu0 %4680, %v286
    %v4682 = vpop.permute.xlu0 %4681
    %4685 = vset.pattern.permute.xlu0 0
    %4686 = vperm.xlu0 %4685, %v287
    %v4687 = vpop.permute.xlu0 %4686
    %4690 = vset.pattern.permute.xlu0 0
    %4691 = vperm.xlu0 %4690, %v288
    %v4692 = vpop.permute.xlu0 %4691
    %4695 = vset.pattern.permute.xlu0 0
    %4696 = vperm.xlu0 %4695, %v289
    %v4697 = vpop.permute.xlu0 %4696
    %4700 = vset.pattern.permute.xlu0 0
    %4701 = vperm.xlu0 %4700, %v290
    %v4702 = vpop.permute.xlu0 %4701
    %4705 = vset.pattern.permute.xlu0 0
    %4706 = vperm.xlu0 %4705, %v291
    %v4707 = vpop.permute.xlu0 %4706
    %4710 = vset.pattern.permute.xlu0 0
    %4711 = vperm.xlu0 %4710, %v292
    %v4712 = vpop.permute.xlu0 %4711
    %4715 = vset.pattern.permute.xlu0 0
    %4716 = vperm.xlu0 %4715, %v293
    %v4717 = vpop.permute.xlu0 %4716
    %4720 = vset.pattern.permute.xlu0 0
    %4721 = vperm.xlu0 %4720, %v294
    %v4722 = vpop.permute.xlu0 %4721
    %4725 = vset.pattern.permute.xlu0 0
    %4726 = vperm.xlu0 %4725, %v295
    %v4727 = vpop.permute.xlu0 %4726
    %4730 = vset.pattern.permute.xlu0 0
    %4731 = vperm.xlu0 %4730, %v296
    %v4732 = vpop.permute.xlu0 %4731
    %4735 = vset.pattern.permute.xlu0 0
    %4736 = vperm.xlu0 %4735, %v297
    %v4737 = vpop.permute.xlu0 %4736
    %4740 = vset.pattern.permute.xlu0 0
    %4741 = vperm.xlu0 %4740, %v298
    %v4742 = vpop.permute.xlu0 %4741
    %v4744 = vand.u32 %v4567, 4294901760
    %4745 = vmatpush.msra.mxu0 %v4744
    %v4746 = vand.u32 %v4566, 4294901760
    %4747 = vmatpush.msra.mxu0 %v4746
    %v4748 = vand.u32 %v4565, 4294901760
    %4749 = vmatpush.msra.mxu0 %v4748
    %v4750 = vand.u32 %v4564, 4294901760
    %4751 = vmatpush.msra.mxu0 %v4750
    %v4752 = vand.u32 %v4563, 4294901760
    %4753 = vmatpush.msra.mxu0 %v4752
    %v4754 = vand.u32 %v4562, 4294901760
    %4755 = vmatpush.msra.mxu0 %v4754
    %v4756 = vand.u32 %v4561, 4294901760
    %4757 = vmatpush.msra.mxu0 %v4756
    %v4758 = vand.u32 %v4560, 4294901760
    %4759 = vmatpush.msra.mxu0 %v4758
    %v4760 = vand.u32 %v4559, 4294901760
    %4761 = vmatpush.msra.mxu0 %v4760
    %v4762 = vand.u32 %v4558, 4294901760
    %4763 = vmatpush.msra.mxu0 %v4762
    %v4764 = vand.u32 %v4557, 4294901760
    %4765 = vmatpush.msra.mxu0 %v4764
    %v4766 = vand.u32 %v4556, 4294901760
    %4767 = vmatpush.msra.mxu0 %v4766
    %v4768 = vand.u32 %v4555, 4294901760
    %4769 = vmatpush.msra.mxu0 %v4768
    %v4770 = vand.u32 %v4554, 4294901760
    %4771 = vmatpush.msra.mxu0 %v4770
    %v4772 = vand.u32 %v4553, 4294901760
    %4773 = vmatpush.msra.mxu0 %v4772
    %v4774 = vand.u32 %v4552, 4294901760
    %4775 = vmatpush.msra.mxu0 %v4774
    %v4776 = vand.u32 %v203, 4294901760
    %v4777 = vsub.f32 %v203, %v4776
    %v4778 = vand.u32 %v4777, 4294901760
    %v4779 = vsub.f32 %v4777, %v4778
    %v4780 = vand.u32 %v4779, 4294901760
    %4781 = vmatmul.f32.gmra.mxu0 %v4780
    %v4782 = vpop.f32.mrf.mxu0
    %v4783 = vadd.f32 %v4587, %v4782
    %v4784 = vand.u32 %v205, 4294901760
    %v4785 = vsub.f32 %v205, %v4784
    %v4786 = vand.u32 %v4785, 4294901760
    %v4787 = vsub.f32 %v4785, %v4786
    %v4788 = vand.u32 %v4787, 4294901760
    %4789 = vmatmul.f32.gmra.mxu0 %v4788
    %v4790 = vpop.f32.mrf.mxu0
    %v4791 = vadd.f32 %v4592, %v4790
    %v4792 = vand.u32 %v207, 4294901760
    %v4793 = vsub.f32 %v207, %v4792
    %v4794 = vand.u32 %v4793, 4294901760
    %v4795 = vsub.f32 %v4793, %v4794
    %v4796 = vand.u32 %v4795, 4294901760
    %4797 = vmatmul.f32.gmra.mxu0 %v4796
    %v4798 = vpop.f32.mrf.mxu0
    %v4799 = vadd.f32 %v4597, %v4798
    %v4800 = vand.u32 %v209, 4294901760
    %v4801 = vsub.f32 %v209, %v4800
    %v4802 = vand.u32 %v4801, 4294901760
    %v4803 = vsub.f32 %v4801, %v4802
    %v4804 = vand.u32 %v4803, 4294901760
    %4805 = vmatmul.f32.gmra.mxu0 %v4804
    %v4806 = vpop.f32.mrf.mxu0
    %v4807 = vadd.f32 %v4602, %v4806
    %v4808 = vand.u32 %v211, 4294901760
    %v4809 = vsub.f32 %v211, %v4808
    %v4810 = vand.u32 %v4809, 4294901760
    %v4811 = vsub.f32 %v4809, %v4810
    %v4812 = vand.u32 %v4811, 4294901760
    %4813 = vmatmul.f32.gmra.mxu0 %v4812
    %v4814 = vpop.f32.mrf.mxu0
    %v4815 = vadd.f32 %v4607, %v4814
    %v4816 = vand.u32 %v213, 4294901760
    %v4817 = vsub.f32 %v213, %v4816
    %v4818 = vand.u32 %v4817, 4294901760
    %v4819 = vsub.f32 %v4817, %v4818
    %v4820 = vand.u32 %v4819, 4294901760
    %4821 = vmatmul.f32.gmra.mxu0 %v4820
    %v4822 = vpop.f32.mrf.mxu0
    %v4823 = vadd.f32 %v4612, %v4822
    %v4824 = vand.u32 %v215, 4294901760
    %v4825 = vsub.f32 %v215, %v4824
    %v4826 = vand.u32 %v4825, 4294901760
    %v4827 = vsub.f32 %v4825, %v4826
    %v4828 = vand.u32 %v4827, 4294901760
    %4829 = vmatmul.f32.gmra.mxu0 %v4828
    %v4830 = vpop.f32.mrf.mxu0
    %v4831 = vadd.f32 %v4617, %v4830
    %v4832 = vand.u32 %v217, 4294901760
    %v4833 = vsub.f32 %v217, %v4832
    %v4834 = vand.u32 %v4833, 4294901760
    %v4835 = vsub.f32 %v4833, %v4834
    %v4836 = vand.u32 %v4835, 4294901760
    %4837 = vmatmul.f32.gmra.mxu0 %v4836
    %v4838 = vpop.f32.mrf.mxu0
    %v4839 = vadd.f32 %v4622, %v4838
    %v4840 = vand.u32 %v219, 4294901760
    %v4841 = vsub.f32 %v219, %v4840
    %v4842 = vand.u32 %v4841, 4294901760
    %v4843 = vsub.f32 %v4841, %v4842
    %v4844 = vand.u32 %v4843, 4294901760
    %4845 = vmatmul.f32.gmra.mxu0 %v4844
    %v4846 = vpop.f32.mrf.mxu0
    %v4847 = vadd.f32 %v4627, %v4846
    %v4848 = vand.u32 %v221, 4294901760
    %v4849 = vsub.f32 %v221, %v4848
    %v4850 = vand.u32 %v4849, 4294901760
    %v4851 = vsub.f32 %v4849, %v4850
    %v4852 = vand.u32 %v4851, 4294901760
    %4853 = vmatmul.f32.gmra.mxu0 %v4852
    %v4854 = vpop.f32.mrf.mxu0
    %v4855 = vadd.f32 %v4632, %v4854
    %v4856 = vand.u32 %v223, 4294901760
    %v4857 = vsub.f32 %v223, %v4856
    %v4858 = vand.u32 %v4857, 4294901760
    %v4859 = vsub.f32 %v4857, %v4858
    %v4860 = vand.u32 %v4859, 4294901760
    %4861 = vmatmul.f32.gmra.mxu0 %v4860
    %v4862 = vpop.f32.mrf.mxu0
    %v4863 = vadd.f32 %v4637, %v4862
    %v4864 = vand.u32 %v225, 4294901760
    %v4865 = vsub.f32 %v225, %v4864
    %v4866 = vand.u32 %v4865, 4294901760
    %v4867 = vsub.f32 %v4865, %v4866
    %v4868 = vand.u32 %v4867, 4294901760
    %4869 = vmatmul.f32.gmra.mxu0 %v4868
    %v4870 = vpop.f32.mrf.mxu0
    %v4871 = vadd.f32 %v4642, %v4870
    %v4872 = vand.u32 %v227, 4294901760
    %v4873 = vsub.f32 %v227, %v4872
    %v4874 = vand.u32 %v4873, 4294901760
    %v4875 = vsub.f32 %v4873, %v4874
    %v4876 = vand.u32 %v4875, 4294901760
    %4877 = vmatmul.f32.gmra.mxu0 %v4876
    %v4878 = vpop.f32.mrf.mxu0
    %v4879 = vadd.f32 %v4647, %v4878
    %v4880 = vand.u32 %v229, 4294901760
    %v4881 = vsub.f32 %v229, %v4880
    %v4882 = vand.u32 %v4881, 4294901760
    %v4883 = vsub.f32 %v4881, %v4882
    %v4884 = vand.u32 %v4883, 4294901760
    %4885 = vmatmul.f32.gmra.mxu0 %v4884
    %v4886 = vpop.f32.mrf.mxu0
    %v4887 = vadd.f32 %v4652, %v4886
    %v4888 = vand.u32 %v231, 4294901760
    %v4889 = vsub.f32 %v231, %v4888
    %v4890 = vand.u32 %v4889, 4294901760
    %v4891 = vsub.f32 %v4889, %v4890
    %v4892 = vand.u32 %v4891, 4294901760
    %4893 = vmatmul.f32.gmra.mxu0 %v4892
    %v4894 = vpop.f32.mrf.mxu0
    %v4895 = vadd.f32 %v4657, %v4894
    %v4896 = vand.u32 %v233, 4294901760
    %v4897 = vsub.f32 %v233, %v4896
    %v4898 = vand.u32 %v4897, 4294901760
    %v4899 = vsub.f32 %v4897, %v4898
    %v4900 = vand.u32 %v4899, 4294901760
    %4901 = vmatmul.f32.gmra.mxu0 %v4900
    %v4902 = vpop.f32.mrf.mxu0
    %v4903 = vadd.f32 %v4662, %v4902
    %v4904 = vand.u32 %v235, 4294901760
    %v4905 = vsub.f32 %v235, %v4904
    %v4906 = vand.u32 %v4905, 4294901760
    %v4907 = vsub.f32 %v4905, %v4906
    %v4908 = vand.u32 %v4907, 4294901760
    %4909 = vmatmul.f32.gmra.mxu0 %v4908
    %v4910 = vpop.f32.mrf.mxu0
    %v4911 = vadd.f32 %v4667, %v4910
    %v4912 = vand.u32 %v237, 4294901760
    %v4913 = vsub.f32 %v237, %v4912
    %v4914 = vand.u32 %v4913, 4294901760
    %v4915 = vsub.f32 %v4913, %v4914
    %v4916 = vand.u32 %v4915, 4294901760
    %4917 = vmatmul.f32.gmra.mxu0 %v4916
    %v4918 = vpop.f32.mrf.mxu0
    %v4919 = vadd.f32 %v4672, %v4918
    %v4920 = vand.u32 %v239, 4294901760
    %v4921 = vsub.f32 %v239, %v4920
    %v4922 = vand.u32 %v4921, 4294901760
    %v4923 = vsub.f32 %v4921, %v4922
    %v4924 = vand.u32 %v4923, 4294901760
    %4925 = vmatmul.f32.gmra.mxu0 %v4924
    %v4926 = vpop.f32.mrf.mxu0
    %v4927 = vadd.f32 %v4677, %v4926
    %v4928 = vand.u32 %v241, 4294901760
    %v4929 = vsub.f32 %v241, %v4928
    %v4930 = vand.u32 %v4929, 4294901760
    %v4931 = vsub.f32 %v4929, %v4930
    %v4932 = vand.u32 %v4931, 4294901760
    %4933 = vmatmul.f32.gmra.mxu0 %v4932
    %v4934 = vpop.f32.mrf.mxu0
    %v4935 = vadd.f32 %v4682, %v4934
    %v4936 = vand.u32 %v243, 4294901760
    %v4937 = vsub.f32 %v243, %v4936
    %v4938 = vand.u32 %v4937, 4294901760
    %v4939 = vsub.f32 %v4937, %v4938
    %v4940 = vand.u32 %v4939, 4294901760
    %4941 = vmatmul.f32.gmra.mxu0 %v4940
    %v4942 = vpop.f32.mrf.mxu0
    %v4943 = vadd.f32 %v4687, %v4942
    %v4944 = vand.u32 %v245, 4294901760
    %v4945 = vsub.f32 %v245, %v4944
    %v4946 = vand.u32 %v4945, 4294901760
    %v4947 = vsub.f32 %v4945, %v4946
    %v4948 = vand.u32 %v4947, 4294901760
    %4949 = vmatmul.f32.gmra.mxu0 %v4948
    %v4950 = vpop.f32.mrf.mxu0
    %v4951 = vadd.f32 %v4692, %v4950
    %v4952 = vand.u32 %v247, 4294901760
    %v4953 = vsub.f32 %v247, %v4952
    %v4954 = vand.u32 %v4953, 4294901760
    %v4955 = vsub.f32 %v4953, %v4954
    %v4956 = vand.u32 %v4955, 4294901760
    %4957 = vmatmul.f32.gmra.mxu0 %v4956
    %v4958 = vpop.f32.mrf.mxu0
    %v4959 = vadd.f32 %v4697, %v4958
    %v4960 = vand.u32 %v249, 4294901760
    %v4961 = vsub.f32 %v249, %v4960
    %v4962 = vand.u32 %v4961, 4294901760
    %v4963 = vsub.f32 %v4961, %v4962
    %v4964 = vand.u32 %v4963, 4294901760
    %4965 = vmatmul.f32.gmra.mxu0 %v4964
    %v4966 = vpop.f32.mrf.mxu0
    %v4967 = vadd.f32 %v4702, %v4966
    %v4968 = vand.u32 %v251, 4294901760
    %v4969 = vsub.f32 %v251, %v4968
    %v4970 = vand.u32 %v4969, 4294901760
    %v4971 = vsub.f32 %v4969, %v4970
    %v4972 = vand.u32 %v4971, 4294901760
    %4973 = vmatmul.f32.gmra.mxu0 %v4972
    %v4974 = vpop.f32.mrf.mxu0
    %v4975 = vadd.f32 %v4707, %v4974
    %v4976 = vand.u32 %v253, 4294901760
    %v4977 = vsub.f32 %v253, %v4976
    %v4978 = vand.u32 %v4977, 4294901760
    %v4979 = vsub.f32 %v4977, %v4978
    %v4980 = vand.u32 %v4979, 4294901760
    %4981 = vmatmul.f32.gmra.mxu0 %v4980
    %v4982 = vpop.f32.mrf.mxu0
    %v4983 = vadd.f32 %v4712, %v4982
    %v4984 = vand.u32 %v255, 4294901760
    %v4985 = vsub.f32 %v255, %v4984
    %v4986 = vand.u32 %v4985, 4294901760
    %v4987 = vsub.f32 %v4985, %v4986
    %v4988 = vand.u32 %v4987, 4294901760
    %4989 = vmatmul.f32.gmra.mxu0 %v4988
    %v4990 = vpop.f32.mrf.mxu0
    %v4991 = vadd.f32 %v4717, %v4990
    %v4992 = vand.u32 %v257, 4294901760
    %v4993 = vsub.f32 %v257, %v4992
    %v4994 = vand.u32 %v4993, 4294901760
    %v4995 = vsub.f32 %v4993, %v4994
    %v4996 = vand.u32 %v4995, 4294901760
    %4997 = vmatmul.f32.gmra.mxu0 %v4996
    %v4998 = vpop.f32.mrf.mxu0
    %v4999 = vadd.f32 %v4722, %v4998
    %v5000 = vand.u32 %v259, 4294901760
    %v5001 = vsub.f32 %v259, %v5000
    %v5002 = vand.u32 %v5001, 4294901760
    %v5003 = vsub.f32 %v5001, %v5002
    %v5004 = vand.u32 %v5003, 4294901760
    %5005 = vmatmul.f32.gmra.mxu0 %v5004
    %v5006 = vpop.f32.mrf.mxu0
    %v5007 = vadd.f32 %v4727, %v5006
    %v5008 = vand.u32 %v261, 4294901760
    %v5009 = vsub.f32 %v261, %v5008
    %v5010 = vand.u32 %v5009, 4294901760
    %v5011 = vsub.f32 %v5009, %v5010
    %v5012 = vand.u32 %v5011, 4294901760
    %5013 = vmatmul.f32.gmra.mxu0 %v5012
    %v5014 = vpop.f32.mrf.mxu0
    %v5015 = vadd.f32 %v4732, %v5014
    %v5016 = vand.u32 %v263, 4294901760
    %v5017 = vsub.f32 %v263, %v5016
    %v5018 = vand.u32 %v5017, 4294901760
    %v5019 = vsub.f32 %v5017, %v5018
    %v5020 = vand.u32 %v5019, 4294901760
    %5021 = vmatmul.f32.gmra.mxu0 %v5020
    %v5022 = vpop.f32.mrf.mxu0
    %v5023 = vadd.f32 %v4737, %v5022
    %v5024 = vand.u32 %v265, 4294901760
    %v5025 = vsub.f32 %v265, %v5024
    %v5026 = vand.u32 %v5025, 4294901760
    %v5027 = vsub.f32 %v5025, %v5026
    %v5028 = vand.u32 %v5027, 4294901760
    %5029 = vmatmul.f32.gmra.mxu0 %v5028
    %v5030 = vpop.f32.mrf.mxu0
    %v5031 = vadd.f32 %v4742, %v5030
    %5032 = vdwg.mxu0
    %v5033 = vand.u32 %v4567, 4294901760
    %v5034 = vsub.f32 %v4567, %v5033
    %v5035 = vand.u32 %v5034, 4294901760
    %v5036 = vsub.f32 %v5034, %v5035
    %v5037 = vand.u32 %v5036, 4294901760
    %5038 = vmatpush.msra.mxu0 %v5037
    %v5039 = vand.u32 %v4566, 4294901760
    %v5040 = vsub.f32 %v4566, %v5039
    %v5041 = vand.u32 %v5040, 4294901760
    %v5042 = vsub.f32 %v5040, %v5041
    %v5043 = vand.u32 %v5042, 4294901760
    %5044 = vmatpush.msra.mxu0 %v5043
    %v5045 = vand.u32 %v4565, 4294901760
    %v5046 = vsub.f32 %v4565, %v5045
    %v5047 = vand.u32 %v5046, 4294901760
    %v5048 = vsub.f32 %v5046, %v5047
    %v5049 = vand.u32 %v5048, 4294901760
    %5050 = vmatpush.msra.mxu0 %v5049
    %v5051 = vand.u32 %v4564, 4294901760
    %v5052 = vsub.f32 %v4564, %v5051
    %v5053 = vand.u32 %v5052, 4294901760
    %v5054 = vsub.f32 %v5052, %v5053
    %v5055 = vand.u32 %v5054, 4294901760
    %5056 = vmatpush.msra.mxu0 %v5055
    %v5057 = vand.u32 %v4563, 4294901760
    %v5058 = vsub.f32 %v4563, %v5057
    %v5059 = vand.u32 %v5058, 4294901760
    %v5060 = vsub.f32 %v5058, %v5059
    %v5061 = vand.u32 %v5060, 4294901760
    %5062 = vmatpush.msra.mxu0 %v5061
    %v5063 = vand.u32 %v4562, 4294901760
    %v5064 = vsub.f32 %v4562, %v5063
    %v5065 = vand.u32 %v5064, 4294901760
    %v5066 = vsub.f32 %v5064, %v5065
    %v5067 = vand.u32 %v5066, 4294901760
    %5068 = vmatpush.msra.mxu0 %v5067
    %v5069 = vand.u32 %v4561, 4294901760
    %v5070 = vsub.f32 %v4561, %v5069
    %v5071 = vand.u32 %v5070, 4294901760
    %v5072 = vsub.f32 %v5070, %v5071
    %v5073 = vand.u32 %v5072, 4294901760
    %5074 = vmatpush.msra.mxu0 %v5073
    %v5075 = vand.u32 %v4560, 4294901760
    %v5076 = vsub.f32 %v4560, %v5075
    %v5077 = vand.u32 %v5076, 4294901760
    %v5078 = vsub.f32 %v5076, %v5077
    %v5079 = vand.u32 %v5078, 4294901760
    %5080 = vmatpush.msra.mxu0 %v5079
    %v5081 = vand.u32 %v4559, 4294901760
    %v5082 = vsub.f32 %v4559, %v5081
    %v5083 = vand.u32 %v5082, 4294901760
    %v5084 = vsub.f32 %v5082, %v5083
    %v5085 = vand.u32 %v5084, 4294901760
    %5086 = vmatpush.msra.mxu0 %v5085
    %v5087 = vand.u32 %v4558, 4294901760
    %v5088 = vsub.f32 %v4558, %v5087
    %v5089 = vand.u32 %v5088, 4294901760
    %v5090 = vsub.f32 %v5088, %v5089
    %v5091 = vand.u32 %v5090, 4294901760
    %5092 = vmatpush.msra.mxu0 %v5091
    %v5093 = vand.u32 %v4557, 4294901760
    %v5094 = vsub.f32 %v4557, %v5093
    %v5095 = vand.u32 %v5094, 4294901760
    %v5096 = vsub.f32 %v5094, %v5095
    %v5097 = vand.u32 %v5096, 4294901760
    %5098 = vmatpush.msra.mxu0 %v5097
    %v5099 = vand.u32 %v4556, 4294901760
    %v5100 = vsub.f32 %v4556, %v5099
    %v5101 = vand.u32 %v5100, 4294901760
    %v5102 = vsub.f32 %v5100, %v5101
    %v5103 = vand.u32 %v5102, 4294901760
    %5104 = vmatpush.msra.mxu0 %v5103
    %v5105 = vand.u32 %v4555, 4294901760
    %v5106 = vsub.f32 %v4555, %v5105
    %v5107 = vand.u32 %v5106, 4294901760
    %v5108 = vsub.f32 %v5106, %v5107
    %v5109 = vand.u32 %v5108, 4294901760
    %5110 = vmatpush.msra.mxu0 %v5109
    %v5111 = vand.u32 %v4554, 4294901760
    %v5112 = vsub.f32 %v4554, %v5111
    %v5113 = vand.u32 %v5112, 4294901760
    %v5114 = vsub.f32 %v5112, %v5113
    %v5115 = vand.u32 %v5114, 4294901760
    %5116 = vmatpush.msra.mxu0 %v5115
    %v5117 = vand.u32 %v4553, 4294901760
    %v5118 = vsub.f32 %v4553, %v5117
    %v5119 = vand.u32 %v5118, 4294901760
    %v5120 = vsub.f32 %v5118, %v5119
    %v5121 = vand.u32 %v5120, 4294901760
    %5122 = vmatpush.msra.mxu0 %v5121
    %v5123 = vand.u32 %v4552, 4294901760
    %v5124 = vsub.f32 %v4552, %v5123
    %v5125 = vand.u32 %v5124, 4294901760
    %v5126 = vsub.f32 %v5124, %v5125
    %v5127 = vand.u32 %v5126, 4294901760
    %5128 = vmatpush.msra.mxu0 %v5127
    %v5129 = vand.u32 %v203, 4294901760
    %5130 = vmatmul.f32.gmra.mxu0 %v5129
    %v5131 = vpop.f32.mrf.mxu0
    %v5132 = vadd.f32 %v4783, %v5131
    %v5133 = vand.u32 %v205, 4294901760
    %5134 = vmatmul.f32.gmra.mxu0 %v5133
    %v5135 = vpop.f32.mrf.mxu0
    %v5136 = vadd.f32 %v4791, %v5135
    %v5137 = vand.u32 %v207, 4294901760
    %5138 = vmatmul.f32.gmra.mxu0 %v5137
    %v5139 = vpop.f32.mrf.mxu0
    %v5140 = vadd.f32 %v4799, %v5139
    %v5141 = vand.u32 %v209, 4294901760
    %5142 = vmatmul.f32.gmra.mxu0 %v5141
    %v5143 = vpop.f32.mrf.mxu0
    %v5144 = vadd.f32 %v4807, %v5143
    %v5145 = vand.u32 %v211, 4294901760
    %5146 = vmatmul.f32.gmra.mxu0 %v5145
    %v5147 = vpop.f32.mrf.mxu0
    %v5148 = vadd.f32 %v4815, %v5147
    %v5149 = vand.u32 %v213, 4294901760
    %5150 = vmatmul.f32.gmra.mxu0 %v5149
    %v5151 = vpop.f32.mrf.mxu0
    %v5152 = vadd.f32 %v4823, %v5151
    %v5153 = vand.u32 %v215, 4294901760
    %5154 = vmatmul.f32.gmra.mxu0 %v5153
    %v5155 = vpop.f32.mrf.mxu0
    %v5156 = vadd.f32 %v4831, %v5155
    %v5157 = vand.u32 %v217, 4294901760
    %5158 = vmatmul.f32.gmra.mxu0 %v5157
    %v5159 = vpop.f32.mrf.mxu0
    %v5160 = vadd.f32 %v4839, %v5159
    %v5161 = vand.u32 %v219, 4294901760
    %5162 = vmatmul.f32.gmra.mxu0 %v5161
    %v5163 = vpop.f32.mrf.mxu0
    %v5164 = vadd.f32 %v4847, %v5163
    %v5165 = vand.u32 %v221, 4294901760
    %5166 = vmatmul.f32.gmra.mxu0 %v5165
    %v5167 = vpop.f32.mrf.mxu0
    %v5168 = vadd.f32 %v4855, %v5167
    %v5169 = vand.u32 %v223, 4294901760
    %5170 = vmatmul.f32.gmra.mxu0 %v5169
    %v5171 = vpop.f32.mrf.mxu0
    %v5172 = vadd.f32 %v4863, %v5171
    %v5173 = vand.u32 %v225, 4294901760
    %5174 = vmatmul.f32.gmra.mxu0 %v5173
    %v5175 = vpop.f32.mrf.mxu0
    %v5176 = vadd.f32 %v4871, %v5175
    %v5177 = vand.u32 %v227, 4294901760
    %5178 = vmatmul.f32.gmra.mxu0 %v5177
    %v5179 = vpop.f32.mrf.mxu0
    %v5180 = vadd.f32 %v4879, %v5179
    %v5181 = vand.u32 %v229, 4294901760
    %5182 = vmatmul.f32.gmra.mxu0 %v5181
    %v5183 = vpop.f32.mrf.mxu0
    %v5184 = vadd.f32 %v4887, %v5183
    %v5185 = vand.u32 %v231, 4294901760
    %5186 = vmatmul.f32.gmra.mxu0 %v5185
    %v5187 = vpop.f32.mrf.mxu0
    %v5188 = vadd.f32 %v4895, %v5187
    %v5189 = vand.u32 %v233, 4294901760
    %5190 = vmatmul.f32.gmra.mxu0 %v5189
    %v5191 = vpop.f32.mrf.mxu0
    %v5192 = vadd.f32 %v4903, %v5191
    %v5193 = vand.u32 %v235, 4294901760
    %5194 = vmatmul.f32.gmra.mxu0 %v5193
    %v5195 = vpop.f32.mrf.mxu0
    %v5196 = vadd.f32 %v4911, %v5195
    %v5197 = vand.u32 %v237, 4294901760
    %5198 = vmatmul.f32.gmra.mxu0 %v5197
    %v5199 = vpop.f32.mrf.mxu0
    %v5200 = vadd.f32 %v4919, %v5199
    %v5201 = vand.u32 %v239, 4294901760
    %5202 = vmatmul.f32.gmra.mxu0 %v5201
    %v5203 = vpop.f32.mrf.mxu0
    %v5204 = vadd.f32 %v4927, %v5203
    %v5205 = vand.u32 %v241, 4294901760
    %5206 = vmatmul.f32.gmra.mxu0 %v5205
    %v5207 = vpop.f32.mrf.mxu0
    %v5208 = vadd.f32 %v4935, %v5207
    %v5209 = vand.u32 %v243, 4294901760
    %5210 = vmatmul.f32.gmra.mxu0 %v5209
    %v5211 = vpop.f32.mrf.mxu0
    %v5212 = vadd.f32 %v4943, %v5211
    %v5213 = vand.u32 %v245, 4294901760
    %5214 = vmatmul.f32.gmra.mxu0 %v5213
    %v5215 = vpop.f32.mrf.mxu0
    %v5216 = vadd.f32 %v4951, %v5215
    %v5217 = vand.u32 %v247, 4294901760
    %5218 = vmatmul.f32.gmra.mxu0 %v5217
    %v5219 = vpop.f32.mrf.mxu0
    %v5220 = vadd.f32 %v4959, %v5219
    %v5221 = vand.u32 %v249, 4294901760
    %5222 = vmatmul.f32.gmra.mxu0 %v5221
    %v5223 = vpop.f32.mrf.mxu0
    %v5224 = vadd.f32 %v4967, %v5223
    %v5225 = vand.u32 %v251, 4294901760
    %5226 = vmatmul.f32.gmra.mxu0 %v5225
    %v5227 = vpop.f32.mrf.mxu0
    %v5228 = vadd.f32 %v4975, %v5227
    %v5229 = vand.u32 %v253, 4294901760
    %5230 = vmatmul.f32.gmra.mxu0 %v5229
    %v5231 = vpop.f32.mrf.mxu0
    %v5232 = vadd.f32 %v4983, %v5231
    %v5233 = vand.u32 %v255, 4294901760
    %5234 = vmatmul.f32.gmra.mxu0 %v5233
    %v5235 = vpop.f32.mrf.mxu0
    %v5236 = vadd.f32 %v4991, %v5235
    %v5237 = vand.u32 %v257, 4294901760
    %5238 = vmatmul.f32.gmra.mxu0 %v5237
    %v5239 = vpop.f32.mrf.mxu0
    %v5240 = vadd.f32 %v4999, %v5239
    %v5241 = vand.u32 %v259, 4294901760
    %5242 = vmatmul.f32.gmra.mxu0 %v5241
    %v5243 = vpop.f32.mrf.mxu0
    %v5244 = vadd.f32 %v5007, %v5243
    %v5245 = vand.u32 %v261, 4294901760
    %5246 = vmatmul.f32.gmra.mxu0 %v5245
    %v5247 = vpop.f32.mrf.mxu0
    %v5248 = vadd.f32 %v5015, %v5247
    %v5249 = vand.u32 %v263, 4294901760
    %5250 = vmatmul.f32.gmra.mxu0 %v5249
    %v5251 = vpop.f32.mrf.mxu0
    %v5252 = vadd.f32 %v5023, %v5251
    %v5253 = vand.u32 %v265, 4294901760
    %5254 = vmatmul.f32.gmra.mxu0 %v5253
    %v5255 = vpop.f32.mrf.mxu0
    %v5256 = vadd.f32 %v5031, %v5255
    %5257 = vdwg.mxu0
    %v5258 = vand.u32 %v4567, 4294901760
    %v5259 = vsub.f32 %v4567, %v5258
    %5260 = vmatpush.msra.mxu0 %v5259
    %v5261 = vand.u32 %v4566, 4294901760
    %v5262 = vsub.f32 %v4566, %v5261
    %5263 = vmatpush.msra.mxu0 %v5262
    %v5264 = vand.u32 %v4565, 4294901760
    %v5265 = vsub.f32 %v4565, %v5264
    %5266 = vmatpush.msra.mxu0 %v5265
    %v5267 = vand.u32 %v4564, 4294901760
    %v5268 = vsub.f32 %v4564, %v5267
    %5269 = vmatpush.msra.mxu0 %v5268
    %v5270 = vand.u32 %v4563, 4294901760
    %v5271 = vsub.f32 %v4563, %v5270
    %5272 = vmatpush.msra.mxu0 %v5271
    %v5273 = vand.u32 %v4562, 4294901760
    %v5274 = vsub.f32 %v4562, %v5273
    %5275 = vmatpush.msra.mxu0 %v5274
    %v5276 = vand.u32 %v4561, 4294901760
    %v5277 = vsub.f32 %v4561, %v5276
    %5278 = vmatpush.msra.mxu0 %v5277
    %v5279 = vand.u32 %v4560, 4294901760
    %v5280 = vsub.f32 %v4560, %v5279
    %5281 = vmatpush.msra.mxu0 %v5280
    %v5282 = vand.u32 %v4559, 4294901760
    %v5283 = vsub.f32 %v4559, %v5282
    %5284 = vmatpush.msra.mxu0 %v5283
    %v5285 = vand.u32 %v4558, 4294901760
    %v5286 = vsub.f32 %v4558, %v5285
    %5287 = vmatpush.msra.mxu0 %v5286
    %v5288 = vand.u32 %v4557, 4294901760
    %v5289 = vsub.f32 %v4557, %v5288
    %5290 = vmatpush.msra.mxu0 %v5289
    %v5291 = vand.u32 %v4556, 4294901760
    %v5292 = vsub.f32 %v4556, %v5291
    %5293 = vmatpush.msra.mxu0 %v5292
    %v5294 = vand.u32 %v4555, 4294901760
    %v5295 = vsub.f32 %v4555, %v5294
    %5296 = vmatpush.msra.mxu0 %v5295
    %v5297 = vand.u32 %v4554, 4294901760
    %v5298 = vsub.f32 %v4554, %v5297
    %5299 = vmatpush.msra.mxu0 %v5298
    %v5300 = vand.u32 %v4553, 4294901760
    %v5301 = vsub.f32 %v4553, %v5300
    %5302 = vmatpush.msra.mxu0 %v5301
    %v5303 = vand.u32 %v4552, 4294901760
    %v5304 = vsub.f32 %v4552, %v5303
    %5305 = vmatpush.msra.mxu0 %v5304
    %v5306 = vand.u32 %v203, 4294901760
    %v5307 = vsub.f32 %v203, %v5306
    %5308 = vmatmul.f32.gmra.mxu0 %v5307
    %v5309 = vpop.f32.mrf.mxu0
    %v5310 = vadd.f32 %v5132, %v5309
    %v5311 = vand.u32 %v205, 4294901760
    %v5312 = vsub.f32 %v205, %v5311
    %5313 = vmatmul.f32.gmra.mxu0 %v5312
    %v5314 = vpop.f32.mrf.mxu0
    %v5315 = vadd.f32 %v5136, %v5314
    %v5316 = vand.u32 %v207, 4294901760
    %v5317 = vsub.f32 %v207, %v5316
    %5318 = vmatmul.f32.gmra.mxu0 %v5317
    %v5319 = vpop.f32.mrf.mxu0
    %v5320 = vadd.f32 %v5140, %v5319
    %v5321 = vand.u32 %v209, 4294901760
    %v5322 = vsub.f32 %v209, %v5321
    %5323 = vmatmul.f32.gmra.mxu0 %v5322
    %v5324 = vpop.f32.mrf.mxu0
    %v5325 = vadd.f32 %v5144, %v5324
    %v5326 = vand.u32 %v211, 4294901760
    %v5327 = vsub.f32 %v211, %v5326
    %5328 = vmatmul.f32.gmra.mxu0 %v5327
    %v5329 = vpop.f32.mrf.mxu0
    %v5330 = vadd.f32 %v5148, %v5329
    %v5331 = vand.u32 %v213, 4294901760
    %v5332 = vsub.f32 %v213, %v5331
    %5333 = vmatmul.f32.gmra.mxu0 %v5332
    %v5334 = vpop.f32.mrf.mxu0
    %v5335 = vadd.f32 %v5152, %v5334
    %v5336 = vand.u32 %v215, 4294901760
    %v5337 = vsub.f32 %v215, %v5336
    %5338 = vmatmul.f32.gmra.mxu0 %v5337
    %v5339 = vpop.f32.mrf.mxu0
    %v5340 = vadd.f32 %v5156, %v5339
    %v5341 = vand.u32 %v217, 4294901760
    %v5342 = vsub.f32 %v217, %v5341
    %5343 = vmatmul.f32.gmra.mxu0 %v5342
    %v5344 = vpop.f32.mrf.mxu0
    %v5345 = vadd.f32 %v5160, %v5344
    %v5346 = vand.u32 %v219, 4294901760
    %v5347 = vsub.f32 %v219, %v5346
    %5348 = vmatmul.f32.gmra.mxu0 %v5347
    %v5349 = vpop.f32.mrf.mxu0
    %v5350 = vadd.f32 %v5164, %v5349
    %v5351 = vand.u32 %v221, 4294901760
    %v5352 = vsub.f32 %v221, %v5351
    %5353 = vmatmul.f32.gmra.mxu0 %v5352
    %v5354 = vpop.f32.mrf.mxu0
    %v5355 = vadd.f32 %v5168, %v5354
    %v5356 = vand.u32 %v223, 4294901760
    %v5357 = vsub.f32 %v223, %v5356
    %5358 = vmatmul.f32.gmra.mxu0 %v5357
    %v5359 = vpop.f32.mrf.mxu0
    %v5360 = vadd.f32 %v5172, %v5359
    %v5361 = vand.u32 %v225, 4294901760
    %v5362 = vsub.f32 %v225, %v5361
    %5363 = vmatmul.f32.gmra.mxu0 %v5362
    %v5364 = vpop.f32.mrf.mxu0
    %v5365 = vadd.f32 %v5176, %v5364
    %v5366 = vand.u32 %v227, 4294901760
    %v5367 = vsub.f32 %v227, %v5366
    %5368 = vmatmul.f32.gmra.mxu0 %v5367
    %v5369 = vpop.f32.mrf.mxu0
    %v5370 = vadd.f32 %v5180, %v5369
    %v5371 = vand.u32 %v229, 4294901760
    %v5372 = vsub.f32 %v229, %v5371
    %5373 = vmatmul.f32.gmra.mxu0 %v5372
    %v5374 = vpop.f32.mrf.mxu0
    %v5375 = vadd.f32 %v5184, %v5374
    %v5376 = vand.u32 %v231, 4294901760
    %v5377 = vsub.f32 %v231, %v5376
    %5378 = vmatmul.f32.gmra.mxu0 %v5377
    %v5379 = vpop.f32.mrf.mxu0
    %v5380 = vadd.f32 %v5188, %v5379
    %v5381 = vand.u32 %v233, 4294901760
    %v5382 = vsub.f32 %v233, %v5381
    %5383 = vmatmul.f32.gmra.mxu0 %v5382
    %v5384 = vpop.f32.mrf.mxu0
    %v5385 = vadd.f32 %v5192, %v5384
    %v5386 = vand.u32 %v235, 4294901760
    %v5387 = vsub.f32 %v235, %v5386
    %5388 = vmatmul.f32.gmra.mxu0 %v5387
    %v5389 = vpop.f32.mrf.mxu0
    %v5390 = vadd.f32 %v5196, %v5389
    %v5391 = vand.u32 %v237, 4294901760
    %v5392 = vsub.f32 %v237, %v5391
    %5393 = vmatmul.f32.gmra.mxu0 %v5392
    %v5394 = vpop.f32.mrf.mxu0
    %v5395 = vadd.f32 %v5200, %v5394
    %v5396 = vand.u32 %v239, 4294901760
    %v5397 = vsub.f32 %v239, %v5396
    %5398 = vmatmul.f32.gmra.mxu0 %v5397
    %v5399 = vpop.f32.mrf.mxu0
    %v5400 = vadd.f32 %v5204, %v5399
    %v5401 = vand.u32 %v241, 4294901760
    %v5402 = vsub.f32 %v241, %v5401
    %5403 = vmatmul.f32.gmra.mxu0 %v5402
    %v5404 = vpop.f32.mrf.mxu0
    %v5405 = vadd.f32 %v5208, %v5404
    %v5406 = vand.u32 %v243, 4294901760
    %v5407 = vsub.f32 %v243, %v5406
    %5408 = vmatmul.f32.gmra.mxu0 %v5407
    %v5409 = vpop.f32.mrf.mxu0
    %v5410 = vadd.f32 %v5212, %v5409
    %v5411 = vand.u32 %v245, 4294901760
    %v5412 = vsub.f32 %v245, %v5411
    %5413 = vmatmul.f32.gmra.mxu0 %v5412
    %v5414 = vpop.f32.mrf.mxu0
    %v5415 = vadd.f32 %v5216, %v5414
    %v5416 = vand.u32 %v247, 4294901760
    %v5417 = vsub.f32 %v247, %v5416
    %5418 = vmatmul.f32.gmra.mxu0 %v5417
    %v5419 = vpop.f32.mrf.mxu0
    %v5420 = vadd.f32 %v5220, %v5419
    %v5421 = vand.u32 %v249, 4294901760
    %v5422 = vsub.f32 %v249, %v5421
    %5423 = vmatmul.f32.gmra.mxu0 %v5422
    %v5424 = vpop.f32.mrf.mxu0
    %v5425 = vadd.f32 %v5224, %v5424
    %v5426 = vand.u32 %v251, 4294901760
    %v5427 = vsub.f32 %v251, %v5426
    %5428 = vmatmul.f32.gmra.mxu0 %v5427
    %v5429 = vpop.f32.mrf.mxu0
    %v5430 = vadd.f32 %v5228, %v5429
    %v5431 = vand.u32 %v253, 4294901760
    %v5432 = vsub.f32 %v253, %v5431
    %5433 = vmatmul.f32.gmra.mxu0 %v5432
    %v5434 = vpop.f32.mrf.mxu0
    %v5435 = vadd.f32 %v5232, %v5434
    %v5436 = vand.u32 %v255, 4294901760
    %v5437 = vsub.f32 %v255, %v5436
    %5438 = vmatmul.f32.gmra.mxu0 %v5437
    %v5439 = vpop.f32.mrf.mxu0
    %v5440 = vadd.f32 %v5236, %v5439
    %v5441 = vand.u32 %v257, 4294901760
    %v5442 = vsub.f32 %v257, %v5441
    %5443 = vmatmul.f32.gmra.mxu0 %v5442
    %v5444 = vpop.f32.mrf.mxu0
    %v5445 = vadd.f32 %v5240, %v5444
    %v5446 = vand.u32 %v259, 4294901760
    %v5447 = vsub.f32 %v259, %v5446
    %5448 = vmatmul.f32.gmra.mxu0 %v5447
    %v5449 = vpop.f32.mrf.mxu0
    %v5450 = vadd.f32 %v5244, %v5449
    %v5451 = vand.u32 %v261, 4294901760
    %v5452 = vsub.f32 %v261, %v5451
    %5453 = vmatmul.f32.gmra.mxu0 %v5452
    %v5454 = vpop.f32.mrf.mxu0
    %v5455 = vadd.f32 %v5248, %v5454
    %v5456 = vand.u32 %v263, 4294901760
    %v5457 = vsub.f32 %v263, %v5456
    %5458 = vmatmul.f32.gmra.mxu0 %v5457
    %v5459 = vpop.f32.mrf.mxu0
    %v5460 = vadd.f32 %v5252, %v5459
    %v5461 = vand.u32 %v265, 4294901760
    %v5462 = vsub.f32 %v265, %v5461
    %5463 = vmatmul.f32.gmra.mxu0 %v5462
    %v5464 = vpop.f32.mrf.mxu0
    %v5465 = vadd.f32 %v5256, %v5464
    %5466 = vdwg.mxu0
    %v5467 = vand.u32 %v4567, 4294901760
    %5468 = vmatpush.msra.mxu0 %v5467
    %v5469 = vand.u32 %v4566, 4294901760
    %5470 = vmatpush.msra.mxu0 %v5469
    %v5471 = vand.u32 %v4565, 4294901760
    %5472 = vmatpush.msra.mxu0 %v5471
    %v5473 = vand.u32 %v4564, 4294901760
    %5474 = vmatpush.msra.mxu0 %v5473
    %v5475 = vand.u32 %v4563, 4294901760
    %5476 = vmatpush.msra.mxu0 %v5475
    %v5477 = vand.u32 %v4562, 4294901760
    %5478 = vmatpush.msra.mxu0 %v5477
    %v5479 = vand.u32 %v4561, 4294901760
    %5480 = vmatpush.msra.mxu0 %v5479
    %v5481 = vand.u32 %v4560, 4294901760
    %5482 = vmatpush.msra.mxu0 %v5481
    %v5483 = vand.u32 %v4559, 4294901760
    %5484 = vmatpush.msra.mxu0 %v5483
    %v5485 = vand.u32 %v4558, 4294901760
    %5486 = vmatpush.msra.mxu0 %v5485
    %v5487 = vand.u32 %v4557, 4294901760
    %5488 = vmatpush.msra.mxu0 %v5487
    %v5489 = vand.u32 %v4556, 4294901760
    %5490 = vmatpush.msra.mxu0 %v5489
    %v5491 = vand.u32 %v4555, 4294901760
    %5492 = vmatpush.msra.mxu0 %v5491
    %v5493 = vand.u32 %v4554, 4294901760
    %5494 = vmatpush.msra.mxu0 %v5493
    %v5495 = vand.u32 %v4553, 4294901760
    %5496 = vmatpush.msra.mxu0 %v5495
    %v5497 = vand.u32 %v4552, 4294901760
    %5498 = vmatpush.msra.mxu0 %v5497
    %v5499 = vand.u32 %v203, 4294901760
    %v5500 = vsub.f32 %v203, %v5499
    %v5501 = vand.u32 %v5500, 4294901760
    %5502 = vmatmul.f32.gmra.mxu0 %v5501
    %v5503 = vpop.f32.mrf.mxu0
    %v5504 = vadd.f32 %v5310, %v5503
    %v5505 = vand.u32 %v205, 4294901760
    %v5506 = vsub.f32 %v205, %v5505
    %v5507 = vand.u32 %v5506, 4294901760
    %5508 = vmatmul.f32.gmra.mxu0 %v5507
    %v5509 = vpop.f32.mrf.mxu0
    %v5510 = vadd.f32 %v5315, %v5509
    %v5511 = vand.u32 %v207, 4294901760
    %v5512 = vsub.f32 %v207, %v5511
    %v5513 = vand.u32 %v5512, 4294901760
    %5514 = vmatmul.f32.gmra.mxu0 %v5513
    %v5515 = vpop.f32.mrf.mxu0
    %v5516 = vadd.f32 %v5320, %v5515
    %v5517 = vand.u32 %v209, 4294901760
    %v5518 = vsub.f32 %v209, %v5517
    %v5519 = vand.u32 %v5518, 4294901760
    %5520 = vmatmul.f32.gmra.mxu0 %v5519
    %v5521 = vpop.f32.mrf.mxu0
    %v5522 = vadd.f32 %v5325, %v5521
    %v5523 = vand.u32 %v211, 4294901760
    %v5524 = vsub.f32 %v211, %v5523
    %v5525 = vand.u32 %v5524, 4294901760
    %5526 = vmatmul.f32.gmra.mxu0 %v5525
    %v5527 = vpop.f32.mrf.mxu0
    %v5528 = vadd.f32 %v5330, %v5527
    %v5529 = vand.u32 %v213, 4294901760
    %v5530 = vsub.f32 %v213, %v5529
    %v5531 = vand.u32 %v5530, 4294901760
    %5532 = vmatmul.f32.gmra.mxu0 %v5531
    %v5533 = vpop.f32.mrf.mxu0
    %v5534 = vadd.f32 %v5335, %v5533
    %v5535 = vand.u32 %v215, 4294901760
    %v5536 = vsub.f32 %v215, %v5535
    %v5537 = vand.u32 %v5536, 4294901760
    %5538 = vmatmul.f32.gmra.mxu0 %v5537
    %v5539 = vpop.f32.mrf.mxu0
    %v5540 = vadd.f32 %v5340, %v5539
    %v5541 = vand.u32 %v217, 4294901760
    %v5542 = vsub.f32 %v217, %v5541
    %v5543 = vand.u32 %v5542, 4294901760
    %5544 = vmatmul.f32.gmra.mxu0 %v5543
    %v5545 = vpop.f32.mrf.mxu0
    %v5546 = vadd.f32 %v5345, %v5545
    %v5547 = vand.u32 %v219, 4294901760
    %v5548 = vsub.f32 %v219, %v5547
    %v5549 = vand.u32 %v5548, 4294901760
    %5550 = vmatmul.f32.gmra.mxu0 %v5549
    %v5551 = vpop.f32.mrf.mxu0
    %v5552 = vadd.f32 %v5350, %v5551
    %v5553 = vand.u32 %v221, 4294901760
    %v5554 = vsub.f32 %v221, %v5553
    %v5555 = vand.u32 %v5554, 4294901760
    %5556 = vmatmul.f32.gmra.mxu0 %v5555
    %v5557 = vpop.f32.mrf.mxu0
    %v5558 = vadd.f32 %v5355, %v5557
    %v5559 = vand.u32 %v223, 4294901760
    %v5560 = vsub.f32 %v223, %v5559
    %v5561 = vand.u32 %v5560, 4294901760
    %5562 = vmatmul.f32.gmra.mxu0 %v5561
    %v5563 = vpop.f32.mrf.mxu0
    %v5564 = vadd.f32 %v5360, %v5563
    %v5565 = vand.u32 %v225, 4294901760
    %v5566 = vsub.f32 %v225, %v5565
    %v5567 = vand.u32 %v5566, 4294901760
    %5568 = vmatmul.f32.gmra.mxu0 %v5567
    %v5569 = vpop.f32.mrf.mxu0
    %v5570 = vadd.f32 %v5365, %v5569
    %v5571 = vand.u32 %v227, 4294901760
    %v5572 = vsub.f32 %v227, %v5571
    %v5573 = vand.u32 %v5572, 4294901760
    %5574 = vmatmul.f32.gmra.mxu0 %v5573
    %v5575 = vpop.f32.mrf.mxu0
    %v5576 = vadd.f32 %v5370, %v5575
    %v5577 = vand.u32 %v229, 4294901760
    %v5578 = vsub.f32 %v229, %v5577
    %v5579 = vand.u32 %v5578, 4294901760
    %5580 = vmatmul.f32.gmra.mxu0 %v5579
    %v5581 = vpop.f32.mrf.mxu0
    %v5582 = vadd.f32 %v5375, %v5581
    %v5583 = vand.u32 %v231, 4294901760
    %v5584 = vsub.f32 %v231, %v5583
    %v5585 = vand.u32 %v5584, 4294901760
    %5586 = vmatmul.f32.gmra.mxu0 %v5585
    %v5587 = vpop.f32.mrf.mxu0
    %v5588 = vadd.f32 %v5380, %v5587
    %v5589 = vand.u32 %v233, 4294901760
    %v5590 = vsub.f32 %v233, %v5589
    %v5591 = vand.u32 %v5590, 4294901760
    %5592 = vmatmul.f32.gmra.mxu0 %v5591
    %v5593 = vpop.f32.mrf.mxu0
    %v5594 = vadd.f32 %v5385, %v5593
    %v5595 = vand.u32 %v235, 4294901760
    %v5596 = vsub.f32 %v235, %v5595
    %v5597 = vand.u32 %v5596, 4294901760
    %5598 = vmatmul.f32.gmra.mxu0 %v5597
    %v5599 = vpop.f32.mrf.mxu0
    %v5600 = vadd.f32 %v5390, %v5599
    %v5601 = vand.u32 %v237, 4294901760
    %v5602 = vsub.f32 %v237, %v5601
    %v5603 = vand.u32 %v5602, 4294901760
    %5604 = vmatmul.f32.gmra.mxu0 %v5603
    %v5605 = vpop.f32.mrf.mxu0
    %v5606 = vadd.f32 %v5395, %v5605
    %v5607 = vand.u32 %v239, 4294901760
    %v5608 = vsub.f32 %v239, %v5607
    %v5609 = vand.u32 %v5608, 4294901760
    %5610 = vmatmul.f32.gmra.mxu0 %v5609
    %v5611 = vpop.f32.mrf.mxu0
    %v5612 = vadd.f32 %v5400, %v5611
    %v5613 = vand.u32 %v241, 4294901760
    %v5614 = vsub.f32 %v241, %v5613
    %v5615 = vand.u32 %v5614, 4294901760
    %5616 = vmatmul.f32.gmra.mxu0 %v5615
    %v5617 = vpop.f32.mrf.mxu0
    %v5618 = vadd.f32 %v5405, %v5617
    %v5619 = vand.u32 %v243, 4294901760
    %v5620 = vsub.f32 %v243, %v5619
    %v5621 = vand.u32 %v5620, 4294901760
    %5622 = vmatmul.f32.gmra.mxu0 %v5621
    %v5623 = vpop.f32.mrf.mxu0
    %v5624 = vadd.f32 %v5410, %v5623
    %v5625 = vand.u32 %v245, 4294901760
    %v5626 = vsub.f32 %v245, %v5625
    %v5627 = vand.u32 %v5626, 4294901760
    %5628 = vmatmul.f32.gmra.mxu0 %v5627
    %v5629 = vpop.f32.mrf.mxu0
    %v5630 = vadd.f32 %v5415, %v5629
    %v5631 = vand.u32 %v247, 4294901760
    %v5632 = vsub.f32 %v247, %v5631
    %v5633 = vand.u32 %v5632, 4294901760
    %5634 = vmatmul.f32.gmra.mxu0 %v5633
    %v5635 = vpop.f32.mrf.mxu0
    %v5636 = vadd.f32 %v5420, %v5635
    %v5637 = vand.u32 %v249, 4294901760
    %v5638 = vsub.f32 %v249, %v5637
    %v5639 = vand.u32 %v5638, 4294901760
    %5640 = vmatmul.f32.gmra.mxu0 %v5639
    %v5641 = vpop.f32.mrf.mxu0
    %v5642 = vadd.f32 %v5425, %v5641
    %v5643 = vand.u32 %v251, 4294901760
    %v5644 = vsub.f32 %v251, %v5643
    %v5645 = vand.u32 %v5644, 4294901760
    %5646 = vmatmul.f32.gmra.mxu0 %v5645
    %v5647 = vpop.f32.mrf.mxu0
    %v5648 = vadd.f32 %v5430, %v5647
    %v5649 = vand.u32 %v253, 4294901760
    %v5650 = vsub.f32 %v253, %v5649
    %v5651 = vand.u32 %v5650, 4294901760
    %5652 = vmatmul.f32.gmra.mxu0 %v5651
    %v5653 = vpop.f32.mrf.mxu0
    %v5654 = vadd.f32 %v5435, %v5653
    %v5655 = vand.u32 %v255, 4294901760
    %v5656 = vsub.f32 %v255, %v5655
    %v5657 = vand.u32 %v5656, 4294901760
    %5658 = vmatmul.f32.gmra.mxu0 %v5657
    %v5659 = vpop.f32.mrf.mxu0
    %v5660 = vadd.f32 %v5440, %v5659
    %v5661 = vand.u32 %v257, 4294901760
    %v5662 = vsub.f32 %v257, %v5661
    %v5663 = vand.u32 %v5662, 4294901760
    %5664 = vmatmul.f32.gmra.mxu0 %v5663
    %v5665 = vpop.f32.mrf.mxu0
    %v5666 = vadd.f32 %v5445, %v5665
    %v5667 = vand.u32 %v259, 4294901760
    %v5668 = vsub.f32 %v259, %v5667
    %v5669 = vand.u32 %v5668, 4294901760
    %5670 = vmatmul.f32.gmra.mxu0 %v5669
    %v5671 = vpop.f32.mrf.mxu0
    %v5672 = vadd.f32 %v5450, %v5671
    %v5673 = vand.u32 %v261, 4294901760
    %v5674 = vsub.f32 %v261, %v5673
    %v5675 = vand.u32 %v5674, 4294901760
    %5676 = vmatmul.f32.gmra.mxu0 %v5675
    %v5677 = vpop.f32.mrf.mxu0
    %v5678 = vadd.f32 %v5455, %v5677
    %v5679 = vand.u32 %v263, 4294901760
    %v5680 = vsub.f32 %v263, %v5679
    %v5681 = vand.u32 %v5680, 4294901760
    %5682 = vmatmul.f32.gmra.mxu0 %v5681
    %v5683 = vpop.f32.mrf.mxu0
    %v5684 = vadd.f32 %v5460, %v5683
    %v5685 = vand.u32 %v265, 4294901760
    %v5686 = vsub.f32 %v265, %v5685
    %v5687 = vand.u32 %v5686, 4294901760
    %5688 = vmatmul.f32.gmra.mxu0 %v5687
    %v5689 = vpop.f32.mrf.mxu0
    %v5690 = vadd.f32 %v5465, %v5689
    %5691 = vdwg.mxu0
    %v5692 = vand.u32 %v4567, 4294901760
    %v5693 = vsub.f32 %v4567, %v5692
    %v5694 = vand.u32 %v5693, 4294901760
    %5695 = vmatpush.msra.mxu0 %v5694
    %v5696 = vand.u32 %v4566, 4294901760
    %v5697 = vsub.f32 %v4566, %v5696
    %v5698 = vand.u32 %v5697, 4294901760
    %5699 = vmatpush.msra.mxu0 %v5698
    %v5700 = vand.u32 %v4565, 4294901760
    %v5701 = vsub.f32 %v4565, %v5700
    %v5702 = vand.u32 %v5701, 4294901760
    %5703 = vmatpush.msra.mxu0 %v5702
    %v5704 = vand.u32 %v4564, 4294901760
    %v5705 = vsub.f32 %v4564, %v5704
    %v5706 = vand.u32 %v5705, 4294901760
    %5707 = vmatpush.msra.mxu0 %v5706
    %v5708 = vand.u32 %v4563, 4294901760
    %v5709 = vsub.f32 %v4563, %v5708
    %v5710 = vand.u32 %v5709, 4294901760
    %5711 = vmatpush.msra.mxu0 %v5710
    %v5712 = vand.u32 %v4562, 4294901760
    %v5713 = vsub.f32 %v4562, %v5712
    %v5714 = vand.u32 %v5713, 4294901760
    %5715 = vmatpush.msra.mxu0 %v5714
    %v5716 = vand.u32 %v4561, 4294901760
    %v5717 = vsub.f32 %v4561, %v5716
    %v5718 = vand.u32 %v5717, 4294901760
    %5719 = vmatpush.msra.mxu0 %v5718
    %v5720 = vand.u32 %v4560, 4294901760
    %v5721 = vsub.f32 %v4560, %v5720
    %v5722 = vand.u32 %v5721, 4294901760
    %5723 = vmatpush.msra.mxu0 %v5722
    %v5724 = vand.u32 %v4559, 4294901760
    %v5725 = vsub.f32 %v4559, %v5724
    %v5726 = vand.u32 %v5725, 4294901760
    %5727 = vmatpush.msra.mxu0 %v5726
    %v5728 = vand.u32 %v4558, 4294901760
    %v5729 = vsub.f32 %v4558, %v5728
    %v5730 = vand.u32 %v5729, 4294901760
    %5731 = vmatpush.msra.mxu0 %v5730
    %v5732 = vand.u32 %v4557, 4294901760
    %v5733 = vsub.f32 %v4557, %v5732
    %v5734 = vand.u32 %v5733, 4294901760
    %5735 = vmatpush.msra.mxu0 %v5734
    %v5736 = vand.u32 %v4556, 4294901760
    %v5737 = vsub.f32 %v4556, %v5736
    %v5738 = vand.u32 %v5737, 4294901760
    %5739 = vmatpush.msra.mxu0 %v5738
    %v5740 = vand.u32 %v4555, 4294901760
    %v5741 = vsub.f32 %v4555, %v5740
    %v5742 = vand.u32 %v5741, 4294901760
    %5743 = vmatpush.msra.mxu0 %v5742
    %v5744 = vand.u32 %v4554, 4294901760
    %v5745 = vsub.f32 %v4554, %v5744
    %v5746 = vand.u32 %v5745, 4294901760
    %5747 = vmatpush.msra.mxu0 %v5746
    %v5748 = vand.u32 %v4553, 4294901760
    %v5749 = vsub.f32 %v4553, %v5748
    %v5750 = vand.u32 %v5749, 4294901760
    %5751 = vmatpush.msra.mxu0 %v5750
    %v5752 = vand.u32 %v4552, 4294901760
    %v5753 = vsub.f32 %v4552, %v5752
    %v5754 = vand.u32 %v5753, 4294901760
    %5755 = vmatpush.msra.mxu0 %v5754
    %v5756 = vand.u32 %v203, 4294901760
    %5757 = vmatmul.f32.gmra.mxu0 %v5756
    %v5758 = vpop.f32.mrf.mxu0
    %v5759 = vadd.f32 %v5504, %v5758
    %v5760 = vand.u32 %v205, 4294901760
    %5761 = vmatmul.f32.gmra.mxu0 %v5760
    %v5762 = vpop.f32.mrf.mxu0
    %v5763 = vadd.f32 %v5510, %v5762
    %v5764 = vand.u32 %v207, 4294901760
    %5765 = vmatmul.f32.gmra.mxu0 %v5764
    %v5766 = vpop.f32.mrf.mxu0
    %v5767 = vadd.f32 %v5516, %v5766
    %v5768 = vand.u32 %v209, 4294901760
    %5769 = vmatmul.f32.gmra.mxu0 %v5768
    %v5770 = vpop.f32.mrf.mxu0
    %v5771 = vadd.f32 %v5522, %v5770
    %v5772 = vand.u32 %v211, 4294901760
    %5773 = vmatmul.f32.gmra.mxu0 %v5772
    %v5774 = vpop.f32.mrf.mxu0
    %v5775 = vadd.f32 %v5528, %v5774
    %v5776 = vand.u32 %v213, 4294901760
    %5777 = vmatmul.f32.gmra.mxu0 %v5776
    %v5778 = vpop.f32.mrf.mxu0
    %v5779 = vadd.f32 %v5534, %v5778
    %v5780 = vand.u32 %v215, 4294901760
    %5781 = vmatmul.f32.gmra.mxu0 %v5780
    %v5782 = vpop.f32.mrf.mxu0
    %v5783 = vadd.f32 %v5540, %v5782
    %v5784 = vand.u32 %v217, 4294901760
    %5785 = vmatmul.f32.gmra.mxu0 %v5784
    %v5786 = vpop.f32.mrf.mxu0
    %v5787 = vadd.f32 %v5546, %v5786
    %v5788 = vand.u32 %v219, 4294901760
    %5789 = vmatmul.f32.gmra.mxu0 %v5788
    %v5790 = vpop.f32.mrf.mxu0
    %v5791 = vadd.f32 %v5552, %v5790
    %v5792 = vand.u32 %v221, 4294901760
    %5793 = vmatmul.f32.gmra.mxu0 %v5792
    %v5794 = vpop.f32.mrf.mxu0
    %v5795 = vadd.f32 %v5558, %v5794
    %v5796 = vand.u32 %v223, 4294901760
    %5797 = vmatmul.f32.gmra.mxu0 %v5796
    %v5798 = vpop.f32.mrf.mxu0
    %v5799 = vadd.f32 %v5564, %v5798
    %v5800 = vand.u32 %v225, 4294901760
    %5801 = vmatmul.f32.gmra.mxu0 %v5800
    %v5802 = vpop.f32.mrf.mxu0
    %v5803 = vadd.f32 %v5570, %v5802
    %v5804 = vand.u32 %v227, 4294901760
    %5805 = vmatmul.f32.gmra.mxu0 %v5804
    %v5806 = vpop.f32.mrf.mxu0
    %v5807 = vadd.f32 %v5576, %v5806
    %v5808 = vand.u32 %v229, 4294901760
    %5809 = vmatmul.f32.gmra.mxu0 %v5808
    %v5810 = vpop.f32.mrf.mxu0
    %v5811 = vadd.f32 %v5582, %v5810
    %v5812 = vand.u32 %v231, 4294901760
    %5813 = vmatmul.f32.gmra.mxu0 %v5812
    %v5814 = vpop.f32.mrf.mxu0
    %v5815 = vadd.f32 %v5588, %v5814
    %v5816 = vand.u32 %v233, 4294901760
    %5817 = vmatmul.f32.gmra.mxu0 %v5816
    %v5818 = vpop.f32.mrf.mxu0
    %v5819 = vadd.f32 %v5594, %v5818
    %v5820 = vand.u32 %v235, 4294901760
    %5821 = vmatmul.f32.gmra.mxu0 %v5820
    %v5822 = vpop.f32.mrf.mxu0
    %v5823 = vadd.f32 %v5600, %v5822
    %v5824 = vand.u32 %v237, 4294901760
    %5825 = vmatmul.f32.gmra.mxu0 %v5824
    %v5826 = vpop.f32.mrf.mxu0
    %v5827 = vadd.f32 %v5606, %v5826
    %v5828 = vand.u32 %v239, 4294901760
    %5829 = vmatmul.f32.gmra.mxu0 %v5828
    %v5830 = vpop.f32.mrf.mxu0
    %v5831 = vadd.f32 %v5612, %v5830
    %v5832 = vand.u32 %v241, 4294901760
    %5833 = vmatmul.f32.gmra.mxu0 %v5832
    %v5834 = vpop.f32.mrf.mxu0
    %v5835 = vadd.f32 %v5618, %v5834
    %v5836 = vand.u32 %v243, 4294901760
    %5837 = vmatmul.f32.gmra.mxu0 %v5836
    %v5838 = vpop.f32.mrf.mxu0
    %v5839 = vadd.f32 %v5624, %v5838
    %v5840 = vand.u32 %v245, 4294901760
    %5841 = vmatmul.f32.gmra.mxu0 %v5840
    %v5842 = vpop.f32.mrf.mxu0
    %v5843 = vadd.f32 %v5630, %v5842
    %v5844 = vand.u32 %v247, 4294901760
    %5845 = vmatmul.f32.gmra.mxu0 %v5844
    %v5846 = vpop.f32.mrf.mxu0
    %v5847 = vadd.f32 %v5636, %v5846
    %v5848 = vand.u32 %v249, 4294901760
    %5849 = vmatmul.f32.gmra.mxu0 %v5848
    %v5850 = vpop.f32.mrf.mxu0
    %v5851 = vadd.f32 %v5642, %v5850
    %v5852 = vand.u32 %v251, 4294901760
    %5853 = vmatmul.f32.gmra.mxu0 %v5852
    %v5854 = vpop.f32.mrf.mxu0
    %v5855 = vadd.f32 %v5648, %v5854
    %v5856 = vand.u32 %v253, 4294901760
    %5857 = vmatmul.f32.gmra.mxu0 %v5856
    %v5858 = vpop.f32.mrf.mxu0
    %v5859 = vadd.f32 %v5654, %v5858
    %v5860 = vand.u32 %v255, 4294901760
    %5861 = vmatmul.f32.gmra.mxu0 %v5860
    %v5862 = vpop.f32.mrf.mxu0
    %v5863 = vadd.f32 %v5660, %v5862
    %v5864 = vand.u32 %v257, 4294901760
    %5865 = vmatmul.f32.gmra.mxu0 %v5864
    %v5866 = vpop.f32.mrf.mxu0
    %v5867 = vadd.f32 %v5666, %v5866
    %v5868 = vand.u32 %v259, 4294901760
    %5869 = vmatmul.f32.gmra.mxu0 %v5868
    %v5870 = vpop.f32.mrf.mxu0
    %v5871 = vadd.f32 %v5672, %v5870
    %v5872 = vand.u32 %v261, 4294901760
    %5873 = vmatmul.f32.gmra.mxu0 %v5872
    %v5874 = vpop.f32.mrf.mxu0
    %v5875 = vadd.f32 %v5678, %v5874
    %v5876 = vand.u32 %v263, 4294901760
    %5877 = vmatmul.f32.gmra.mxu0 %v5876
    %v5878 = vpop.f32.mrf.mxu0
    %v5879 = vadd.f32 %v5684, %v5878
    %v5880 = vand.u32 %v265, 4294901760
    %5881 = vmatmul.f32.gmra.mxu0 %v5880
    %v5882 = vpop.f32.mrf.mxu0
    %v5883 = vadd.f32 %v5690, %v5882
    %5884 = vdwg.mxu0
    %v5885 = vand.u32 %v4567, 4294901760
    %5886 = vmatpush.msra.mxu0 %v5885
    %v5887 = vand.u32 %v4566, 4294901760
    %5888 = vmatpush.msra.mxu0 %v5887
    %v5889 = vand.u32 %v4565, 4294901760
    %5890 = vmatpush.msra.mxu0 %v5889
    %v5891 = vand.u32 %v4564, 4294901760
    %5892 = vmatpush.msra.mxu0 %v5891
    %v5893 = vand.u32 %v4563, 4294901760
    %5894 = vmatpush.msra.mxu0 %v5893
    %v5895 = vand.u32 %v4562, 4294901760
    %5896 = vmatpush.msra.mxu0 %v5895
    %v5897 = vand.u32 %v4561, 4294901760
    %5898 = vmatpush.msra.mxu0 %v5897
    %v5899 = vand.u32 %v4560, 4294901760
    %5900 = vmatpush.msra.mxu0 %v5899
    %v5901 = vand.u32 %v4559, 4294901760
    %5902 = vmatpush.msra.mxu0 %v5901
    %v5903 = vand.u32 %v4558, 4294901760
    %5904 = vmatpush.msra.mxu0 %v5903
    %v5905 = vand.u32 %v4557, 4294901760
    %5906 = vmatpush.msra.mxu0 %v5905
    %v5907 = vand.u32 %v4556, 4294901760
    %5908 = vmatpush.msra.mxu0 %v5907
    %v5909 = vand.u32 %v4555, 4294901760
    %5910 = vmatpush.msra.mxu0 %v5909
    %v5911 = vand.u32 %v4554, 4294901760
    %5912 = vmatpush.msra.mxu0 %v5911
    %v5913 = vand.u32 %v4553, 4294901760
    %5914 = vmatpush.msra.mxu0 %v5913
    %v5915 = vand.u32 %v4552, 4294901760
    %5916 = vmatpush.msra.mxu0 %v5915
    %v5917 = vand.u32 %v203, 4294901760
    %5918 = vmatmul.f32.gmra.mxu0 %v5917
    %v5919 = vpop.f32.mrf.mxu0
    %v5920 = vadd.f32 %v5759, %v5919
    %v5921 = vand.u32 %v205, 4294901760
    %5922 = vmatmul.f32.gmra.mxu0 %v5921
    %v5923 = vpop.f32.mrf.mxu0
    %v5924 = vadd.f32 %v5763, %v5923
    %v5925 = vand.u32 %v207, 4294901760
    %5926 = vmatmul.f32.gmra.mxu0 %v5925
    %v5927 = vpop.f32.mrf.mxu0
    %v5928 = vadd.f32 %v5767, %v5927
    %v5929 = vand.u32 %v209, 4294901760
    %5930 = vmatmul.f32.gmra.mxu0 %v5929
    %v5931 = vpop.f32.mrf.mxu0
    %v5932 = vadd.f32 %v5771, %v5931
    %v5933 = vand.u32 %v211, 4294901760
    %5934 = vmatmul.f32.gmra.mxu0 %v5933
    %v5935 = vpop.f32.mrf.mxu0
    %v5936 = vadd.f32 %v5775, %v5935
    %v5937 = vand.u32 %v213, 4294901760
    %5938 = vmatmul.f32.gmra.mxu0 %v5937
    %v5939 = vpop.f32.mrf.mxu0
    %v5940 = vadd.f32 %v5779, %v5939
    %v5941 = vand.u32 %v215, 4294901760
    %5942 = vmatmul.f32.gmra.mxu0 %v5941
    %v5943 = vpop.f32.mrf.mxu0
    %v5944 = vadd.f32 %v5783, %v5943
    %v5945 = vand.u32 %v217, 4294901760
    %5946 = vmatmul.f32.gmra.mxu0 %v5945
    %v5947 = vpop.f32.mrf.mxu0
    %v5948 = vadd.f32 %v5787, %v5947
    %v5949 = vand.u32 %v219, 4294901760
    %5950 = vmatmul.f32.gmra.mxu0 %v5949
    %v5951 = vpop.f32.mrf.mxu0
    %v5952 = vadd.f32 %v5791, %v5951
    %v5953 = vand.u32 %v221, 4294901760
    %5954 = vmatmul.f32.gmra.mxu0 %v5953
    %v5955 = vpop.f32.mrf.mxu0
    %v5956 = vadd.f32 %v5795, %v5955
    %v5957 = vand.u32 %v223, 4294901760
    %5958 = vmatmul.f32.gmra.mxu0 %v5957
    %v5959 = vpop.f32.mrf.mxu0
    %v5960 = vadd.f32 %v5799, %v5959
    %v5961 = vand.u32 %v225, 4294901760
    %5962 = vmatmul.f32.gmra.mxu0 %v5961
    %v5963 = vpop.f32.mrf.mxu0
    %v5964 = vadd.f32 %v5803, %v5963
    %v5965 = vand.u32 %v227, 4294901760
    %5966 = vmatmul.f32.gmra.mxu0 %v5965
    %v5967 = vpop.f32.mrf.mxu0
    %v5968 = vadd.f32 %v5807, %v5967
    %v5969 = vand.u32 %v229, 4294901760
    %5970 = vmatmul.f32.gmra.mxu0 %v5969
    %v5971 = vpop.f32.mrf.mxu0
    %v5972 = vadd.f32 %v5811, %v5971
    %v5973 = vand.u32 %v231, 4294901760
    %5974 = vmatmul.f32.gmra.mxu0 %v5973
    %v5975 = vpop.f32.mrf.mxu0
    %v5976 = vadd.f32 %v5815, %v5975
    %v5977 = vand.u32 %v233, 4294901760
    %5978 = vmatmul.f32.gmra.mxu0 %v5977
    %v5979 = vpop.f32.mrf.mxu0
    %v5980 = vadd.f32 %v5819, %v5979
    %v5981 = vand.u32 %v235, 4294901760
    %5982 = vmatmul.f32.gmra.mxu0 %v5981
    %v5983 = vpop.f32.mrf.mxu0
    %v5984 = vadd.f32 %v5823, %v5983
    %v5985 = vand.u32 %v237, 4294901760
    %5986 = vmatmul.f32.gmra.mxu0 %v5985
    %v5987 = vpop.f32.mrf.mxu0
    %v5988 = vadd.f32 %v5827, %v5987
    %v5989 = vand.u32 %v239, 4294901760
    %5990 = vmatmul.f32.gmra.mxu0 %v5989
    %v5991 = vpop.f32.mrf.mxu0
    %v5992 = vadd.f32 %v5831, %v5991
    %v5993 = vand.u32 %v241, 4294901760
    %5994 = vmatmul.f32.gmra.mxu0 %v5993
    %v5995 = vpop.f32.mrf.mxu0
    %v5996 = vadd.f32 %v5835, %v5995
    %v5997 = vand.u32 %v243, 4294901760
    %5998 = vmatmul.f32.gmra.mxu0 %v5997
    %v5999 = vpop.f32.mrf.mxu0
    %v6000 = vadd.f32 %v5839, %v5999
    %v6001 = vand.u32 %v245, 4294901760
    %6002 = vmatmul.f32.gmra.mxu0 %v6001
    %v6003 = vpop.f32.mrf.mxu0
    %v6004 = vadd.f32 %v5843, %v6003
    %v6005 = vand.u32 %v247, 4294901760
    %6006 = vmatmul.f32.gmra.mxu0 %v6005
    %v6007 = vpop.f32.mrf.mxu0
    %v6008 = vadd.f32 %v5847, %v6007
    %v6009 = vand.u32 %v249, 4294901760
    %6010 = vmatmul.f32.gmra.mxu0 %v6009
    %v6011 = vpop.f32.mrf.mxu0
    %v6012 = vadd.f32 %v5851, %v6011
    %v6013 = vand.u32 %v251, 4294901760
    %6014 = vmatmul.f32.gmra.mxu0 %v6013
    %v6015 = vpop.f32.mrf.mxu0
    %v6016 = vadd.f32 %v5855, %v6015
    %v6017 = vand.u32 %v253, 4294901760
    %6018 = vmatmul.f32.gmra.mxu0 %v6017
    %v6019 = vpop.f32.mrf.mxu0
    %v6020 = vadd.f32 %v5859, %v6019
    %v6021 = vand.u32 %v255, 4294901760
    %6022 = vmatmul.f32.gmra.mxu0 %v6021
    %v6023 = vpop.f32.mrf.mxu0
    %v6024 = vadd.f32 %v5863, %v6023
    %v6025 = vand.u32 %v257, 4294901760
    %6026 = vmatmul.f32.gmra.mxu0 %v6025
    %v6027 = vpop.f32.mrf.mxu0
    %v6028 = vadd.f32 %v5867, %v6027
    %v6029 = vand.u32 %v259, 4294901760
    %6030 = vmatmul.f32.gmra.mxu0 %v6029
    %v6031 = vpop.f32.mrf.mxu0
    %v6032 = vadd.f32 %v5871, %v6031
    %v6033 = vand.u32 %v261, 4294901760
    %6034 = vmatmul.f32.gmra.mxu0 %v6033
    %v6035 = vpop.f32.mrf.mxu0
    %v6036 = vadd.f32 %v5875, %v6035
    %v6037 = vand.u32 %v263, 4294901760
    %6038 = vmatmul.f32.gmra.mxu0 %v6037
    %v6039 = vpop.f32.mrf.mxu0
    %v6040 = vadd.f32 %v5879, %v6039
    %v6041 = vand.u32 %v265, 4294901760
    %6042 = vmatmul.f32.gmra.mxu0 %v6041
    %v6043 = vpop.f32.mrf.mxu0
    %v6044 = vadd.f32 %v5883, %v6043
    %6045 = vdwg.mxu0
    %v6046 = vand.u32 %v4583, 4294901760
    %6047 = vmatpush.msra.mxu0 %v6046
    %v6048 = vand.u32 %v4582, 4294901760
    %6049 = vmatpush.msra.mxu0 %v6048
    %v6050 = vand.u32 %v4581, 4294901760
    %6051 = vmatpush.msra.mxu0 %v6050
    %v6052 = vand.u32 %v4580, 4294901760
    %6053 = vmatpush.msra.mxu0 %v6052
    %v6054 = vand.u32 %v4579, 4294901760
    %6055 = vmatpush.msra.mxu0 %v6054
    %v6056 = vand.u32 %v4578, 4294901760
    %6057 = vmatpush.msra.mxu0 %v6056
    %v6058 = vand.u32 %v4577, 4294901760
    %6059 = vmatpush.msra.mxu0 %v6058
    %v6060 = vand.u32 %v4576, 4294901760
    %6061 = vmatpush.msra.mxu0 %v6060
    %v6062 = vand.u32 %v4575, 4294901760
    %6063 = vmatpush.msra.mxu0 %v6062
    %v6064 = vand.u32 %v4574, 4294901760
    %6065 = vmatpush.msra.mxu0 %v6064
    %v6066 = vand.u32 %v4573, 4294901760
    %6067 = vmatpush.msra.mxu0 %v6066
    %v6068 = vand.u32 %v4572, 4294901760
    %6069 = vmatpush.msra.mxu0 %v6068
    %v6070 = vand.u32 %v4571, 4294901760
    %6071 = vmatpush.msra.mxu0 %v6070
    %v6072 = vand.u32 %v4570, 4294901760
    %6073 = vmatpush.msra.mxu0 %v6072
    %v6074 = vand.u32 %v4569, 4294901760
    %6075 = vmatpush.msra.mxu0 %v6074
    %v6076 = vand.u32 %v4568, 4294901760
    %6077 = vmatpush.msra.mxu0 %v6076
    %v6078 = vand.u32 %v204, 4294901760
    %v6079 = vsub.f32 %v204, %v6078
    %v6080 = vand.u32 %v6079, 4294901760
    %v6081 = vsub.f32 %v6079, %v6080
    %v6082 = vand.u32 %v6081, 4294901760
    %6083 = vmatmul.f32.gmra.mxu0 %v6082
    %v6084 = vpop.f32.mrf.mxu0
    %v6085 = vadd.f32 %v5920, %v6084
    %v6086 = vand.u32 %v206, 4294901760
    %v6087 = vsub.f32 %v206, %v6086
    %v6088 = vand.u32 %v6087, 4294901760
    %v6089 = vsub.f32 %v6087, %v6088
    %v6090 = vand.u32 %v6089, 4294901760
    %6091 = vmatmul.f32.gmra.mxu0 %v6090
    %v6092 = vpop.f32.mrf.mxu0
    %v6093 = vadd.f32 %v5924, %v6092
    %v6094 = vand.u32 %v208, 4294901760
    %v6095 = vsub.f32 %v208, %v6094
    %v6096 = vand.u32 %v6095, 4294901760
    %v6097 = vsub.f32 %v6095, %v6096
    %v6098 = vand.u32 %v6097, 4294901760
    %6099 = vmatmul.f32.gmra.mxu0 %v6098
    %v6100 = vpop.f32.mrf.mxu0
    %v6101 = vadd.f32 %v5928, %v6100
    %v6102 = vand.u32 %v210, 4294901760
    %v6103 = vsub.f32 %v210, %v6102
    %v6104 = vand.u32 %v6103, 4294901760
    %v6105 = vsub.f32 %v6103, %v6104
    %v6106 = vand.u32 %v6105, 4294901760
    %6107 = vmatmul.f32.gmra.mxu0 %v6106
    %v6108 = vpop.f32.mrf.mxu0
    %v6109 = vadd.f32 %v5932, %v6108
    %v6110 = vand.u32 %v212, 4294901760
    %v6111 = vsub.f32 %v212, %v6110
    %v6112 = vand.u32 %v6111, 4294901760
    %v6113 = vsub.f32 %v6111, %v6112
    %v6114 = vand.u32 %v6113, 4294901760
    %6115 = vmatmul.f32.gmra.mxu0 %v6114
    %v6116 = vpop.f32.mrf.mxu0
    %v6117 = vadd.f32 %v5936, %v6116
    %v6118 = vand.u32 %v214, 4294901760
    %v6119 = vsub.f32 %v214, %v6118
    %v6120 = vand.u32 %v6119, 4294901760
    %v6121 = vsub.f32 %v6119, %v6120
    %v6122 = vand.u32 %v6121, 4294901760
    %6123 = vmatmul.f32.gmra.mxu0 %v6122
    %v6124 = vpop.f32.mrf.mxu0
    %v6125 = vadd.f32 %v5940, %v6124
    %v6126 = vand.u32 %v216, 4294901760
    %v6127 = vsub.f32 %v216, %v6126
    %v6128 = vand.u32 %v6127, 4294901760
    %v6129 = vsub.f32 %v6127, %v6128
    %v6130 = vand.u32 %v6129, 4294901760
    %6131 = vmatmul.f32.gmra.mxu0 %v6130
    %v6132 = vpop.f32.mrf.mxu0
    %v6133 = vadd.f32 %v5944, %v6132
    %v6134 = vand.u32 %v218, 4294901760
    %v6135 = vsub.f32 %v218, %v6134
    %v6136 = vand.u32 %v6135, 4294901760
    %v6137 = vsub.f32 %v6135, %v6136
    %v6138 = vand.u32 %v6137, 4294901760
    %6139 = vmatmul.f32.gmra.mxu0 %v6138
    %v6140 = vpop.f32.mrf.mxu0
    %v6141 = vadd.f32 %v5948, %v6140
    %v6142 = vand.u32 %v220, 4294901760
    %v6143 = vsub.f32 %v220, %v6142
    %v6144 = vand.u32 %v6143, 4294901760
    %v6145 = vsub.f32 %v6143, %v6144
    %v6146 = vand.u32 %v6145, 4294901760
    %6147 = vmatmul.f32.gmra.mxu0 %v6146
    %v6148 = vpop.f32.mrf.mxu0
    %v6149 = vadd.f32 %v5952, %v6148
    %v6150 = vand.u32 %v222, 4294901760
    %v6151 = vsub.f32 %v222, %v6150
    %v6152 = vand.u32 %v6151, 4294901760
    %v6153 = vsub.f32 %v6151, %v6152
    %v6154 = vand.u32 %v6153, 4294901760
    %6155 = vmatmul.f32.gmra.mxu0 %v6154
    %v6156 = vpop.f32.mrf.mxu0
    %v6157 = vadd.f32 %v5956, %v6156
    %v6158 = vand.u32 %v224, 4294901760
    %v6159 = vsub.f32 %v224, %v6158
    %v6160 = vand.u32 %v6159, 4294901760
    %v6161 = vsub.f32 %v6159, %v6160
    %v6162 = vand.u32 %v6161, 4294901760
    %6163 = vmatmul.f32.gmra.mxu0 %v6162
    %v6164 = vpop.f32.mrf.mxu0
    %v6165 = vadd.f32 %v5960, %v6164
    %v6166 = vand.u32 %v226, 4294901760
    %v6167 = vsub.f32 %v226, %v6166
    %v6168 = vand.u32 %v6167, 4294901760
    %v6169 = vsub.f32 %v6167, %v6168
    %v6170 = vand.u32 %v6169, 4294901760
    %6171 = vmatmul.f32.gmra.mxu0 %v6170
    %v6172 = vpop.f32.mrf.mxu0
    %v6173 = vadd.f32 %v5964, %v6172
    %v6174 = vand.u32 %v228, 4294901760
    %v6175 = vsub.f32 %v228, %v6174
    %v6176 = vand.u32 %v6175, 4294901760
    %v6177 = vsub.f32 %v6175, %v6176
    %v6178 = vand.u32 %v6177, 4294901760
    %6179 = vmatmul.f32.gmra.mxu0 %v6178
    %v6180 = vpop.f32.mrf.mxu0
    %v6181 = vadd.f32 %v5968, %v6180
    %v6182 = vand.u32 %v230, 4294901760
    %v6183 = vsub.f32 %v230, %v6182
    %v6184 = vand.u32 %v6183, 4294901760
    %v6185 = vsub.f32 %v6183, %v6184
    %v6186 = vand.u32 %v6185, 4294901760
    %6187 = vmatmul.f32.gmra.mxu0 %v6186
    %v6188 = vpop.f32.mrf.mxu0
    %v6189 = vadd.f32 %v5972, %v6188
    %v6190 = vand.u32 %v232, 4294901760
    %v6191 = vsub.f32 %v232, %v6190
    %v6192 = vand.u32 %v6191, 4294901760
    %v6193 = vsub.f32 %v6191, %v6192
    %v6194 = vand.u32 %v6193, 4294901760
    %6195 = vmatmul.f32.gmra.mxu0 %v6194
    %v6196 = vpop.f32.mrf.mxu0
    %v6197 = vadd.f32 %v5976, %v6196
    %v6198 = vand.u32 %v234, 4294901760
    %v6199 = vsub.f32 %v234, %v6198
    %v6200 = vand.u32 %v6199, 4294901760
    %v6201 = vsub.f32 %v6199, %v6200
    %v6202 = vand.u32 %v6201, 4294901760
    %6203 = vmatmul.f32.gmra.mxu0 %v6202
    %v6204 = vpop.f32.mrf.mxu0
    %v6205 = vadd.f32 %v5980, %v6204
    %v6206 = vand.u32 %v236, 4294901760
    %v6207 = vsub.f32 %v236, %v6206
    %v6208 = vand.u32 %v6207, 4294901760
    %v6209 = vsub.f32 %v6207, %v6208
    %v6210 = vand.u32 %v6209, 4294901760
    %6211 = vmatmul.f32.gmra.mxu0 %v6210
    %v6212 = vpop.f32.mrf.mxu0
    %v6213 = vadd.f32 %v5984, %v6212
    %v6214 = vand.u32 %v238, 4294901760
    %v6215 = vsub.f32 %v238, %v6214
    %v6216 = vand.u32 %v6215, 4294901760
    %v6217 = vsub.f32 %v6215, %v6216
    %v6218 = vand.u32 %v6217, 4294901760
    %6219 = vmatmul.f32.gmra.mxu0 %v6218
    %v6220 = vpop.f32.mrf.mxu0
    %v6221 = vadd.f32 %v5988, %v6220
    %v6222 = vand.u32 %v240, 4294901760
    %v6223 = vsub.f32 %v240, %v6222
    %v6224 = vand.u32 %v6223, 4294901760
    %v6225 = vsub.f32 %v6223, %v6224
    %v6226 = vand.u32 %v6225, 4294901760
    %6227 = vmatmul.f32.gmra.mxu0 %v6226
    %v6228 = vpop.f32.mrf.mxu0
    %v6229 = vadd.f32 %v5992, %v6228
    %v6230 = vand.u32 %v242, 4294901760
    %v6231 = vsub.f32 %v242, %v6230
    %v6232 = vand.u32 %v6231, 4294901760
    %v6233 = vsub.f32 %v6231, %v6232
    %v6234 = vand.u32 %v6233, 4294901760
    %6235 = vmatmul.f32.gmra.mxu0 %v6234
    %v6236 = vpop.f32.mrf.mxu0
    %v6237 = vadd.f32 %v5996, %v6236
    %v6238 = vand.u32 %v244, 4294901760
    %v6239 = vsub.f32 %v244, %v6238
    %v6240 = vand.u32 %v6239, 4294901760
    %v6241 = vsub.f32 %v6239, %v6240
    %v6242 = vand.u32 %v6241, 4294901760
    %6243 = vmatmul.f32.gmra.mxu0 %v6242
    %v6244 = vpop.f32.mrf.mxu0
    %v6245 = vadd.f32 %v6000, %v6244
    %v6246 = vand.u32 %v246, 4294901760
    %v6247 = vsub.f32 %v246, %v6246
    %v6248 = vand.u32 %v6247, 4294901760
    %v6249 = vsub.f32 %v6247, %v6248
    %v6250 = vand.u32 %v6249, 4294901760
    %6251 = vmatmul.f32.gmra.mxu0 %v6250
    %v6252 = vpop.f32.mrf.mxu0
    %v6253 = vadd.f32 %v6004, %v6252
    %v6254 = vand.u32 %v248, 4294901760
    %v6255 = vsub.f32 %v248, %v6254
    %v6256 = vand.u32 %v6255, 4294901760
    %v6257 = vsub.f32 %v6255, %v6256
    %v6258 = vand.u32 %v6257, 4294901760
    %6259 = vmatmul.f32.gmra.mxu0 %v6258
    %v6260 = vpop.f32.mrf.mxu0
    %v6261 = vadd.f32 %v6008, %v6260
    %v6262 = vand.u32 %v250, 4294901760
    %v6263 = vsub.f32 %v250, %v6262
    %v6264 = vand.u32 %v6263, 4294901760
    %v6265 = vsub.f32 %v6263, %v6264
    %v6266 = vand.u32 %v6265, 4294901760
    %6267 = vmatmul.f32.gmra.mxu0 %v6266
    %v6268 = vpop.f32.mrf.mxu0
    %v6269 = vadd.f32 %v6012, %v6268
    %v6270 = vand.u32 %v252, 4294901760
    %v6271 = vsub.f32 %v252, %v6270
    %v6272 = vand.u32 %v6271, 4294901760
    %v6273 = vsub.f32 %v6271, %v6272
    %v6274 = vand.u32 %v6273, 4294901760
    %6275 = vmatmul.f32.gmra.mxu0 %v6274
    %v6276 = vpop.f32.mrf.mxu0
    %v6277 = vadd.f32 %v6016, %v6276
    %v6278 = vand.u32 %v254, 4294901760
    %v6279 = vsub.f32 %v254, %v6278
    %v6280 = vand.u32 %v6279, 4294901760
    %v6281 = vsub.f32 %v6279, %v6280
    %v6282 = vand.u32 %v6281, 4294901760
    %6283 = vmatmul.f32.gmra.mxu0 %v6282
    %v6284 = vpop.f32.mrf.mxu0
    %v6285 = vadd.f32 %v6020, %v6284
    %v6286 = vand.u32 %v256, 4294901760
    %v6287 = vsub.f32 %v256, %v6286
    %v6288 = vand.u32 %v6287, 4294901760
    %v6289 = vsub.f32 %v6287, %v6288
    %v6290 = vand.u32 %v6289, 4294901760
    %6291 = vmatmul.f32.gmra.mxu0 %v6290
    %v6292 = vpop.f32.mrf.mxu0
    %v6293 = vadd.f32 %v6024, %v6292
    %v6294 = vand.u32 %v258, 4294901760
    %v6295 = vsub.f32 %v258, %v6294
    %v6296 = vand.u32 %v6295, 4294901760
    %v6297 = vsub.f32 %v6295, %v6296
    %v6298 = vand.u32 %v6297, 4294901760
    %6299 = vmatmul.f32.gmra.mxu0 %v6298
    %v6300 = vpop.f32.mrf.mxu0
    %v6301 = vadd.f32 %v6028, %v6300
    %v6302 = vand.u32 %v260, 4294901760
    %v6303 = vsub.f32 %v260, %v6302
    %v6304 = vand.u32 %v6303, 4294901760
    %v6305 = vsub.f32 %v6303, %v6304
    %v6306 = vand.u32 %v6305, 4294901760
    %6307 = vmatmul.f32.gmra.mxu0 %v6306
    %v6308 = vpop.f32.mrf.mxu0
    %v6309 = vadd.f32 %v6032, %v6308
    %v6310 = vand.u32 %v262, 4294901760
    %v6311 = vsub.f32 %v262, %v6310
    %v6312 = vand.u32 %v6311, 4294901760
    %v6313 = vsub.f32 %v6311, %v6312
    %v6314 = vand.u32 %v6313, 4294901760
    %6315 = vmatmul.f32.gmra.mxu0 %v6314
    %v6316 = vpop.f32.mrf.mxu0
    %v6317 = vadd.f32 %v6036, %v6316
    %v6318 = vand.u32 %v264, 4294901760
    %v6319 = vsub.f32 %v264, %v6318
    %v6320 = vand.u32 %v6319, 4294901760
    %v6321 = vsub.f32 %v6319, %v6320
    %v6322 = vand.u32 %v6321, 4294901760
    %6323 = vmatmul.f32.gmra.mxu0 %v6322
    %v6324 = vpop.f32.mrf.mxu0
    %v6325 = vadd.f32 %v6040, %v6324
    %v6326 = vand.u32 %v266, 4294901760
    %v6327 = vsub.f32 %v266, %v6326
    %v6328 = vand.u32 %v6327, 4294901760
    %v6329 = vsub.f32 %v6327, %v6328
    %v6330 = vand.u32 %v6329, 4294901760
    %6331 = vmatmul.f32.gmra.mxu0 %v6330
    %v6332 = vpop.f32.mrf.mxu0
    %v6333 = vadd.f32 %v6044, %v6332
    %6334 = vdwg.mxu0
    %v6335 = vand.u32 %v4583, 4294901760
    %v6336 = vsub.f32 %v4583, %v6335
    %v6337 = vand.u32 %v6336, 4294901760
    %v6338 = vsub.f32 %v6336, %v6337
    %v6339 = vand.u32 %v6338, 4294901760
    %6340 = vmatpush.msra.mxu0 %v6339
    %v6341 = vand.u32 %v4582, 4294901760
    %v6342 = vsub.f32 %v4582, %v6341
    %v6343 = vand.u32 %v6342, 4294901760
    %v6344 = vsub.f32 %v6342, %v6343
    %v6345 = vand.u32 %v6344, 4294901760
    %6346 = vmatpush.msra.mxu0 %v6345
    %v6347 = vand.u32 %v4581, 4294901760
    %v6348 = vsub.f32 %v4581, %v6347
    %v6349 = vand.u32 %v6348, 4294901760
    %v6350 = vsub.f32 %v6348, %v6349
    %v6351 = vand.u32 %v6350, 4294901760
    %6352 = vmatpush.msra.mxu0 %v6351
    %v6353 = vand.u32 %v4580, 4294901760
    %v6354 = vsub.f32 %v4580, %v6353
    %v6355 = vand.u32 %v6354, 4294901760
    %v6356 = vsub.f32 %v6354, %v6355
    %v6357 = vand.u32 %v6356, 4294901760
    %6358 = vmatpush.msra.mxu0 %v6357
    %v6359 = vand.u32 %v4579, 4294901760
    %v6360 = vsub.f32 %v4579, %v6359
    %v6361 = vand.u32 %v6360, 4294901760
    %v6362 = vsub.f32 %v6360, %v6361
    %v6363 = vand.u32 %v6362, 4294901760
    %6364 = vmatpush.msra.mxu0 %v6363
    %v6365 = vand.u32 %v4578, 4294901760
    %v6366 = vsub.f32 %v4578, %v6365
    %v6367 = vand.u32 %v6366, 4294901760
    %v6368 = vsub.f32 %v6366, %v6367
    %v6369 = vand.u32 %v6368, 4294901760
    %6370 = vmatpush.msra.mxu0 %v6369
    %v6371 = vand.u32 %v4577, 4294901760
    %v6372 = vsub.f32 %v4577, %v6371
    %v6373 = vand.u32 %v6372, 4294901760
    %v6374 = vsub.f32 %v6372, %v6373
    %v6375 = vand.u32 %v6374, 4294901760
    %6376 = vmatpush.msra.mxu0 %v6375
    %v6377 = vand.u32 %v4576, 4294901760
    %v6378 = vsub.f32 %v4576, %v6377
    %v6379 = vand.u32 %v6378, 4294901760
    %v6380 = vsub.f32 %v6378, %v6379
    %v6381 = vand.u32 %v6380, 4294901760
    %6382 = vmatpush.msra.mxu0 %v6381
    %v6383 = vand.u32 %v4575, 4294901760
    %v6384 = vsub.f32 %v4575, %v6383
    %v6385 = vand.u32 %v6384, 4294901760
    %v6386 = vsub.f32 %v6384, %v6385
    %v6387 = vand.u32 %v6386, 4294901760
    %6388 = vmatpush.msra.mxu0 %v6387
    %v6389 = vand.u32 %v4574, 4294901760
    %v6390 = vsub.f32 %v4574, %v6389
    %v6391 = vand.u32 %v6390, 4294901760
    %v6392 = vsub.f32 %v6390, %v6391
    %v6393 = vand.u32 %v6392, 4294901760
    %6394 = vmatpush.msra.mxu0 %v6393
    %v6395 = vand.u32 %v4573, 4294901760
    %v6396 = vsub.f32 %v4573, %v6395
    %v6397 = vand.u32 %v6396, 4294901760
    %v6398 = vsub.f32 %v6396, %v6397
    %v6399 = vand.u32 %v6398, 4294901760
    %6400 = vmatpush.msra.mxu0 %v6399
    %v6401 = vand.u32 %v4572, 4294901760
    %v6402 = vsub.f32 %v4572, %v6401
    %v6403 = vand.u32 %v6402, 4294901760
    %v6404 = vsub.f32 %v6402, %v6403
    %v6405 = vand.u32 %v6404, 4294901760
    %6406 = vmatpush.msra.mxu0 %v6405
    %v6407 = vand.u32 %v4571, 4294901760
    %v6408 = vsub.f32 %v4571, %v6407
    %v6409 = vand.u32 %v6408, 4294901760
    %v6410 = vsub.f32 %v6408, %v6409
    %v6411 = vand.u32 %v6410, 4294901760
    %6412 = vmatpush.msra.mxu0 %v6411
    %v6413 = vand.u32 %v4570, 4294901760
    %v6414 = vsub.f32 %v4570, %v6413
    %v6415 = vand.u32 %v6414, 4294901760
    %v6416 = vsub.f32 %v6414, %v6415
    %v6417 = vand.u32 %v6416, 4294901760
    %6418 = vmatpush.msra.mxu0 %v6417
    %v6419 = vand.u32 %v4569, 4294901760
    %v6420 = vsub.f32 %v4569, %v6419
    %v6421 = vand.u32 %v6420, 4294901760
    %v6422 = vsub.f32 %v6420, %v6421
    %v6423 = vand.u32 %v6422, 4294901760
    %6424 = vmatpush.msra.mxu0 %v6423
    %v6425 = vand.u32 %v4568, 4294901760
    %v6426 = vsub.f32 %v4568, %v6425
    %v6427 = vand.u32 %v6426, 4294901760
    %v6428 = vsub.f32 %v6426, %v6427
    %v6429 = vand.u32 %v6428, 4294901760
    %6430 = vmatpush.msra.mxu0 %v6429
    %v6431 = vand.u32 %v204, 4294901760
    %6432 = vmatmul.f32.gmra.mxu0 %v6431
    %v6433 = vpop.f32.mrf.mxu0
    %v6434 = vadd.f32 %v6085, %v6433
    %v6435 = vand.u32 %v206, 4294901760
    %6436 = vmatmul.f32.gmra.mxu0 %v6435
    %v6437 = vpop.f32.mrf.mxu0
    %v6438 = vadd.f32 %v6093, %v6437
    %v6439 = vand.u32 %v208, 4294901760
    %6440 = vmatmul.f32.gmra.mxu0 %v6439
    %v6441 = vpop.f32.mrf.mxu0
    %v6442 = vadd.f32 %v6101, %v6441
    %v6443 = vand.u32 %v210, 4294901760
    %6444 = vmatmul.f32.gmra.mxu0 %v6443
    %v6445 = vpop.f32.mrf.mxu0
    %v6446 = vadd.f32 %v6109, %v6445
    %v6447 = vand.u32 %v212, 4294901760
    %6448 = vmatmul.f32.gmra.mxu0 %v6447
    %v6449 = vpop.f32.mrf.mxu0
    %v6450 = vadd.f32 %v6117, %v6449
    %v6451 = vand.u32 %v214, 4294901760
    %6452 = vmatmul.f32.gmra.mxu0 %v6451
    %v6453 = vpop.f32.mrf.mxu0
    %v6454 = vadd.f32 %v6125, %v6453
    %v6455 = vand.u32 %v216, 4294901760
    %6456 = vmatmul.f32.gmra.mxu0 %v6455
    %v6457 = vpop.f32.mrf.mxu0
    %v6458 = vadd.f32 %v6133, %v6457
    %v6459 = vand.u32 %v218, 4294901760
    %6460 = vmatmul.f32.gmra.mxu0 %v6459
    %v6461 = vpop.f32.mrf.mxu0
    %v6462 = vadd.f32 %v6141, %v6461
    %v6463 = vand.u32 %v220, 4294901760
    %6464 = vmatmul.f32.gmra.mxu0 %v6463
    %v6465 = vpop.f32.mrf.mxu0
    %v6466 = vadd.f32 %v6149, %v6465
    %v6467 = vand.u32 %v222, 4294901760
    %6468 = vmatmul.f32.gmra.mxu0 %v6467
    %v6469 = vpop.f32.mrf.mxu0
    %v6470 = vadd.f32 %v6157, %v6469
    %v6471 = vand.u32 %v224, 4294901760
    %6472 = vmatmul.f32.gmra.mxu0 %v6471
    %v6473 = vpop.f32.mrf.mxu0
    %v6474 = vadd.f32 %v6165, %v6473
    %v6475 = vand.u32 %v226, 4294901760
    %6476 = vmatmul.f32.gmra.mxu0 %v6475
    %v6477 = vpop.f32.mrf.mxu0
    %v6478 = vadd.f32 %v6173, %v6477
    %v6479 = vand.u32 %v228, 4294901760
    %6480 = vmatmul.f32.gmra.mxu0 %v6479
    %v6481 = vpop.f32.mrf.mxu0
    %v6482 = vadd.f32 %v6181, %v6481
    %v6483 = vand.u32 %v230, 4294901760
    %6484 = vmatmul.f32.gmra.mxu0 %v6483
    %v6485 = vpop.f32.mrf.mxu0
    %v6486 = vadd.f32 %v6189, %v6485
    %v6487 = vand.u32 %v232, 4294901760
    %6488 = vmatmul.f32.gmra.mxu0 %v6487
    %v6489 = vpop.f32.mrf.mxu0
    %v6490 = vadd.f32 %v6197, %v6489
    %v6491 = vand.u32 %v234, 4294901760
    %6492 = vmatmul.f32.gmra.mxu0 %v6491
    %v6493 = vpop.f32.mrf.mxu0
    %v6494 = vadd.f32 %v6205, %v6493
    %v6495 = vand.u32 %v236, 4294901760
    %6496 = vmatmul.f32.gmra.mxu0 %v6495
    %v6497 = vpop.f32.mrf.mxu0
    %v6498 = vadd.f32 %v6213, %v6497
    %v6499 = vand.u32 %v238, 4294901760
    %6500 = vmatmul.f32.gmra.mxu0 %v6499
    %v6501 = vpop.f32.mrf.mxu0
    %v6502 = vadd.f32 %v6221, %v6501
    %v6503 = vand.u32 %v240, 4294901760
    %6504 = vmatmul.f32.gmra.mxu0 %v6503
    %v6505 = vpop.f32.mrf.mxu0
    %v6506 = vadd.f32 %v6229, %v6505
    %v6507 = vand.u32 %v242, 4294901760
    %6508 = vmatmul.f32.gmra.mxu0 %v6507
    %v6509 = vpop.f32.mrf.mxu0
    %v6510 = vadd.f32 %v6237, %v6509
    %v6511 = vand.u32 %v244, 4294901760
    %6512 = vmatmul.f32.gmra.mxu0 %v6511
    %v6513 = vpop.f32.mrf.mxu0
    %v6514 = vadd.f32 %v6245, %v6513
    %v6515 = vand.u32 %v246, 4294901760
    %6516 = vmatmul.f32.gmra.mxu0 %v6515
    %v6517 = vpop.f32.mrf.mxu0
    %v6518 = vadd.f32 %v6253, %v6517
    %v6519 = vand.u32 %v248, 4294901760
    %6520 = vmatmul.f32.gmra.mxu0 %v6519
    %v6521 = vpop.f32.mrf.mxu0
    %v6522 = vadd.f32 %v6261, %v6521
    %v6523 = vand.u32 %v250, 4294901760
    %6524 = vmatmul.f32.gmra.mxu0 %v6523
    %v6525 = vpop.f32.mrf.mxu0
    %v6526 = vadd.f32 %v6269, %v6525
    %v6527 = vand.u32 %v252, 4294901760
    %6528 = vmatmul.f32.gmra.mxu0 %v6527
    %v6529 = vpop.f32.mrf.mxu0
    %v6530 = vadd.f32 %v6277, %v6529
    %v6531 = vand.u32 %v254, 4294901760
    %6532 = vmatmul.f32.gmra.mxu0 %v6531
    %v6533 = vpop.f32.mrf.mxu0
    %v6534 = vadd.f32 %v6285, %v6533
    %v6535 = vand.u32 %v256, 4294901760
    %6536 = vmatmul.f32.gmra.mxu0 %v6535
    %v6537 = vpop.f32.mrf.mxu0
    %v6538 = vadd.f32 %v6293, %v6537
    %v6539 = vand.u32 %v258, 4294901760
    %6540 = vmatmul.f32.gmra.mxu0 %v6539
    %v6541 = vpop.f32.mrf.mxu0
    %v6542 = vadd.f32 %v6301, %v6541
    %v6543 = vand.u32 %v260, 4294901760
    %6544 = vmatmul.f32.gmra.mxu0 %v6543
    %v6545 = vpop.f32.mrf.mxu0
    %v6546 = vadd.f32 %v6309, %v6545
    %v6547 = vand.u32 %v262, 4294901760
    %6548 = vmatmul.f32.gmra.mxu0 %v6547
    %v6549 = vpop.f32.mrf.mxu0
    %v6550 = vadd.f32 %v6317, %v6549
    %v6551 = vand.u32 %v264, 4294901760
    %6552 = vmatmul.f32.gmra.mxu0 %v6551
    %v6553 = vpop.f32.mrf.mxu0
    %v6554 = vadd.f32 %v6325, %v6553
    %v6555 = vand.u32 %v266, 4294901760
    %6556 = vmatmul.f32.gmra.mxu0 %v6555
    %v6557 = vpop.f32.mrf.mxu0
    %v6558 = vadd.f32 %v6333, %v6557
    %6559 = vdwg.mxu0
    %v6560 = vand.u32 %v4583, 4294901760
    %v6561 = vsub.f32 %v4583, %v6560
    %6562 = vmatpush.msra.mxu0 %v6561
    %v6563 = vand.u32 %v4582, 4294901760
    %v6564 = vsub.f32 %v4582, %v6563
    %6565 = vmatpush.msra.mxu0 %v6564
    %v6566 = vand.u32 %v4581, 4294901760
    %v6567 = vsub.f32 %v4581, %v6566
    %6568 = vmatpush.msra.mxu0 %v6567
    %v6569 = vand.u32 %v4580, 4294901760
    %v6570 = vsub.f32 %v4580, %v6569
    %6571 = vmatpush.msra.mxu0 %v6570
    %v6572 = vand.u32 %v4579, 4294901760
    %v6573 = vsub.f32 %v4579, %v6572
    %6574 = vmatpush.msra.mxu0 %v6573
    %v6575 = vand.u32 %v4578, 4294901760
    %v6576 = vsub.f32 %v4578, %v6575
    %6577 = vmatpush.msra.mxu0 %v6576
    %v6578 = vand.u32 %v4577, 4294901760
    %v6579 = vsub.f32 %v4577, %v6578
    %6580 = vmatpush.msra.mxu0 %v6579
    %v6581 = vand.u32 %v4576, 4294901760
    %v6582 = vsub.f32 %v4576, %v6581
    %6583 = vmatpush.msra.mxu0 %v6582
    %v6584 = vand.u32 %v4575, 4294901760
    %v6585 = vsub.f32 %v4575, %v6584
    %6586 = vmatpush.msra.mxu0 %v6585
    %v6587 = vand.u32 %v4574, 4294901760
    %v6588 = vsub.f32 %v4574, %v6587
    %6589 = vmatpush.msra.mxu0 %v6588
    %v6590 = vand.u32 %v4573, 4294901760
    %v6591 = vsub.f32 %v4573, %v6590
    %6592 = vmatpush.msra.mxu0 %v6591
    %v6593 = vand.u32 %v4572, 4294901760
    %v6594 = vsub.f32 %v4572, %v6593
    %6595 = vmatpush.msra.mxu0 %v6594
    %v6596 = vand.u32 %v4571, 4294901760
    %v6597 = vsub.f32 %v4571, %v6596
    %6598 = vmatpush.msra.mxu0 %v6597
    %v6599 = vand.u32 %v4570, 4294901760
    %v6600 = vsub.f32 %v4570, %v6599
    %6601 = vmatpush.msra.mxu0 %v6600
    %v6602 = vand.u32 %v4569, 4294901760
    %v6603 = vsub.f32 %v4569, %v6602
    %6604 = vmatpush.msra.mxu0 %v6603
    %v6605 = vand.u32 %v4568, 4294901760
    %v6606 = vsub.f32 %v4568, %v6605
    %6607 = vmatpush.msra.mxu0 %v6606
    %v6608 = vand.u32 %v204, 4294901760
    %v6609 = vsub.f32 %v204, %v6608
    %6610 = vmatmul.f32.gmra.mxu0 %v6609
    %v6611 = vpop.f32.mrf.mxu0
    %v6612 = vadd.f32 %v6434, %v6611
    %v6613 = vand.u32 %v206, 4294901760
    %v6614 = vsub.f32 %v206, %v6613
    %6615 = vmatmul.f32.gmra.mxu0 %v6614
    %v6616 = vpop.f32.mrf.mxu0
    %v6617 = vadd.f32 %v6438, %v6616
    %v6618 = vand.u32 %v208, 4294901760
    %v6619 = vsub.f32 %v208, %v6618
    %6620 = vmatmul.f32.gmra.mxu0 %v6619
    %v6621 = vpop.f32.mrf.mxu0
    %v6622 = vadd.f32 %v6442, %v6621
    %v6623 = vand.u32 %v210, 4294901760
    %v6624 = vsub.f32 %v210, %v6623
    %6625 = vmatmul.f32.gmra.mxu0 %v6624
    %v6626 = vpop.f32.mrf.mxu0
    %v6627 = vadd.f32 %v6446, %v6626
    %v6628 = vand.u32 %v212, 4294901760
    %v6629 = vsub.f32 %v212, %v6628
    %6630 = vmatmul.f32.gmra.mxu0 %v6629
    %v6631 = vpop.f32.mrf.mxu0
    %v6632 = vadd.f32 %v6450, %v6631
    %v6633 = vand.u32 %v214, 4294901760
    %v6634 = vsub.f32 %v214, %v6633
    %6635 = vmatmul.f32.gmra.mxu0 %v6634
    %v6636 = vpop.f32.mrf.mxu0
    %v6637 = vadd.f32 %v6454, %v6636
    %v6638 = vand.u32 %v216, 4294901760
    %v6639 = vsub.f32 %v216, %v6638
    %6640 = vmatmul.f32.gmra.mxu0 %v6639
    %v6641 = vpop.f32.mrf.mxu0
    %v6642 = vadd.f32 %v6458, %v6641
    %v6643 = vand.u32 %v218, 4294901760
    %v6644 = vsub.f32 %v218, %v6643
    %6645 = vmatmul.f32.gmra.mxu0 %v6644
    %v6646 = vpop.f32.mrf.mxu0
    %v6647 = vadd.f32 %v6462, %v6646
    %v6648 = vand.u32 %v220, 4294901760
    %v6649 = vsub.f32 %v220, %v6648
    %6650 = vmatmul.f32.gmra.mxu0 %v6649
    %v6651 = vpop.f32.mrf.mxu0
    %v6652 = vadd.f32 %v6466, %v6651
    %v6653 = vand.u32 %v222, 4294901760
    %v6654 = vsub.f32 %v222, %v6653
    %6655 = vmatmul.f32.gmra.mxu0 %v6654
    %v6656 = vpop.f32.mrf.mxu0
    %v6657 = vadd.f32 %v6470, %v6656
    %v6658 = vand.u32 %v224, 4294901760
    %v6659 = vsub.f32 %v224, %v6658
    %6660 = vmatmul.f32.gmra.mxu0 %v6659
    %v6661 = vpop.f32.mrf.mxu0
    %v6662 = vadd.f32 %v6474, %v6661
    %v6663 = vand.u32 %v226, 4294901760
    %v6664 = vsub.f32 %v226, %v6663
    %6665 = vmatmul.f32.gmra.mxu0 %v6664
    %v6666 = vpop.f32.mrf.mxu0
    %v6667 = vadd.f32 %v6478, %v6666
    %v6668 = vand.u32 %v228, 4294901760
    %v6669 = vsub.f32 %v228, %v6668
    %6670 = vmatmul.f32.gmra.mxu0 %v6669
    %v6671 = vpop.f32.mrf.mxu0
    %v6672 = vadd.f32 %v6482, %v6671
    %v6673 = vand.u32 %v230, 4294901760
    %v6674 = vsub.f32 %v230, %v6673
    %6675 = vmatmul.f32.gmra.mxu0 %v6674
    %v6676 = vpop.f32.mrf.mxu0
    %v6677 = vadd.f32 %v6486, %v6676
    %v6678 = vand.u32 %v232, 4294901760
    %v6679 = vsub.f32 %v232, %v6678
    %6680 = vmatmul.f32.gmra.mxu0 %v6679
    %v6681 = vpop.f32.mrf.mxu0
    %v6682 = vadd.f32 %v6490, %v6681
    %v6683 = vand.u32 %v234, 4294901760
    %v6684 = vsub.f32 %v234, %v6683
    %6685 = vmatmul.f32.gmra.mxu0 %v6684
    %v6686 = vpop.f32.mrf.mxu0
    %v6687 = vadd.f32 %v6494, %v6686
    %v6688 = vand.u32 %v236, 4294901760
    %v6689 = vsub.f32 %v236, %v6688
    %6690 = vmatmul.f32.gmra.mxu0 %v6689
    %v6691 = vpop.f32.mrf.mxu0
    %v6692 = vadd.f32 %v6498, %v6691
    %v6693 = vand.u32 %v238, 4294901760
    %v6694 = vsub.f32 %v238, %v6693
    %6695 = vmatmul.f32.gmra.mxu0 %v6694
    %v6696 = vpop.f32.mrf.mxu0
    %v6697 = vadd.f32 %v6502, %v6696
    %v6698 = vand.u32 %v240, 4294901760
    %v6699 = vsub.f32 %v240, %v6698
    %6700 = vmatmul.f32.gmra.mxu0 %v6699
    %v6701 = vpop.f32.mrf.mxu0
    %v6702 = vadd.f32 %v6506, %v6701
    %v6703 = vand.u32 %v242, 4294901760
    %v6704 = vsub.f32 %v242, %v6703
    %6705 = vmatmul.f32.gmra.mxu0 %v6704
    %v6706 = vpop.f32.mrf.mxu0
    %v6707 = vadd.f32 %v6510, %v6706
    %v6708 = vand.u32 %v244, 4294901760
    %v6709 = vsub.f32 %v244, %v6708
    %6710 = vmatmul.f32.gmra.mxu0 %v6709
    %v6711 = vpop.f32.mrf.mxu0
    %v6712 = vadd.f32 %v6514, %v6711
    %v6713 = vand.u32 %v246, 4294901760
    %v6714 = vsub.f32 %v246, %v6713
    %6715 = vmatmul.f32.gmra.mxu0 %v6714
    %v6716 = vpop.f32.mrf.mxu0
    %v6717 = vadd.f32 %v6518, %v6716
    %v6718 = vand.u32 %v248, 4294901760
    %v6719 = vsub.f32 %v248, %v6718
    %6720 = vmatmul.f32.gmra.mxu0 %v6719
    %v6721 = vpop.f32.mrf.mxu0
    %v6722 = vadd.f32 %v6522, %v6721
    %v6723 = vand.u32 %v250, 4294901760
    %v6724 = vsub.f32 %v250, %v6723
    %6725 = vmatmul.f32.gmra.mxu0 %v6724
    %v6726 = vpop.f32.mrf.mxu0
    %v6727 = vadd.f32 %v6526, %v6726
    %v6728 = vand.u32 %v252, 4294901760
    %v6729 = vsub.f32 %v252, %v6728
    %6730 = vmatmul.f32.gmra.mxu0 %v6729
    %v6731 = vpop.f32.mrf.mxu0
    %v6732 = vadd.f32 %v6530, %v6731
    %v6733 = vand.u32 %v254, 4294901760
    %v6734 = vsub.f32 %v254, %v6733
    %6735 = vmatmul.f32.gmra.mxu0 %v6734
    %v6736 = vpop.f32.mrf.mxu0
    %v6737 = vadd.f32 %v6534, %v6736
    %v6738 = vand.u32 %v256, 4294901760
    %v6739 = vsub.f32 %v256, %v6738
    %6740 = vmatmul.f32.gmra.mxu0 %v6739
    %v6741 = vpop.f32.mrf.mxu0
    %v6742 = vadd.f32 %v6538, %v6741
    %v6743 = vand.u32 %v258, 4294901760
    %v6744 = vsub.f32 %v258, %v6743
    %6745 = vmatmul.f32.gmra.mxu0 %v6744
    %v6746 = vpop.f32.mrf.mxu0
    %v6747 = vadd.f32 %v6542, %v6746
    %v6748 = vand.u32 %v260, 4294901760
    %v6749 = vsub.f32 %v260, %v6748
    %6750 = vmatmul.f32.gmra.mxu0 %v6749
    %v6751 = vpop.f32.mrf.mxu0
    %v6752 = vadd.f32 %v6546, %v6751
    %v6753 = vand.u32 %v262, 4294901760
    %v6754 = vsub.f32 %v262, %v6753
    %6755 = vmatmul.f32.gmra.mxu0 %v6754
    %v6756 = vpop.f32.mrf.mxu0
    %v6757 = vadd.f32 %v6550, %v6756
    %v6758 = vand.u32 %v264, 4294901760
    %v6759 = vsub.f32 %v264, %v6758
    %6760 = vmatmul.f32.gmra.mxu0 %v6759
    %v6761 = vpop.f32.mrf.mxu0
    %v6762 = vadd.f32 %v6554, %v6761
    %v6763 = vand.u32 %v266, 4294901760
    %v6764 = vsub.f32 %v266, %v6763
    %6765 = vmatmul.f32.gmra.mxu0 %v6764
    %v6766 = vpop.f32.mrf.mxu0
    %v6767 = vadd.f32 %v6558, %v6766
    %6768 = vdwg.mxu0
    %v6769 = vand.u32 %v4583, 4294901760
    %6770 = vmatpush.msra.mxu0 %v6769
    %v6771 = vand.u32 %v4582, 4294901760
    %6772 = vmatpush.msra.mxu0 %v6771
    %v6773 = vand.u32 %v4581, 4294901760
    %6774 = vmatpush.msra.mxu0 %v6773
    %v6775 = vand.u32 %v4580, 4294901760
    %6776 = vmatpush.msra.mxu0 %v6775
    %v6777 = vand.u32 %v4579, 4294901760
    %6778 = vmatpush.msra.mxu0 %v6777
    %v6779 = vand.u32 %v4578, 4294901760
    %6780 = vmatpush.msra.mxu0 %v6779
    %v6781 = vand.u32 %v4577, 4294901760
    %6782 = vmatpush.msra.mxu0 %v6781
    %v6783 = vand.u32 %v4576, 4294901760
    %6784 = vmatpush.msra.mxu0 %v6783
    %v6785 = vand.u32 %v4575, 4294901760
    %6786 = vmatpush.msra.mxu0 %v6785
    %v6787 = vand.u32 %v4574, 4294901760
    %6788 = vmatpush.msra.mxu0 %v6787
    %v6789 = vand.u32 %v4573, 4294901760
    %6790 = vmatpush.msra.mxu0 %v6789
    %v6791 = vand.u32 %v4572, 4294901760
    %6792 = vmatpush.msra.mxu0 %v6791
    %v6793 = vand.u32 %v4571, 4294901760
    %6794 = vmatpush.msra.mxu0 %v6793
    %v6795 = vand.u32 %v4570, 4294901760
    %6796 = vmatpush.msra.mxu0 %v6795
    %v6797 = vand.u32 %v4569, 4294901760
    %6798 = vmatpush.msra.mxu0 %v6797
    %v6799 = vand.u32 %v4568, 4294901760
    %6800 = vmatpush.msra.mxu0 %v6799
    %v6801 = vand.u32 %v204, 4294901760
    %v6802 = vsub.f32 %v204, %v6801
    %v6803 = vand.u32 %v6802, 4294901760
    %6804 = vmatmul.f32.gmra.mxu0 %v6803
    %v6805 = vpop.f32.mrf.mxu0
    %v6806 = vadd.f32 %v6612, %v6805
    %v6807 = vand.u32 %v206, 4294901760
    %v6808 = vsub.f32 %v206, %v6807
    %v6809 = vand.u32 %v6808, 4294901760
    %6810 = vmatmul.f32.gmra.mxu0 %v6809
    %v6811 = vpop.f32.mrf.mxu0
    %v6812 = vadd.f32 %v6617, %v6811
    %v6813 = vand.u32 %v208, 4294901760
    %v6814 = vsub.f32 %v208, %v6813
    %v6815 = vand.u32 %v6814, 4294901760
    %6816 = vmatmul.f32.gmra.mxu0 %v6815
    %v6817 = vpop.f32.mrf.mxu0
    %v6818 = vadd.f32 %v6622, %v6817
    %v6819 = vand.u32 %v210, 4294901760
    %v6820 = vsub.f32 %v210, %v6819
    %v6821 = vand.u32 %v6820, 4294901760
    %6822 = vmatmul.f32.gmra.mxu0 %v6821
    %v6823 = vpop.f32.mrf.mxu0
    %v6824 = vadd.f32 %v6627, %v6823
    %v6825 = vand.u32 %v212, 4294901760
    %v6826 = vsub.f32 %v212, %v6825
    %v6827 = vand.u32 %v6826, 4294901760
    %6828 = vmatmul.f32.gmra.mxu0 %v6827
    %v6829 = vpop.f32.mrf.mxu0
    %v6830 = vadd.f32 %v6632, %v6829
    %v6831 = vand.u32 %v214, 4294901760
    %v6832 = vsub.f32 %v214, %v6831
    %v6833 = vand.u32 %v6832, 4294901760
    %6834 = vmatmul.f32.gmra.mxu0 %v6833
    %v6835 = vpop.f32.mrf.mxu0
    %v6836 = vadd.f32 %v6637, %v6835
    %v6837 = vand.u32 %v216, 4294901760
    %v6838 = vsub.f32 %v216, %v6837
    %v6839 = vand.u32 %v6838, 4294901760
    %6840 = vmatmul.f32.gmra.mxu0 %v6839
    %v6841 = vpop.f32.mrf.mxu0
    %v6842 = vadd.f32 %v6642, %v6841
    %v6843 = vand.u32 %v218, 4294901760
    %v6844 = vsub.f32 %v218, %v6843
    %v6845 = vand.u32 %v6844, 4294901760
    %6846 = vmatmul.f32.gmra.mxu0 %v6845
    %v6847 = vpop.f32.mrf.mxu0
    %v6848 = vadd.f32 %v6647, %v6847
    %v6849 = vand.u32 %v220, 4294901760
    %v6850 = vsub.f32 %v220, %v6849
    %v6851 = vand.u32 %v6850, 4294901760
    %6852 = vmatmul.f32.gmra.mxu0 %v6851
    %v6853 = vpop.f32.mrf.mxu0
    %v6854 = vadd.f32 %v6652, %v6853
    %v6855 = vand.u32 %v222, 4294901760
    %v6856 = vsub.f32 %v222, %v6855
    %v6857 = vand.u32 %v6856, 4294901760
    %6858 = vmatmul.f32.gmra.mxu0 %v6857
    %v6859 = vpop.f32.mrf.mxu0
    %v6860 = vadd.f32 %v6657, %v6859
    %v6861 = vand.u32 %v224, 4294901760
    %v6862 = vsub.f32 %v224, %v6861
    %v6863 = vand.u32 %v6862, 4294901760
    %6864 = vmatmul.f32.gmra.mxu0 %v6863
    %v6865 = vpop.f32.mrf.mxu0
    %v6866 = vadd.f32 %v6662, %v6865
    %v6867 = vand.u32 %v226, 4294901760
    %v6868 = vsub.f32 %v226, %v6867
    %v6869 = vand.u32 %v6868, 4294901760
    %6870 = vmatmul.f32.gmra.mxu0 %v6869
    %v6871 = vpop.f32.mrf.mxu0
    %v6872 = vadd.f32 %v6667, %v6871
    %v6873 = vand.u32 %v228, 4294901760
    %v6874 = vsub.f32 %v228, %v6873
    %v6875 = vand.u32 %v6874, 4294901760
    %6876 = vmatmul.f32.gmra.mxu0 %v6875
    %v6877 = vpop.f32.mrf.mxu0
    %v6878 = vadd.f32 %v6672, %v6877
    %v6879 = vand.u32 %v230, 4294901760
    %v6880 = vsub.f32 %v230, %v6879
    %v6881 = vand.u32 %v6880, 4294901760
    %6882 = vmatmul.f32.gmra.mxu0 %v6881
    %v6883 = vpop.f32.mrf.mxu0
    %v6884 = vadd.f32 %v6677, %v6883
    %v6885 = vand.u32 %v232, 4294901760
    %v6886 = vsub.f32 %v232, %v6885
    %v6887 = vand.u32 %v6886, 4294901760
    %6888 = vmatmul.f32.gmra.mxu0 %v6887
    %v6889 = vpop.f32.mrf.mxu0
    %v6890 = vadd.f32 %v6682, %v6889
    %v6891 = vand.u32 %v234, 4294901760
    %v6892 = vsub.f32 %v234, %v6891
    %v6893 = vand.u32 %v6892, 4294901760
    %6894 = vmatmul.f32.gmra.mxu0 %v6893
    %v6895 = vpop.f32.mrf.mxu0
    %v6896 = vadd.f32 %v6687, %v6895
    %v6897 = vand.u32 %v236, 4294901760
    %v6898 = vsub.f32 %v236, %v6897
    %v6899 = vand.u32 %v6898, 4294901760
    %6900 = vmatmul.f32.gmra.mxu0 %v6899
    %v6901 = vpop.f32.mrf.mxu0
    %v6902 = vadd.f32 %v6692, %v6901
    %v6903 = vand.u32 %v238, 4294901760
    %v6904 = vsub.f32 %v238, %v6903
    %v6905 = vand.u32 %v6904, 4294901760
    %6906 = vmatmul.f32.gmra.mxu0 %v6905
    %v6907 = vpop.f32.mrf.mxu0
    %v6908 = vadd.f32 %v6697, %v6907
    %v6909 = vand.u32 %v240, 4294901760
    %v6910 = vsub.f32 %v240, %v6909
    %v6911 = vand.u32 %v6910, 4294901760
    %6912 = vmatmul.f32.gmra.mxu0 %v6911
    %v6913 = vpop.f32.mrf.mxu0
    %v6914 = vadd.f32 %v6702, %v6913
    %v6915 = vand.u32 %v242, 4294901760
    %v6916 = vsub.f32 %v242, %v6915
    %v6917 = vand.u32 %v6916, 4294901760
    %6918 = vmatmul.f32.gmra.mxu0 %v6917
    %v6919 = vpop.f32.mrf.mxu0
    %v6920 = vadd.f32 %v6707, %v6919
    %v6921 = vand.u32 %v244, 4294901760
    %v6922 = vsub.f32 %v244, %v6921
    %v6923 = vand.u32 %v6922, 4294901760
    %6924 = vmatmul.f32.gmra.mxu0 %v6923
    %v6925 = vpop.f32.mrf.mxu0
    %v6926 = vadd.f32 %v6712, %v6925
    %v6927 = vand.u32 %v246, 4294901760
    %v6928 = vsub.f32 %v246, %v6927
    %v6929 = vand.u32 %v6928, 4294901760
    %6930 = vmatmul.f32.gmra.mxu0 %v6929
    %v6931 = vpop.f32.mrf.mxu0
    %v6932 = vadd.f32 %v6717, %v6931
    %v6933 = vand.u32 %v248, 4294901760
    %v6934 = vsub.f32 %v248, %v6933
    %v6935 = vand.u32 %v6934, 4294901760
    %6936 = vmatmul.f32.gmra.mxu0 %v6935
    %v6937 = vpop.f32.mrf.mxu0
    %v6938 = vadd.f32 %v6722, %v6937
    %v6939 = vand.u32 %v250, 4294901760
    %v6940 = vsub.f32 %v250, %v6939
    %v6941 = vand.u32 %v6940, 4294901760
    %6942 = vmatmul.f32.gmra.mxu0 %v6941
    %v6943 = vpop.f32.mrf.mxu0
    %v6944 = vadd.f32 %v6727, %v6943
    %v6945 = vand.u32 %v252, 4294901760
    %v6946 = vsub.f32 %v252, %v6945
    %v6947 = vand.u32 %v6946, 4294901760
    %6948 = vmatmul.f32.gmra.mxu0 %v6947
    %v6949 = vpop.f32.mrf.mxu0
    %v6950 = vadd.f32 %v6732, %v6949
    %v6951 = vand.u32 %v254, 4294901760
    %v6952 = vsub.f32 %v254, %v6951
    %v6953 = vand.u32 %v6952, 4294901760
    %6954 = vmatmul.f32.gmra.mxu0 %v6953
    %v6955 = vpop.f32.mrf.mxu0
    %v6956 = vadd.f32 %v6737, %v6955
    %v6957 = vand.u32 %v256, 4294901760
    %v6958 = vsub.f32 %v256, %v6957
    %v6959 = vand.u32 %v6958, 4294901760
    %6960 = vmatmul.f32.gmra.mxu0 %v6959
    %v6961 = vpop.f32.mrf.mxu0
    %v6962 = vadd.f32 %v6742, %v6961
    %v6963 = vand.u32 %v258, 4294901760
    %v6964 = vsub.f32 %v258, %v6963
    %v6965 = vand.u32 %v6964, 4294901760
    %6966 = vmatmul.f32.gmra.mxu0 %v6965
    %v6967 = vpop.f32.mrf.mxu0
    %v6968 = vadd.f32 %v6747, %v6967
    %v6969 = vand.u32 %v260, 4294901760
    %v6970 = vsub.f32 %v260, %v6969
    %v6971 = vand.u32 %v6970, 4294901760
    %6972 = vmatmul.f32.gmra.mxu0 %v6971
    %v6973 = vpop.f32.mrf.mxu0
    %v6974 = vadd.f32 %v6752, %v6973
    %v6975 = vand.u32 %v262, 4294901760
    %v6976 = vsub.f32 %v262, %v6975
    %v6977 = vand.u32 %v6976, 4294901760
    %6978 = vmatmul.f32.gmra.mxu0 %v6977
    %v6979 = vpop.f32.mrf.mxu0
    %v6980 = vadd.f32 %v6757, %v6979
    %v6981 = vand.u32 %v264, 4294901760
    %v6982 = vsub.f32 %v264, %v6981
    %v6983 = vand.u32 %v6982, 4294901760
    %6984 = vmatmul.f32.gmra.mxu0 %v6983
    %v6985 = vpop.f32.mrf.mxu0
    %v6986 = vadd.f32 %v6762, %v6985
    %v6987 = vand.u32 %v266, 4294901760
    %v6988 = vsub.f32 %v266, %v6987
    %v6989 = vand.u32 %v6988, 4294901760
    %6990 = vmatmul.f32.gmra.mxu0 %v6989
    %v6991 = vpop.f32.mrf.mxu0
    %v6992 = vadd.f32 %v6767, %v6991
    %6993 = vdwg.mxu0
    %v6994 = vand.u32 %v4583, 4294901760
    %v6995 = vsub.f32 %v4583, %v6994
    %v6996 = vand.u32 %v6995, 4294901760
    %6997 = vmatpush.msra.mxu0 %v6996
    %v6998 = vand.u32 %v4582, 4294901760
    %v6999 = vsub.f32 %v4582, %v6998
    %v7000 = vand.u32 %v6999, 4294901760
    %7001 = vmatpush.msra.mxu0 %v7000
    %v7002 = vand.u32 %v4581, 4294901760
    %v7003 = vsub.f32 %v4581, %v7002
    %v7004 = vand.u32 %v7003, 4294901760
    %7005 = vmatpush.msra.mxu0 %v7004
    %v7006 = vand.u32 %v4580, 4294901760
    %v7007 = vsub.f32 %v4580, %v7006
    %v7008 = vand.u32 %v7007, 4294901760
    %7009 = vmatpush.msra.mxu0 %v7008
    %v7010 = vand.u32 %v4579, 4294901760
    %v7011 = vsub.f32 %v4579, %v7010
    %v7012 = vand.u32 %v7011, 4294901760
    %7013 = vmatpush.msra.mxu0 %v7012
    %v7014 = vand.u32 %v4578, 4294901760
    %v7015 = vsub.f32 %v4578, %v7014
    %v7016 = vand.u32 %v7015, 4294901760
    %7017 = vmatpush.msra.mxu0 %v7016
    %v7018 = vand.u32 %v4577, 4294901760
    %v7019 = vsub.f32 %v4577, %v7018
    %v7020 = vand.u32 %v7019, 4294901760
    %7021 = vmatpush.msra.mxu0 %v7020
    %v7022 = vand.u32 %v4576, 4294901760
    %v7023 = vsub.f32 %v4576, %v7022
    %v7024 = vand.u32 %v7023, 4294901760
    %7025 = vmatpush.msra.mxu0 %v7024
    %v7026 = vand.u32 %v4575, 4294901760
    %v7027 = vsub.f32 %v4575, %v7026
    %v7028 = vand.u32 %v7027, 4294901760
    %7029 = vmatpush.msra.mxu0 %v7028
    %v7030 = vand.u32 %v4574, 4294901760
    %v7031 = vsub.f32 %v4574, %v7030
    %v7032 = vand.u32 %v7031, 4294901760
    %7033 = vmatpush.msra.mxu0 %v7032
    %v7034 = vand.u32 %v4573, 4294901760
    %v7035 = vsub.f32 %v4573, %v7034
    %v7036 = vand.u32 %v7035, 4294901760
    %7037 = vmatpush.msra.mxu0 %v7036
    %v7038 = vand.u32 %v4572, 4294901760
    %v7039 = vsub.f32 %v4572, %v7038
    %v7040 = vand.u32 %v7039, 4294901760
    %7041 = vmatpush.msra.mxu0 %v7040
    %v7042 = vand.u32 %v4571, 4294901760
    %v7043 = vsub.f32 %v4571, %v7042
    %v7044 = vand.u32 %v7043, 4294901760
    %7045 = vmatpush.msra.mxu0 %v7044
    %v7046 = vand.u32 %v4570, 4294901760
    %v7047 = vsub.f32 %v4570, %v7046
    %v7048 = vand.u32 %v7047, 4294901760
    %7049 = vmatpush.msra.mxu0 %v7048
    %v7050 = vand.u32 %v4569, 4294901760
    %v7051 = vsub.f32 %v4569, %v7050
    %v7052 = vand.u32 %v7051, 4294901760
    %7053 = vmatpush.msra.mxu0 %v7052
    %v7054 = vand.u32 %v4568, 4294901760
    %v7055 = vsub.f32 %v4568, %v7054
    %v7056 = vand.u32 %v7055, 4294901760
    %7057 = vmatpush.msra.mxu0 %v7056
    %v7058 = vand.u32 %v204, 4294901760
    %7059 = vmatmul.f32.gmra.mxu0 %v7058
    %v7060 = vpop.f32.mrf.mxu0
    %v7061 = vadd.f32 %v6806, %v7060
    %v7062 = vand.u32 %v206, 4294901760
    %7063 = vmatmul.f32.gmra.mxu0 %v7062
    %v7064 = vpop.f32.mrf.mxu0
    %v7065 = vadd.f32 %v6812, %v7064
    %v7066 = vand.u32 %v208, 4294901760
    %7067 = vmatmul.f32.gmra.mxu0 %v7066
    %v7068 = vpop.f32.mrf.mxu0
    %v7069 = vadd.f32 %v6818, %v7068
    %v7070 = vand.u32 %v210, 4294901760
    %7071 = vmatmul.f32.gmra.mxu0 %v7070
    %v7072 = vpop.f32.mrf.mxu0
    %v7073 = vadd.f32 %v6824, %v7072
    %v7074 = vand.u32 %v212, 4294901760
    %7075 = vmatmul.f32.gmra.mxu0 %v7074
    %v7076 = vpop.f32.mrf.mxu0
    %v7077 = vadd.f32 %v6830, %v7076
    %v7078 = vand.u32 %v214, 4294901760
    %7079 = vmatmul.f32.gmra.mxu0 %v7078
    %v7080 = vpop.f32.mrf.mxu0
    %v7081 = vadd.f32 %v6836, %v7080
    %v7082 = vand.u32 %v216, 4294901760
    %7083 = vmatmul.f32.gmra.mxu0 %v7082
    %v7084 = vpop.f32.mrf.mxu0
    %v7085 = vadd.f32 %v6842, %v7084
    %v7086 = vand.u32 %v218, 4294901760
    %7087 = vmatmul.f32.gmra.mxu0 %v7086
    %v7088 = vpop.f32.mrf.mxu0
    %v7089 = vadd.f32 %v6848, %v7088
    %v7090 = vand.u32 %v220, 4294901760
    %7091 = vmatmul.f32.gmra.mxu0 %v7090
    %v7092 = vpop.f32.mrf.mxu0
    %v7093 = vadd.f32 %v6854, %v7092
    %v7094 = vand.u32 %v222, 4294901760
    %7095 = vmatmul.f32.gmra.mxu0 %v7094
    %v7096 = vpop.f32.mrf.mxu0
    %v7097 = vadd.f32 %v6860, %v7096
    %v7098 = vand.u32 %v224, 4294901760
    %7099 = vmatmul.f32.gmra.mxu0 %v7098
    %v7100 = vpop.f32.mrf.mxu0
    %v7101 = vadd.f32 %v6866, %v7100
    %v7102 = vand.u32 %v226, 4294901760
    %7103 = vmatmul.f32.gmra.mxu0 %v7102
    %v7104 = vpop.f32.mrf.mxu0
    %v7105 = vadd.f32 %v6872, %v7104
    %v7106 = vand.u32 %v228, 4294901760
    %7107 = vmatmul.f32.gmra.mxu0 %v7106
    %v7108 = vpop.f32.mrf.mxu0
    %v7109 = vadd.f32 %v6878, %v7108
    %v7110 = vand.u32 %v230, 4294901760
    %7111 = vmatmul.f32.gmra.mxu0 %v7110
    %v7112 = vpop.f32.mrf.mxu0
    %v7113 = vadd.f32 %v6884, %v7112
    %v7114 = vand.u32 %v232, 4294901760
    %7115 = vmatmul.f32.gmra.mxu0 %v7114
    %v7116 = vpop.f32.mrf.mxu0
    %v7117 = vadd.f32 %v6890, %v7116
    %v7118 = vand.u32 %v234, 4294901760
    %7119 = vmatmul.f32.gmra.mxu0 %v7118
    %v7120 = vpop.f32.mrf.mxu0
    %v7121 = vadd.f32 %v6896, %v7120
    %v7122 = vand.u32 %v236, 4294901760
    %7123 = vmatmul.f32.gmra.mxu0 %v7122
    %v7124 = vpop.f32.mrf.mxu0
    %v7125 = vadd.f32 %v6902, %v7124
    %v7126 = vand.u32 %v238, 4294901760
    %7127 = vmatmul.f32.gmra.mxu0 %v7126
    %v7128 = vpop.f32.mrf.mxu0
    %v7129 = vadd.f32 %v6908, %v7128
    %v7130 = vand.u32 %v240, 4294901760
    %7131 = vmatmul.f32.gmra.mxu0 %v7130
    %v7132 = vpop.f32.mrf.mxu0
    %v7133 = vadd.f32 %v6914, %v7132
    %v7134 = vand.u32 %v242, 4294901760
    %7135 = vmatmul.f32.gmra.mxu0 %v7134
    %v7136 = vpop.f32.mrf.mxu0
    %v7137 = vadd.f32 %v6920, %v7136
    %v7138 = vand.u32 %v244, 4294901760
    %7139 = vmatmul.f32.gmra.mxu0 %v7138
    %v7140 = vpop.f32.mrf.mxu0
    %v7141 = vadd.f32 %v6926, %v7140
    %v7142 = vand.u32 %v246, 4294901760
    %7143 = vmatmul.f32.gmra.mxu0 %v7142
    %v7144 = vpop.f32.mrf.mxu0
    %v7145 = vadd.f32 %v6932, %v7144
    %v7146 = vand.u32 %v248, 4294901760
    %7147 = vmatmul.f32.gmra.mxu0 %v7146
    %v7148 = vpop.f32.mrf.mxu0
    %v7149 = vadd.f32 %v6938, %v7148
    %v7150 = vand.u32 %v250, 4294901760
    %7151 = vmatmul.f32.gmra.mxu0 %v7150
    %v7152 = vpop.f32.mrf.mxu0
    %v7153 = vadd.f32 %v6944, %v7152
    %v7154 = vand.u32 %v252, 4294901760
    %7155 = vmatmul.f32.gmra.mxu0 %v7154
    %v7156 = vpop.f32.mrf.mxu0
    %v7157 = vadd.f32 %v6950, %v7156
    %v7158 = vand.u32 %v254, 4294901760
    %7159 = vmatmul.f32.gmra.mxu0 %v7158
    %v7160 = vpop.f32.mrf.mxu0
    %v7161 = vadd.f32 %v6956, %v7160
    %v7162 = vand.u32 %v256, 4294901760
    %7163 = vmatmul.f32.gmra.mxu0 %v7162
    %v7164 = vpop.f32.mrf.mxu0
    %v7165 = vadd.f32 %v6962, %v7164
    %v7166 = vand.u32 %v258, 4294901760
    %7167 = vmatmul.f32.gmra.mxu0 %v7166
    %v7168 = vpop.f32.mrf.mxu0
    %v7169 = vadd.f32 %v6968, %v7168
    %v7170 = vand.u32 %v260, 4294901760
    %7171 = vmatmul.f32.gmra.mxu0 %v7170
    %v7172 = vpop.f32.mrf.mxu0
    %v7173 = vadd.f32 %v6974, %v7172
    %v7174 = vand.u32 %v262, 4294901760
    %7175 = vmatmul.f32.gmra.mxu0 %v7174
    %v7176 = vpop.f32.mrf.mxu0
    %v7177 = vadd.f32 %v6980, %v7176
    %v7178 = vand.u32 %v264, 4294901760
    %7179 = vmatmul.f32.gmra.mxu0 %v7178
    %v7180 = vpop.f32.mrf.mxu0
    %v7181 = vadd.f32 %v6986, %v7180
    %v7182 = vand.u32 %v266, 4294901760
    %7183 = vmatmul.f32.gmra.mxu0 %v7182
    %v7184 = vpop.f32.mrf.mxu0
    %v7185 = vadd.f32 %v6992, %v7184
    %7186 = vdwg.mxu0
    %v7187 = vand.u32 %v4583, 4294901760
    %7188 = vmatpush.msra.mxu0 %v7187
    %v7189 = vand.u32 %v4582, 4294901760
    %7190 = vmatpush.msra.mxu0 %v7189
    %v7191 = vand.u32 %v4581, 4294901760
    %7192 = vmatpush.msra.mxu0 %v7191
    %v7193 = vand.u32 %v4580, 4294901760
    %7194 = vmatpush.msra.mxu0 %v7193
    %v7195 = vand.u32 %v4579, 4294901760
    %7196 = vmatpush.msra.mxu0 %v7195
    %v7197 = vand.u32 %v4578, 4294901760
    %7198 = vmatpush.msra.mxu0 %v7197
    %v7199 = vand.u32 %v4577, 4294901760
    %7200 = vmatpush.msra.mxu0 %v7199
    %v7201 = vand.u32 %v4576, 4294901760
    %7202 = vmatpush.msra.mxu0 %v7201
    %v7203 = vand.u32 %v4575, 4294901760
    %7204 = vmatpush.msra.mxu0 %v7203
    %v7205 = vand.u32 %v4574, 4294901760
    %7206 = vmatpush.msra.mxu0 %v7205
    %v7207 = vand.u32 %v4573, 4294901760
    %7208 = vmatpush.msra.mxu0 %v7207
    %v7209 = vand.u32 %v4572, 4294901760
    %7210 = vmatpush.msra.mxu0 %v7209
    %v7211 = vand.u32 %v4571, 4294901760
    %7212 = vmatpush.msra.mxu0 %v7211
    %v7213 = vand.u32 %v4570, 4294901760
    %7214 = vmatpush.msra.mxu0 %v7213
    %v7215 = vand.u32 %v4569, 4294901760
    %7216 = vmatpush.msra.mxu0 %v7215
    %v7217 = vand.u32 %v4568, 4294901760
    %7218 = vmatpush.msra.mxu0 %v7217
    %v7219 = vand.u32 %v204, 4294901760
    %7220 = vmatmul.f32.gmra.mxu0 %v7219
    %v7221 = vpop.f32.mrf.mxu0
    %v7222 = vadd.f32 %v7061, %v7221
    %v7223 = vand.u32 %v206, 4294901760
    %7224 = vmatmul.f32.gmra.mxu0 %v7223
    %v7225 = vpop.f32.mrf.mxu0
    %v7226 = vadd.f32 %v7065, %v7225
    %v7227 = vand.u32 %v208, 4294901760
    %7228 = vmatmul.f32.gmra.mxu0 %v7227
    %v7229 = vpop.f32.mrf.mxu0
    %v7230 = vadd.f32 %v7069, %v7229
    %v7231 = vand.u32 %v210, 4294901760
    %7232 = vmatmul.f32.gmra.mxu0 %v7231
    %v7233 = vpop.f32.mrf.mxu0
    %v7234 = vadd.f32 %v7073, %v7233
    %v7235 = vand.u32 %v212, 4294901760
    %7236 = vmatmul.f32.gmra.mxu0 %v7235
    %v7237 = vpop.f32.mrf.mxu0
    %v7238 = vadd.f32 %v7077, %v7237
    %v7239 = vand.u32 %v214, 4294901760
    %7240 = vmatmul.f32.gmra.mxu0 %v7239
    %v7241 = vpop.f32.mrf.mxu0
    %v7242 = vadd.f32 %v7081, %v7241
    %v7243 = vand.u32 %v216, 4294901760
    %7244 = vmatmul.f32.gmra.mxu0 %v7243
    %v7245 = vpop.f32.mrf.mxu0
    %v7246 = vadd.f32 %v7085, %v7245
    %v7247 = vand.u32 %v218, 4294901760
    %7248 = vmatmul.f32.gmra.mxu0 %v7247
    %v7249 = vpop.f32.mrf.mxu0
    %v7250 = vadd.f32 %v7089, %v7249
    %v7251 = vand.u32 %v220, 4294901760
    %7252 = vmatmul.f32.gmra.mxu0 %v7251
    %v7253 = vpop.f32.mrf.mxu0
    %v7254 = vadd.f32 %v7093, %v7253
    %v7255 = vand.u32 %v222, 4294901760
    %7256 = vmatmul.f32.gmra.mxu0 %v7255
    %v7257 = vpop.f32.mrf.mxu0
    %v7258 = vadd.f32 %v7097, %v7257
    %v7259 = vand.u32 %v224, 4294901760
    %7260 = vmatmul.f32.gmra.mxu0 %v7259
    %v7261 = vpop.f32.mrf.mxu0
    %v7262 = vadd.f32 %v7101, %v7261
    %v7263 = vand.u32 %v226, 4294901760
    %7264 = vmatmul.f32.gmra.mxu0 %v7263
    %v7265 = vpop.f32.mrf.mxu0
    %v7266 = vadd.f32 %v7105, %v7265
    %v7267 = vand.u32 %v228, 4294901760
    %7268 = vmatmul.f32.gmra.mxu0 %v7267
    %v7269 = vpop.f32.mrf.mxu0
    %v7270 = vadd.f32 %v7109, %v7269
    %v7271 = vand.u32 %v230, 4294901760
    %7272 = vmatmul.f32.gmra.mxu0 %v7271
    %v7273 = vpop.f32.mrf.mxu0
    %v7274 = vadd.f32 %v7113, %v7273
    %v7275 = vand.u32 %v232, 4294901760
    %7276 = vmatmul.f32.gmra.mxu0 %v7275
    %v7277 = vpop.f32.mrf.mxu0
    %v7278 = vadd.f32 %v7117, %v7277
    %v7279 = vand.u32 %v234, 4294901760
    %7280 = vmatmul.f32.gmra.mxu0 %v7279
    %v7281 = vpop.f32.mrf.mxu0
    %v7282 = vadd.f32 %v7121, %v7281
    %v7283 = vand.u32 %v236, 4294901760
    %7284 = vmatmul.f32.gmra.mxu0 %v7283
    %v7285 = vpop.f32.mrf.mxu0
    %v7286 = vadd.f32 %v7125, %v7285
    %v7287 = vand.u32 %v238, 4294901760
    %7288 = vmatmul.f32.gmra.mxu0 %v7287
    %v7289 = vpop.f32.mrf.mxu0
    %v7290 = vadd.f32 %v7129, %v7289
    %v7291 = vand.u32 %v240, 4294901760
    %7292 = vmatmul.f32.gmra.mxu0 %v7291
    %v7293 = vpop.f32.mrf.mxu0
    %v7294 = vadd.f32 %v7133, %v7293
    %v7295 = vand.u32 %v242, 4294901760
    %7296 = vmatmul.f32.gmra.mxu0 %v7295
    %v7297 = vpop.f32.mrf.mxu0
    %v7298 = vadd.f32 %v7137, %v7297
    %v7299 = vand.u32 %v244, 4294901760
    %7300 = vmatmul.f32.gmra.mxu0 %v7299
    %v7301 = vpop.f32.mrf.mxu0
    %v7302 = vadd.f32 %v7141, %v7301
    %v7303 = vand.u32 %v246, 4294901760
    %7304 = vmatmul.f32.gmra.mxu0 %v7303
    %v7305 = vpop.f32.mrf.mxu0
    %v7306 = vadd.f32 %v7145, %v7305
    %v7307 = vand.u32 %v248, 4294901760
    %7308 = vmatmul.f32.gmra.mxu0 %v7307
    %v7309 = vpop.f32.mrf.mxu0
    %v7310 = vadd.f32 %v7149, %v7309
    %v7311 = vand.u32 %v250, 4294901760
    %7312 = vmatmul.f32.gmra.mxu0 %v7311
    %v7313 = vpop.f32.mrf.mxu0
    %v7314 = vadd.f32 %v7153, %v7313
    %v7315 = vand.u32 %v252, 4294901760
    %7316 = vmatmul.f32.gmra.mxu0 %v7315
    %v7317 = vpop.f32.mrf.mxu0
    %v7318 = vadd.f32 %v7157, %v7317
    %v7319 = vand.u32 %v254, 4294901760
    %7320 = vmatmul.f32.gmra.mxu0 %v7319
    %v7321 = vpop.f32.mrf.mxu0
    %v7322 = vadd.f32 %v7161, %v7321
    %v7323 = vand.u32 %v256, 4294901760
    %7324 = vmatmul.f32.gmra.mxu0 %v7323
    %v7325 = vpop.f32.mrf.mxu0
    %v7326 = vadd.f32 %v7165, %v7325
    %v7327 = vand.u32 %v258, 4294901760
    %7328 = vmatmul.f32.gmra.mxu0 %v7327
    %v7329 = vpop.f32.mrf.mxu0
    %v7330 = vadd.f32 %v7169, %v7329
    %v7331 = vand.u32 %v260, 4294901760
    %7332 = vmatmul.f32.gmra.mxu0 %v7331
    %v7333 = vpop.f32.mrf.mxu0
    %v7334 = vadd.f32 %v7173, %v7333
    %v7335 = vand.u32 %v262, 4294901760
    %7336 = vmatmul.f32.gmra.mxu0 %v7335
    %v7337 = vpop.f32.mrf.mxu0
    %v7338 = vadd.f32 %v7177, %v7337
    %v7339 = vand.u32 %v264, 4294901760
    %7340 = vmatmul.f32.gmra.mxu0 %v7339
    %v7341 = vpop.f32.mrf.mxu0
    %v7342 = vadd.f32 %v7181, %v7341
    %v7343 = vand.u32 %v266, 4294901760
    %7344 = vmatmul.f32.gmra.mxu0 %v7343
    %v7345 = vpop.f32.mrf.mxu0
    %v7346 = vadd.f32 %v7185, %v7345
    %7347 = vdwg.mxu0
    %v7348 = vmax.f32 %v7222, 0.0
    %v7349 = vmax.f32 %v7226, 0.0
    %v7350 = vmax.f32 %v7230, 0.0
    %v7351 = vmax.f32 %v7234, 0.0
    %v7352 = vmax.f32 %v7238, 0.0
    %v7353 = vmax.f32 %v7242, 0.0
    %v7354 = vmax.f32 %v7246, 0.0
    %v7355 = vmax.f32 %v7250, 0.0
    %v7356 = vmax.f32 %v7254, 0.0
    %v7357 = vmax.f32 %v7258, 0.0
    %v7358 = vmax.f32 %v7262, 0.0
    %v7359 = vmax.f32 %v7266, 0.0
    %v7360 = vmax.f32 %v7270, 0.0
    %v7361 = vmax.f32 %v7274, 0.0
    %v7362 = vmax.f32 %v7278, 0.0
    %v7363 = vmax.f32 %v7282, 0.0
    %v7364 = vmax.f32 %v7286, 0.0
    %v7365 = vmax.f32 %v7290, 0.0
    %v7366 = vmax.f32 %v7294, 0.0
    %v7367 = vmax.f32 %v7298, 0.0
    %v7368 = vmax.f32 %v7302, 0.0
    %v7369 = vmax.f32 %v7306, 0.0
    %v7370 = vmax.f32 %v7310, 0.0
    %v7371 = vmax.f32 %v7314, 0.0
    %v7372 = vmax.f32 %v7318, 0.0
    %v7373 = vmax.f32 %v7322, 0.0
    %v7374 = vmax.f32 %v7326, 0.0
    %v7375 = vmax.f32 %v7330, 0.0
    %v7376 = vmax.f32 %v7334, 0.0
    %v7377 = vmax.f32 %v7338, 0.0
    %v7378 = vmax.f32 %v7342, 0.0
    %v7379 = vmax.f32 %v7346, 0.0
    %v7380 = vstv %s42
    %v7381 = vand.u32 %v7363, 4294901760
    %7382 = vmatpush.msra.mxu0 %v7381
    %v7383 = vand.u32 %v7362, 4294901760
    %7384 = vmatpush.msra.mxu0 %v7383
    %v7385 = vand.u32 %v7361, 4294901760
    %7386 = vmatpush.msra.mxu0 %v7385
    %v7387 = vand.u32 %v7360, 4294901760
    %7388 = vmatpush.msra.mxu0 %v7387
    %v7389 = vand.u32 %v7359, 4294901760
    %7390 = vmatpush.msra.mxu0 %v7389
    %v7391 = vand.u32 %v7358, 4294901760
    %7392 = vmatpush.msra.mxu0 %v7391
    %v7393 = vand.u32 %v7357, 4294901760
    %7394 = vmatpush.msra.mxu0 %v7393
    %v7395 = vand.u32 %v7356, 4294901760
    %7396 = vmatpush.msra.mxu0 %v7395
    %v7397 = vand.u32 %v7355, 4294901760
    %7398 = vmatpush.msra.mxu0 %v7397
    %v7399 = vand.u32 %v7354, 4294901760
    %7400 = vmatpush.msra.mxu0 %v7399
    %v7401 = vand.u32 %v7353, 4294901760
    %7402 = vmatpush.msra.mxu0 %v7401
    %v7403 = vand.u32 %v7352, 4294901760
    %7404 = vmatpush.msra.mxu0 %v7403
    %v7405 = vand.u32 %v7351, 4294901760
    %7406 = vmatpush.msra.mxu0 %v7405
    %v7407 = vand.u32 %v7350, 4294901760
    %7408 = vmatpush.msra.mxu0 %v7407
    %v7409 = vand.u32 %v7349, 4294901760
    %7410 = vmatpush.msra.mxu0 %v7409
    %v7411 = vand.u32 %v7348, 4294901760
    %7412 = vmatpush.msra.mxu0 %v7411
    %v7413 = vand.u32 %v299, 4294901760
    %v7414 = vsub.f32 %v299, %v7413
    %v7415 = vand.u32 %v7414, 4294901760
    %v7416 = vsub.f32 %v7414, %v7415
    %v7417 = vand.u32 %v7416, 4294901760
    %7418 = vmatmul.f32.gmra.mxu0 %v7417
    %v7419 = vpop.f32.mrf.mxu0
    %v7420 = vadd.f32 %v7380, %v7419
    %7421 = vdwg.mxu0
    %v7422 = vand.u32 %v7363, 4294901760
    %v7423 = vsub.f32 %v7363, %v7422
    %v7424 = vand.u32 %v7423, 4294901760
    %v7425 = vsub.f32 %v7423, %v7424
    %v7426 = vand.u32 %v7425, 4294901760
    %7427 = vmatpush.msra.mxu0 %v7426
    %v7428 = vand.u32 %v7362, 4294901760
    %v7429 = vsub.f32 %v7362, %v7428
    %v7430 = vand.u32 %v7429, 4294901760
    %v7431 = vsub.f32 %v7429, %v7430
    %v7432 = vand.u32 %v7431, 4294901760
    %7433 = vmatpush.msra.mxu0 %v7432
    %v7434 = vand.u32 %v7361, 4294901760
    %v7435 = vsub.f32 %v7361, %v7434
    %v7436 = vand.u32 %v7435, 4294901760
    %v7437 = vsub.f32 %v7435, %v7436
    %v7438 = vand.u32 %v7437, 4294901760
    %7439 = vmatpush.msra.mxu0 %v7438
    %v7440 = vand.u32 %v7360, 4294901760
    %v7441 = vsub.f32 %v7360, %v7440
    %v7442 = vand.u32 %v7441, 4294901760
    %v7443 = vsub.f32 %v7441, %v7442
    %v7444 = vand.u32 %v7443, 4294901760
    %7445 = vmatpush.msra.mxu0 %v7444
    %v7446 = vand.u32 %v7359, 4294901760
    %v7447 = vsub.f32 %v7359, %v7446
    %v7448 = vand.u32 %v7447, 4294901760
    %v7449 = vsub.f32 %v7447, %v7448
    %v7450 = vand.u32 %v7449, 4294901760
    %7451 = vmatpush.msra.mxu0 %v7450
    %v7452 = vand.u32 %v7358, 4294901760
    %v7453 = vsub.f32 %v7358, %v7452
    %v7454 = vand.u32 %v7453, 4294901760
    %v7455 = vsub.f32 %v7453, %v7454
    %v7456 = vand.u32 %v7455, 4294901760
    %7457 = vmatpush.msra.mxu0 %v7456
    %v7458 = vand.u32 %v7357, 4294901760
    %v7459 = vsub.f32 %v7357, %v7458
    %v7460 = vand.u32 %v7459, 4294901760
    %v7461 = vsub.f32 %v7459, %v7460
    %v7462 = vand.u32 %v7461, 4294901760
    %7463 = vmatpush.msra.mxu0 %v7462
    %v7464 = vand.u32 %v7356, 4294901760
    %v7465 = vsub.f32 %v7356, %v7464
    %v7466 = vand.u32 %v7465, 4294901760
    %v7467 = vsub.f32 %v7465, %v7466
    %v7468 = vand.u32 %v7467, 4294901760
    %7469 = vmatpush.msra.mxu0 %v7468
    %v7470 = vand.u32 %v7355, 4294901760
    %v7471 = vsub.f32 %v7355, %v7470
    %v7472 = vand.u32 %v7471, 4294901760
    %v7473 = vsub.f32 %v7471, %v7472
    %v7474 = vand.u32 %v7473, 4294901760
    %7475 = vmatpush.msra.mxu0 %v7474
    %v7476 = vand.u32 %v7354, 4294901760
    %v7477 = vsub.f32 %v7354, %v7476
    %v7478 = vand.u32 %v7477, 4294901760
    %v7479 = vsub.f32 %v7477, %v7478
    %v7480 = vand.u32 %v7479, 4294901760
    %7481 = vmatpush.msra.mxu0 %v7480
    %v7482 = vand.u32 %v7353, 4294901760
    %v7483 = vsub.f32 %v7353, %v7482
    %v7484 = vand.u32 %v7483, 4294901760
    %v7485 = vsub.f32 %v7483, %v7484
    %v7486 = vand.u32 %v7485, 4294901760
    %7487 = vmatpush.msra.mxu0 %v7486
    %v7488 = vand.u32 %v7352, 4294901760
    %v7489 = vsub.f32 %v7352, %v7488
    %v7490 = vand.u32 %v7489, 4294901760
    %v7491 = vsub.f32 %v7489, %v7490
    %v7492 = vand.u32 %v7491, 4294901760
    %7493 = vmatpush.msra.mxu0 %v7492
    %v7494 = vand.u32 %v7351, 4294901760
    %v7495 = vsub.f32 %v7351, %v7494
    %v7496 = vand.u32 %v7495, 4294901760
    %v7497 = vsub.f32 %v7495, %v7496
    %v7498 = vand.u32 %v7497, 4294901760
    %7499 = vmatpush.msra.mxu0 %v7498
    %v7500 = vand.u32 %v7350, 4294901760
    %v7501 = vsub.f32 %v7350, %v7500
    %v7502 = vand.u32 %v7501, 4294901760
    %v7503 = vsub.f32 %v7501, %v7502
    %v7504 = vand.u32 %v7503, 4294901760
    %7505 = vmatpush.msra.mxu0 %v7504
    %v7506 = vand.u32 %v7349, 4294901760
    %v7507 = vsub.f32 %v7349, %v7506
    %v7508 = vand.u32 %v7507, 4294901760
    %v7509 = vsub.f32 %v7507, %v7508
    %v7510 = vand.u32 %v7509, 4294901760
    %7511 = vmatpush.msra.mxu0 %v7510
    %v7512 = vand.u32 %v7348, 4294901760
    %v7513 = vsub.f32 %v7348, %v7512
    %v7514 = vand.u32 %v7513, 4294901760
    %v7515 = vsub.f32 %v7513, %v7514
    %v7516 = vand.u32 %v7515, 4294901760
    %7517 = vmatpush.msra.mxu0 %v7516
    %v7518 = vand.u32 %v299, 4294901760
    %7519 = vmatmul.f32.gmra.mxu0 %v7518
    %v7520 = vpop.f32.mrf.mxu0
    %v7521 = vadd.f32 %v7420, %v7520
    %7522 = vdwg.mxu0
    %v7523 = vand.u32 %v7363, 4294901760
    %v7524 = vsub.f32 %v7363, %v7523
    %7525 = vmatpush.msra.mxu0 %v7524
    %v7526 = vand.u32 %v7362, 4294901760
    %v7527 = vsub.f32 %v7362, %v7526
    %7528 = vmatpush.msra.mxu0 %v7527
    %v7529 = vand.u32 %v7361, 4294901760
    %v7530 = vsub.f32 %v7361, %v7529
    %7531 = vmatpush.msra.mxu0 %v7530
    %v7532 = vand.u32 %v7360, 4294901760
    %v7533 = vsub.f32 %v7360, %v7532
    %7534 = vmatpush.msra.mxu0 %v7533
    %v7535 = vand.u32 %v7359, 4294901760
    %v7536 = vsub.f32 %v7359, %v7535
    %7537 = vmatpush.msra.mxu0 %v7536
    %v7538 = vand.u32 %v7358, 4294901760
    %v7539 = vsub.f32 %v7358, %v7538
    %7540 = vmatpush.msra.mxu0 %v7539
    %v7541 = vand.u32 %v7357, 4294901760
    %v7542 = vsub.f32 %v7357, %v7541
    %7543 = vmatpush.msra.mxu0 %v7542
    %v7544 = vand.u32 %v7356, 4294901760
    %v7545 = vsub.f32 %v7356, %v7544
    %7546 = vmatpush.msra.mxu0 %v7545
    %v7547 = vand.u32 %v7355, 4294901760
    %v7548 = vsub.f32 %v7355, %v7547
    %7549 = vmatpush.msra.mxu0 %v7548
    %v7550 = vand.u32 %v7354, 4294901760
    %v7551 = vsub.f32 %v7354, %v7550
    %7552 = vmatpush.msra.mxu0 %v7551
    %v7553 = vand.u32 %v7353, 4294901760
    %v7554 = vsub.f32 %v7353, %v7553
    %7555 = vmatpush.msra.mxu0 %v7554
    %v7556 = vand.u32 %v7352, 4294901760
    %v7557 = vsub.f32 %v7352, %v7556
    %7558 = vmatpush.msra.mxu0 %v7557
    %v7559 = vand.u32 %v7351, 4294901760
    %v7560 = vsub.f32 %v7351, %v7559
    %7561 = vmatpush.msra.mxu0 %v7560
    %v7562 = vand.u32 %v7350, 4294901760
    %v7563 = vsub.f32 %v7350, %v7562
    %7564 = vmatpush.msra.mxu0 %v7563
    %v7565 = vand.u32 %v7349, 4294901760
    %v7566 = vsub.f32 %v7349, %v7565
    %7567 = vmatpush.msra.mxu0 %v7566
    %v7568 = vand.u32 %v7348, 4294901760
    %v7569 = vsub.f32 %v7348, %v7568
    %7570 = vmatpush.msra.mxu0 %v7569
    %v7571 = vand.u32 %v299, 4294901760
    %v7572 = vsub.f32 %v299, %v7571
    %7573 = vmatmul.f32.gmra.mxu0 %v7572
    %v7574 = vpop.f32.mrf.mxu0
    %v7575 = vadd.f32 %v7521, %v7574
    %7576 = vdwg.mxu0
    %v7577 = vand.u32 %v7363, 4294901760
    %7578 = vmatpush.msra.mxu0 %v7577
    %v7579 = vand.u32 %v7362, 4294901760
    %7580 = vmatpush.msra.mxu0 %v7579
    %v7581 = vand.u32 %v7361, 4294901760
    %7582 = vmatpush.msra.mxu0 %v7581
    %v7583 = vand.u32 %v7360, 4294901760
    %7584 = vmatpush.msra.mxu0 %v7583
    %v7585 = vand.u32 %v7359, 4294901760
    %7586 = vmatpush.msra.mxu0 %v7585
    %v7587 = vand.u32 %v7358, 4294901760
    %7588 = vmatpush.msra.mxu0 %v7587
    %v7589 = vand.u32 %v7357, 4294901760
    %7590 = vmatpush.msra.mxu0 %v7589
    %v7591 = vand.u32 %v7356, 4294901760
    %7592 = vmatpush.msra.mxu0 %v7591
    %v7593 = vand.u32 %v7355, 4294901760
    %7594 = vmatpush.msra.mxu0 %v7593
    %v7595 = vand.u32 %v7354, 4294901760
    %7596 = vmatpush.msra.mxu0 %v7595
    %v7597 = vand.u32 %v7353, 4294901760
    %7598 = vmatpush.msra.mxu0 %v7597
    %v7599 = vand.u32 %v7352, 4294901760
    %7600 = vmatpush.msra.mxu0 %v7599
    %v7601 = vand.u32 %v7351, 4294901760
    %7602 = vmatpush.msra.mxu0 %v7601
    %v7603 = vand.u32 %v7350, 4294901760
    %7604 = vmatpush.msra.mxu0 %v7603
    %v7605 = vand.u32 %v7349, 4294901760
    %7606 = vmatpush.msra.mxu0 %v7605
    %v7607 = vand.u32 %v7348, 4294901760
    %7608 = vmatpush.msra.mxu0 %v7607
    %v7609 = vand.u32 %v299, 4294901760
    %v7610 = vsub.f32 %v299, %v7609
    %v7611 = vand.u32 %v7610, 4294901760
    %7612 = vmatmul.f32.gmra.mxu0 %v7611
    %v7613 = vpop.f32.mrf.mxu0
    %v7614 = vadd.f32 %v7575, %v7613
    %7615 = vdwg.mxu0
    %v7616 = vand.u32 %v7363, 4294901760
    %v7617 = vsub.f32 %v7363, %v7616
    %v7618 = vand.u32 %v7617, 4294901760
    %7619 = vmatpush.msra.mxu0 %v7618
    %v7620 = vand.u32 %v7362, 4294901760
    %v7621 = vsub.f32 %v7362, %v7620
    %v7622 = vand.u32 %v7621, 4294901760
    %7623 = vmatpush.msra.mxu0 %v7622
    %v7624 = vand.u32 %v7361, 4294901760
    %v7625 = vsub.f32 %v7361, %v7624
    %v7626 = vand.u32 %v7625, 4294901760
    %7627 = vmatpush.msra.mxu0 %v7626
    %v7628 = vand.u32 %v7360, 4294901760
    %v7629 = vsub.f32 %v7360, %v7628
    %v7630 = vand.u32 %v7629, 4294901760
    %7631 = vmatpush.msra.mxu0 %v7630
    %v7632 = vand.u32 %v7359, 4294901760
    %v7633 = vsub.f32 %v7359, %v7632
    %v7634 = vand.u32 %v7633, 4294901760
    %7635 = vmatpush.msra.mxu0 %v7634
    %v7636 = vand.u32 %v7358, 4294901760
    %v7637 = vsub.f32 %v7358, %v7636
    %v7638 = vand.u32 %v7637, 4294901760
    %7639 = vmatpush.msra.mxu0 %v7638
    %v7640 = vand.u32 %v7357, 4294901760
    %v7641 = vsub.f32 %v7357, %v7640
    %v7642 = vand.u32 %v7641, 4294901760
    %7643 = vmatpush.msra.mxu0 %v7642
    %v7644 = vand.u32 %v7356, 4294901760
    %v7645 = vsub.f32 %v7356, %v7644
    %v7646 = vand.u32 %v7645, 4294901760
    %7647 = vmatpush.msra.mxu0 %v7646
    %v7648 = vand.u32 %v7355, 4294901760
    %v7649 = vsub.f32 %v7355, %v7648
    %v7650 = vand.u32 %v7649, 4294901760
    %7651 = vmatpush.msra.mxu0 %v7650
    %v7652 = vand.u32 %v7354, 4294901760
    %v7653 = vsub.f32 %v7354, %v7652
    %v7654 = vand.u32 %v7653, 4294901760
    %7655 = vmatpush.msra.mxu0 %v7654
    %v7656 = vand.u32 %v7353, 4294901760
    %v7657 = vsub.f32 %v7353, %v7656
    %v7658 = vand.u32 %v7657, 4294901760
    %7659 = vmatpush.msra.mxu0 %v7658
    %v7660 = vand.u32 %v7352, 4294901760
    %v7661 = vsub.f32 %v7352, %v7660
    %v7662 = vand.u32 %v7661, 4294901760
    %7663 = vmatpush.msra.mxu0 %v7662
    %v7664 = vand.u32 %v7351, 4294901760
    %v7665 = vsub.f32 %v7351, %v7664
    %v7666 = vand.u32 %v7665, 4294901760
    %7667 = vmatpush.msra.mxu0 %v7666
    %v7668 = vand.u32 %v7350, 4294901760
    %v7669 = vsub.f32 %v7350, %v7668
    %v7670 = vand.u32 %v7669, 4294901760
    %7671 = vmatpush.msra.mxu0 %v7670
    %v7672 = vand.u32 %v7349, 4294901760
    %v7673 = vsub.f32 %v7349, %v7672
    %v7674 = vand.u32 %v7673, 4294901760
    %7675 = vmatpush.msra.mxu0 %v7674
    %v7676 = vand.u32 %v7348, 4294901760
    %v7677 = vsub.f32 %v7348, %v7676
    %v7678 = vand.u32 %v7677, 4294901760
    %7679 = vmatpush.msra.mxu0 %v7678
    %v7680 = vand.u32 %v299, 4294901760
    %7681 = vmatmul.f32.gmra.mxu0 %v7680
    %v7682 = vpop.f32.mrf.mxu0
    %v7683 = vadd.f32 %v7614, %v7682
    %7684 = vdwg.mxu0
    %v7685 = vand.u32 %v7363, 4294901760
    %7686 = vmatpush.msra.mxu0 %v7685
    %v7687 = vand.u32 %v7362, 4294901760
    %7688 = vmatpush.msra.mxu0 %v7687
    %v7689 = vand.u32 %v7361, 4294901760
    %7690 = vmatpush.msra.mxu0 %v7689
    %v7691 = vand.u32 %v7360, 4294901760
    %7692 = vmatpush.msra.mxu0 %v7691
    %v7693 = vand.u32 %v7359, 4294901760
    %7694 = vmatpush.msra.mxu0 %v7693
    %v7695 = vand.u32 %v7358, 4294901760
    %7696 = vmatpush.msra.mxu0 %v7695
    %v7697 = vand.u32 %v7357, 4294901760
    %7698 = vmatpush.msra.mxu0 %v7697
    %v7699 = vand.u32 %v7356, 4294901760
    %7700 = vmatpush.msra.mxu0 %v7699
    %v7701 = vand.u32 %v7355, 4294901760
    %7702 = vmatpush.msra.mxu0 %v7701
    %v7703 = vand.u32 %v7354, 4294901760
    %7704 = vmatpush.msra.mxu0 %v7703
    %v7705 = vand.u32 %v7353, 4294901760
    %7706 = vmatpush.msra.mxu0 %v7705
    %v7707 = vand.u32 %v7352, 4294901760
    %7708 = vmatpush.msra.mxu0 %v7707
    %v7709 = vand.u32 %v7351, 4294901760
    %7710 = vmatpush.msra.mxu0 %v7709
    %v7711 = vand.u32 %v7350, 4294901760
    %7712 = vmatpush.msra.mxu0 %v7711
    %v7713 = vand.u32 %v7349, 4294901760
    %7714 = vmatpush.msra.mxu0 %v7713
    %v7715 = vand.u32 %v7348, 4294901760
    %7716 = vmatpush.msra.mxu0 %v7715
    %v7717 = vand.u32 %v299, 4294901760
    %7718 = vmatmul.f32.gmra.mxu0 %v7717
    %v7719 = vpop.f32.mrf.mxu0
    %v7720 = vadd.f32 %v7683, %v7719
    %7721 = vdwg.mxu0
    %v7722 = vand.u32 %v7379, 4294901760
    %7723 = vmatpush.msra.mxu0 %v7722
    %v7724 = vand.u32 %v7378, 4294901760
    %7725 = vmatpush.msra.mxu0 %v7724
    %v7726 = vand.u32 %v7377, 4294901760
    %7727 = vmatpush.msra.mxu0 %v7726
    %v7728 = vand.u32 %v7376, 4294901760
    %7729 = vmatpush.msra.mxu0 %v7728
    %v7730 = vand.u32 %v7375, 4294901760
    %7731 = vmatpush.msra.mxu0 %v7730
    %v7732 = vand.u32 %v7374, 4294901760
    %7733 = vmatpush.msra.mxu0 %v7732
    %v7734 = vand.u32 %v7373, 4294901760
    %7735 = vmatpush.msra.mxu0 %v7734
    %v7736 = vand.u32 %v7372, 4294901760
    %7737 = vmatpush.msra.mxu0 %v7736
    %v7738 = vand.u32 %v7371, 4294901760
    %7739 = vmatpush.msra.mxu0 %v7738
    %v7740 = vand.u32 %v7370, 4294901760
    %7741 = vmatpush.msra.mxu0 %v7740
    %v7742 = vand.u32 %v7369, 4294901760
    %7743 = vmatpush.msra.mxu0 %v7742
    %v7744 = vand.u32 %v7368, 4294901760
    %7745 = vmatpush.msra.mxu0 %v7744
    %v7746 = vand.u32 %v7367, 4294901760
    %7747 = vmatpush.msra.mxu0 %v7746
    %v7748 = vand.u32 %v7366, 4294901760
    %7749 = vmatpush.msra.mxu0 %v7748
    %v7750 = vand.u32 %v7365, 4294901760
    %7751 = vmatpush.msra.mxu0 %v7750
    %v7752 = vand.u32 %v7364, 4294901760
    %7753 = vmatpush.msra.mxu0 %v7752
    %v7754 = vand.u32 %v300, 4294901760
    %v7755 = vsub.f32 %v300, %v7754
    %v7756 = vand.u32 %v7755, 4294901760
    %v7757 = vsub.f32 %v7755, %v7756
    %v7758 = vand.u32 %v7757, 4294901760
    %7759 = vmatmul.f32.gmra.mxu0 %v7758
    %v7760 = vpop.f32.mrf.mxu0
    %v7761 = vadd.f32 %v7720, %v7760
    %7762 = vdwg.mxu0
    %v7763 = vand.u32 %v7379, 4294901760
    %v7764 = vsub.f32 %v7379, %v7763
    %v7765 = vand.u32 %v7764, 4294901760
    %v7766 = vsub.f32 %v7764, %v7765
    %v7767 = vand.u32 %v7766, 4294901760
    %7768 = vmatpush.msra.mxu0 %v7767
    %v7769 = vand.u32 %v7378, 4294901760
    %v7770 = vsub.f32 %v7378, %v7769
    %v7771 = vand.u32 %v7770, 4294901760
    %v7772 = vsub.f32 %v7770, %v7771
    %v7773 = vand.u32 %v7772, 4294901760
    %7774 = vmatpush.msra.mxu0 %v7773
    %v7775 = vand.u32 %v7377, 4294901760
    %v7776 = vsub.f32 %v7377, %v7775
    %v7777 = vand.u32 %v7776, 4294901760
    %v7778 = vsub.f32 %v7776, %v7777
    %v7779 = vand.u32 %v7778, 4294901760
    %7780 = vmatpush.msra.mxu0 %v7779
    %v7781 = vand.u32 %v7376, 4294901760
    %v7782 = vsub.f32 %v7376, %v7781
    %v7783 = vand.u32 %v7782, 4294901760
    %v7784 = vsub.f32 %v7782, %v7783
    %v7785 = vand.u32 %v7784, 4294901760
    %7786 = vmatpush.msra.mxu0 %v7785
    %v7787 = vand.u32 %v7375, 4294901760
    %v7788 = vsub.f32 %v7375, %v7787
    %v7789 = vand.u32 %v7788, 4294901760
    %v7790 = vsub.f32 %v7788, %v7789
    %v7791 = vand.u32 %v7790, 4294901760
    %7792 = vmatpush.msra.mxu0 %v7791
    %v7793 = vand.u32 %v7374, 4294901760
    %v7794 = vsub.f32 %v7374, %v7793
    %v7795 = vand.u32 %v7794, 4294901760
    %v7796 = vsub.f32 %v7794, %v7795
    %v7797 = vand.u32 %v7796, 4294901760
    %7798 = vmatpush.msra.mxu0 %v7797
    %v7799 = vand.u32 %v7373, 4294901760
    %v7800 = vsub.f32 %v7373, %v7799
    %v7801 = vand.u32 %v7800, 4294901760
    %v7802 = vsub.f32 %v7800, %v7801
    %v7803 = vand.u32 %v7802, 4294901760
    %7804 = vmatpush.msra.mxu0 %v7803
    %v7805 = vand.u32 %v7372, 4294901760
    %v7806 = vsub.f32 %v7372, %v7805
    %v7807 = vand.u32 %v7806, 4294901760
    %v7808 = vsub.f32 %v7806, %v7807
    %v7809 = vand.u32 %v7808, 4294901760
    %7810 = vmatpush.msra.mxu0 %v7809
    %v7811 = vand.u32 %v7371, 4294901760
    %v7812 = vsub.f32 %v7371, %v7811
    %v7813 = vand.u32 %v7812, 4294901760
    %v7814 = vsub.f32 %v7812, %v7813
    %v7815 = vand.u32 %v7814, 4294901760
    %7816 = vmatpush.msra.mxu0 %v7815
    %v7817 = vand.u32 %v7370, 4294901760
    %v7818 = vsub.f32 %v7370, %v7817
    %v7819 = vand.u32 %v7818, 4294901760
    %v7820 = vsub.f32 %v7818, %v7819
    %v7821 = vand.u32 %v7820, 4294901760
    %7822 = vmatpush.msra.mxu0 %v7821
    %v7823 = vand.u32 %v7369, 4294901760
    %v7824 = vsub.f32 %v7369, %v7823
    %v7825 = vand.u32 %v7824, 4294901760
    %v7826 = vsub.f32 %v7824, %v7825
    %v7827 = vand.u32 %v7826, 4294901760
    %7828 = vmatpush.msra.mxu0 %v7827
    %v7829 = vand.u32 %v7368, 4294901760
    %v7830 = vsub.f32 %v7368, %v7829
    %v7831 = vand.u32 %v7830, 4294901760
    %v7832 = vsub.f32 %v7830, %v7831
    %v7833 = vand.u32 %v7832, 4294901760
    %7834 = vmatpush.msra.mxu0 %v7833
    %v7835 = vand.u32 %v7367, 4294901760
    %v7836 = vsub.f32 %v7367, %v7835
    %v7837 = vand.u32 %v7836, 4294901760
    %v7838 = vsub.f32 %v7836, %v7837
    %v7839 = vand.u32 %v7838, 4294901760
    %7840 = vmatpush.msra.mxu0 %v7839
    %v7841 = vand.u32 %v7366, 4294901760
    %v7842 = vsub.f32 %v7366, %v7841
    %v7843 = vand.u32 %v7842, 4294901760
    %v7844 = vsub.f32 %v7842, %v7843
    %v7845 = vand.u32 %v7844, 4294901760
    %7846 = vmatpush.msra.mxu0 %v7845
    %v7847 = vand.u32 %v7365, 4294901760
    %v7848 = vsub.f32 %v7365, %v7847
    %v7849 = vand.u32 %v7848, 4294901760
    %v7850 = vsub.f32 %v7848, %v7849
    %v7851 = vand.u32 %v7850, 4294901760
    %7852 = vmatpush.msra.mxu0 %v7851
    %v7853 = vand.u32 %v7364, 4294901760
    %v7854 = vsub.f32 %v7364, %v7853
    %v7855 = vand.u32 %v7854, 4294901760
    %v7856 = vsub.f32 %v7854, %v7855
    %v7857 = vand.u32 %v7856, 4294901760
    %7858 = vmatpush.msra.mxu0 %v7857
    %v7859 = vand.u32 %v300, 4294901760
    %7860 = vmatmul.f32.gmra.mxu0 %v7859
    %v7861 = vpop.f32.mrf.mxu0
    %v7862 = vadd.f32 %v7761, %v7861
    %7863 = vdwg.mxu0
    %v7864 = vand.u32 %v7379, 4294901760
    %v7865 = vsub.f32 %v7379, %v7864
    %7866 = vmatpush.msra.mxu0 %v7865
    %v7867 = vand.u32 %v7378, 4294901760
    %v7868 = vsub.f32 %v7378, %v7867
    %7869 = vmatpush.msra.mxu0 %v7868
    %v7870 = vand.u32 %v7377, 4294901760
    %v7871 = vsub.f32 %v7377, %v7870
    %7872 = vmatpush.msra.mxu0 %v7871
    %v7873 = vand.u32 %v7376, 4294901760
    %v7874 = vsub.f32 %v7376, %v7873
    %7875 = vmatpush.msra.mxu0 %v7874
    %v7876 = vand.u32 %v7375, 4294901760
    %v7877 = vsub.f32 %v7375, %v7876
    %7878 = vmatpush.msra.mxu0 %v7877
    %v7879 = vand.u32 %v7374, 4294901760
    %v7880 = vsub.f32 %v7374, %v7879
    %7881 = vmatpush.msra.mxu0 %v7880
    %v7882 = vand.u32 %v7373, 4294901760
    %v7883 = vsub.f32 %v7373, %v7882
    %7884 = vmatpush.msra.mxu0 %v7883
    %v7885 = vand.u32 %v7372, 4294901760
    %v7886 = vsub.f32 %v7372, %v7885
    %7887 = vmatpush.msra.mxu0 %v7886
    %v7888 = vand.u32 %v7371, 4294901760
    %v7889 = vsub.f32 %v7371, %v7888
    %7890 = vmatpush.msra.mxu0 %v7889
    %v7891 = vand.u32 %v7370, 4294901760
    %v7892 = vsub.f32 %v7370, %v7891
    %7893 = vmatpush.msra.mxu0 %v7892
    %v7894 = vand.u32 %v7369, 4294901760
    %v7895 = vsub.f32 %v7369, %v7894
    %7896 = vmatpush.msra.mxu0 %v7895
    %v7897 = vand.u32 %v7368, 4294901760
    %v7898 = vsub.f32 %v7368, %v7897
    %7899 = vmatpush.msra.mxu0 %v7898
    %v7900 = vand.u32 %v7367, 4294901760
    %v7901 = vsub.f32 %v7367, %v7900
    %7902 = vmatpush.msra.mxu0 %v7901
    %v7903 = vand.u32 %v7366, 4294901760
    %v7904 = vsub.f32 %v7366, %v7903
    %7905 = vmatpush.msra.mxu0 %v7904
    %v7906 = vand.u32 %v7365, 4294901760
    %v7907 = vsub.f32 %v7365, %v7906
    %7908 = vmatpush.msra.mxu0 %v7907
    %v7909 = vand.u32 %v7364, 4294901760
    %v7910 = vsub.f32 %v7364, %v7909
    %7911 = vmatpush.msra.mxu0 %v7910
    %v7912 = vand.u32 %v300, 4294901760
    %v7913 = vsub.f32 %v300, %v7912
    %7914 = vmatmul.f32.gmra.mxu0 %v7913
    %v7915 = vpop.f32.mrf.mxu0
    %v7916 = vadd.f32 %v7862, %v7915
    %7917 = vdwg.mxu0
    %v7918 = vand.u32 %v7379, 4294901760
    %7919 = vmatpush.msra.mxu0 %v7918
    %v7920 = vand.u32 %v7378, 4294901760
    %7921 = vmatpush.msra.mxu0 %v7920
    %v7922 = vand.u32 %v7377, 4294901760
    %7923 = vmatpush.msra.mxu0 %v7922
    %v7924 = vand.u32 %v7376, 4294901760
    %7925 = vmatpush.msra.mxu0 %v7924
    %v7926 = vand.u32 %v7375, 4294901760
    %7927 = vmatpush.msra.mxu0 %v7926
    %v7928 = vand.u32 %v7374, 4294901760
    %7929 = vmatpush.msra.mxu0 %v7928
    %v7930 = vand.u32 %v7373, 4294901760
    %7931 = vmatpush.msra.mxu0 %v7930
    %v7932 = vand.u32 %v7372, 4294901760
    %7933 = vmatpush.msra.mxu0 %v7932
    %v7934 = vand.u32 %v7371, 4294901760
    %7935 = vmatpush.msra.mxu0 %v7934
    %v7936 = vand.u32 %v7370, 4294901760
    %7937 = vmatpush.msra.mxu0 %v7936
    %v7938 = vand.u32 %v7369, 4294901760
    %7939 = vmatpush.msra.mxu0 %v7938
    %v7940 = vand.u32 %v7368, 4294901760
    %7941 = vmatpush.msra.mxu0 %v7940
    %v7942 = vand.u32 %v7367, 4294901760
    %7943 = vmatpush.msra.mxu0 %v7942
    %v7944 = vand.u32 %v7366, 4294901760
    %7945 = vmatpush.msra.mxu0 %v7944
    %v7946 = vand.u32 %v7365, 4294901760
    %7947 = vmatpush.msra.mxu0 %v7946
    %v7948 = vand.u32 %v7364, 4294901760
    %7949 = vmatpush.msra.mxu0 %v7948
    %v7950 = vand.u32 %v300, 4294901760
    %v7951 = vsub.f32 %v300, %v7950
    %v7952 = vand.u32 %v7951, 4294901760
    %7953 = vmatmul.f32.gmra.mxu0 %v7952
    %v7954 = vpop.f32.mrf.mxu0
    %v7955 = vadd.f32 %v7916, %v7954
    %7956 = vdwg.mxu0
    %v7957 = vand.u32 %v7379, 4294901760
    %v7958 = vsub.f32 %v7379, %v7957
    %v7959 = vand.u32 %v7958, 4294901760
    %7960 = vmatpush.msra.mxu0 %v7959
    %v7961 = vand.u32 %v7378, 4294901760
    %v7962 = vsub.f32 %v7378, %v7961
    %v7963 = vand.u32 %v7962, 4294901760
    %7964 = vmatpush.msra.mxu0 %v7963
    %v7965 = vand.u32 %v7377, 4294901760
    %v7966 = vsub.f32 %v7377, %v7965
    %v7967 = vand.u32 %v7966, 4294901760
    %7968 = vmatpush.msra.mxu0 %v7967
    %v7969 = vand.u32 %v7376, 4294901760
    %v7970 = vsub.f32 %v7376, %v7969
    %v7971 = vand.u32 %v7970, 4294901760
    %7972 = vmatpush.msra.mxu0 %v7971
    %v7973 = vand.u32 %v7375, 4294901760
    %v7974 = vsub.f32 %v7375, %v7973
    %v7975 = vand.u32 %v7974, 4294901760
    %7976 = vmatpush.msra.mxu0 %v7975
    %v7977 = vand.u32 %v7374, 4294901760
    %v7978 = vsub.f32 %v7374, %v7977
    %v7979 = vand.u32 %v7978, 4294901760
    %7980 = vmatpush.msra.mxu0 %v7979
    %v7981 = vand.u32 %v7373, 4294901760
    %v7982 = vsub.f32 %v7373, %v7981
    %v7983 = vand.u32 %v7982, 4294901760
    %7984 = vmatpush.msra.mxu0 %v7983
    %v7985 = vand.u32 %v7372, 4294901760
    %v7986 = vsub.f32 %v7372, %v7985
    %v7987 = vand.u32 %v7986, 4294901760
    %7988 = vmatpush.msra.mxu0 %v7987
    %v7989 = vand.u32 %v7371, 4294901760
    %v7990 = vsub.f32 %v7371, %v7989
    %v7991 = vand.u32 %v7990, 4294901760
    %7992 = vmatpush.msra.mxu0 %v7991
    %v7993 = vand.u32 %v7370, 4294901760
    %v7994 = vsub.f32 %v7370, %v7993
    %v7995 = vand.u32 %v7994, 4294901760
    %7996 = vmatpush.msra.mxu0 %v7995
    %v7997 = vand.u32 %v7369, 4294901760
    %v7998 = vsub.f32 %v7369, %v7997
    %v7999 = vand.u32 %v7998, 4294901760
    %8000 = vmatpush.msra.mxu0 %v7999
    %v8001 = vand.u32 %v7368, 4294901760
    %v8002 = vsub.f32 %v7368, %v8001
    %v8003 = vand.u32 %v8002, 4294901760
    %8004 = vmatpush.msra.mxu0 %v8003
    %v8005 = vand.u32 %v7367, 4294901760
    %v8006 = vsub.f32 %v7367, %v8005
    %v8007 = vand.u32 %v8006, 4294901760
    %8008 = vmatpush.msra.mxu0 %v8007
    %v8009 = vand.u32 %v7366, 4294901760
    %v8010 = vsub.f32 %v7366, %v8009
    %v8011 = vand.u32 %v8010, 4294901760
    %8012 = vmatpush.msra.mxu0 %v8011
    %v8013 = vand.u32 %v7365, 4294901760
    %v8014 = vsub.f32 %v7365, %v8013
    %v8015 = vand.u32 %v8014, 4294901760
    %8016 = vmatpush.msra.mxu0 %v8015
    %v8017 = vand.u32 %v7364, 4294901760
    %v8018 = vsub.f32 %v7364, %v8017
    %v8019 = vand.u32 %v8018, 4294901760
    %8020 = vmatpush.msra.mxu0 %v8019
    %v8021 = vand.u32 %v300, 4294901760
    %8022 = vmatmul.f32.gmra.mxu0 %v8021
    %v8023 = vpop.f32.mrf.mxu0
    %v8024 = vadd.f32 %v7955, %v8023
    %8025 = vdwg.mxu0
    %v8026 = vand.u32 %v7379, 4294901760
    %8027 = vmatpush.msra.mxu0 %v8026
    %v8028 = vand.u32 %v7378, 4294901760
    %8029 = vmatpush.msra.mxu0 %v8028
    %v8030 = vand.u32 %v7377, 4294901760
    %8031 = vmatpush.msra.mxu0 %v8030
    %v8032 = vand.u32 %v7376, 4294901760
    %8033 = vmatpush.msra.mxu0 %v8032
    %v8034 = vand.u32 %v7375, 4294901760
    %8035 = vmatpush.msra.mxu0 %v8034
    %v8036 = vand.u32 %v7374, 4294901760
    %8037 = vmatpush.msra.mxu0 %v8036
    %v8038 = vand.u32 %v7373, 4294901760
    %8039 = vmatpush.msra.mxu0 %v8038
    %v8040 = vand.u32 %v7372, 4294901760
    %8041 = vmatpush.msra.mxu0 %v8040
    %v8042 = vand.u32 %v7371, 4294901760
    %8043 = vmatpush.msra.mxu0 %v8042
    %v8044 = vand.u32 %v7370, 4294901760
    %8045 = vmatpush.msra.mxu0 %v8044
    %v8046 = vand.u32 %v7369, 4294901760
    %8047 = vmatpush.msra.mxu0 %v8046
    %v8048 = vand.u32 %v7368, 4294901760
    %8049 = vmatpush.msra.mxu0 %v8048
    %v8050 = vand.u32 %v7367, 4294901760
    %8051 = vmatpush.msra.mxu0 %v8050
    %v8052 = vand.u32 %v7366, 4294901760
    %8053 = vmatpush.msra.mxu0 %v8052
    %v8054 = vand.u32 %v7365, 4294901760
    %8055 = vmatpush.msra.mxu0 %v8054
    %v8056 = vand.u32 %v7364, 4294901760
    %8057 = vmatpush.msra.mxu0 %v8056
    %v8058 = vand.u32 %v300, 4294901760
    %8059 = vmatmul.f32.gmra.mxu0 %v8058
    %v8060 = vpop.f32.mrf.mxu0
    %v8061 = vadd.f32 %v8024, %v8060
    %8062 = vdwg.mxu0
    %8063 = vst [vmem:[#allocation3] sm:$0xff] %v8061
    // Predicated region
    $region38: #{tpu_custom_call.1} parent=1 // pred_check
      _
    $region39: #{tpu_custom_call.1} parent=1 // pred_check_branch
      %8065 = sbr.rel (0) target = $region41
    $region40: #{tpu_custom_call.1} parent=1 // pred_region
      %8067 = vsyncadd [#allocation4], 0
      %s8069 = sshll.u32 [#allocation3], 4
      %s8070 = int_to_ptr.vmem [resolvable:$true] %s8069
      %s8071 = sshll.u32 %s9, 4
      %s8072 = int_to_ptr.hbm [resolvable:$true] %s8071
      %8074 = dma.vmem_to_hbm [thread:$0]  %s8070, 128, %s8072, [#allocation4]
    $region41: #{tpu_custom_call.1} parent=1 // pred_fallthru
      _
    // Predicated region
    $region42: #{tpu_custom_call.1} parent=1 // pred_check
      _
    $region43: #{tpu_custom_call.1} parent=1 // pred_check_branch
      %8076 = sbr.rel (0) target = $region45
    $region44: #{tpu_custom_call.1} parent=1 // pred_region
      %8078 = dma.done [#allocation4], 128
    $region45: #{tpu_custom_call.1} parent=1 // pred_fallthru
      _
    %8079 = vsyncpa [#allocation4], 1

</llo_original>
